<compile_context>
chip_gen: v7x
topology: tpu7x:2x2x1
jax: 0.10.0
libtpu: 0.0.40
codegen_flags: <defaults>
</compile_context>

<pallas_src>
import numpy as np

import jax
import jax.numpy as jnp
from jax import lax
from jax.experimental import pallas as pl
from jax.experimental.pallas import tpu as pltpu

KSIZE = 5
STRIDE = 2


def conv2d_size_out(size, kernel_size=KSIZE, stride=STRIDE):
    return (size - (kernel_size - 1) - 1) // stride + 1


def _round_up(x, m):
    return ((x + m - 1) // m) * m


# ------------------------------ Pallas kernel --------------------------------
def _dqn_kernel(x_ref,
                sg1_ref, bw1_ref, sh1_ref,
                sg2_ref, bw2_ref, sh2_ref,
                sg3_ref, bw3_ref, sh3_ref,
                sgh_ref, wh_ref, bh_ref,
                o_ref):
    """Full DQN forward for one tile of Bt images (grid iterates over tiles).

    Activations are a batch-stacked 2-D row plane  X[b*H_in + h, w*C + c]
    (lane dim padded to a multiple of 128).  Each layer:
        rows_k   = SG[k] @ X                (block-diag row gather, MXU)
        rows_cat = concat_k(rows_k)         (lane concat at 128 boundaries)
        z        = rows_cat @ BW_cat        (one K = ntaps*WinC_pad matmul)
        y        = max(z + shift, 0)        (f32 epilogue; BN scale pre-folded)
    The head is the same pattern with one tap per output row h and no ReLU.
    """

    def layer(x_stack, sg_ref, bw_ref, shift_ref):
        ntaps = sg_ref.shape[0]
        rows = [
            jnp.dot(sg_ref[k], x_stack,
                    preferred_element_type=jnp.float32).astype(jnp.bfloat16)
            for k in range(ntaps)
        ]
        rows_cat = jnp.concatenate(rows, axis=-1)     # (M, ntaps*WinC_pad)
        z = jnp.dot(rows_cat, bw_ref[...], preferred_element_type=jnp.float32)
        return z + shift_ref[...]                     # f32 (v5e-safe) epilogue

    x = x_ref[...]                                                  # (Bt*H, WC_pad)
    y1 = jnp.maximum(layer(x,  sg1_ref, bw1_ref, sh1_ref), 0.0).astype(jnp.bfloat16)
    y2 = jnp.maximum(layer(y1, sg2_ref, bw2_ref, sh2_ref), 0.0).astype(jnp.bfloat16)
    y3 = jnp.maximum(layer(y2, sg3_ref, bw3_ref, sh3_ref), 0.0).astype(jnp.bfloat16)

    q = layer(y3, sgh_ref, wh_ref, bh_ref)            # (Bt, out_pad) f32, no ReLU
    o_ref[0] = q.astype(o_ref.dtype)


# --------------------------- parameter preparation ---------------------------
def _gather_block_diag(h_in, h_out, bt, ntaps, dtype):
    """S[k, b*h_out+oh, b*h_in + STRIDE*oh + k] = 1 (batched 0/1 row gather)."""
    s = np.zeros((ntaps, bt * h_out, bt * h_in), np.float32)
    for k in range(ntaps):
        for b in range(bt):
            for oh in range(h_out):
                s[k, b * h_out + oh, b * h_in + STRIDE * oh + k] = 1.0
    return jnp.asarray(s, dtype)


def _band_weight_cat(w_oihw, scale, w_in, w_out, in_lanes, out_lanes, dtype):
    """BW[kh*in_lanes + (w*IC+ic), ow*OC+oc] = scale[oc]*W[oc,ic,kh,w-2*ow].

    Zero outside the band, zero in padded lanes; kh blocks concatenated along
    the contraction axis so the kh reduction happens inside a single matmul.
    """
    oc, ic, kh_, kw_ = w_oihw.shape
    m = np.zeros((w_in, w_out, kw_), np.float32)
    for ow in range(w_out):
        for kw in range(kw_):
            m[STRIDE * ow + kw, ow, kw] = 1.0
    w_scaled = w_oihw * scale[:, None, None, None]              # fold BN scale
    w_t = jnp.transpose(w_scaled, (2, 3, 1, 0))                 # (kh, kw, ic, oc)
    big = jnp.einsum('wuk,hkio->hwiuo', jnp.asarray(m), w_t)    # (kh,w_in,ic,w_out,oc)
    bw = big.reshape(kh_, w_in * ic, w_out * oc)
    bw = jnp.pad(bw, ((0, 0),
                      (0, in_lanes - w_in * ic),
                      (0, out_lanes - w_out * oc)))
    return bw.reshape(kh_ * in_lanes, out_lanes).astype(dtype)


def _bn_fold(bias, bn, eps=1e-5):
    """Eval-mode BN + conv bias -> per-channel (scale, shift)."""
    gamma, beta, mean, var = bn
    scale = gamma / jnp.sqrt(var + eps)
    shift = (bias - mean) * scale + beta
    return scale, shift


def _tile_shift(shift, w_out, out_lanes):
    sh = jnp.tile(shift, w_out)                            # index ow*OC+oc -> shift[oc]
    sh = jnp.pad(sh, (0, out_lanes - sh.shape[0]))         # 0 in padded lanes
    return sh[None, :].astype(jnp.float32)


def _head_weight(head_w, head_b, oc3, h3, w3, w3c_lanes, out_lanes, dtype):
    """PyTorch NCHW-flatten head -> row-plane order, lane/out padded, h-concat."""
    outputs = head_b.shape[0]
    hw4 = head_w.reshape(outputs, oc3, h3, w3)                         # (o, c, h, w)
    wh = jnp.transpose(hw4, (2, 3, 1, 0)).reshape(h3, w3 * oc3, outputs)
    wh = jnp.pad(wh, ((0, 0),
                      (0, w3c_lanes - w3 * oc3),
                      (0, out_lanes - outputs)))
    wh = wh.reshape(h3 * w3c_lanes, out_lanes).astype(dtype)
    bh = jnp.pad(head_b, (0, out_lanes - outputs)).astype(jnp.float32)[None, :]
    return wh, bh


def _pick_bt(batch, bt_max=8):
    """Images per grid step: amortize step overhead, keep >= 2 steps (v7x TCs)."""
    if batch <= 1:
        return 1
    n_steps = max(2, -(-batch // bt_max))
    return -(-batch // n_steps)


# ------------------------------- forward pass --------------------------------
def dqn_forward(x_nchw, params, bt_max=8):
    B, C, H, W = x_nchw.shape
    H1, W1 = conv2d_size_out(H), conv2d_size_out(W)
    H2, W2 = conv2d_size_out(H1), conv2d_size_out(W1)
    H3, W3 = conv2d_size_out(H2), conv2d_size_out(W2)
    oc1, oc2, oc3 = params["w1"].shape[0], params["w2"].shape[0], params["w3"].shape[0]
    outputs = params["head_b"].shape[0]
    bf16 = jnp.bfloat16

    # Lane / sublane padding: every matmul lane dim is a multiple of 128.
    h_pad = _round_up(H, 8)
    wc0 = _round_up(W * C, 128)
    wc1 = _round_up(W1 * oc1, 128)
    wc2 = _round_up(W2 * oc2, 128)
    wc3 = _round_up(W3 * oc3, 128)
    out_pad = _round_up(outputs, 128)

    # Batch tiling.
    bt = _pick_bt(B, bt_max)
    n_steps = -(-B // bt)
    b_pad = n_steps * bt

    # Batch-stacked row plane X[b*h_pad + h, w*C + c] (zero padded), bf16.
    x_plane = jnp.transpose(x_nchw, (0, 2, 3, 1)).reshape(B, H, W * C)
    x_plane = jnp.pad(x_plane, ((0, b_pad - B), (0, h_pad - H), (0, wc0 - W * C)))
    x_plane = x_plane.reshape(b_pad * h_pad, wc0).astype(bf16)

    # Block-diagonal row-gather matrices (one set per layer + head).
    sg1 = _gather_block_diag(h_pad, H1, bt, KSIZE, bf16)
    sg2 = _gather_block_diag(H1, H2, bt, KSIZE, bf16)
    sg3 = _gather_block_diag(H2, H3, bt, KSIZE, bf16)
    sgh = _gather_block_diag(H3, 1, bt, H3, bf16)      # head: one tap per row

    # Band weights with BN scale folded in; per-plane shifts (bias+BN) in f32.
    sc1, shf1 = _bn_fold(params["b1"], params["bn1"])
    sc2, shf2 = _bn_fold(params["b2"], params["bn2"])
    sc3, shf3 = _bn_fold(params["b3"], params["bn3"])
    bw1 = _band_weight_cat(params["w1"], sc1, W, W1, wc0, wc1, bf16)
    bw2 = _band_weight_cat(params["w2"], sc2, W1, W2, wc1, wc2, bf16)
    bw3 = _band_weight_cat(params["w3"], sc3, W2, W3, wc2, wc3, bf16)
    sh1 = _tile_shift(shf1, W1, wc1)
    sh2 = _tile_shift(shf2, W2, wc2)
    sh3 = _tile_shift(shf3, W3, wc3)

    wh, bh = _head_weight(params["head_w"], params["head_b"],
                          oc3, H3, W3, wc3, out_pad, bf16)

    def const_spec(arr):
        nd = arr.ndim
        return pl.BlockSpec(arr.shape, lambda b, _nd=nd: (0,) * _nd)

    out = pl.pallas_call(
        _dqn_kernel,
        out_shape=jax.ShapeDtypeStruct((n_steps, bt, out_pad), jnp.float32),
        grid=(n_steps,),
        in_specs=[
            pl.BlockSpec((bt * h_pad, wc0), lambda b: (b, 0)),
            const_spec(sg1), const_spec(bw1), const_spec(sh1),
            const_spec(sg2), const_spec(bw2), const_spec(sh2),
            const_spec(sg3), const_spec(bw3), const_spec(sh3),
            const_spec(sgh), const_spec(wh), const_spec(bh),
        ],
        out_specs=pl.BlockSpec((1, bt, out_pad), lambda b: (b, 0, 0)),
        compiler_params=pltpu.CompilerParams(
            dimension_semantics=("parallel",)),
    )(x_plane, sg1, bw1, sh1, sg2, bw2, sh2, sg3, bw3, sh3, sgh, wh, bh)

    return out.reshape(b_pad, out_pad)[:B, :outputs]


# ------------------------------ parameters -----------------------------------
def init_params(key, h, w, outputs):
    convw = conv2d_size_out(conv2d_size_out(conv2d_size_out(w)))
    convh = conv2d_size_out(conv2d_size_out(conv2d_size_out(h)))
    lin_in = convw * convh * 32
    ks = jax.random.split(key, 12)

    def conv_w(k, oc, ic, ksz):
        bound = 1.0 / float(ic * ksz * ksz) ** 0.5
        return jax.random.uniform(k, (oc, ic, ksz, ksz), jnp.float32, -bound, bound)

    def vec(k, n, fan_in):
        bound = 1.0 / float(fan_in) ** 0.5
        return jax.random.uniform(k, (n,), jnp.float32, -bound, bound)

    def bn_params(k, n):
        k1, k2, k3, k4 = jax.random.split(k, 4)
        gamma = 1.0 + 0.1 * jax.random.normal(k1, (n,), jnp.float32)
        beta = 0.1 * jax.random.normal(k2, (n,), jnp.float32)
        mean = 0.05 * jax.random.normal(k3, (n,), jnp.float32)
        var = 1.0 + 0.1 * jax.random.uniform(k4, (n,), jnp.float32)
        return gamma, beta, mean, var

    return {
        "w1": conv_w(ks[0], 16, 3, 5), "b1": vec(ks[1], 16, 3 * 25), "bn1": bn_params(ks[2], 16),
        "w2": conv_w(ks[3], 32, 16, 5), "b2": vec(ks[4], 32, 16 * 25), "bn2": bn_params(ks[5], 32),
        "w3": conv_w(ks[6], 32, 32, 5), "b3": vec(ks[7], 32, 32 * 25), "bn3": bn_params(ks[8], 32),
        "head_w": jax.random.uniform(ks[9], (outputs, lin_in), jnp.float32,
                                     -1.0 / lin_in ** 0.5, 1.0 / lin_in ** 0.5),
        "head_b": vec(ks[10], outputs, lin_in),
    }


# -------------------------- pure-JAX reference -------------------------------
def reference_forward(x_nchw, params, eps=1e-5):
    def conv(x, wgt, b):
        y = lax.conv_general_dilated(x, wgt, (2, 2), "VALID",
                                     dimension_numbers=("NCHW", "OIHW", "NCHW"))
        return y + b[None, :, None, None]

    def bnrelu(x, bn):
        g, be, m, v = bn
        y = (x - m[None, :, None, None]) / jnp.sqrt(v + eps)[None, :, None, None]
        return jnp.maximum(y * g[None, :, None, None] + be[None, :, None, None], 0.0)

    x = bnrelu(conv(x_nchw, params["w1"], params["b1"]), params["bn1"])
    x = bnrelu(conv(x, params["w2"], params["b2"]), params["bn2"])
    x = bnrelu(conv(x, params["w3"], params["b3"]), params["bn3"])
    flat = x.reshape(x.shape[0], -1)
    return flat @ params["head_w"].T + params["head_b"]


if __name__ == "__main__":
    # B=16 -> 2 grid steps of Bt=8 images each (both v7x TCs get a tile).
    B, H, W, OUT = 16, 40, 40, 4
    key = jax.random.PRNGKey(0)
    kx, kp = jax.random.split(key)
    x = jax.random.normal(kx, (B, 3, H, W), jnp.float32)   # NCHW like PyTorch
    params = init_params(kp, H, W, OUT)

    fwd = jax.jit(dqn_forward)
    out = jax.block_until_ready(fwd(x, params))

    ref = jax.block_until_ready(reference_forward(x, params))
    assert out.shape == (B, OUT), out.shape
    # bf16 MXU operands with BN scale folded into weights (f32 accumulation).
    err = float(jnp.max(jnp.abs(out - ref)))
    assert jnp.allclose(out, ref, atol=5e-2, rtol=5e-2), ("max abs err", err)
    print("KERNEL_OK")
</pallas_src>

<mosaic_0001>
module attributes {stable_mosaic.version = 11 : i64} {
  func.func @_dqn_kernel(%arg0: i32, %arg1: memref<320x128xbf16, #tpu.memory_space<vmem>>, %arg2: memref<5x144x320xbf16, #tpu.memory_space<vmem>>, %arg3: memref<640x384xbf16, #tpu.memory_space<vmem>>, %arg4: memref<1x384xf32, #tpu.memory_space<vmem>>, %arg5: memref<5x56x144xbf16, #tpu.memory_space<vmem>>, %arg6: memref<1920x256xbf16, #tpu.memory_space<vmem>>, %arg7: memref<1x256xf32, #tpu.memory_space<vmem>>, %arg8: memref<5x16x56xbf16, #tpu.memory_space<vmem>>, %arg9: memref<1280x128xbf16, #tpu.memory_space<vmem>>, %arg10: memref<1x128xf32, #tpu.memory_space<vmem>>, %arg11: memref<2x8x16xbf16, #tpu.memory_space<vmem>>, %arg12: memref<256x128xbf16, #tpu.memory_space<vmem>>, %arg13: memref<1x128xf32, #tpu.memory_space<vmem>>, %arg14: memref<1x8x128xf32, #tpu.memory_space<vmem>>) attributes {dimension_semantics = [#tpu.dimension_semantics<parallel>], iteration_bounds = array<i64: 2>, scalar_prefetch = 0 : i64, scratch_operands = 0 : i64, tpu.core_type = #tpu.core_type<tc>, window_params = [{transform_indices = @transform_0, window_bounds = array<i64: 320, 128>}, {pipeline_mode = #tpu.pipeline_mode<synchronous>, transform_indices = @transform_1, window_bounds = array<i64: 5, 144, 320>}, {pipeline_mode = #tpu.pipeline_mode<synchronous>, transform_indices = @transform_2, window_bounds = array<i64: 640, 384>}, {pipeline_mode = #tpu.pipeline_mode<synchronous>, transform_indices = @transform_3, window_bounds = array<i64: 1, 384>}, {pipeline_mode = #tpu.pipeline_mode<synchronous>, transform_indices = @transform_4, window_bounds = array<i64: 5, 56, 144>}, {pipeline_mode = #tpu.pipeline_mode<synchronous>, transform_indices = @transform_5, window_bounds = array<i64: 1920, 256>}, {pipeline_mode = #tpu.pipeline_mode<synchronous>, transform_indices = @transform_6, window_bounds = array<i64: 1, 256>}, {pipeline_mode = #tpu.pipeline_mode<synchronous>, transform_indices = @transform_7, window_bounds = array<i64: 5, 16, 56>}, {pipeline_mode = #tpu.pipeline_mode<synchronous>, transform_indices = @transform_8, window_bounds = array<i64: 1280, 128>}, {pipeline_mode = #tpu.pipeline_mode<synchronous>, transform_indices = @transform_9, window_bounds = array<i64: 1, 128>}, {pipeline_mode = #tpu.pipeline_mode<synchronous>, transform_indices = @transform_10, window_bounds = array<i64: 2, 8, 16>}, {pipeline_mode = #tpu.pipeline_mode<synchronous>, transform_indices = @transform_11, window_bounds = array<i64: 256, 128>}, {pipeline_mode = #tpu.pipeline_mode<synchronous>, transform_indices = @transform_12, window_bounds = array<i64: 1, 128>}, {transform_indices = @transform_13, window_bounds = array<i64: 1, 8, 128>}]} {
    %c0 = arith.constant 0 : index
    %c0_0 = arith.constant 0 : index
    %0 = vector.load %arg1[%c0, %c0_0] : memref<320x128xbf16, #tpu.memory_space<vmem>>, vector<320x128xbf16>
    %c0_1 = arith.constant 0 : index
    %c0_2 = arith.constant 0 : index
    %c0_3 = arith.constant 0 : index
    %1 = vector.load %arg2[%c0_1, %c0_2, %c0_3] : memref<5x144x320xbf16, #tpu.memory_space<vmem>>, vector<1x144x320xbf16>
    %2 = vector.shape_cast %1 : vector<1x144x320xbf16> to vector<144x320xbf16>
    %cst = arith.constant dense<0.000000e+00> : vector<144x128xf32>
    %3 = tpu.matmul %2, %0, %cst {dimension_numbers = #tpu.dot_dimension_numbers<[1], [0], [0], [1], [0, 0, 1, 1], [], []>} : vector<144x320xbf16>, vector<320x128xbf16>, vector<144x128xf32> -> vector<144x128xf32>
    %4 = arith.truncf %3 : vector<144x128xf32> to vector<144x128xbf16>
    %c1 = arith.constant 1 : index
    %c0_4 = arith.constant 0 : index
    %c0_5 = arith.constant 0 : index
    %5 = vector.load %arg2[%c1, %c0_4, %c0_5] : memref<5x144x320xbf16, #tpu.memory_space<vmem>>, vector<1x144x320xbf16>
    %6 = vector.shape_cast %5 : vector<1x144x320xbf16> to vector<144x320xbf16>
    %cst_6 = arith.constant dense<0.000000e+00> : vector<144x128xf32>
    %7 = tpu.matmul %6, %0, %cst_6 {dimension_numbers = #tpu.dot_dimension_numbers<[1], [0], [0], [1], [0, 0, 1, 1], [], []>} : vector<144x320xbf16>, vector<320x128xbf16>, vector<144x128xf32> -> vector<144x128xf32>
    %8 = arith.truncf %7 : vector<144x128xf32> to vector<144x128xbf16>
    %c2 = arith.constant 2 : index
    %c0_7 = arith.constant 0 : index
    %c0_8 = arith.constant 0 : index
    %9 = vector.load %arg2[%c2, %c0_7, %c0_8] : memref<5x144x320xbf16, #tpu.memory_space<vmem>>, vector<1x144x320xbf16>
    %10 = vector.shape_cast %9 : vector<1x144x320xbf16> to vector<144x320xbf16>
    %cst_9 = arith.constant dense<0.000000e+00> : vector<144x128xf32>
    %11 = tpu.matmul %10, %0, %cst_9 {dimension_numbers = #tpu.dot_dimension_numbers<[1], [0], [0], [1], [0, 0, 1, 1], [], []>} : vector<144x320xbf16>, vector<320x128xbf16>, vector<144x128xf32> -> vector<144x128xf32>
    %12 = arith.truncf %11 : vector<144x128xf32> to vector<144x128xbf16>
    %c3 = arith.constant 3 : index
    %c0_10 = arith.constant 0 : index
    %c0_11 = arith.constant 0 : index
    %13 = vector.load %arg2[%c3, %c0_10, %c0_11] : memref<5x144x320xbf16, #tpu.memory_space<vmem>>, vector<1x144x320xbf16>
    %14 = vector.shape_cast %13 : vector<1x144x320xbf16> to vector<144x320xbf16>
    %cst_12 = arith.constant dense<0.000000e+00> : vector<144x128xf32>
    %15 = tpu.matmul %14, %0, %cst_12 {dimension_numbers = #tpu.dot_dimension_numbers<[1], [0], [0], [1], [0, 0, 1, 1], [], []>} : vector<144x320xbf16>, vector<320x128xbf16>, vector<144x128xf32> -> vector<144x128xf32>
    %16 = arith.truncf %15 : vector<144x128xf32> to vector<144x128xbf16>
    %c4 = arith.constant 4 : index
    %c0_13 = arith.constant 0 : index
    %c0_14 = arith.constant 0 : index
    %17 = vector.load %arg2[%c4, %c0_13, %c0_14] : memref<5x144x320xbf16, #tpu.memory_space<vmem>>, vector<1x144x320xbf16>
    %18 = vector.shape_cast %17 : vector<1x144x320xbf16> to vector<144x320xbf16>
    %cst_15 = arith.constant dense<0.000000e+00> : vector<144x128xf32>
    %19 = tpu.matmul %18, %0, %cst_15 {dimension_numbers = #tpu.dot_dimension_numbers<[1], [0], [0], [1], [0, 0, 1, 1], [], []>} : vector<144x320xbf16>, vector<320x128xbf16>, vector<144x128xf32> -> vector<144x128xf32>
    %20 = arith.truncf %19 : vector<144x128xf32> to vector<144x128xbf16>
    %21 = tpu.concatenate %4, %8, %12, %16, %20 in 1 : vector<144x128xbf16>, vector<144x128xbf16>, vector<144x128xbf16>, vector<144x128xbf16>, vector<144x128xbf16> -> vector<144x640xbf16>
    %c0_16 = arith.constant 0 : index
    %c0_17 = arith.constant 0 : index
    %22 = vector.load %arg3[%c0_16, %c0_17] : memref<640x384xbf16, #tpu.memory_space<vmem>>, vector<640x384xbf16>
    %cst_18 = arith.constant dense<0.000000e+00> : vector<144x384xf32>
    %23 = tpu.matmul %21, %22, %cst_18 {dimension_numbers = #tpu.dot_dimension_numbers<[1], [0], [0], [1], [0, 0, 1, 1], [], []>} : vector<144x640xbf16>, vector<640x384xbf16>, vector<144x384xf32> -> vector<144x384xf32>
    %c0_19 = arith.constant 0 : index
    %c0_20 = arith.constant 0 : index
    %24 = vector.load %arg4[%c0_19, %c0_20] : memref<1x384xf32, #tpu.memory_space<vmem>>, vector<1x384xf32>
    %25 = vector.broadcast %24 : vector<1x384xf32> to vector<144x384xf32>
    %26 = arith.addf %23, %25 : vector<144x384xf32>
    %cst_21 = arith.constant 0.000000e+00 : f32
    %27 = vector.broadcast %cst_21 : f32 to vector<144x384xf32>
    %28 = arith.maximumf %26, %27 : vector<144x384xf32>
    %29 = arith.truncf %28 : vector<144x384xf32> to vector<144x384xbf16>
    %c0_22 = arith.constant 0 : index
    %c0_23 = arith.constant 0 : index
    %c0_24 = arith.constant 0 : index
    %30 = vector.load %arg5[%c0_22, %c0_23, %c0_24] : memref<5x56x144xbf16, #tpu.memory_space<vmem>>, vector<1x56x144xbf16>
    %31 = vector.shape_cast %30 : vector<1x56x144xbf16> to vector<56x144xbf16>
    %cst_25 = arith.constant dense<0.000000e+00> : vector<56x384xf32>
    %32 = tpu.matmul %31, %29, %cst_25 {dimension_numbers = #tpu.dot_dimension_numbers<[1], [0], [0], [1], [0, 0, 1, 1], [], []>} : vector<56x144xbf16>, vector<144x384xbf16>, vector<56x384xf32> -> vector<56x384xf32>
    %33 = arith.truncf %32 : vector<56x384xf32> to vector<56x384xbf16>
    %c1_26 = arith.constant 1 : index
    %c0_27 = arith.constant 0 : index
    %c0_28 = arith.constant 0 : index
    %34 = vector.load %arg5[%c1_26, %c0_27, %c0_28] : memref<5x56x144xbf16, #tpu.memory_space<vmem>>, vector<1x56x144xbf16>
    %35 = vector.shape_cast %34 : vector<1x56x144xbf16> to vector<56x144xbf16>
    %cst_29 = arith.constant dense<0.000000e+00> : vector<56x384xf32>
    %36 = tpu.matmul %35, %29, %cst_29 {dimension_numbers = #tpu.dot_dimension_numbers<[1], [0], [0], [1], [0, 0, 1, 1], [], []>} : vector<56x144xbf16>, vector<144x384xbf16>, vector<56x384xf32> -> vector<56x384xf32>
    %37 = arith.truncf %36 : vector<56x384xf32> to vector<56x384xbf16>
    %c2_30 = arith.constant 2 : index
    %c0_31 = arith.constant 0 : index
    %c0_32 = arith.constant 0 : index
    %38 = vector.load %arg5[%c2_30, %c0_31, %c0_32] : memref<5x56x144xbf16, #tpu.memory_space<vmem>>, vector<1x56x144xbf16>
    %39 = vector.shape_cast %38 : vector<1x56x144xbf16> to vector<56x144xbf16>
    %cst_33 = arith.constant dense<0.000000e+00> : vector<56x384xf32>
    %40 = tpu.matmul %39, %29, %cst_33 {dimension_numbers = #tpu.dot_dimension_numbers<[1], [0], [0], [1], [0, 0, 1, 1], [], []>} : vector<56x144xbf16>, vector<144x384xbf16>, vector<56x384xf32> -> vector<56x384xf32>
    %41 = arith.truncf %40 : vector<56x384xf32> to vector<56x384xbf16>
    %c3_34 = arith.constant 3 : index
    %c0_35 = arith.constant 0 : index
    %c0_36 = arith.constant 0 : index
    %42 = vector.load %arg5[%c3_34, %c0_35, %c0_36] : memref<5x56x144xbf16, #tpu.memory_space<vmem>>, vector<1x56x144xbf16>
    %43 = vector.shape_cast %42 : vector<1x56x144xbf16> to vector<56x144xbf16>
    %cst_37 = arith.constant dense<0.000000e+00> : vector<56x384xf32>
    %44 = tpu.matmul %43, %29, %cst_37 {dimension_numbers = #tpu.dot_dimension_numbers<[1], [0], [0], [1], [0, 0, 1, 1], [], []>} : vector<56x144xbf16>, vector<144x384xbf16>, vector<56x384xf32> -> vector<56x384xf32>
    %45 = arith.truncf %44 : vector<56x384xf32> to vector<56x384xbf16>
    %c4_38 = arith.constant 4 : index
    %c0_39 = arith.constant 0 : index
    %c0_40 = arith.constant 0 : index
    %46 = vector.load %arg5[%c4_38, %c0_39, %c0_40] : memref<5x56x144xbf16, #tpu.memory_space<vmem>>, vector<1x56x144xbf16>
    %47 = vector.shape_cast %46 : vector<1x56x144xbf16> to vector<56x144xbf16>
    %cst_41 = arith.constant dense<0.000000e+00> : vector<56x384xf32>
    %48 = tpu.matmul %47, %29, %cst_41 {dimension_numbers = #tpu.dot_dimension_numbers<[1], [0], [0], [1], [0, 0, 1, 1], [], []>} : vector<56x144xbf16>, vector<144x384xbf16>, vector<56x384xf32> -> vector<56x384xf32>
    %49 = arith.truncf %48 : vector<56x384xf32> to vector<56x384xbf16>
    %50 = tpu.concatenate %33, %37, %41, %45, %49 in 1 : vector<56x384xbf16>, vector<56x384xbf16>, vector<56x384xbf16>, vector<56x384xbf16>, vector<56x384xbf16> -> vector<56x1920xbf16>
    %c0_42 = arith.constant 0 : index
    %c0_43 = arith.constant 0 : index
    %51 = vector.load %arg6[%c0_42, %c0_43] : memref<1920x256xbf16, #tpu.memory_space<vmem>>, vector<1920x256xbf16>
    %cst_44 = arith.constant dense<0.000000e+00> : vector<56x256xf32>
    %52 = tpu.matmul %50, %51, %cst_44 {dimension_numbers = #tpu.dot_dimension_numbers<[1], [0], [0], [1], [0, 0, 1, 1], [], []>} : vector<56x1920xbf16>, vector<1920x256xbf16>, vector<56x256xf32> -> vector<56x256xf32>
    %c0_45 = arith.constant 0 : index
    %c0_46 = arith.constant 0 : index
    %53 = vector.load %arg7[%c0_45, %c0_46] : memref<1x256xf32, #tpu.memory_space<vmem>>, vector<1x256xf32>
    %54 = vector.broadcast %53 : vector<1x256xf32> to vector<56x256xf32>
    %55 = arith.addf %52, %54 : vector<56x256xf32>
    %cst_47 = arith.constant 0.000000e+00 : f32
    %56 = vector.broadcast %cst_47 : f32 to vector<56x256xf32>
    %57 = arith.maximumf %55, %56 : vector<56x256xf32>
    %58 = arith.truncf %57 : vector<56x256xf32> to vector<56x256xbf16>
    %c0_48 = arith.constant 0 : index
    %c0_49 = arith.constant 0 : index
    %c0_50 = arith.constant 0 : index
    %59 = vector.load %arg8[%c0_48, %c0_49, %c0_50] : memref<5x16x56xbf16, #tpu.memory_space<vmem>>, vector<1x16x56xbf16>
    %60 = vector.shape_cast %59 : vector<1x16x56xbf16> to vector<16x56xbf16>
    %cst_51 = arith.constant dense<0.000000e+00> : vector<16x256xf32>
    %61 = tpu.matmul %60, %58, %cst_51 {dimension_numbers = #tpu.dot_dimension_numbers<[1], [0], [0], [1], [0, 0, 1, 1], [], []>} : vector<16x56xbf16>, vector<56x256xbf16>, vector<16x256xf32> -> vector<16x256xf32>
    %62 = arith.truncf %61 : vector<16x256xf32> to vector<16x256xbf16>
    %c1_52 = arith.constant 1 : index
    %c0_53 = arith.constant 0 : index
    %c0_54 = arith.constant 0 : index
    %63 = vector.load %arg8[%c1_52, %c0_53, %c0_54] : memref<5x16x56xbf16, #tpu.memory_space<vmem>>, vector<1x16x56xbf16>
    %64 = vector.shape_cast %63 : vector<1x16x56xbf16> to vector<16x56xbf16>
    %cst_55 = arith.constant dense<0.000000e+00> : vector<16x256xf32>
    %65 = tpu.matmul %64, %58, %cst_55 {dimension_numbers = #tpu.dot_dimension_numbers<[1], [0], [0], [1], [0, 0, 1, 1], [], []>} : vector<16x56xbf16>, vector<56x256xbf16>, vector<16x256xf32> -> vector<16x256xf32>
    %66 = arith.truncf %65 : vector<16x256xf32> to vector<16x256xbf16>
    %c2_56 = arith.constant 2 : index
    %c0_57 = arith.constant 0 : index
    %c0_58 = arith.constant 0 : index
    %67 = vector.load %arg8[%c2_56, %c0_57, %c0_58] : memref<5x16x56xbf16, #tpu.memory_space<vmem>>, vector<1x16x56xbf16>
    %68 = vector.shape_cast %67 : vector<1x16x56xbf16> to vector<16x56xbf16>
    %cst_59 = arith.constant dense<0.000000e+00> : vector<16x256xf32>
    %69 = tpu.matmul %68, %58, %cst_59 {dimension_numbers = #tpu.dot_dimension_numbers<[1], [0], [0], [1], [0, 0, 1, 1], [], []>} : vector<16x56xbf16>, vector<56x256xbf16>, vector<16x256xf32> -> vector<16x256xf32>
    %70 = arith.truncf %69 : vector<16x256xf32> to vector<16x256xbf16>
    %c3_60 = arith.constant 3 : index
    %c0_61 = arith.constant 0 : index
    %c0_62 = arith.constant 0 : index
    %71 = vector.load %arg8[%c3_60, %c0_61, %c0_62] : memref<5x16x56xbf16, #tpu.memory_space<vmem>>, vector<1x16x56xbf16>
    %72 = vector.shape_cast %71 : vector<1x16x56xbf16> to vector<16x56xbf16>
    %cst_63 = arith.constant dense<0.000000e+00> : vector<16x256xf32>
    %73 = tpu.matmul %72, %58, %cst_63 {dimension_numbers = #tpu.dot_dimension_numbers<[1], [0], [0], [1], [0, 0, 1, 1], [], []>} : vector<16x56xbf16>, vector<56x256xbf16>, vector<16x256xf32> -> vector<16x256xf32>
    %74 = arith.truncf %73 : vector<16x256xf32> to vector<16x256xbf16>
    %c4_64 = arith.constant 4 : index
    %c0_65 = arith.constant 0 : index
    %c0_66 = arith.constant 0 : index
    %75 = vector.load %arg8[%c4_64, %c0_65, %c0_66] : memref<5x16x56xbf16, #tpu.memory_space<vmem>>, vector<1x16x56xbf16>
    %76 = vector.shape_cast %75 : vector<1x16x56xbf16> to vector<16x56xbf16>
    %cst_67 = arith.constant dense<0.000000e+00> : vector<16x256xf32>
    %77 = tpu.matmul %76, %58, %cst_67 {dimension_numbers = #tpu.dot_dimension_numbers<[1], [0], [0], [1], [0, 0, 1, 1], [], []>} : vector<16x56xbf16>, vector<56x256xbf16>, vector<16x256xf32> -> vector<16x256xf32>
    %78 = arith.truncf %77 : vector<16x256xf32> to vector<16x256xbf16>
    %79 = tpu.concatenate %62, %66, %70, %74, %78 in 1 : vector<16x256xbf16>, vector<16x256xbf16>, vector<16x256xbf16>, vector<16x256xbf16>, vector<16x256xbf16> -> vector<16x1280xbf16>
    %c0_68 = arith.constant 0 : index
    %c0_69 = arith.constant 0 : index
    %80 = vector.load %arg9[%c0_68, %c0_69] : memref<1280x128xbf16, #tpu.memory_space<vmem>>, vector<1280x128xbf16>
    %cst_70 = arith.constant dense<0.000000e+00> : vector<16x128xf32>
    %81 = tpu.matmul %79, %80, %cst_70 {dimension_numbers = #tpu.dot_dimension_numbers<[1], [0], [0], [1], [0, 0, 1, 1], [], []>} : vector<16x1280xbf16>, vector<1280x128xbf16>, vector<16x128xf32> -> vector<16x128xf32>
    %c0_71 = arith.constant 0 : index
    %c0_72 = arith.constant 0 : index
    %82 = vector.load %arg10[%c0_71, %c0_72] : memref<1x128xf32, #tpu.memory_space<vmem>>, vector<1x128xf32>
    %83 = vector.broadcast %82 : vector<1x128xf32> to vector<16x128xf32>
    %84 = arith.addf %81, %83 : vector<16x128xf32>
    %cst_73 = arith.constant 0.000000e+00 : f32
    %85 = vector.broadcast %cst_73 : f32 to vector<16x128xf32>
    %86 = arith.maximumf %84, %85 : vector<16x128xf32>
    %87 = arith.truncf %86 : vector<16x128xf32> to vector<16x128xbf16>
    %c0_74 = arith.constant 0 : index
    %c0_75 = arith.constant 0 : index
    %c0_76 = arith.constant 0 : index
    %88 = vector.load %arg11[%c0_74, %c0_75, %c0_76] : memref<2x8x16xbf16, #tpu.memory_space<vmem>>, vector<1x8x16xbf16>
    %89 = vector.shape_cast %88 : vector<1x8x16xbf16> to vector<8x16xbf16>
    %cst_77 = arith.constant dense<0.000000e+00> : vector<8x128xf32>
    %90 = tpu.matmul %89, %87, %cst_77 {dimension_numbers = #tpu.dot_dimension_numbers<[1], [0], [0], [1], [0, 0, 1, 1], [], []>} : vector<8x16xbf16>, vector<16x128xbf16>, vector<8x128xf32> -> vector<8x128xf32>
    %91 = arith.truncf %90 : vector<8x128xf32> to vector<8x128xbf16>
    %c1_78 = arith.constant 1 : index
    %c0_79 = arith.constant 0 : index
    %c0_80 = arith.constant 0 : index
    %92 = vector.load %arg11[%c1_78, %c0_79, %c0_80] : memref<2x8x16xbf16, #tpu.memory_space<vmem>>, vector<1x8x16xbf16>
    %93 = vector.shape_cast %92 : vector<1x8x16xbf16> to vector<8x16xbf16>
    %cst_81 = arith.constant dense<0.000000e+00> : vector<8x128xf32>
    %94 = tpu.matmul %93, %87, %cst_81 {dimension_numbers = #tpu.dot_dimension_numbers<[1], [0], [0], [1], [0, 0, 1, 1], [], []>} : vector<8x16xbf16>, vector<16x128xbf16>, vector<8x128xf32> -> vector<8x128xf32>
    %95 = arith.truncf %94 : vector<8x128xf32> to vector<8x128xbf16>
    %96 = tpu.concatenate %91, %95 in 1 : vector<8x128xbf16>, vector<8x128xbf16> -> vector<8x256xbf16>
    %c0_82 = arith.constant 0 : index
    %c0_83 = arith.constant 0 : index
    %97 = vector.load %arg12[%c0_82, %c0_83] : memref<256x128xbf16, #tpu.memory_space<vmem>>, vector<256x128xbf16>
    %cst_84 = arith.constant dense<0.000000e+00> : vector<8x128xf32>
    %98 = tpu.matmul %96, %97, %cst_84 {dimension_numbers = #tpu.dot_dimension_numbers<[1], [0], [0], [1], [0, 0, 1, 1], [], []>} : vector<8x256xbf16>, vector<256x128xbf16>, vector<8x128xf32> -> vector<8x128xf32>
    %c0_85 = arith.constant 0 : index
    %c0_86 = arith.constant 0 : index
    %99 = vector.load %arg13[%c0_85, %c0_86] : memref<1x128xf32, #tpu.memory_space<vmem>>, vector<1x128xf32>
    %100 = vector.broadcast %99 : vector<1x128xf32> to vector<8x128xf32>
    %101 = arith.addf %98, %100 : vector<8x128xf32>
    %c0_87 = arith.constant 0 : index
    %c0_88 = arith.constant 0 : index
    %c0_89 = arith.constant 0 : index
    %102 = vector.load %arg14[%c0_87, %c0_88, %c0_89] : memref<1x8x128xf32, #tpu.memory_space<vmem>>, vector<1x8x128xf32>
    %103 = vector.shape_cast %102 : vector<1x8x128xf32> to vector<8x128xf32>
    %104 = vector.shape_cast %101 : vector<8x128xf32> to vector<1x8x128xf32>
    tpu.vector_store %arg14[%c0_87, %c0_88, %c0_89], %104 {strides = array<i32>} : memref<1x8x128xf32, #tpu.memory_space<vmem>>, vector<1x8x128xf32>,
    return
  }
  func.func @transform_0(%arg0: i32) -> (i32, i32) {
    %c0_i32 = arith.constant 0 : i32
    %c0_i32_0 = arith.constant 0 : i32
    return %arg0, %c0_i32 : i32, i32
  }
  func.func @transform_1(%arg0: i32) -> (i32, i32, i32) {
    %c0_i32 = arith.constant 0 : i32
    %c0_i32_0 = arith.constant 0 : i32
    %c0_i32_1 = arith.constant 0 : i32
    %c0_i32_2 = arith.constant 0 : i32
    return %c0_i32, %c0_i32_0, %c0_i32_1 : i32, i32, i32
  }
  func.func @transform_2(%arg0: i32) -> (i32, i32) {
    %c0_i32 = arith.constant 0 : i32
    %c0_i32_0 = arith.constant 0 : i32
    %c0_i32_1 = arith.constant 0 : i32
    return %c0_i32, %c0_i32_0 : i32, i32
  }
  func.func @transform_3(%arg0: i32) -> (i32, i32) {
    %c0_i32 = arith.constant 0 : i32
    %c0_i32_0 = arith.constant 0 : i32
    %c0_i32_1 = arith.constant 0 : i32
    return %c0_i32, %c0_i32_0 : i32, i32
  }
  func.func @transform_4(%arg0: i32) -> (i32, i32, i32) {
    %c0_i32 = arith.constant 0 : i32
    %c0_i32_0 = arith.constant 0 : i32
    %c0_i32_1 = arith.constant 0 : i32
    %c0_i32_2 = arith.constant 0 : i32
    return %c0_i32, %c0_i32_0, %c0_i32_1 : i32, i32, i32
  }
  func.func @transform_5(%arg0: i32) -> (i32, i32) {
    %c0_i32 = arith.constant 0 : i32
    %c0_i32_0 = arith.constant 0 : i32
    %c0_i32_1 = arith.constant 0 : i32
    return %c0_i32, %c0_i32_0 : i32, i32
  }
  func.func @transform_6(%arg0: i32) -> (i32, i32) {
    %c0_i32 = arith.constant 0 : i32
    %c0_i32_0 = arith.constant 0 : i32
    %c0_i32_1 = arith.constant 0 : i32
    return %c0_i32, %c0_i32_0 : i32, i32
  }
  func.func @transform_7(%arg0: i32) -> (i32, i32, i32) {
    %c0_i32 = arith.constant 0 : i32
    %c0_i32_0 = arith.constant 0 : i32
    %c0_i32_1 = arith.constant 0 : i32
    %c0_i32_2 = arith.constant 0 : i32
    return %c0_i32, %c0_i32_0, %c0_i32_1 : i32, i32, i32
  }
  func.func @transform_8(%arg0: i32) -> (i32, i32) {
    %c0_i32 = arith.constant 0 : i32
    %c0_i32_0 = arith.constant 0 : i32
    %c0_i32_1 = arith.constant 0 : i32
    return %c0_i32, %c0_i32_0 : i32, i32
  }
  func.func @transform_9(%arg0: i32) -> (i32, i32) {
    %c0_i32 = arith.constant 0 : i32
    %c0_i32_0 = arith.constant 0 : i32
    %c0_i32_1 = arith.constant 0 : i32
    return %c0_i32, %c0_i32_0 : i32, i32
  }
  func.func @transform_10(%arg0: i32) -> (i32, i32, i32) {
    %c0_i32 = arith.constant 0 : i32
    %c0_i32_0 = arith.constant 0 : i32
    %c0_i32_1 = arith.constant 0 : i32
    %c0_i32_2 = arith.constant 0 : i32
    return %c0_i32, %c0_i32_0, %c0_i32_1 : i32, i32, i32
  }
  func.func @transform_11(%arg0: i32) -> (i32, i32) {
    %c0_i32 = arith.constant 0 : i32
    %c0_i32_0 = arith.constant 0 : i32
    %c0_i32_1 = arith.constant 0 : i32
    return %c0_i32, %c0_i32_0 : i32, i32
  }
  func.func @transform_12(%arg0: i32) -> (i32, i32) {
    %c0_i32 = arith.constant 0 : i32
    %c0_i32_0 = arith.constant 0 : i32
    %c0_i32_1 = arith.constant 0 : i32
    return %c0_i32, %c0_i32_0 : i32, i32
  }
  func.func @transform_13(%arg0: i32) -> (i32, i32, i32) {
    %c0_i32 = arith.constant 0 : i32
    %c0_i32_0 = arith.constant 0 : i32
    %c0_i32_1 = arith.constant 0 : i32
    return %arg0, %c0_i32, %c0_i32_0 : i32, i32, i32
  }
}

</mosaic_0001>

<llo_original>
// kernel: tile.28
$region0: #{tile.28}
  #allocation0 [shape = 's32[1]{0}', space=sflag, size = 0x4, scoped, tag = 'scoped memory for tile.28']
  %s0 = inlined_call_operand.vmem [shape: f32[32], index: 0, kind: input, shape index: {}]
  %s1 = inlined_call_operand.vmem [shape: f32[2,32], index: 1, kind: output, shape index: {}]
  // Predicated region
  $region2: #{tile.28} parent=0 // pred_check
    _
  $region3: #{tile.28} parent=0 // pred_check_branch
    %3 = sbr.rel (0) target = $region5
  $region4: #{tile.28} parent=0 // pred_region
    _
  $region5: #{tile.28} parent=0 // pred_fallthru
    _
  %v4 = vld [vmem:[%s0] ss:$0 sm:$0xff]
  %5 = vst [vmem:[%s1] sm:$0x3] %v4

// kernel: tile.29
$region0: #{tile.29}
  %s0 = inlined_call_operand.vmem [shape: f32[2,32], index: 0, kind: input, shape index: {}]
  %s1 = inlined_call_operand.vmem [shape: f32[64], index: 1, kind: output, shape index: {}]
  $region1: #{tile.29} parent=0
    #allocation0 [shape = 'u8[4096]{0}', space=vmem, size = 0x1000, scoped, tag = 'scoped mem for output reshape']
    #allocation1 [shape = 'u8[4096]{0}', space=vmem, size = 0x1000, scoped, tag = 'scoped mem for input reshape']
    %s3 = sshllo.u32 0, 2
    %v4 = vld [vmem:[%s0] sm:%s3]
    %5 = vst [vmem:[#allocation1] sm:%s3] %v4
    %v6 = vld [vmem:[#allocation1] sm:$0x1]
    %vm7 = vcmask 261120
    %8 = vst.msk [vmem:[#allocation0] sm:$0x1] %vm7, %v6
    %s9 = scalar_lea.vmem [#allocation1], 1
    %v10 = vld [vmem:[%s9] sm:$0x1]
    %11 = vrot.lane.b32.xlu0 %v10, 32
    %v12 = vpop.permute.xlu0 %11
    %vm13 = vcmask 523520
    %14 = vst.msk [vmem:[#allocation0] sm:$0x1] %vm13, %v12
    %s16 = sshllo.u32 0, 1
    %v18 = vld [vmem:[#allocation0] sm:%s16]
    %s19 = sshllo.u32 0, 1
    %20 = vst [vmem:[%s1] sm:%s19] %v18

// kernel: tile.18
$region0: #{tile.18}
  #allocation0 [shape = 's32[1]{0}', space=sflag, size = 0x4, scoped, tag = 'scoped memory for tile.18']
  %s0 = inlined_call_operand.vmem [shape: f32[16], index: 0, kind: input, shape index: {}]
  %s1 = inlined_call_operand.vmem [shape: f32[18,16], index: 1, kind: output, shape index: {}]
  // Predicated region
  $region2: #{tile.18} parent=0 // pred_check
    _
  $region3: #{tile.18} parent=0 // pred_check_branch
    %3 = sbr.rel (0) target = $region5
  $region4: #{tile.18} parent=0 // pred_region
    _
  $region5: #{tile.18} parent=0 // pred_fallthru
    _
  %v4 = vld [vmem:[%s0] ss:$0 sm:$0xff]
  %5 = vst [vmem:[%s1] sm:$0xff] %v4
  %s6 = scalar_lea.vmem %s1, 8
  %7 = vst [vmem:[%s6] sm:$0xff] %v4
  %s8 = scalar_lea.vmem %s1, 16
  %9 = vst [vmem:[%s8] sm:$0xff] %v4

// kernel: tile.19
$region0: #{tile.19}
  %s0 = inlined_call_operand.vmem [shape: f32[18,16], index: 0, kind: input, shape index: {}]
  %s1 = inlined_call_operand.vmem [shape: f32[288], index: 1, kind: output, shape index: {}]
  $region1: #{tile.19} parent=0
    #allocation0 [shape = 'u8[4096]{0}', space=vmem, size = 0x1000, scoped, tag = 'scoped mem for output reshape']
    %v2 = vld [vmem:[%s0] ss:$8 sm:$0x7]
    %vm3 = vcmask 130048
    %4 = vst.msk [vmem:[#allocation0] sm:$0x7] %vm3, %v2
    %s5 = scalar_lea.vmem %s0, 7
    %s6 = smov 3
    %v7 = vld [vmem:[%s5] ss:$8 sm:%s6]
    %8 = vrot.lane.b32.xlu0 %v7, 112
    %v9 = vpop.permute.xlu0 %8
    %vm10 = vcmask 1048448
    %11 = vst.msk [vmem:[#allocation0] sm:$0x3] %vm10, %v9
    %s12 = scalar_lea.vmem %s0, 6
    %s13 = smov 3
    %v14 = vld [vmem:[%s12] ss:$8 sm:%s13]
    %15 = vrot.lane.b32.xlu0 %v14, 96
    %v16 = vpop.permute.xlu0 %15
    %vm17 = vcmask 917248
    %18 = vst.msk [vmem:[#allocation0] sm:$0x3] %vm17, %v16
    %s19 = scalar_lea.vmem %s0, 5
    %s20 = smov 3
    %v21 = vld [vmem:[%s19] ss:$8 sm:%s20]
    %22 = vrot.lane.b32.xlu0 %v21, 80
    %v23 = vpop.permute.xlu0 %22
    %vm24 = vcmask 786048
    %25 = vst.msk [vmem:[#allocation0] sm:$0x3] %vm24, %v23
    %s26 = scalar_lea.vmem %s0, 4
    %s27 = smov 3
    %v28 = vld [vmem:[%s26] ss:$8 sm:%s27]
    %29 = vrot.lane.b32.xlu0 %v28, 64
    %v30 = vpop.permute.xlu0 %29
    %vm31 = vcmask 654848
    %32 = vst.msk [vmem:[#allocation0] sm:$0x3] %vm31, %v30
    %s33 = scalar_lea.vmem %s0, 3
    %s34 = smov 3
    %v35 = vld [vmem:[%s33] ss:$8 sm:%s34]
    %36 = vrot.lane.b32.xlu0 %v35, 48
    %v37 = vpop.permute.xlu0 %36
    %vm38 = vcmask 523648
    %39 = vst.msk [vmem:[#allocation0] sm:$0x3] %vm38, %v37
    %s40 = scalar_lea.vmem %s0, 2
    %s41 = smov 3
    %v42 = vld [vmem:[%s40] ss:$8 sm:%s41]
    %43 = vrot.lane.b32.xlu0 %v42, 32
    %v44 = vpop.permute.xlu0 %43
    %vm45 = vcmask 392448
    %46 = vst.msk [vmem:[#allocation0] sm:$0x3] %vm45, %v44
    %s47 = scalar_lea.vmem %s0, 1
    %v48 = vld [vmem:[%s47] ss:$8 sm:$0x7]
    %49 = vrot.lane.b32.xlu0 %v48, 16
    %v50 = vpop.permute.xlu0 %49
    %vm51 = vcmask 261248
    %52 = vst.msk [vmem:[#allocation0] sm:$0x7] %vm51, %v50
    %s54 = sshllo.u32 0, 4
    %v56 = vld [vmem:[#allocation0] sm:%s54]
    %s57 = sshllo.u32 0, 4
    %58 = vst [vmem:[%s1] sm:%s57] %v56

// kernel: tile.23
$region0: #{tile.23}
  #allocation0 [shape = 's32[1]{0}', space=sflag, size = 0x4, scoped, tag = 'scoped memory for tile.23']
  %s0 = inlined_call_operand.vmem [shape: f32[32], index: 0, kind: input, shape index: {}]
  %s1 = inlined_call_operand.vmem [shape: f32[7,32], index: 1, kind: output, shape index: {}]
  // Predicated region
  $region2: #{tile.23} parent=0 // pred_check
    _
  $region3: #{tile.23} parent=0 // pred_check_branch
    %3 = sbr.rel (0) target = $region5
  $region4: #{tile.23} parent=0 // pred_region
    _
  $region5: #{tile.23} parent=0 // pred_fallthru
    _
  %v4 = vld [vmem:[%s0] ss:$0 sm:$0xff]
  %5 = vst [vmem:[%s1] sm:$0xff] %v4

// kernel: tile.24
$region0: #{tile.24}
  %s0 = inlined_call_operand.vmem [shape: f32[7,32], index: 0, kind: input, shape index: {}]
  %s1 = inlined_call_operand.vmem [shape: f32[224], index: 1, kind: output, shape index: {}]
  $region1: #{tile.24} parent=0
    #allocation0 [shape = 'u8[4096]{0}', space=vmem, size = 0x1000, scoped, tag = 'scoped mem for output reshape']
    %s2 = smov 3
    %v3 = vld [vmem:[%s0] ss:$4 sm:%s2]
    %vm4 = vcmask 261120
    %5 = vst.msk [vmem:[#allocation0] sm:$0x3] %vm4, %v3
    %s6 = scalar_lea.vmem %s0, 3
    %v7 = vld [vmem:[%s6] sm:$0x1]
    %8 = vrot.lane.b32.xlu0 %v7, 96
    %v9 = vpop.permute.xlu0 %8
    %vm10 = vcmask 1048320
    %11 = vst.msk [vmem:[#allocation0] sm:$0x1] %vm10, %v9
    %s12 = scalar_lea.vmem %s0, 2
    %s13 = smov 3
    %v14 = vld [vmem:[%s12] ss:$4 sm:%s13]
    %15 = vrot.lane.b32.xlu0 %v14, 64
    %v16 = vpop.permute.xlu0 %15
    %vm17 = vcmask 785920
    %18 = vst.msk [vmem:[#allocation0] sm:$0x3] %vm17, %v16
    %s19 = scalar_lea.vmem %s0, 1
    %s20 = smov 3
    %v21 = vld [vmem:[%s19] ss:$4 sm:%s20]
    %22 = vrot.lane.b32.xlu0 %v21, 32
    %v23 = vpop.permute.xlu0 %22
    %vm24 = vcmask 523520
    %25 = vst.msk [vmem:[#allocation0] sm:$0x3] %vm24, %v23
    %s27 = sshllo.u32 0, 2
    %v29 = vld [vmem:[#allocation0] sm:%s27]
    %s30 = sshllo.u32 0, 2
    %31 = vst [vmem:[%s1] sm:%s30] %v29

// kernel: dqn_forward.1
$region0: #{dqn_forward.1}
  #allocation0 [shape = 'u32[]', space=smem, size = 0x4, offset = 0x4, fixed_abs, tag = 'smem constant byte address 0x4 - core index']
  #allocation1 [shape = 'u32[144,128]{1,0:T(1,128)}', space=vmem, size = 0x12000, scoped, tag = 'internal scratch']
  %s0 = inlined_call_operand.vmem [shape: bf16[640,128], index: 0, kind: input, shape index: {}]
  %s1 = inlined_call_operand.vmem [shape: bf16[5,144,320], index: 1, kind: input, shape index: {}]
  %s2 = inlined_call_operand.vmem [shape: bf16[640,384], index: 2, kind: input, shape index: {}]
  %s3 = inlined_call_operand.vmem [shape: f32[1,384], index: 3, kind: input, shape index: {}]
  %s4 = inlined_call_operand.vmem [shape: bf16[5,56,144], index: 4, kind: input, shape index: {}]
  %s5 = inlined_call_operand.vmem [shape: bf16[1920,256], index: 5, kind: input, shape index: {}]
  %s6 = inlined_call_operand.vmem [shape: f32[1,256], index: 6, kind: input, shape index: {}]
  %s7 = inlined_call_operand.vmem [shape: bf16[5,16,56], index: 7, kind: input, shape index: {}]
  %s8 = inlined_call_operand.vmem [shape: bf16[1280,128], index: 8, kind: input, shape index: {}]
  %s9 = inlined_call_operand.vmem [shape: f32[1,128], index: 9, kind: input, shape index: {}]
  %s10 = inlined_call_operand.vmem [shape: bf16[2,8,16], index: 10, kind: input, shape index: {}]
  %s11 = inlined_call_operand.vmem [shape: bf16[256,128], index: 11, kind: input, shape index: {}]
  %s12 = inlined_call_operand.vmem [shape: f32[1,128], index: 12, kind: input, shape index: {}]
  %s13 = inlined_call_operand.vmem [shape: f32[2,8,128], index: 13, kind: output, shape index: {}]
  %s14 = sld [smem:[#allocation0]]
  $region85: #{dqn_forward.1} parent=0
    _
  %s16 = ssub.s32 1, %s14
  %s17 = scalar_select 0, %s16, %s14
  loop: start=0, step=1, limit=4
  $region2: #{dqn_forward.1} parent=0 // loop_pre_header
    _
  $region3: #{dqn_forward.1} parent=0 // loop_header
    %s19 = sphi 0, %s23
    %p20 = scmp.ge.s32.totalorder %s19, 4
    %s29 = sphi 0, %s31
    %s32 = sphi 0, %s29
    %s33 = sphi 0, %s32
    %s49 = sphi 0, %s33
    %s53 = sphi 0, %s53
    %s55 = sphi 0, %s53
    %s56 = sphi 0, %s55
    %s70 = sphi 0, %s56
    %s74 = sphi 0, %s74
    %s76 = sphi 0, %s74
    %s77 = sphi 0, %s76
    %s91 = sphi 0, %s77
    %s95 = sphi 0, %s95
    %s97 = sphi 0, %s95
    %s98 = sphi 0, %s97
    %s112 = sphi 0, %s98
    %s116 = sphi 0, %s116
    %s118 = sphi 0, %s116
    %s119 = sphi 0, %s118
    %s133 = sphi 0, %s119
    %s137 = sphi 0, %s137
    %s139 = sphi 0, %s137
    %s140 = sphi 0, %s139
    %s154 = sphi 0, %s140
    %s158 = sphi 0, %s158
    %s160 = sphi 0, %s158
    %s161 = sphi 0, %s160
    %s175 = sphi 0, %s161
    %s179 = sphi 0, %s179
    %s181 = sphi 0, %s179
    %s182 = sphi 0, %s181
    %s196 = sphi 0, %s182
    %s200 = sphi 0, %s200
    %s202 = sphi 0, %s200
    %s203 = sphi 0, %s202
    %s217 = sphi 0, %s203
    %s221 = sphi 0, %s221
    %s223 = sphi 0, %s221
    %s224 = sphi 0, %s223
    %s238 = sphi 0, %s224
    %s242 = sphi 0, %s242
    %s244 = sphi 0, %s242
    %s245 = sphi 0, %s244
    %s259 = sphi 0, %s245
    %s263 = sphi 0, %s263
    %s265 = sphi 0, %s263
    %s266 = sphi 0, %s265
    %s280 = sphi 0, %s266
    %s284 = sphi 0, %s284
    %s286 = sphi 0, %s284
    %s287 = sphi 0, %s286
    %s301 = sphi 0, %s287
    %s307 = sphi 0, %s309
    %s310 = sphi 0, %s307
    %s311 = sphi 0, %s310
    %s327 = sphi 0, %s311
  $region4: #{dqn_forward.1} parent=0 // loop_header_branch
    %22 = sbr.rel (%p20) target = $region8
  $region5: #{dqn_forward.1} parent=0 // loop_body
    %s24 = ssub.s32 %s19, 1
    %s25 = ssub.s32 %s19, 2
    %s26 = sadd.s32 %s19, 1
    %s27 = ssub.s32 %s19, %s26
    %p28 = scmp.eq.s32.totalorder %s27, 0
    %s30 = sadd.s32 %s29, 1
    %s31 = scalar_select %p28, %s29, %s30
    %p34 = pneg %p28
    %p35 = scmp.eq.s32.totalorder %s19, 1
    %p36 = por %p34, %p35
    %p37 = scmp.ne.s32.totalorder %s29, %s32
    %p38 = scmp.eq.s32.totalorder %s19, 0
    %p39 = por %p37, %p38
    %p40 = scmp.ne.s32.totalorder %s29, %s32
    %p41 = scmp.eq.s32.totalorder %s24, 1
    %p42 = por %p40, %p41
    %p43 = scmp.ne.s32.totalorder %s32, %s33
    %p44 = scmp.eq.s32.totalorder %s24, 0
    %p45 = por %p43, %p44
    %p46 = scmp.ne.s32.totalorder %s32, %s33
    %p47 = scmp.eq.s32.totalorder %s25, 1
    %p48 = por %p46, %p47
    %p50 = scmp.ne.s32.totalorder %s33, %s49
    %p51 = scmp.eq.s32.totalorder %s25, 0
    %p52 = por %p50, %p51
    %s54 = sadd.s32 %s53, 1
    %p57 = scmp.eq.s32.totalorder %s19, 1
    %p58 = scmp.ne.s32.totalorder %s53, %s55
    %p59 = scmp.eq.s32.totalorder %s19, 0
    %p60 = por %p58, %p59
    %p61 = scmp.ne.s32.totalorder %s53, %s55
    %p62 = scmp.eq.s32.totalorder %s24, 1
    %p63 = por %p61, %p62
    %p64 = scmp.ne.s32.totalorder %s55, %s56
    %p65 = scmp.eq.s32.totalorder %s24, 0
    %p66 = por %p64, %p65
    %p67 = scmp.ne.s32.totalorder %s55, %s56
    %p68 = scmp.eq.s32.totalorder %s25, 1
    %p69 = por %p67, %p68
    %p71 = scmp.ne.s32.totalorder %s56, %s70
    %p72 = scmp.eq.s32.totalorder %s25, 0
    %p73 = por %p71, %p72
    %s75 = sadd.s32 %s74, 1
    %p78 = scmp.eq.s32.totalorder %s19, 1
    %p79 = scmp.ne.s32.totalorder %s74, %s76
    %p80 = scmp.eq.s32.totalorder %s19, 0
    %p81 = por %p79, %p80
    %p82 = scmp.ne.s32.totalorder %s74, %s76
    %p83 = scmp.eq.s32.totalorder %s24, 1
    %p84 = por %p82, %p83
    %p85 = scmp.ne.s32.totalorder %s76, %s77
    %p86 = scmp.eq.s32.totalorder %s24, 0
    %p87 = por %p85, %p86
    %p88 = scmp.ne.s32.totalorder %s76, %s77
    %p89 = scmp.eq.s32.totalorder %s25, 1
    %p90 = por %p88, %p89
    %p92 = scmp.ne.s32.totalorder %s77, %s91
    %p93 = scmp.eq.s32.totalorder %s25, 0
    %p94 = por %p92, %p93
    %s96 = sadd.s32 %s95, 1
    %p99 = scmp.eq.s32.totalorder %s19, 1
    %p100 = scmp.ne.s32.totalorder %s95, %s97
    %p101 = scmp.eq.s32.totalorder %s19, 0
    %p102 = por %p100, %p101
    %p103 = scmp.ne.s32.totalorder %s95, %s97
    %p104 = scmp.eq.s32.totalorder %s24, 1
    %p105 = por %p103, %p104
    %p106 = scmp.ne.s32.totalorder %s97, %s98
    %p107 = scmp.eq.s32.totalorder %s24, 0
    %p108 = por %p106, %p107
    %p109 = scmp.ne.s32.totalorder %s97, %s98
    %p110 = scmp.eq.s32.totalorder %s25, 1
    %p111 = por %p109, %p110
    %p113 = scmp.ne.s32.totalorder %s98, %s112
    %p114 = scmp.eq.s32.totalorder %s25, 0
    %p115 = por %p113, %p114
    %s117 = sadd.s32 %s116, 1
    %p120 = scmp.eq.s32.totalorder %s19, 1
    %p121 = scmp.ne.s32.totalorder %s116, %s118
    %p122 = scmp.eq.s32.totalorder %s19, 0
    %p123 = por %p121, %p122
    %p124 = scmp.ne.s32.totalorder %s116, %s118
    %p125 = scmp.eq.s32.totalorder %s24, 1
    %p126 = por %p124, %p125
    %p127 = scmp.ne.s32.totalorder %s118, %s119
    %p128 = scmp.eq.s32.totalorder %s24, 0
    %p129 = por %p127, %p128
    %p130 = scmp.ne.s32.totalorder %s118, %s119
    %p131 = scmp.eq.s32.totalorder %s25, 1
    %p132 = por %p130, %p131
    %p134 = scmp.ne.s32.totalorder %s119, %s133
    %p135 = scmp.eq.s32.totalorder %s25, 0
    %p136 = por %p134, %p135
    %s138 = sadd.s32 %s137, 1
    %p141 = scmp.eq.s32.totalorder %s19, 1
    %p142 = scmp.ne.s32.totalorder %s137, %s139
    %p143 = scmp.eq.s32.totalorder %s19, 0
    %p144 = por %p142, %p143
    %p145 = scmp.ne.s32.totalorder %s137, %s139
    %p146 = scmp.eq.s32.totalorder %s24, 1
    %p147 = por %p145, %p146
    %p148 = scmp.ne.s32.totalorder %s139, %s140
    %p149 = scmp.eq.s32.totalorder %s24, 0
    %p150 = por %p148, %p149
    %p151 = scmp.ne.s32.totalorder %s139, %s140
    %p152 = scmp.eq.s32.totalorder %s25, 1
    %p153 = por %p151, %p152
    %p155 = scmp.ne.s32.totalorder %s140, %s154
    %p156 = scmp.eq.s32.totalorder %s25, 0
    %p157 = por %p155, %p156
    %s159 = sadd.s32 %s158, 1
    %p162 = scmp.eq.s32.totalorder %s19, 1
    %p163 = scmp.ne.s32.totalorder %s158, %s160
    %p164 = scmp.eq.s32.totalorder %s19, 0
    %p165 = por %p163, %p164
    %p166 = scmp.ne.s32.totalorder %s158, %s160
    %p167 = scmp.eq.s32.totalorder %s24, 1
    %p168 = por %p166, %p167
    %p169 = scmp.ne.s32.totalorder %s160, %s161
    %p170 = scmp.eq.s32.totalorder %s24, 0
    %p171 = por %p169, %p170
    %p172 = scmp.ne.s32.totalorder %s160, %s161
    %p173 = scmp.eq.s32.totalorder %s25, 1
    %p174 = por %p172, %p173
    %p176 = scmp.ne.s32.totalorder %s161, %s175
    %p177 = scmp.eq.s32.totalorder %s25, 0
    %p178 = por %p176, %p177
    %s180 = sadd.s32 %s179, 1
    %p183 = scmp.eq.s32.totalorder %s19, 1
    %p184 = scmp.ne.s32.totalorder %s179, %s181
    %p185 = scmp.eq.s32.totalorder %s19, 0
    %p186 = por %p184, %p185
    %p187 = scmp.ne.s32.totalorder %s179, %s181
    %p188 = scmp.eq.s32.totalorder %s24, 1
    %p189 = por %p187, %p188
    %p190 = scmp.ne.s32.totalorder %s181, %s182
    %p191 = scmp.eq.s32.totalorder %s24, 0
    %p192 = por %p190, %p191
    %p193 = scmp.ne.s32.totalorder %s181, %s182
    %p194 = scmp.eq.s32.totalorder %s25, 1
    %p195 = por %p193, %p194
    %p197 = scmp.ne.s32.totalorder %s182, %s196
    %p198 = scmp.eq.s32.totalorder %s25, 0
    %p199 = por %p197, %p198
    %s201 = sadd.s32 %s200, 1
    %p204 = scmp.eq.s32.totalorder %s19, 1
    %p205 = scmp.ne.s32.totalorder %s200, %s202
    %p206 = scmp.eq.s32.totalorder %s19, 0
    %p207 = por %p205, %p206
    %p208 = scmp.ne.s32.totalorder %s200, %s202
    %p209 = scmp.eq.s32.totalorder %s24, 1
    %p210 = por %p208, %p209
    %p211 = scmp.ne.s32.totalorder %s202, %s203
    %p212 = scmp.eq.s32.totalorder %s24, 0
    %p213 = por %p211, %p212
    %p214 = scmp.ne.s32.totalorder %s202, %s203
    %p215 = scmp.eq.s32.totalorder %s25, 1
    %p216 = por %p214, %p215
    %p218 = scmp.ne.s32.totalorder %s203, %s217
    %p219 = scmp.eq.s32.totalorder %s25, 0
    %p220 = por %p218, %p219
    %s222 = sadd.s32 %s221, 1
    %p225 = scmp.eq.s32.totalorder %s19, 1
    %p226 = scmp.ne.s32.totalorder %s221, %s223
    %p227 = scmp.eq.s32.totalorder %s19, 0
    %p228 = por %p226, %p227
    %p229 = scmp.ne.s32.totalorder %s221, %s223
    %p230 = scmp.eq.s32.totalorder %s24, 1
    %p231 = por %p229, %p230
    %p232 = scmp.ne.s32.totalorder %s223, %s224
    %p233 = scmp.eq.s32.totalorder %s24, 0
    %p234 = por %p232, %p233
    %p235 = scmp.ne.s32.totalorder %s223, %s224
    %p236 = scmp.eq.s32.totalorder %s25, 1
    %p237 = por %p235, %p236
    %p239 = scmp.ne.s32.totalorder %s224, %s238
    %p240 = scmp.eq.s32.totalorder %s25, 0
    %p241 = por %p239, %p240
    %s243 = sadd.s32 %s242, 1
    %p246 = scmp.eq.s32.totalorder %s19, 1
    %p247 = scmp.ne.s32.totalorder %s242, %s244
    %p248 = scmp.eq.s32.totalorder %s19, 0
    %p249 = por %p247, %p248
    %p250 = scmp.ne.s32.totalorder %s242, %s244
    %p251 = scmp.eq.s32.totalorder %s24, 1
    %p252 = por %p250, %p251
    %p253 = scmp.ne.s32.totalorder %s244, %s245
    %p254 = scmp.eq.s32.totalorder %s24, 0
    %p255 = por %p253, %p254
    %p256 = scmp.ne.s32.totalorder %s244, %s245
    %p257 = scmp.eq.s32.totalorder %s25, 1
    %p258 = por %p256, %p257
    %p260 = scmp.ne.s32.totalorder %s245, %s259
    %p261 = scmp.eq.s32.totalorder %s25, 0
    %p262 = por %p260, %p261
    %s264 = sadd.s32 %s263, 1
    %p267 = scmp.eq.s32.totalorder %s19, 1
    %p268 = scmp.ne.s32.totalorder %s263, %s265
    %p269 = scmp.eq.s32.totalorder %s19, 0
    %p270 = por %p268, %p269
    %p271 = scmp.ne.s32.totalorder %s263, %s265
    %p272 = scmp.eq.s32.totalorder %s24, 1
    %p273 = por %p271, %p272
    %p274 = scmp.ne.s32.totalorder %s265, %s266
    %p275 = scmp.eq.s32.totalorder %s24, 0
    %p276 = por %p274, %p275
    %p277 = scmp.ne.s32.totalorder %s265, %s266
    %p278 = scmp.eq.s32.totalorder %s25, 1
    %p279 = por %p277, %p278
    %p281 = scmp.ne.s32.totalorder %s266, %s280
    %p282 = scmp.eq.s32.totalorder %s25, 0
    %p283 = por %p281, %p282
    %s285 = sadd.s32 %s284, 1
    %p288 = scmp.eq.s32.totalorder %s19, 1
    %p289 = scmp.ne.s32.totalorder %s284, %s286
    %p290 = scmp.eq.s32.totalorder %s19, 0
    %p291 = por %p289, %p290
    %p292 = scmp.ne.s32.totalorder %s284, %s286
    %p293 = scmp.eq.s32.totalorder %s24, 1
    %p294 = por %p292, %p293
    %p295 = scmp.ne.s32.totalorder %s286, %s287
    %p296 = scmp.eq.s32.totalorder %s24, 0
    %p297 = por %p295, %p296
    %p298 = scmp.ne.s32.totalorder %s286, %s287
    %p299 = scmp.eq.s32.totalorder %s25, 1
    %p300 = por %p298, %p299
    %p302 = scmp.ne.s32.totalorder %s287, %s301
    %p303 = scmp.eq.s32.totalorder %s25, 0
    %p304 = por %p302, %p303
    %s305 = ssub.s32 %s19, %s26
    %p306 = scmp.eq.s32.totalorder %s305, 0
    %s308 = sadd.s32 %s307, 1
    %s309 = scalar_select %p306, %s307, %s308
    %p312 = pneg %p306
    %p313 = scmp.eq.s32.totalorder %s19, 1
    %p314 = por %p312, %p313
    %p315 = scmp.ne.s32.totalorder %s307, %s310
    %p316 = scmp.eq.s32.totalorder %s19, 0
    %p317 = por %p315, %p316
    %p318 = scmp.ne.s32.totalorder %s307, %s310
    %p319 = scmp.eq.s32.totalorder %s24, 1
    %p320 = por %p318, %p319
    %p321 = scmp.ne.s32.totalorder %s310, %s311
    %p322 = scmp.eq.s32.totalorder %s24, 0
    %p323 = por %p321, %p322
    %p324 = scmp.ne.s32.totalorder %s310, %s311
    %p325 = scmp.eq.s32.totalorder %s25, 1
    %p326 = por %p324, %p325
    %p328 = scmp.ne.s32.totalorder %s311, %s327
    %p329 = scmp.eq.s32.totalorder %s25, 0
    %p330 = por %p328, %p329
    %p331 = scmp.le.s32.totalorder 1, %s19
    %p332 = scmp.lt.s32.totalorder %s19, 3
    %p333 = pnand %p331, %p332
    %p334 = pneg %p333
    // Predicated region
    $region9: #{dqn_forward.1} parent=5 // pred_check
      _
    $region10: #{dqn_forward.1} parent=5 // pred_check_branch
      %336 = sbr.rel (%p333) target = $region12
    $region11: #{dqn_forward.1} parent=5 // pred_region
      %s337 = ssub.s32 %s19, 1
      // Predicated region
      $region13: #{dqn_forward.1} parent=11 // pred_check
        %p338 = pneg %p66
      $region14: #{dqn_forward.1} parent=11 // pred_check_branch
        %340 = sbr.rel (%p338) target = $region16
      $region15: #{dqn_forward.1} parent=11 // pred_region
        _
      $region16: #{dqn_forward.1} parent=11 // pred_fallthru
        _
      // Predicated region
      $region17: #{dqn_forward.1} parent=11 // pred_check
        %p341 = pneg %p87
      $region18: #{dqn_forward.1} parent=11 // pred_check_branch
        %343 = sbr.rel (%p341) target = $region20
      $region19: #{dqn_forward.1} parent=11 // pred_region
        _
      $region20: #{dqn_forward.1} parent=11 // pred_fallthru
        _
      // Predicated region
      $region21: #{dqn_forward.1} parent=11 // pred_check
        %p344 = pneg %p108
      $region22: #{dqn_forward.1} parent=11 // pred_check_branch
        %346 = sbr.rel (%p344) target = $region24
      $region23: #{dqn_forward.1} parent=11 // pred_region
        _
      $region24: #{dqn_forward.1} parent=11 // pred_fallthru
        _
      // Predicated region
      $region25: #{dqn_forward.1} parent=11 // pred_check
        %p347 = pneg %p129
      $region26: #{dqn_forward.1} parent=11 // pred_check_branch
        %349 = sbr.rel (%p347) target = $region28
      $region27: #{dqn_forward.1} parent=11 // pred_region
        _
      $region28: #{dqn_forward.1} parent=11 // pred_fallthru
        _
      // Predicated region
      $region29: #{dqn_forward.1} parent=11 // pred_check
        %p350 = pneg %p150
      $region30: #{dqn_forward.1} parent=11 // pred_check_branch
        %352 = sbr.rel (%p350) target = $region32
      $region31: #{dqn_forward.1} parent=11 // pred_region
        _
      $region32: #{dqn_forward.1} parent=11 // pred_fallthru
        _
      // Predicated region
      $region33: #{dqn_forward.1} parent=11 // pred_check
        %p353 = pneg %p171
      $region34: #{dqn_forward.1} parent=11 // pred_check_branch
        %355 = sbr.rel (%p353) target = $region36
      $region35: #{dqn_forward.1} parent=11 // pred_region
        _
      $region36: #{dqn_forward.1} parent=11 // pred_fallthru
        _
      // Predicated region
      $region37: #{dqn_forward.1} parent=11 // pred_check
        %p356 = pneg %p192
      $region38: #{dqn_forward.1} parent=11 // pred_check_branch
        %358 = sbr.rel (%p356) target = $region40
      $region39: #{dqn_forward.1} parent=11 // pred_region
        _
      $region40: #{dqn_forward.1} parent=11 // pred_fallthru
        _
      // Predicated region
      $region41: #{dqn_forward.1} parent=11 // pred_check
        %p359 = pneg %p213
      $region42: #{dqn_forward.1} parent=11 // pred_check_branch
        %361 = sbr.rel (%p359) target = $region44
      $region43: #{dqn_forward.1} parent=11 // pred_region
        _
      $region44: #{dqn_forward.1} parent=11 // pred_fallthru
        _
      // Predicated region
      $region45: #{dqn_forward.1} parent=11 // pred_check
        %p362 = pneg %p234
      $region46: #{dqn_forward.1} parent=11 // pred_check_branch
        %364 = sbr.rel (%p362) target = $region48
      $region47: #{dqn_forward.1} parent=11 // pred_region
        _
      $region48: #{dqn_forward.1} parent=11 // pred_fallthru
        _
      // Predicated region
      $region49: #{dqn_forward.1} parent=11 // pred_check
        %p365 = pneg %p255
      $region50: #{dqn_forward.1} parent=11 // pred_check_branch
        %367 = sbr.rel (%p365) target = $region52
      $region51: #{dqn_forward.1} parent=11 // pred_region
        _
      $region52: #{dqn_forward.1} parent=11 // pred_fallthru
        _
      // Predicated region
      $region53: #{dqn_forward.1} parent=11 // pred_check
        %p368 = pneg %p276
      $region54: #{dqn_forward.1} parent=11 // pred_check_branch
        %370 = sbr.rel (%p368) target = $region56
      $region55: #{dqn_forward.1} parent=11 // pred_region
        _
      $region56: #{dqn_forward.1} parent=11 // pred_fallthru
        _
      // Predicated region
      $region57: #{dqn_forward.1} parent=11 // pred_check
        %p371 = pneg %p297
      $region58: #{dqn_forward.1} parent=11 // pred_check_branch
        %373 = sbr.rel (%p371) target = $region60
      $region59: #{dqn_forward.1} parent=11 // pred_region
        _
      $region60: #{dqn_forward.1} parent=11 // pred_fallthru
        _
    $region12: #{dqn_forward.1} parent=5 // pred_fallthru
      _
    %p374 = scmp.lt.s32.totalorder %s19, 2
    // Predicated region
    $region61: #{dqn_forward.1} parent=5 // pred_check
      %p375 = pneg %p374
    $region62: #{dqn_forward.1} parent=5 // pred_check_branch
      %377 = sbr.rel (%p375) target = $region64
    $region63: #{dqn_forward.1} parent=5 // pred_region
      // Predicated region
      $region65: #{dqn_forward.1} parent=63 // pred_check
        %p378 = pneg %p39
      $region66: #{dqn_forward.1} parent=63 // pred_check_branch
        %380 = sbr.rel (%p378) target = $region68
      $region67: #{dqn_forward.1} parent=63 // pred_region
        %s381 = smul.u32 40, %s19
        %p382 = scmp.lt.s32.totalorder %s381, 79
        %s383 = scalar_select %p382, %s381, 79
        %s384 = smul.addr %s383, 4
        %s385 = scalar_lea.vmem %s0, %s384
        %s386 = smul.u32 40, %s19
      $region68: #{dqn_forward.1} parent=63 // pred_fallthru
        _
    $region64: #{dqn_forward.1} parent=5 // pred_fallthru
      _
    %p387 = scmp.le.s32.totalorder 1, %s19
    %p388 = scmp.lt.s32.totalorder %s19, 3
    %p389 = pnand %p387, %p388
    %p390 = pneg %p389
    // Predicated region
    $region69: #{dqn_forward.1} parent=5 // pred_check
      _
    $region70: #{dqn_forward.1} parent=5 // pred_check_branch
      %392 = sbr.rel (%p389) target = $region72
    $region71: #{dqn_forward.1} parent=5 // pred_region
      %s393 = ssub.s32 %s19, 1
      %s394 = smul.u32 40, %s24
      %p395 = scmp.lt.s32.totalorder %s394, 79
      %s396 = scalar_select %p395, %s394, 79
      %s397 = smul.addr %s396, 4
      %s398 = scalar_lea.vmem %s0, %s397
      %p399 = pneg %p45
      %p400 = pneg %p42
      %p401 = pneg %p66
      %p402 = pneg %p63
      %p403 = pneg %p87
      %p404 = pneg %p84
      %p405 = pneg %p108
      %p406 = pneg %p105
      %p407 = pneg %p129
      %p408 = pneg %p126
      %p409 = pneg %p150
      %p410 = pneg %p147
      %p411 = pneg %p171
      %p412 = pneg %p168
      %p413 = pneg %p192
      %p414 = pneg %p189
      %p415 = pneg %p213
      %p416 = pneg %p210
      %p417 = pneg %p234
      %p418 = pneg %p231
      %p419 = pneg %p255
      %p420 = pneg %p252
      %p421 = pneg %p276
      %p422 = pneg %p273
      %p423 = pneg %p297
      %p424 = pneg %p294
      %p425 = pneg %p323
      %p426 = pneg %p320
      %p427 = scmp.lt.s32.totalorder %s24, 1
      %s428 = scalar_select %p427, %s24, 1
      %s429 = smul.addr %s428, 8
      %s430 = scalar_lea.vmem %s13, %s429
      %s431 = smul.u32 40, %s24
      %p432 = scmp.lt.s32.totalorder %s431, 79
      %s433 = scalar_select %p432, %s431, 79
      %s434 = smul.addr %s433, 4
      %s435 = scalar_lea.vmem %s0, %s434
      %s436 = smul.u32 40, %s24
      %p437 = scmp.lt.s32.totalorder %s24, 1
      %s438 = scalar_select %p437, %s24, 1
      %s439 = smul.addr %s438, 8
      %s440 = scalar_lea.vmem %s13, %s439
      %v442 = vld [vmem:[%s435] sm:$0xf]
      %v443 = vld [vmem:[%s435 + $0x4] sm:$0xf]
      %v444 = vld [vmem:[%s435 + $0x8] sm:$0xf]
      %v445 = vld [vmem:[%s435 + $0xc] sm:$0xf]
      %v446 = vld [vmem:[%s435 + $0x10] sm:$0xf]
      %v447 = vld [vmem:[%s435 + $0x14] sm:$0xf]
      %v448 = vld [vmem:[%s435 + $0x18] sm:$0xf]
      %v449 = vld [vmem:[%s435 + $0x1c] sm:$0xf]
      %v450 = vld [vmem:[%s435 + $0x20] sm:$0xf]
      %v451 = vld [vmem:[%s435 + $0x24] sm:$0xf]
      %v452 = vld [vmem:[%s435 + $0x28] sm:$0xf]
      %v453 = vld [vmem:[%s435 + $0x2c] sm:$0xf]
      %v454 = vld [vmem:[%s435 + $0x30] sm:$0xf]
      %v455 = vld [vmem:[%s435 + $0x34] sm:$0xf]
      %v456 = vld [vmem:[%s435 + $0x38] sm:$0xf]
      %v457 = vld [vmem:[%s435 + $0x3c] sm:$0xf]
      %v458 = vld [vmem:[%s435 + $0x40] sm:$0xf]
      %v459 = vld [vmem:[%s435 + $0x44] sm:$0xf]
      %v460 = vld [vmem:[%s435 + $0x48] sm:$0xf]
      %v461 = vld [vmem:[%s435 + $0x4c] sm:$0xf]
      %v462 = vld [vmem:[%s435 + $0x50] sm:$0xf]
      %v463 = vld [vmem:[%s435 + $0x54] sm:$0xf]
      %v464 = vld [vmem:[%s435 + $0x58] sm:$0xf]
      %v465 = vld [vmem:[%s435 + $0x5c] sm:$0xf]
      %v466 = vld [vmem:[%s435 + $0x60] sm:$0xf]
      %v467 = vld [vmem:[%s435 + $0x64] sm:$0xf]
      %v468 = vld [vmem:[%s435 + $0x68] sm:$0xf]
      %v469 = vld [vmem:[%s435 + $0x6c] sm:$0xf]
      %v470 = vld [vmem:[%s435 + $0x70] sm:$0xf]
      %v471 = vld [vmem:[%s435 + $0x74] sm:$0xf]
      %v472 = vld [vmem:[%s435 + $0x78] sm:$0xf]
      %v473 = vld [vmem:[%s435 + $0x7c] sm:$0xf]
      %v474 = vld [vmem:[%s435 + $0x80] sm:$0xf]
      %v475 = vld [vmem:[%s435 + $0x84] sm:$0xf]
      %v476 = vld [vmem:[%s435 + $0x88] sm:$0xf]
      %v477 = vld [vmem:[%s435 + $0x8c] sm:$0xf]
      %v478 = vld [vmem:[%s435 + $0x90] sm:$0xf]
      %v479 = vld [vmem:[%s435 + $0x94] sm:$0xf]
      %v480 = vld [vmem:[%s435 + $0x98] sm:$0xf]
      %v481 = vld [vmem:[%s435 + $0x9c] sm:$0xf]
      %v482 = vld [vmem:[%s1] sm:$0xff]
      %v483 = vld [vmem:[%s1 + $0x8] sm:$0xf]
      %v484 = vld [vmem:[%s1 + $0xc] sm:$0xff]
      %v485 = vld [vmem:[%s1 + $0x14] sm:$0xf]
      %v486 = vld [vmem:[%s1 + $0x18] sm:$0xff]
      %v487 = vld [vmem:[%s1 + $0x20] sm:$0xf]
      %v488 = vld [vmem:[%s1 + $0x24] sm:$0xff]
      %v489 = vld [vmem:[%s1 + $0x2c] sm:$0xf]
      %v490 = vld [vmem:[%s1 + $0x30] sm:$0xff]
      %v491 = vld [vmem:[%s1 + $0x38] sm:$0xf]
      %v492 = vld [vmem:[%s1 + $0x3c] sm:$0xff]
      %v493 = vld [vmem:[%s1 + $0x44] sm:$0xf]
      %v494 = vld [vmem:[%s1 + $0x48] sm:$0xff]
      %v495 = vld [vmem:[%s1 + $0x50] sm:$0xf]
      %v496 = vld [vmem:[%s1 + $0x54] sm:$0xff]
      %v497 = vld [vmem:[%s1 + $0x5c] sm:$0xf]
      %v498 = vld [vmem:[%s1 + $0x60] sm:$0xff]
      %v499 = vld [vmem:[%s1 + $0x68] sm:$0xf]
      %v500 = vld [vmem:[%s1 + $0x6c] sm:$0xff]
      %v501 = vld [vmem:[%s1 + $0x74] sm:$0xf]
      %v502 = vld [vmem:[%s1 + $0x78] sm:$0xff]
      %v503 = vld [vmem:[%s1 + $0x80] sm:$0xf]
      %v504 = vld [vmem:[%s1 + $0x84] sm:$0xff]
      %v505 = vld [vmem:[%s1 + $0x8c] sm:$0xf]
      %v506 = vld [vmem:[%s1 + $0x90] sm:$0xff]
      %v507 = vld [vmem:[%s1 + $0x98] sm:$0xf]
      %v508 = vld [vmem:[%s1 + $0x9c] sm:$0xff]
      %v509 = vld [vmem:[%s1 + $0xa4] sm:$0xf]
      %v510 = vld [vmem:[%s1 + $0xa8] sm:$0xff]
      %v511 = vld [vmem:[%s1 + $0xb0] sm:$0xf]
      %v512 = vld [vmem:[%s1 + $0xb4] sm:$0xff]
      %v513 = vld [vmem:[%s1 + $0xbc] sm:$0xf]
      %v514 = vld [vmem:[%s1 + $0xc0] sm:$0xff]
      %v515 = vld [vmem:[%s1 + $0xc8] sm:$0xf]
      %v516 = vld [vmem:[%s1 + $0xcc] sm:$0xff]
      %v517 = vld [vmem:[%s1 + $0xd4] sm:$0xf]
      %v554 = vunpack.c.l.b16 %v482
      %v555 = vunpack.c.h.b16 %v482
      %v556 = vunpack.c.l.b16 %v483
      %v557 = vunpack.c.l.b16 %v484
      %v558 = vunpack.c.h.b16 %v484
      %v559 = vunpack.c.l.b16 %v485
      %v560 = vunpack.c.l.b16 %v486
      %v561 = vunpack.c.h.b16 %v486
      %v562 = vunpack.c.l.b16 %v487
      %v563 = vunpack.c.l.b16 %v488
      %v564 = vunpack.c.h.b16 %v488
      %v565 = vunpack.c.l.b16 %v489
      %v566 = vunpack.c.l.b16 %v490
      %v567 = vunpack.c.h.b16 %v490
      %v568 = vunpack.c.l.b16 %v491
      %v569 = vunpack.c.l.b16 %v492
      %v570 = vunpack.c.h.b16 %v492
      %v571 = vunpack.c.l.b16 %v493
      %v572 = vunpack.c.l.b16 %v494
      %v573 = vunpack.c.h.b16 %v494
      %v574 = vunpack.c.l.b16 %v495
      %v575 = vunpack.c.l.b16 %v496
      %v576 = vunpack.c.h.b16 %v496
      %v577 = vunpack.c.l.b16 %v497
      %v578 = vunpack.c.l.b16 %v498
      %v579 = vunpack.c.h.b16 %v498
      %v580 = vunpack.c.l.b16 %v499
      %v581 = vunpack.c.l.b16 %v500
      %v582 = vunpack.c.h.b16 %v500
      %v583 = vunpack.c.l.b16 %v501
      %v584 = vunpack.c.l.b16 %v502
      %v585 = vunpack.c.h.b16 %v502
      %v586 = vunpack.c.l.b16 %v503
      %v587 = vunpack.c.l.b16 %v504
      %v588 = vunpack.c.h.b16 %v504
      %v589 = vunpack.c.l.b16 %v505
      %v590 = vunpack.c.l.b16 %v506
      %v591 = vunpack.c.h.b16 %v506
      %v592 = vunpack.c.l.b16 %v507
      %v593 = vunpack.c.l.b16 %v508
      %v594 = vunpack.c.h.b16 %v508
      %v595 = vunpack.c.l.b16 %v509
      %v596 = vunpack.c.l.b16 %v510
      %v597 = vunpack.c.h.b16 %v510
      %v598 = vunpack.c.l.b16 %v511
      %v599 = vunpack.c.l.b16 %v512
      %v600 = vunpack.c.h.b16 %v512
      %v601 = vunpack.c.l.b16 %v513
      %v602 = vunpack.c.l.b16 %v514
      %v603 = vunpack.c.h.b16 %v514
      %v604 = vunpack.c.l.b16 %v515
      %v605 = vunpack.c.l.b16 %v516
      %v606 = vunpack.c.h.b16 %v516
      %v607 = vunpack.c.l.b16 %v517
      %v608 = vpack.c.b16 %v557, %v554
      %v609 = vpack.c.b16 %v558, %v555
      %v610 = vpack.c.b16 %v559, %v556
      %v611 = vpack.c.b16 %v563, %v560
      %v612 = vpack.c.b16 %v564, %v561
      %v613 = vpack.c.b16 %v565, %v562
      %v614 = vpack.c.b16 %v569, %v566
      %v615 = vpack.c.b16 %v570, %v567
      %v616 = vpack.c.b16 %v571, %v568
      %v617 = vpack.c.b16 %v575, %v572
      %v618 = vpack.c.b16 %v576, %v573
      %v619 = vpack.c.b16 %v577, %v574
      %v620 = vpack.c.b16 %v581, %v578
      %v621 = vpack.c.b16 %v582, %v579
      %v622 = vpack.c.b16 %v583, %v580
      %v623 = vpack.c.b16 %v587, %v584
      %v624 = vpack.c.b16 %v588, %v585
      %v625 = vpack.c.b16 %v589, %v586
      %v626 = vpack.c.b16 %v593, %v590
      %v627 = vpack.c.b16 %v594, %v591
      %v628 = vpack.c.b16 %v595, %v592
      %v629 = vpack.c.b16 %v599, %v596
      %v630 = vpack.c.b16 %v600, %v597
      %v631 = vpack.c.b16 %v601, %v598
      %v632 = vpack.c.b16 %v605, %v602
      %v633 = vpack.c.b16 %v606, %v603
      %v634 = vpack.c.b16 %v607, %v604
      %v693 = vunpack.c.l.b16 %v442
      %v694 = vunpack.c.l.b16 %v443
      %v695 = vunpack.c.l.b16 %v444
      %v696 = vunpack.c.l.b16 %v445
      %v697 = vunpack.c.l.b16 %v446
      %v698 = vunpack.c.l.b16 %v447
      %v699 = vunpack.c.l.b16 %v448
      %v700 = vunpack.c.l.b16 %v449
      %v701 = vunpack.c.l.b16 %v450
      %v702 = vunpack.c.l.b16 %v451
      %v703 = vunpack.c.l.b16 %v452
      %v704 = vunpack.c.l.b16 %v453
      %v705 = vunpack.c.l.b16 %v454
      %v706 = vunpack.c.l.b16 %v455
      %v707 = vunpack.c.l.b16 %v456
      %v708 = vunpack.c.l.b16 %v457
      %v709 = vunpack.c.l.b16 %v458
      %v710 = vunpack.c.l.b16 %v459
      %v711 = vunpack.c.l.b16 %v460
      %v712 = vunpack.c.l.b16 %v461
      %v713 = vunpack.c.l.b16 %v462
      %v714 = vunpack.c.l.b16 %v463
      %v715 = vunpack.c.l.b16 %v464
      %v716 = vunpack.c.l.b16 %v465
      %v717 = vunpack.c.l.b16 %v466
      %v718 = vunpack.c.l.b16 %v467
      %v719 = vunpack.c.l.b16 %v468
      %v720 = vunpack.c.l.b16 %v469
      %v721 = vunpack.c.l.b16 %v470
      %v722 = vunpack.c.l.b16 %v471
      %v723 = vunpack.c.l.b16 %v472
      %v724 = vunpack.c.l.b16 %v473
      %v725 = vunpack.c.l.b16 %v474
      %v726 = vunpack.c.l.b16 %v475
      %v727 = vunpack.c.l.b16 %v476
      %v728 = vunpack.c.l.b16 %v477
      %v729 = vunpack.c.l.b16 %v478
      %v730 = vunpack.c.l.b16 %v479
      %v731 = vunpack.c.l.b16 %v480
      %v732 = vunpack.c.l.b16 %v481
      %v733 = vpack.c.b16 %v694, %v693
      %v734 = vpack.c.b16 %v696, %v695
      %v735 = vpack.c.b16 %v698, %v697
      %v736 = vpack.c.b16 %v700, %v699
      %v737 = vpack.c.b16 %v702, %v701
      %v738 = vpack.c.b16 %v704, %v703
      %v739 = vpack.c.b16 %v706, %v705
      %v740 = vpack.c.b16 %v708, %v707
      %v741 = vpack.c.b16 %v710, %v709
      %v742 = vpack.c.b16 %v712, %v711
      %v743 = vpack.c.b16 %v714, %v713
      %v744 = vpack.c.b16 %v716, %v715
      %v745 = vpack.c.b16 %v718, %v717
      %v746 = vpack.c.b16 %v720, %v719
      %v747 = vpack.c.b16 %v722, %v721
      %v748 = vpack.c.b16 %v724, %v723
      %v749 = vpack.c.b16 %v726, %v725
      %v750 = vpack.c.b16 %v728, %v727
      %v751 = vpack.c.b16 %v730, %v729
      %v752 = vpack.c.b16 %v732, %v731
      %vm773 = vcmask 523264
      %v775 = vsel %vm773, %v610, 0
      %v778 = vsel %vm773, %v613, 0
      %v781 = vsel %vm773, %v616, 0
      %v784 = vsel %vm773, %v619, 0
      %v787 = vsel %vm773, %v622, 0
      %v790 = vsel %vm773, %v625, 0
      %v793 = vsel %vm773, %v628, 0
      %v796 = vsel %vm773, %v631, 0
      %v799 = vsel %vm773, %v634, 0
      %801 = vmatprep.subr.bf16.mxu0 0
      %802 = vmatpush1.bf16.msra.mxu0 %v733
      %803 = vmatprep.subr.bf16.mxu0 0
      %804 = vmatpush1.bf16.msra.mxu0 %v734
      %805 = vmatprep.subr.bf16.mxu0 0
      %806 = vmatpush1.bf16.msra.mxu0 %v735
      %807 = vmatprep.subr.bf16.mxu0 0
      %808 = vmatpush1.bf16.msra.mxu0 %v736
      %809 = vmatprep.subr.bf16.mxu0 0
      %810 = vmatpush1.bf16.msra.mxu0 %v737
      %811 = vmatprep.subr.bf16.mxu0 0
      %812 = vmatpush1.bf16.msra.mxu0 %v738
      %813 = vmatprep.subr.bf16.mxu0 0
      %814 = vmatpush1.bf16.msra.mxu0 %v739
      %815 = vmatprep.subr.bf16.mxu0 0
      %816 = vmatpush1.bf16.msra.mxu0 %v740
      %817 = vmatprep.subr.bf16.mxu0 0
      %818 = vmatpush1.bf16.msra.mxu0 %v741
      %819 = vmatprep.subr.bf16.mxu0 0
      %820 = vmatpush1.bf16.msra.mxu0 %v742
      %821 = vmatprep.subr.bf16.mxu0 0
      %822 = vmatpush1.bf16.msra.mxu0 %v743
      %823 = vmatprep.subr.bf16.mxu0 0
      %824 = vmatpush1.bf16.msra.mxu0 %v744
      %825 = vmatprep.subr.bf16.mxu0 0
      %826 = vmatpush1.bf16.msra.mxu0 %v745
      %827 = vmatprep.subr.bf16.mxu0 0
      %828 = vmatpush1.bf16.msra.mxu0 %v746
      %829 = vmatprep.subr.bf16.mxu0 0
      %830 = vmatpush1.bf16.msra.mxu0 %v747
      %831 = vmatprep.subr.bf16.mxu0 0
      %832 = vmatpush1.bf16.msra.mxu0 %v748
      %833 = vmatprep.mubr.bf16.mxu0 %v609
      %834 = vmatmul.mubr.bf16.gmra.mrb[0].mxu0 %v608
      %v835 = vpop.f32.mrb[0].mxu0
      %v836 = vadd.f32 0.0, %v835
      %v837 = vpop.f32.mrb[0].mxu0
      %v838 = vpop.f32.mrb[0].mxu0
      %v839 = vadd.f32 0.0, %v838
      %v840 = vpop.f32.mrb[0].mxu0
      %841 = vmatprep.mubr.bf16.mxu0 %v612
      %842 = vmatmul.mubr.bf16.gmra.mrb[0].mxu0 %v611
      %v843 = vpop.f32.mrb[0].mxu0
      %v844 = vadd.f32 0.0, %v843
      %v845 = vpop.f32.mrb[0].mxu0
      %v846 = vpop.f32.mrb[0].mxu0
      %v847 = vadd.f32 0.0, %v846
      %v848 = vpop.f32.mrb[0].mxu0
      %849 = vmatprep.mubr.bf16.mxu0 %v615
      %850 = vmatmul.mubr.bf16.gmra.mrb[0].mxu0 %v614
      %v851 = vpop.f32.mrb[0].mxu0
      %v852 = vadd.f32 0.0, %v851
      %v853 = vpop.f32.mrb[0].mxu0
      %v854 = vpop.f32.mrb[0].mxu0
      %v855 = vadd.f32 0.0, %v854
      %v856 = vpop.f32.mrb[0].mxu0
      %857 = vmatprep.mubr.bf16.mxu0 %v618
      %858 = vmatmul.mubr.bf16.gmra.mrb[0].mxu0 %v617
      %v859 = vpop.f32.mrb[0].mxu0
      %v860 = vadd.f32 0.0, %v859
      %v861 = vpop.f32.mrb[0].mxu0
      %v862 = vpop.f32.mrb[0].mxu0
      %v863 = vadd.f32 0.0, %v862
      %v864 = vpop.f32.mrb[0].mxu0
      %865 = vmatprep.mubr.bf16.mxu0 %v621
      %866 = vmatmul.mubr.bf16.gmra.mrb[0].mxu0 %v620
      %v867 = vpop.f32.mrb[0].mxu0
      %v868 = vadd.f32 0.0, %v867
      %v869 = vpop.f32.mrb[0].mxu0
      %v870 = vpop.f32.mrb[0].mxu0
      %v871 = vadd.f32 0.0, %v870
      %v872 = vpop.f32.mrb[0].mxu0
      %873 = vmatprep.mubr.bf16.mxu0 %v624
      %874 = vmatmul.mubr.bf16.gmra.mrb[0].mxu0 %v623
      %v875 = vpop.f32.mrb[0].mxu0
      %v876 = vadd.f32 0.0, %v875
      %v877 = vpop.f32.mrb[0].mxu0
      %v878 = vpop.f32.mrb[0].mxu0
      %v879 = vadd.f32 0.0, %v878
      %v880 = vpop.f32.mrb[0].mxu0
      %881 = vmatprep.mubr.bf16.mxu0 %v627
      %882 = vmatmul.mubr.bf16.gmra.mrb[0].mxu0 %v626
      %v883 = vpop.f32.mrb[0].mxu0
      %v884 = vadd.f32 0.0, %v883
      %v885 = vpop.f32.mrb[0].mxu0
      %v886 = vpop.f32.mrb[0].mxu0
      %v887 = vadd.f32 0.0, %v886
      %v888 = vpop.f32.mrb[0].mxu0
      %889 = vmatprep.mubr.bf16.mxu0 %v630
      %890 = vmatmul.mubr.bf16.gmra.mrb[0].mxu0 %v629
      %v891 = vpop.f32.mrb[0].mxu0
      %v892 = vadd.f32 0.0, %v891
      %v893 = vpop.f32.mrb[0].mxu0
      %v894 = vpop.f32.mrb[0].mxu0
      %v895 = vadd.f32 0.0, %v894
      %v896 = vpop.f32.mrb[0].mxu0
      %897 = vmatprep.mubr.bf16.mxu0 %v633
      %898 = vmatmul.mubr.bf16.gmra.mrb[0].mxu0 %v632
      %v899 = vpop.f32.mrb[0].mxu0
      %v900 = vadd.f32 0.0, %v899
      %v901 = vpop.f32.mrb[0].mxu0
      %v902 = vpop.f32.mrb[0].mxu0
      %v903 = vadd.f32 0.0, %v902
      %v904 = vpop.f32.mrb[0].mxu0
      %905 = vdwg.mxu0
      %906 = vmatprep.subr.bf16.mxu0 0
      %907 = vmatpush1.bf16.msra.mxu0 %v749
      %908 = vmatprep.subr.bf16.mxu0 0
      %909 = vmatpush1.bf16.msra.mxu0 %v750
      %910 = vmatprep.subr.bf16.mxu0 0
      %911 = vmatpush1.bf16.msra.mxu0 %v751
      %912 = vmatprep.subr.bf16.mxu0 0
      %913 = vmatpush1.bf16.msra.mxu0 %v752
      %914 = vmatprep.subr.bf16.mxu0 0
      %915 = vmatpush1.bf16.msra.mxu0 0
      %916 = vmatprep.subr.bf16.mxu0 0
      %917 = vmatpush1.bf16.msra.mxu0 0
      %918 = vmatprep.subr.bf16.mxu0 0
      %919 = vmatpush1.bf16.msra.mxu0 0
      %920 = vmatprep.subr.bf16.mxu0 0
      %921 = vmatpush1.bf16.msra.mxu0 0
      %922 = vmatprep.subr.bf16.mxu0 0
      %923 = vmatpush1.bf16.msra.mxu0 0
      %924 = vmatprep.subr.bf16.mxu0 0
      %925 = vmatpush1.bf16.msra.mxu0 0
      %926 = vmatprep.subr.bf16.mxu0 0
      %927 = vmatpush1.bf16.msra.mxu0 0
      %928 = vmatprep.subr.bf16.mxu0 0
      %929 = vmatpush1.bf16.msra.mxu0 0
      %930 = vmatprep.subr.bf16.mxu0 0
      %931 = vmatpush1.bf16.msra.mxu0 0
      %932 = vmatprep.subr.bf16.mxu0 0
      %933 = vmatpush1.bf16.msra.mxu0 0
      %934 = vmatprep.subr.bf16.mxu0 0
      %935 = vmatpush1.bf16.msra.mxu0 0
      %936 = vmatprep.subr.bf16.mxu0 0
      %937 = vmatpush1.bf16.msra.mxu0 0
      %938 = vmatprep.mubr.bf16.mxu0 0
      %939 = vmatmul.mubr.bf16.gmra.mrb[0].mxu0 %v775
      %v940 = vpop.f32.mrb[0].mxu0
      %v941 = vadd.f32 %v836, %v940
      %v942 = vpop.f32.mrb[0].mxu0
      %v943 = vpop.f32.mrb[0].mxu0
      %v944 = vadd.f32 %v839, %v943
      %v945 = vpop.f32.mrb[0].mxu0
      %946 = vmatprep.mubr.bf16.mxu0 0
      %947 = vmatmul.mubr.bf16.gmra.mrb[0].mxu0 %v778
      %v948 = vpop.f32.mrb[0].mxu0
      %v949 = vadd.f32 %v844, %v948
      %v950 = vpop.f32.mrb[0].mxu0
      %v951 = vpop.f32.mrb[0].mxu0
      %v952 = vadd.f32 %v847, %v951
      %v953 = vpop.f32.mrb[0].mxu0
      %954 = vmatprep.mubr.bf16.mxu0 0
      %955 = vmatmul.mubr.bf16.gmra.mrb[0].mxu0 %v781
      %v956 = vpop.f32.mrb[0].mxu0
      %v957 = vadd.f32 %v852, %v956
      %v958 = vpop.f32.mrb[0].mxu0
      %v959 = vpop.f32.mrb[0].mxu0
      %v960 = vadd.f32 %v855, %v959
      %v961 = vpop.f32.mrb[0].mxu0
      %962 = vmatprep.mubr.bf16.mxu0 0
      %963 = vmatmul.mubr.bf16.gmra.mrb[0].mxu0 %v784
      %v964 = vpop.f32.mrb[0].mxu0
      %v965 = vadd.f32 %v860, %v964
      %v966 = vpop.f32.mrb[0].mxu0
      %v967 = vpop.f32.mrb[0].mxu0
      %v968 = vadd.f32 %v863, %v967
      %v969 = vpop.f32.mrb[0].mxu0
      %970 = vmatprep.mubr.bf16.mxu0 0
      %971 = vmatmul.mubr.bf16.gmra.mrb[0].mxu0 %v787
      %v972 = vpop.f32.mrb[0].mxu0
      %v973 = vadd.f32 %v868, %v972
      %v974 = vpop.f32.mrb[0].mxu0
      %v975 = vpop.f32.mrb[0].mxu0
      %v976 = vadd.f32 %v871, %v975
      %v977 = vpop.f32.mrb[0].mxu0
      %978 = vmatprep.mubr.bf16.mxu0 0
      %979 = vmatmul.mubr.bf16.gmra.mrb[0].mxu0 %v790
      %v980 = vpop.f32.mrb[0].mxu0
      %v981 = vadd.f32 %v876, %v980
      %v982 = vpop.f32.mrb[0].mxu0
      %v983 = vpop.f32.mrb[0].mxu0
      %v984 = vadd.f32 %v879, %v983
      %v985 = vpop.f32.mrb[0].mxu0
      %986 = vmatprep.mubr.bf16.mxu0 0
      %987 = vmatmul.mubr.bf16.gmra.mrb[0].mxu0 %v793
      %v988 = vpop.f32.mrb[0].mxu0
      %v989 = vadd.f32 %v884, %v988
      %v990 = vpop.f32.mrb[0].mxu0
      %v991 = vpop.f32.mrb[0].mxu0
      %v992 = vadd.f32 %v887, %v991
      %v993 = vpop.f32.mrb[0].mxu0
      %994 = vmatprep.mubr.bf16.mxu0 0
      %995 = vmatmul.mubr.bf16.gmra.mrb[0].mxu0 %v796
      %v996 = vpop.f32.mrb[0].mxu0
      %v997 = vadd.f32 %v892, %v996
      %v998 = vpop.f32.mrb[0].mxu0
      %v999 = vpop.f32.mrb[0].mxu0
      %v1000 = vadd.f32 %v895, %v999
      %v1001 = vpop.f32.mrb[0].mxu0
      %1002 = vmatprep.mubr.bf16.mxu0 0
      %1003 = vmatmul.mubr.bf16.gmra.mrb[0].mxu0 %v799
      %v1004 = vpop.f32.mrb[0].mxu0
      %v1005 = vadd.f32 %v900, %v1004
      %v1006 = vpop.f32.mrb[0].mxu0
      %v1007 = vpop.f32.mrb[0].mxu0
      %v1008 = vadd.f32 %v903, %v1007
      %v1009 = vpop.f32.mrb[0].mxu0
      %1010 = vdwg.mxu0
      %v1011 = vpack.c.bf16 %v944, %v941
      %v1012 = vpack.c.bf16 %v952, %v949
      %v1013 = vpack.c.bf16 %v960, %v957
      %v1014 = vpack.c.bf16 %v968, %v965
      %v1015 = vpack.c.bf16 %v976, %v973
      %v1016 = vpack.c.bf16 %v984, %v981
      %v1017 = vpack.c.bf16 %v992, %v989
      %v1018 = vpack.c.bf16 %v1000, %v997
      %v1019 = vpack.c.bf16 %v1008, %v1005
      %s1020 = scalar_lea.vmem %s1, 216
      %v1021 = vld [vmem:[%s1020] sm:$0xff]
      %v1022 = vld [vmem:[%s1020 + $0x8] sm:$0xf]
      %v1023 = vld [vmem:[%s1020 + $0xc] sm:$0xff]
      %v1024 = vld [vmem:[%s1020 + $0x14] sm:$0xf]
      %v1025 = vld [vmem:[%s1020 + $0x18] sm:$0xff]
      %v1026 = vld [vmem:[%s1020 + $0x20] sm:$0xf]
      %v1027 = vld [vmem:[%s1020 + $0x24] sm:$0xff]
      %v1028 = vld [vmem:[%s1020 + $0x2c] sm:$0xf]
      %v1029 = vld [vmem:[%s1020 + $0x30] sm:$0xff]
      %v1030 = vld [vmem:[%s1020 + $0x38] sm:$0xf]
      %v1031 = vld [vmem:[%s1020 + $0x3c] sm:$0xff]
      %v1032 = vld [vmem:[%s1020 + $0x44] sm:$0xf]
      %v1033 = vld [vmem:[%s1020 + $0x48] sm:$0xff]
      %v1034 = vld [vmem:[%s1020 + $0x50] sm:$0xf]
      %v1035 = vld [vmem:[%s1020 + $0x54] sm:$0xff]
      %v1036 = vld [vmem:[%s1020 + $0x5c] sm:$0xf]
      %v1037 = vld [vmem:[%s1020 + $0x60] sm:$0xff]
      %v1038 = vld [vmem:[%s1020 + $0x68] sm:$0xf]
      %v1039 = vld [vmem:[%s1020 + $0x6c] sm:$0xff]
      %v1040 = vld [vmem:[%s1020 + $0x74] sm:$0xf]
      %v1041 = vld [vmem:[%s1020 + $0x78] sm:$0xff]
      %v1042 = vld [vmem:[%s1020 + $0x80] sm:$0xf]
      %v1043 = vld [vmem:[%s1020 + $0x84] sm:$0xff]
      %v1044 = vld [vmem:[%s1020 + $0x8c] sm:$0xf]
      %v1045 = vld [vmem:[%s1020 + $0x90] sm:$0xff]
      %v1046 = vld [vmem:[%s1020 + $0x98] sm:$0xf]
      %v1047 = vld [vmem:[%s1020 + $0x9c] sm:$0xff]
      %v1048 = vld [vmem:[%s1020 + $0xa4] sm:$0xf]
      %v1049 = vld [vmem:[%s1020 + $0xa8] sm:$0xff]
      %v1050 = vld [vmem:[%s1020 + $0xb0] sm:$0xf]
      %v1051 = vld [vmem:[%s1020 + $0xb4] sm:$0xff]
      %v1052 = vld [vmem:[%s1020 + $0xbc] sm:$0xf]
      %v1053 = vld [vmem:[%s1020 + $0xc0] sm:$0xff]
      %v1054 = vld [vmem:[%s1020 + $0xc8] sm:$0xf]
      %v1055 = vld [vmem:[%s1020 + $0xcc] sm:$0xff]
      %v1056 = vld [vmem:[%s1020 + $0xd4] sm:$0xf]
      %v1093 = vunpack.c.l.b16 %v1021
      %v1094 = vunpack.c.h.b16 %v1021
      %v1095 = vunpack.c.l.b16 %v1022
      %v1096 = vunpack.c.l.b16 %v1023
      %v1097 = vunpack.c.h.b16 %v1023
      %v1098 = vunpack.c.l.b16 %v1024
      %v1099 = vunpack.c.l.b16 %v1025
      %v1100 = vunpack.c.h.b16 %v1025
      %v1101 = vunpack.c.l.b16 %v1026
      %v1102 = vunpack.c.l.b16 %v1027
      %v1103 = vunpack.c.h.b16 %v1027
      %v1104 = vunpack.c.l.b16 %v1028
      %v1105 = vunpack.c.l.b16 %v1029
      %v1106 = vunpack.c.h.b16 %v1029
      %v1107 = vunpack.c.l.b16 %v1030
      %v1108 = vunpack.c.l.b16 %v1031
      %v1109 = vunpack.c.h.b16 %v1031
      %v1110 = vunpack.c.l.b16 %v1032
      %v1111 = vunpack.c.l.b16 %v1033
      %v1112 = vunpack.c.h.b16 %v1033
      %v1113 = vunpack.c.l.b16 %v1034
      %v1114 = vunpack.c.l.b16 %v1035
      %v1115 = vunpack.c.h.b16 %v1035
      %v1116 = vunpack.c.l.b16 %v1036
      %v1117 = vunpack.c.l.b16 %v1037
      %v1118 = vunpack.c.h.b16 %v1037
      %v1119 = vunpack.c.l.b16 %v1038
      %v1120 = vunpack.c.l.b16 %v1039
      %v1121 = vunpack.c.h.b16 %v1039
      %v1122 = vunpack.c.l.b16 %v1040
      %v1123 = vunpack.c.l.b16 %v1041
      %v1124 = vunpack.c.h.b16 %v1041
      %v1125 = vunpack.c.l.b16 %v1042
      %v1126 = vunpack.c.l.b16 %v1043
      %v1127 = vunpack.c.h.b16 %v1043
      %v1128 = vunpack.c.l.b16 %v1044
      %v1129 = vunpack.c.l.b16 %v1045
      %v1130 = vunpack.c.h.b16 %v1045
      %v1131 = vunpack.c.l.b16 %v1046
      %v1132 = vunpack.c.l.b16 %v1047
      %v1133 = vunpack.c.h.b16 %v1047
      %v1134 = vunpack.c.l.b16 %v1048
      %v1135 = vunpack.c.l.b16 %v1049
      %v1136 = vunpack.c.h.b16 %v1049
      %v1137 = vunpack.c.l.b16 %v1050
      %v1138 = vunpack.c.l.b16 %v1051
      %v1139 = vunpack.c.h.b16 %v1051
      %v1140 = vunpack.c.l.b16 %v1052
      %v1141 = vunpack.c.l.b16 %v1053
      %v1142 = vunpack.c.h.b16 %v1053
      %v1143 = vunpack.c.l.b16 %v1054
      %v1144 = vunpack.c.l.b16 %v1055
      %v1145 = vunpack.c.h.b16 %v1055
      %v1146 = vunpack.c.l.b16 %v1056
      %v1147 = vpack.c.b16 %v1096, %v1093
      %v1148 = vpack.c.b16 %v1097, %v1094
      %v1149 = vpack.c.b16 %v1098, %v1095
      %v1150 = vpack.c.b16 %v1102, %v1099
      %v1151 = vpack.c.b16 %v1103, %v1100
      %v1152 = vpack.c.b16 %v1104, %v1101
      %v1153 = vpack.c.b16 %v1108, %v1105
      %v1154 = vpack.c.b16 %v1109, %v1106
      %v1155 = vpack.c.b16 %v1110, %v1107
      %v1156 = vpack.c.b16 %v1114, %v1111
      %v1157 = vpack.c.b16 %v1115, %v1112
      %v1158 = vpack.c.b16 %v1116, %v1113
      %v1159 = vpack.c.b16 %v1120, %v1117
      %v1160 = vpack.c.b16 %v1121, %v1118
      %v1161 = vpack.c.b16 %v1122, %v1119
      %v1162 = vpack.c.b16 %v1126, %v1123
      %v1163 = vpack.c.b16 %v1127, %v1124
      %v1164 = vpack.c.b16 %v1128, %v1125
      %v1165 = vpack.c.b16 %v1132, %v1129
      %v1166 = vpack.c.b16 %v1133, %v1130
      %v1167 = vpack.c.b16 %v1134, %v1131
      %v1168 = vpack.c.b16 %v1138, %v1135
      %v1169 = vpack.c.b16 %v1139, %v1136
      %v1170 = vpack.c.b16 %v1140, %v1137
      %v1171 = vpack.c.b16 %v1144, %v1141
      %v1172 = vpack.c.b16 %v1145, %v1142
      %v1173 = vpack.c.b16 %v1146, %v1143
      %v1193 = vsel %vm773, %v1149, 0
      %v1196 = vsel %vm773, %v1152, 0
      %v1199 = vsel %vm773, %v1155, 0
      %v1202 = vsel %vm773, %v1158, 0
      %v1205 = vsel %vm773, %v1161, 0
      %v1208 = vsel %vm773, %v1164, 0
      %v1211 = vsel %vm773, %v1167, 0
      %v1214 = vsel %vm773, %v1170, 0
      %v1217 = vsel %vm773, %v1173, 0
      %1219 = vmatprep.subr.bf16.mxu0 0
      %1220 = vmatpush1.bf16.msra.mxu0 %v733
      %1221 = vmatprep.subr.bf16.mxu0 0
      %1222 = vmatpush1.bf16.msra.mxu0 %v734
      %1223 = vmatprep.subr.bf16.mxu0 0
      %1224 = vmatpush1.bf16.msra.mxu0 %v735
      %1225 = vmatprep.subr.bf16.mxu0 0
      %1226 = vmatpush1.bf16.msra.mxu0 %v736
      %1227 = vmatprep.subr.bf16.mxu0 0
      %1228 = vmatpush1.bf16.msra.mxu0 %v737
      %1229 = vmatprep.subr.bf16.mxu0 0
      %1230 = vmatpush1.bf16.msra.mxu0 %v738
      %1231 = vmatprep.subr.bf16.mxu0 0
      %1232 = vmatpush1.bf16.msra.mxu0 %v739
      %1233 = vmatprep.subr.bf16.mxu0 0
      %1234 = vmatpush1.bf16.msra.mxu0 %v740
      %1235 = vmatprep.subr.bf16.mxu0 0
      %1236 = vmatpush1.bf16.msra.mxu0 %v741
      %1237 = vmatprep.subr.bf16.mxu0 0
      %1238 = vmatpush1.bf16.msra.mxu0 %v742
      %1239 = vmatprep.subr.bf16.mxu0 0
      %1240 = vmatpush1.bf16.msra.mxu0 %v743
      %1241 = vmatprep.subr.bf16.mxu0 0
      %1242 = vmatpush1.bf16.msra.mxu0 %v744
      %1243 = vmatprep.subr.bf16.mxu0 0
      %1244 = vmatpush1.bf16.msra.mxu0 %v745
      %1245 = vmatprep.subr.bf16.mxu0 0
      %1246 = vmatpush1.bf16.msra.mxu0 %v746
      %1247 = vmatprep.subr.bf16.mxu0 0
      %1248 = vmatpush1.bf16.msra.mxu0 %v747
      %1249 = vmatprep.subr.bf16.mxu0 0
      %1250 = vmatpush1.bf16.msra.mxu0 %v748
      %1251 = vmatprep.mubr.bf16.mxu0 %v1148
      %1252 = vmatmul.mubr.bf16.gmra.mrb[0].mxu0 %v1147
      %v1253 = vpop.f32.mrb[0].mxu0
      %v1254 = vadd.f32 0.0, %v1253
      %v1255 = vpop.f32.mrb[0].mxu0
      %v1256 = vpop.f32.mrb[0].mxu0
      %v1257 = vadd.f32 0.0, %v1256
      %v1258 = vpop.f32.mrb[0].mxu0
      %1259 = vmatprep.mubr.bf16.mxu0 %v1151
      %1260 = vmatmul.mubr.bf16.gmra.mrb[0].mxu0 %v1150
      %v1261 = vpop.f32.mrb[0].mxu0
      %v1262 = vadd.f32 0.0, %v1261
      %v1263 = vpop.f32.mrb[0].mxu0
      %v1264 = vpop.f32.mrb[0].mxu0
      %v1265 = vadd.f32 0.0, %v1264
      %v1266 = vpop.f32.mrb[0].mxu0
      %1267 = vmatprep.mubr.bf16.mxu0 %v1154
      %1268 = vmatmul.mubr.bf16.gmra.mrb[0].mxu0 %v1153
      %v1269 = vpop.f32.mrb[0].mxu0
      %v1270 = vadd.f32 0.0, %v1269
      %v1271 = vpop.f32.mrb[0].mxu0
      %v1272 = vpop.f32.mrb[0].mxu0
      %v1273 = vadd.f32 0.0, %v1272
      %v1274 = vpop.f32.mrb[0].mxu0
      %1275 = vmatprep.mubr.bf16.mxu0 %v1157
      %1276 = vmatmul.mubr.bf16.gmra.mrb[0].mxu0 %v1156
      %v1277 = vpop.f32.mrb[0].mxu0
      %v1278 = vadd.f32 0.0, %v1277
      %v1279 = vpop.f32.mrb[0].mxu0
      %v1280 = vpop.f32.mrb[0].mxu0
      %v1281 = vadd.f32 0.0, %v1280
      %v1282 = vpop.f32.mrb[0].mxu0
      %1283 = vmatprep.mubr.bf16.mxu0 %v1160
      %1284 = vmatmul.mubr.bf16.gmra.mrb[0].mxu0 %v1159
      %v1285 = vpop.f32.mrb[0].mxu0
      %v1286 = vadd.f32 0.0, %v1285
      %v1287 = vpop.f32.mrb[0].mxu0
      %v1288 = vpop.f32.mrb[0].mxu0
      %v1289 = vadd.f32 0.0, %v1288
      %v1290 = vpop.f32.mrb[0].mxu0
      %1291 = vmatprep.mubr.bf16.mxu0 %v1163
      %1292 = vmatmul.mubr.bf16.gmra.mrb[0].mxu0 %v1162
      %v1293 = vpop.f32.mrb[0].mxu0
      %v1294 = vadd.f32 0.0, %v1293
      %v1295 = vpop.f32.mrb[0].mxu0
      %v1296 = vpop.f32.mrb[0].mxu0
      %v1297 = vadd.f32 0.0, %v1296
      %v1298 = vpop.f32.mrb[0].mxu0
      %1299 = vmatprep.mubr.bf16.mxu0 %v1166
      %1300 = vmatmul.mubr.bf16.gmra.mrb[0].mxu0 %v1165
      %v1301 = vpop.f32.mrb[0].mxu0
      %v1302 = vadd.f32 0.0, %v1301
      %v1303 = vpop.f32.mrb[0].mxu0
      %v1304 = vpop.f32.mrb[0].mxu0
      %v1305 = vadd.f32 0.0, %v1304
      %v1306 = vpop.f32.mrb[0].mxu0
      %1307 = vmatprep.mubr.bf16.mxu0 %v1169
      %1308 = vmatmul.mubr.bf16.gmra.mrb[0].mxu0 %v1168
      %v1309 = vpop.f32.mrb[0].mxu0
      %v1310 = vadd.f32 0.0, %v1309
      %v1311 = vpop.f32.mrb[0].mxu0
      %v1312 = vpop.f32.mrb[0].mxu0
      %v1313 = vadd.f32 0.0, %v1312
      %v1314 = vpop.f32.mrb[0].mxu0
      %1315 = vmatprep.mubr.bf16.mxu0 %v1172
      %1316 = vmatmul.mubr.bf16.gmra.mrb[0].mxu0 %v1171
      %v1317 = vpop.f32.mrb[0].mxu0
      %v1318 = vadd.f32 0.0, %v1317
      %v1319 = vpop.f32.mrb[0].mxu0
      %v1320 = vpop.f32.mrb[0].mxu0
      %v1321 = vadd.f32 0.0, %v1320
      %v1322 = vpop.f32.mrb[0].mxu0
      %1323 = vdwg.mxu0
      %1324 = vmatprep.subr.bf16.mxu0 0
      %1325 = vmatpush1.bf16.msra.mxu0 %v749
      %1326 = vmatprep.subr.bf16.mxu0 0
      %1327 = vmatpush1.bf16.msra.mxu0 %v750
      %1328 = vmatprep.subr.bf16.mxu0 0
      %1329 = vmatpush1.bf16.msra.mxu0 %v751
      %1330 = vmatprep.subr.bf16.mxu0 0
      %1331 = vmatpush1.bf16.msra.mxu0 %v752
      %1332 = vmatprep.subr.bf16.mxu0 0
      %1333 = vmatpush1.bf16.msra.mxu0 0
      %1334 = vmatprep.subr.bf16.mxu0 0
      %1335 = vmatpush1.bf16.msra.mxu0 0
      %1336 = vmatprep.subr.bf16.mxu0 0
      %1337 = vmatpush1.bf16.msra.mxu0 0
      %1338 = vmatprep.subr.bf16.mxu0 0
      %1339 = vmatpush1.bf16.msra.mxu0 0
      %1340 = vmatprep.subr.bf16.mxu0 0
      %1341 = vmatpush1.bf16.msra.mxu0 0
      %1342 = vmatprep.subr.bf16.mxu0 0
      %1343 = vmatpush1.bf16.msra.mxu0 0
      %1344 = vmatprep.subr.bf16.mxu0 0
      %1345 = vmatpush1.bf16.msra.mxu0 0
      %1346 = vmatprep.subr.bf16.mxu0 0
      %1347 = vmatpush1.bf16.msra.mxu0 0
      %1348 = vmatprep.subr.bf16.mxu0 0
      %1349 = vmatpush1.bf16.msra.mxu0 0
      %1350 = vmatprep.subr.bf16.mxu0 0
      %1351 = vmatpush1.bf16.msra.mxu0 0
      %1352 = vmatprep.subr.bf16.mxu0 0
      %1353 = vmatpush1.bf16.msra.mxu0 0
      %1354 = vmatprep.subr.bf16.mxu0 0
      %1355 = vmatpush1.bf16.msra.mxu0 0
      %1356 = vmatprep.mubr.bf16.mxu0 0
      %1357 = vmatmul.mubr.bf16.gmra.mrb[0].mxu0 %v1193
      %v1358 = vpop.f32.mrb[0].mxu0
      %v1359 = vadd.f32 %v1254, %v1358
      %v1360 = vpop.f32.mrb[0].mxu0
      %v1361 = vpop.f32.mrb[0].mxu0
      %v1362 = vadd.f32 %v1257, %v1361
      %v1363 = vpop.f32.mrb[0].mxu0
      %1364 = vmatprep.mubr.bf16.mxu0 0
      %1365 = vmatmul.mubr.bf16.gmra.mrb[0].mxu0 %v1196
      %v1366 = vpop.f32.mrb[0].mxu0
      %v1367 = vadd.f32 %v1262, %v1366
      %v1368 = vpop.f32.mrb[0].mxu0
      %v1369 = vpop.f32.mrb[0].mxu0
      %v1370 = vadd.f32 %v1265, %v1369
      %v1371 = vpop.f32.mrb[0].mxu0
      %1372 = vmatprep.mubr.bf16.mxu0 0
      %1373 = vmatmul.mubr.bf16.gmra.mrb[0].mxu0 %v1199
      %v1374 = vpop.f32.mrb[0].mxu0
      %v1375 = vadd.f32 %v1270, %v1374
      %v1376 = vpop.f32.mrb[0].mxu0
      %v1377 = vpop.f32.mrb[0].mxu0
      %v1378 = vadd.f32 %v1273, %v1377
      %v1379 = vpop.f32.mrb[0].mxu0
      %1380 = vmatprep.mubr.bf16.mxu0 0
      %1381 = vmatmul.mubr.bf16.gmra.mrb[0].mxu0 %v1202
      %v1382 = vpop.f32.mrb[0].mxu0
      %v1383 = vadd.f32 %v1278, %v1382
      %v1384 = vpop.f32.mrb[0].mxu0
      %v1385 = vpop.f32.mrb[0].mxu0
      %v1386 = vadd.f32 %v1281, %v1385
      %v1387 = vpop.f32.mrb[0].mxu0
      %1388 = vmatprep.mubr.bf16.mxu0 0
      %1389 = vmatmul.mubr.bf16.gmra.mrb[0].mxu0 %v1205
      %v1390 = vpop.f32.mrb[0].mxu0
      %v1391 = vadd.f32 %v1286, %v1390
      %v1392 = vpop.f32.mrb[0].mxu0
      %v1393 = vpop.f32.mrb[0].mxu0
      %v1394 = vadd.f32 %v1289, %v1393
      %v1395 = vpop.f32.mrb[0].mxu0
      %1396 = vmatprep.mubr.bf16.mxu0 0
      %1397 = vmatmul.mubr.bf16.gmra.mrb[0].mxu0 %v1208
      %v1398 = vpop.f32.mrb[0].mxu0
      %v1399 = vadd.f32 %v1294, %v1398
      %v1400 = vpop.f32.mrb[0].mxu0
      %v1401 = vpop.f32.mrb[0].mxu0
      %v1402 = vadd.f32 %v1297, %v1401
      %v1403 = vpop.f32.mrb[0].mxu0
      %1404 = vmatprep.mubr.bf16.mxu0 0
      %1405 = vmatmul.mubr.bf16.gmra.mrb[0].mxu0 %v1211
      %v1406 = vpop.f32.mrb[0].mxu0
      %v1407 = vadd.f32 %v1302, %v1406
      %v1408 = vpop.f32.mrb[0].mxu0
      %v1409 = vpop.f32.mrb[0].mxu0
      %v1410 = vadd.f32 %v1305, %v1409
      %v1411 = vpop.f32.mrb[0].mxu0
      %1412 = vmatprep.mubr.bf16.mxu0 0
      %1413 = vmatmul.mubr.bf16.gmra.mrb[0].mxu0 %v1214
      %v1414 = vpop.f32.mrb[0].mxu0
      %v1415 = vadd.f32 %v1310, %v1414
      %v1416 = vpop.f32.mrb[0].mxu0
      %v1417 = vpop.f32.mrb[0].mxu0
      %v1418 = vadd.f32 %v1313, %v1417
      %v1419 = vpop.f32.mrb[0].mxu0
      %1420 = vmatprep.mubr.bf16.mxu0 0
      %1421 = vmatmul.mubr.bf16.gmra.mrb[0].mxu0 %v1217
      %v1422 = vpop.f32.mrb[0].mxu0
      %v1423 = vadd.f32 %v1318, %v1422
      %v1424 = vpop.f32.mrb[0].mxu0
      %v1425 = vpop.f32.mrb[0].mxu0
      %v1426 = vadd.f32 %v1321, %v1425
      %v1427 = vpop.f32.mrb[0].mxu0
      %1428 = vdwg.mxu0
      %v1429 = vpack.c.bf16 %v1362, %v1359
      %v1430 = vpack.c.bf16 %v1370, %v1367
      %v1431 = vpack.c.bf16 %v1378, %v1375
      %v1432 = vpack.c.bf16 %v1386, %v1383
      %v1433 = vpack.c.bf16 %v1394, %v1391
      %v1434 = vpack.c.bf16 %v1402, %v1399
      %v1435 = vpack.c.bf16 %v1410, %v1407
      %v1436 = vpack.c.bf16 %v1418, %v1415
      %v1437 = vpack.c.bf16 %v1426, %v1423
      %s1438 = scalar_lea.vmem %s1, 432
      %v1439 = vld [vmem:[%s1438] sm:$0xff]
      %v1440 = vld [vmem:[%s1438 + $0x8] sm:$0xf]
      %v1441 = vld [vmem:[%s1438 + $0xc] sm:$0xff]
      %v1442 = vld [vmem:[%s1438 + $0x14] sm:$0xf]
      %v1443 = vld [vmem:[%s1438 + $0x18] sm:$0xff]
      %v1444 = vld [vmem:[%s1438 + $0x20] sm:$0xf]
      %v1445 = vld [vmem:[%s1438 + $0x24] sm:$0xff]
      %v1446 = vld [vmem:[%s1438 + $0x2c] sm:$0xf]
      %v1447 = vld [vmem:[%s1438 + $0x30] sm:$0xff]
      %v1448 = vld [vmem:[%s1438 + $0x38] sm:$0xf]
      %v1449 = vld [vmem:[%s1438 + $0x3c] sm:$0xff]
      %v1450 = vld [vmem:[%s1438 + $0x44] sm:$0xf]
      %v1451 = vld [vmem:[%s1438 + $0x48] sm:$0xff]
      %v1452 = vld [vmem:[%s1438 + $0x50] sm:$0xf]
      %v1453 = vld [vmem:[%s1438 + $0x54] sm:$0xff]
      %v1454 = vld [vmem:[%s1438 + $0x5c] sm:$0xf]
      %v1455 = vld [vmem:[%s1438 + $0x60] sm:$0xff]
      %v1456 = vld [vmem:[%s1438 + $0x68] sm:$0xf]
      %v1457 = vld [vmem:[%s1438 + $0x6c] sm:$0xff]
      %v1458 = vld [vmem:[%s1438 + $0x74] sm:$0xf]
      %v1459 = vld [vmem:[%s1438 + $0x78] sm:$0xff]
      %v1460 = vld [vmem:[%s1438 + $0x80] sm:$0xf]
      %v1461 = vld [vmem:[%s1438 + $0x84] sm:$0xff]
      %v1462 = vld [vmem:[%s1438 + $0x8c] sm:$0xf]
      %v1463 = vld [vmem:[%s1438 + $0x90] sm:$0xff]
      %v1464 = vld [vmem:[%s1438 + $0x98] sm:$0xf]
      %v1465 = vld [vmem:[%s1438 + $0x9c] sm:$0xff]
      %v1466 = vld [vmem:[%s1438 + $0xa4] sm:$0xf]
      %v1467 = vld [vmem:[%s1438 + $0xa8] sm:$0xff]
      %v1468 = vld [vmem:[%s1438 + $0xb0] sm:$0xf]
      %v1469 = vld [vmem:[%s1438 + $0xb4] sm:$0xff]
      %v1470 = vld [vmem:[%s1438 + $0xbc] sm:$0xf]
      %v1471 = vld [vmem:[%s1438 + $0xc0] sm:$0xff]
      %v1472 = vld [vmem:[%s1438 + $0xc8] sm:$0xf]
      %v1473 = vld [vmem:[%s1438 + $0xcc] sm:$0xff]
      %v1474 = vld [vmem:[%s1438 + $0xd4] sm:$0xf]
      %v1511 = vunpack.c.l.b16 %v1439
      %v1512 = vunpack.c.h.b16 %v1439
      %v1513 = vunpack.c.l.b16 %v1440
      %v1514 = vunpack.c.l.b16 %v1441
      %v1515 = vunpack.c.h.b16 %v1441
      %v1516 = vunpack.c.l.b16 %v1442
      %v1517 = vunpack.c.l.b16 %v1443
      %v1518 = vunpack.c.h.b16 %v1443
      %v1519 = vunpack.c.l.b16 %v1444
      %v1520 = vunpack.c.l.b16 %v1445
      %v1521 = vunpack.c.h.b16 %v1445
      %v1522 = vunpack.c.l.b16 %v1446
      %v1523 = vunpack.c.l.b16 %v1447
      %v1524 = vunpack.c.h.b16 %v1447
      %v1525 = vunpack.c.l.b16 %v1448
      %v1526 = vunpack.c.l.b16 %v1449
      %v1527 = vunpack.c.h.b16 %v1449
      %v1528 = vunpack.c.l.b16 %v1450
      %v1529 = vunpack.c.l.b16 %v1451
      %v1530 = vunpack.c.h.b16 %v1451
      %v1531 = vunpack.c.l.b16 %v1452
      %v1532 = vunpack.c.l.b16 %v1453
      %v1533 = vunpack.c.h.b16 %v1453
      %v1534 = vunpack.c.l.b16 %v1454
      %v1535 = vunpack.c.l.b16 %v1455
      %v1536 = vunpack.c.h.b16 %v1455
      %v1537 = vunpack.c.l.b16 %v1456
      %v1538 = vunpack.c.l.b16 %v1457
      %v1539 = vunpack.c.h.b16 %v1457
      %v1540 = vunpack.c.l.b16 %v1458
      %v1541 = vunpack.c.l.b16 %v1459
      %v1542 = vunpack.c.h.b16 %v1459
      %v1543 = vunpack.c.l.b16 %v1460
      %v1544 = vunpack.c.l.b16 %v1461
      %v1545 = vunpack.c.h.b16 %v1461
      %v1546 = vunpack.c.l.b16 %v1462
      %v1547 = vunpack.c.l.b16 %v1463
      %v1548 = vunpack.c.h.b16 %v1463
      %v1549 = vunpack.c.l.b16 %v1464
      %v1550 = vunpack.c.l.b16 %v1465
      %v1551 = vunpack.c.h.b16 %v1465
      %v1552 = vunpack.c.l.b16 %v1466
      %v1553 = vunpack.c.l.b16 %v1467
      %v1554 = vunpack.c.h.b16 %v1467
      %v1555 = vunpack.c.l.b16 %v1468
      %v1556 = vunpack.c.l.b16 %v1469
      %v1557 = vunpack.c.h.b16 %v1469
      %v1558 = vunpack.c.l.b16 %v1470
      %v1559 = vunpack.c.l.b16 %v1471
      %v1560 = vunpack.c.h.b16 %v1471
      %v1561 = vunpack.c.l.b16 %v1472
      %v1562 = vunpack.c.l.b16 %v1473
      %v1563 = vunpack.c.h.b16 %v1473
      %v1564 = vunpack.c.l.b16 %v1474
      %v1565 = vpack.c.b16 %v1514, %v1511
      %v1566 = vpack.c.b16 %v1515, %v1512
      %v1567 = vpack.c.b16 %v1516, %v1513
      %v1568 = vpack.c.b16 %v1520, %v1517
      %v1569 = vpack.c.b16 %v1521, %v1518
      %v1570 = vpack.c.b16 %v1522, %v1519
      %v1571 = vpack.c.b16 %v1526, %v1523
      %v1572 = vpack.c.b16 %v1527, %v1524
      %v1573 = vpack.c.b16 %v1528, %v1525
      %v1574 = vpack.c.b16 %v1532, %v1529
      %v1575 = vpack.c.b16 %v1533, %v1530
      %v1576 = vpack.c.b16 %v1534, %v1531
      %v1577 = vpack.c.b16 %v1538, %v1535
      %v1578 = vpack.c.b16 %v1539, %v1536
      %v1579 = vpack.c.b16 %v1540, %v1537
      %v1580 = vpack.c.b16 %v1544, %v1541
      %v1581 = vpack.c.b16 %v1545, %v1542
      %v1582 = vpack.c.b16 %v1546, %v1543
      %v1583 = vpack.c.b16 %v1550, %v1547
      %v1584 = vpack.c.b16 %v1551, %v1548
      %v1585 = vpack.c.b16 %v1552, %v1549
      %v1586 = vpack.c.b16 %v1556, %v1553
      %v1587 = vpack.c.b16 %v1557, %v1554
      %v1588 = vpack.c.b16 %v1558, %v1555
      %v1589 = vpack.c.b16 %v1562, %v1559
      %v1590 = vpack.c.b16 %v1563, %v1560
      %v1591 = vpack.c.b16 %v1564, %v1561
      %v1611 = vsel %vm773, %v1567, 0
      %v1614 = vsel %vm773, %v1570, 0
      %v1617 = vsel %vm773, %v1573, 0
      %v1620 = vsel %vm773, %v1576, 0
      %v1623 = vsel %vm773, %v1579, 0
      %v1626 = vsel %vm773, %v1582, 0
      %v1629 = vsel %vm773, %v1585, 0
      %v1632 = vsel %vm773, %v1588, 0
      %v1635 = vsel %vm773, %v1591, 0
      %1637 = vmatprep.subr.bf16.mxu0 0
      %1638 = vmatpush1.bf16.msra.mxu0 %v733
      %1639 = vmatprep.subr.bf16.mxu0 0
      %1640 = vmatpush1.bf16.msra.mxu0 %v734
      %1641 = vmatprep.subr.bf16.mxu0 0
      %1642 = vmatpush1.bf16.msra.mxu0 %v735
      %1643 = vmatprep.subr.bf16.mxu0 0
      %1644 = vmatpush1.bf16.msra.mxu0 %v736
      %1645 = vmatprep.subr.bf16.mxu0 0
      %1646 = vmatpush1.bf16.msra.mxu0 %v737
      %1647 = vmatprep.subr.bf16.mxu0 0
      %1648 = vmatpush1.bf16.msra.mxu0 %v738
      %1649 = vmatprep.subr.bf16.mxu0 0
      %1650 = vmatpush1.bf16.msra.mxu0 %v739
      %1651 = vmatprep.subr.bf16.mxu0 0
      %1652 = vmatpush1.bf16.msra.mxu0 %v740
      %1653 = vmatprep.subr.bf16.mxu0 0
      %1654 = vmatpush1.bf16.msra.mxu0 %v741
      %1655 = vmatprep.subr.bf16.mxu0 0
      %1656 = vmatpush1.bf16.msra.mxu0 %v742
      %1657 = vmatprep.subr.bf16.mxu0 0
      %1658 = vmatpush1.bf16.msra.mxu0 %v743
      %1659 = vmatprep.subr.bf16.mxu0 0
      %1660 = vmatpush1.bf16.msra.mxu0 %v744
      %1661 = vmatprep.subr.bf16.mxu0 0
      %1662 = vmatpush1.bf16.msra.mxu0 %v745
      %1663 = vmatprep.subr.bf16.mxu0 0
      %1664 = vmatpush1.bf16.msra.mxu0 %v746
      %1665 = vmatprep.subr.bf16.mxu0 0
      %1666 = vmatpush1.bf16.msra.mxu0 %v747
      %1667 = vmatprep.subr.bf16.mxu0 0
      %1668 = vmatpush1.bf16.msra.mxu0 %v748
      %1669 = vmatprep.mubr.bf16.mxu0 %v1566
      %1670 = vmatmul.mubr.bf16.gmra.mrb[0].mxu0 %v1565
      %v1671 = vpop.f32.mrb[0].mxu0
      %v1672 = vadd.f32 0.0, %v1671
      %v1673 = vpop.f32.mrb[0].mxu0
      %v1674 = vpop.f32.mrb[0].mxu0
      %v1675 = vadd.f32 0.0, %v1674
      %v1676 = vpop.f32.mrb[0].mxu0
      %1677 = vmatprep.mubr.bf16.mxu0 %v1569
      %1678 = vmatmul.mubr.bf16.gmra.mrb[0].mxu0 %v1568
      %v1679 = vpop.f32.mrb[0].mxu0
      %v1680 = vadd.f32 0.0, %v1679
      %v1681 = vpop.f32.mrb[0].mxu0
      %v1682 = vpop.f32.mrb[0].mxu0
      %v1683 = vadd.f32 0.0, %v1682
      %v1684 = vpop.f32.mrb[0].mxu0
      %1685 = vmatprep.mubr.bf16.mxu0 %v1572
      %1686 = vmatmul.mubr.bf16.gmra.mrb[0].mxu0 %v1571
      %v1687 = vpop.f32.mrb[0].mxu0
      %v1688 = vadd.f32 0.0, %v1687
      %v1689 = vpop.f32.mrb[0].mxu0
      %v1690 = vpop.f32.mrb[0].mxu0
      %v1691 = vadd.f32 0.0, %v1690
      %v1692 = vpop.f32.mrb[0].mxu0
      %1693 = vmatprep.mubr.bf16.mxu0 %v1575
      %1694 = vmatmul.mubr.bf16.gmra.mrb[0].mxu0 %v1574
      %v1695 = vpop.f32.mrb[0].mxu0
      %v1696 = vadd.f32 0.0, %v1695
      %v1697 = vpop.f32.mrb[0].mxu0
      %v1698 = vpop.f32.mrb[0].mxu0
      %v1699 = vadd.f32 0.0, %v1698
      %v1700 = vpop.f32.mrb[0].mxu0
      %1701 = vmatprep.mubr.bf16.mxu0 %v1578
      %1702 = vmatmul.mubr.bf16.gmra.mrb[0].mxu0 %v1577
      %v1703 = vpop.f32.mrb[0].mxu0
      %v1704 = vadd.f32 0.0, %v1703
      %v1705 = vpop.f32.mrb[0].mxu0
      %v1706 = vpop.f32.mrb[0].mxu0
      %v1707 = vadd.f32 0.0, %v1706
      %v1708 = vpop.f32.mrb[0].mxu0
      %1709 = vmatprep.mubr.bf16.mxu0 %v1581
      %1710 = vmatmul.mubr.bf16.gmra.mrb[0].mxu0 %v1580
      %v1711 = vpop.f32.mrb[0].mxu0
      %v1712 = vadd.f32 0.0, %v1711
      %v1713 = vpop.f32.mrb[0].mxu0
      %v1714 = vpop.f32.mrb[0].mxu0
      %v1715 = vadd.f32 0.0, %v1714
      %v1716 = vpop.f32.mrb[0].mxu0
      %1717 = vmatprep.mubr.bf16.mxu0 %v1584
      %1718 = vmatmul.mubr.bf16.gmra.mrb[0].mxu0 %v1583
      %v1719 = vpop.f32.mrb[0].mxu0
      %v1720 = vadd.f32 0.0, %v1719
      %v1721 = vpop.f32.mrb[0].mxu0
      %v1722 = vpop.f32.mrb[0].mxu0
      %v1723 = vadd.f32 0.0, %v1722
      %v1724 = vpop.f32.mrb[0].mxu0
      %1725 = vmatprep.mubr.bf16.mxu0 %v1587
      %1726 = vmatmul.mubr.bf16.gmra.mrb[0].mxu0 %v1586
      %v1727 = vpop.f32.mrb[0].mxu0
      %v1728 = vadd.f32 0.0, %v1727
      %v1729 = vpop.f32.mrb[0].mxu0
      %v1730 = vpop.f32.mrb[0].mxu0
      %v1731 = vadd.f32 0.0, %v1730
      %v1732 = vpop.f32.mrb[0].mxu0
      %1733 = vmatprep.mubr.bf16.mxu0 %v1590
      %1734 = vmatmul.mubr.bf16.gmra.mrb[0].mxu0 %v1589
      %v1735 = vpop.f32.mrb[0].mxu0
      %v1736 = vadd.f32 0.0, %v1735
      %v1737 = vpop.f32.mrb[0].mxu0
      %v1738 = vpop.f32.mrb[0].mxu0
      %v1739 = vadd.f32 0.0, %v1738
      %v1740 = vpop.f32.mrb[0].mxu0
      %1741 = vdwg.mxu0
      %1742 = vmatprep.subr.bf16.mxu0 0
      %1743 = vmatpush1.bf16.msra.mxu0 %v749
      %1744 = vmatprep.subr.bf16.mxu0 0
      %1745 = vmatpush1.bf16.msra.mxu0 %v750
      %1746 = vmatprep.subr.bf16.mxu0 0
      %1747 = vmatpush1.bf16.msra.mxu0 %v751
      %1748 = vmatprep.subr.bf16.mxu0 0
      %1749 = vmatpush1.bf16.msra.mxu0 %v752
      %1750 = vmatprep.subr.bf16.mxu0 0
      %1751 = vmatpush1.bf16.msra.mxu0 0
      %1752 = vmatprep.subr.bf16.mxu0 0
      %1753 = vmatpush1.bf16.msra.mxu0 0
      %1754 = vmatprep.subr.bf16.mxu0 0
      %1755 = vmatpush1.bf16.msra.mxu0 0
      %1756 = vmatprep.subr.bf16.mxu0 0
      %1757 = vmatpush1.bf16.msra.mxu0 0
      %1758 = vmatprep.subr.bf16.mxu0 0
      %1759 = vmatpush1.bf16.msra.mxu0 0
      %1760 = vmatprep.subr.bf16.mxu0 0
      %1761 = vmatpush1.bf16.msra.mxu0 0
      %1762 = vmatprep.subr.bf16.mxu0 0
      %1763 = vmatpush1.bf16.msra.mxu0 0
      %1764 = vmatprep.subr.bf16.mxu0 0
      %1765 = vmatpush1.bf16.msra.mxu0 0
      %1766 = vmatprep.subr.bf16.mxu0 0
      %1767 = vmatpush1.bf16.msra.mxu0 0
      %1768 = vmatprep.subr.bf16.mxu0 0
      %1769 = vmatpush1.bf16.msra.mxu0 0
      %1770 = vmatprep.subr.bf16.mxu0 0
      %1771 = vmatpush1.bf16.msra.mxu0 0
      %1772 = vmatprep.subr.bf16.mxu0 0
      %1773 = vmatpush1.bf16.msra.mxu0 0
      %1774 = vmatprep.mubr.bf16.mxu0 0
      %1775 = vmatmul.mubr.bf16.gmra.mrb[0].mxu0 %v1611
      %v1776 = vpop.f32.mrb[0].mxu0
      %v1777 = vadd.f32 %v1672, %v1776
      %v1778 = vpop.f32.mrb[0].mxu0
      %v1779 = vpop.f32.mrb[0].mxu0
      %v1780 = vadd.f32 %v1675, %v1779
      %v1781 = vpop.f32.mrb[0].mxu0
      %1782 = vmatprep.mubr.bf16.mxu0 0
      %1783 = vmatmul.mubr.bf16.gmra.mrb[0].mxu0 %v1614
      %v1784 = vpop.f32.mrb[0].mxu0
      %v1785 = vadd.f32 %v1680, %v1784
      %v1786 = vpop.f32.mrb[0].mxu0
      %v1787 = vpop.f32.mrb[0].mxu0
      %v1788 = vadd.f32 %v1683, %v1787
      %v1789 = vpop.f32.mrb[0].mxu0
      %1790 = vmatprep.mubr.bf16.mxu0 0
      %1791 = vmatmul.mubr.bf16.gmra.mrb[0].mxu0 %v1617
      %v1792 = vpop.f32.mrb[0].mxu0
      %v1793 = vadd.f32 %v1688, %v1792
      %v1794 = vpop.f32.mrb[0].mxu0
      %v1795 = vpop.f32.mrb[0].mxu0
      %v1796 = vadd.f32 %v1691, %v1795
      %v1797 = vpop.f32.mrb[0].mxu0
      %1798 = vmatprep.mubr.bf16.mxu0 0
      %1799 = vmatmul.mubr.bf16.gmra.mrb[0].mxu0 %v1620
      %v1800 = vpop.f32.mrb[0].mxu0
      %v1801 = vadd.f32 %v1696, %v1800
      %v1802 = vpop.f32.mrb[0].mxu0
      %v1803 = vpop.f32.mrb[0].mxu0
      %v1804 = vadd.f32 %v1699, %v1803
      %v1805 = vpop.f32.mrb[0].mxu0
      %1806 = vmatprep.mubr.bf16.mxu0 0
      %1807 = vmatmul.mubr.bf16.gmra.mrb[0].mxu0 %v1623
      %v1808 = vpop.f32.mrb[0].mxu0
      %v1809 = vadd.f32 %v1704, %v1808
      %v1810 = vpop.f32.mrb[0].mxu0
      %v1811 = vpop.f32.mrb[0].mxu0
      %v1812 = vadd.f32 %v1707, %v1811
      %v1813 = vpop.f32.mrb[0].mxu0
      %1814 = vmatprep.mubr.bf16.mxu0 0
      %1815 = vmatmul.mubr.bf16.gmra.mrb[0].mxu0 %v1626
      %v1816 = vpop.f32.mrb[0].mxu0
      %v1817 = vadd.f32 %v1712, %v1816
      %v1818 = vpop.f32.mrb[0].mxu0
      %v1819 = vpop.f32.mrb[0].mxu0
      %v1820 = vadd.f32 %v1715, %v1819
      %v1821 = vpop.f32.mrb[0].mxu0
      %1822 = vmatprep.mubr.bf16.mxu0 0
      %1823 = vmatmul.mubr.bf16.gmra.mrb[0].mxu0 %v1629
      %v1824 = vpop.f32.mrb[0].mxu0
      %v1825 = vadd.f32 %v1720, %v1824
      %v1826 = vpop.f32.mrb[0].mxu0
      %v1827 = vpop.f32.mrb[0].mxu0
      %v1828 = vadd.f32 %v1723, %v1827
      %v1829 = vpop.f32.mrb[0].mxu0
      %1830 = vmatprep.mubr.bf16.mxu0 0
      %1831 = vmatmul.mubr.bf16.gmra.mrb[0].mxu0 %v1632
      %v1832 = vpop.f32.mrb[0].mxu0
      %v1833 = vadd.f32 %v1728, %v1832
      %v1834 = vpop.f32.mrb[0].mxu0
      %v1835 = vpop.f32.mrb[0].mxu0
      %v1836 = vadd.f32 %v1731, %v1835
      %v1837 = vpop.f32.mrb[0].mxu0
      %1838 = vmatprep.mubr.bf16.mxu0 0
      %1839 = vmatmul.mubr.bf16.gmra.mrb[0].mxu0 %v1635
      %v1840 = vpop.f32.mrb[0].mxu0
      %v1841 = vadd.f32 %v1736, %v1840
      %v1842 = vpop.f32.mrb[0].mxu0
      %v1843 = vpop.f32.mrb[0].mxu0
      %v1844 = vadd.f32 %v1739, %v1843
      %v1845 = vpop.f32.mrb[0].mxu0
      %1846 = vdwg.mxu0
      %v1847 = vpack.c.bf16 %v1780, %v1777
      %v1848 = vpack.c.bf16 %v1788, %v1785
      %v1849 = vpack.c.bf16 %v1796, %v1793
      %v1850 = vpack.c.bf16 %v1804, %v1801
      %v1851 = vpack.c.bf16 %v1812, %v1809
      %v1852 = vpack.c.bf16 %v1820, %v1817
      %v1853 = vpack.c.bf16 %v1828, %v1825
      %v1854 = vpack.c.bf16 %v1836, %v1833
      %v1855 = vpack.c.bf16 %v1844, %v1841
      %s1856 = scalar_lea.vmem %s1, 648
      %v1857 = vld [vmem:[%s1856] sm:$0xff]
      %v1858 = vld [vmem:[%s1856 + $0x8] sm:$0xf]
      %v1859 = vld [vmem:[%s1856 + $0xc] sm:$0xff]
      %v1860 = vld [vmem:[%s1856 + $0x14] sm:$0xf]
      %v1861 = vld [vmem:[%s1856 + $0x18] sm:$0xff]
      %v1862 = vld [vmem:[%s1856 + $0x20] sm:$0xf]
      %v1863 = vld [vmem:[%s1856 + $0x24] sm:$0xff]
      %v1864 = vld [vmem:[%s1856 + $0x2c] sm:$0xf]
      %v1865 = vld [vmem:[%s1856 + $0x30] sm:$0xff]
      %v1866 = vld [vmem:[%s1856 + $0x38] sm:$0xf]
      %v1867 = vld [vmem:[%s1856 + $0x3c] sm:$0xff]
      %v1868 = vld [vmem:[%s1856 + $0x44] sm:$0xf]
      %v1869 = vld [vmem:[%s1856 + $0x48] sm:$0xff]
      %v1870 = vld [vmem:[%s1856 + $0x50] sm:$0xf]
      %v1871 = vld [vmem:[%s1856 + $0x54] sm:$0xff]
      %v1872 = vld [vmem:[%s1856 + $0x5c] sm:$0xf]
      %v1873 = vld [vmem:[%s1856 + $0x60] sm:$0xff]
      %v1874 = vld [vmem:[%s1856 + $0x68] sm:$0xf]
      %v1875 = vld [vmem:[%s1856 + $0x6c] sm:$0xff]
      %v1876 = vld [vmem:[%s1856 + $0x74] sm:$0xf]
      %v1877 = vld [vmem:[%s1856 + $0x78] sm:$0xff]
      %v1878 = vld [vmem:[%s1856 + $0x80] sm:$0xf]
      %v1879 = vld [vmem:[%s1856 + $0x84] sm:$0xff]
      %v1880 = vld [vmem:[%s1856 + $0x8c] sm:$0xf]
      %v1881 = vld [vmem:[%s1856 + $0x90] sm:$0xff]
      %v1882 = vld [vmem:[%s1856 + $0x98] sm:$0xf]
      %v1883 = vld [vmem:[%s1856 + $0x9c] sm:$0xff]
      %v1884 = vld [vmem:[%s1856 + $0xa4] sm:$0xf]
      %v1885 = vld [vmem:[%s1856 + $0xa8] sm:$0xff]
      %v1886 = vld [vmem:[%s1856 + $0xb0] sm:$0xf]
      %v1887 = vld [vmem:[%s1856 + $0xb4] sm:$0xff]
      %v1888 = vld [vmem:[%s1856 + $0xbc] sm:$0xf]
      %v1889 = vld [vmem:[%s1856 + $0xc0] sm:$0xff]
      %v1890 = vld [vmem:[%s1856 + $0xc8] sm:$0xf]
      %v1891 = vld [vmem:[%s1856 + $0xcc] sm:$0xff]
      %v1892 = vld [vmem:[%s1856 + $0xd4] sm:$0xf]
      %v1929 = vunpack.c.l.b16 %v1857
      %v1930 = vunpack.c.h.b16 %v1857
      %v1931 = vunpack.c.l.b16 %v1858
      %v1932 = vunpack.c.l.b16 %v1859
      %v1933 = vunpack.c.h.b16 %v1859
      %v1934 = vunpack.c.l.b16 %v1860
      %v1935 = vunpack.c.l.b16 %v1861
      %v1936 = vunpack.c.h.b16 %v1861
      %v1937 = vunpack.c.l.b16 %v1862
      %v1938 = vunpack.c.l.b16 %v1863
      %v1939 = vunpack.c.h.b16 %v1863
      %v1940 = vunpack.c.l.b16 %v1864
      %v1941 = vunpack.c.l.b16 %v1865
      %v1942 = vunpack.c.h.b16 %v1865
      %v1943 = vunpack.c.l.b16 %v1866
      %v1944 = vunpack.c.l.b16 %v1867
      %v1945 = vunpack.c.h.b16 %v1867
      %v1946 = vunpack.c.l.b16 %v1868
      %v1947 = vunpack.c.l.b16 %v1869
      %v1948 = vunpack.c.h.b16 %v1869
      %v1949 = vunpack.c.l.b16 %v1870
      %v1950 = vunpack.c.l.b16 %v1871
      %v1951 = vunpack.c.h.b16 %v1871
      %v1952 = vunpack.c.l.b16 %v1872
      %v1953 = vunpack.c.l.b16 %v1873
      %v1954 = vunpack.c.h.b16 %v1873
      %v1955 = vunpack.c.l.b16 %v1874
      %v1956 = vunpack.c.l.b16 %v1875
      %v1957 = vunpack.c.h.b16 %v1875
      %v1958 = vunpack.c.l.b16 %v1876
      %v1959 = vunpack.c.l.b16 %v1877
      %v1960 = vunpack.c.h.b16 %v1877
      %v1961 = vunpack.c.l.b16 %v1878
      %v1962 = vunpack.c.l.b16 %v1879
      %v1963 = vunpack.c.h.b16 %v1879
      %v1964 = vunpack.c.l.b16 %v1880
      %v1965 = vunpack.c.l.b16 %v1881
      %v1966 = vunpack.c.h.b16 %v1881
      %v1967 = vunpack.c.l.b16 %v1882
      %v1968 = vunpack.c.l.b16 %v1883
      %v1969 = vunpack.c.h.b16 %v1883
      %v1970 = vunpack.c.l.b16 %v1884
      %v1971 = vunpack.c.l.b16 %v1885
      %v1972 = vunpack.c.h.b16 %v1885
      %v1973 = vunpack.c.l.b16 %v1886
      %v1974 = vunpack.c.l.b16 %v1887
      %v1975 = vunpack.c.h.b16 %v1887
      %v1976 = vunpack.c.l.b16 %v1888
      %v1977 = vunpack.c.l.b16 %v1889
      %v1978 = vunpack.c.h.b16 %v1889
      %v1979 = vunpack.c.l.b16 %v1890
      %v1980 = vunpack.c.l.b16 %v1891
      %v1981 = vunpack.c.h.b16 %v1891
      %v1982 = vunpack.c.l.b16 %v1892
      %v1983 = vpack.c.b16 %v1932, %v1929
      %v1984 = vpack.c.b16 %v1933, %v1930
      %v1985 = vpack.c.b16 %v1934, %v1931
      %v1986 = vpack.c.b16 %v1938, %v1935
      %v1987 = vpack.c.b16 %v1939, %v1936
      %v1988 = vpack.c.b16 %v1940, %v1937
      %v1989 = vpack.c.b16 %v1944, %v1941
      %v1990 = vpack.c.b16 %v1945, %v1942
      %v1991 = vpack.c.b16 %v1946, %v1943
      %v1992 = vpack.c.b16 %v1950, %v1947
      %v1993 = vpack.c.b16 %v1951, %v1948
      %v1994 = vpack.c.b16 %v1952, %v1949
      %v1995 = vpack.c.b16 %v1956, %v1953
      %v1996 = vpack.c.b16 %v1957, %v1954
      %v1997 = vpack.c.b16 %v1958, %v1955
      %v1998 = vpack.c.b16 %v1962, %v1959
      %v1999 = vpack.c.b16 %v1963, %v1960
      %v2000 = vpack.c.b16 %v1964, %v1961
      %v2001 = vpack.c.b16 %v1968, %v1965
      %v2002 = vpack.c.b16 %v1969, %v1966
      %v2003 = vpack.c.b16 %v1970, %v1967
      %v2004 = vpack.c.b16 %v1974, %v1971
      %v2005 = vpack.c.b16 %v1975, %v1972
      %v2006 = vpack.c.b16 %v1976, %v1973
      %v2007 = vpack.c.b16 %v1980, %v1977
      %v2008 = vpack.c.b16 %v1981, %v1978
      %v2009 = vpack.c.b16 %v1982, %v1979
      %v2029 = vsel %vm773, %v1985, 0
      %v2032 = vsel %vm773, %v1988, 0
      %v2035 = vsel %vm773, %v1991, 0
      %v2038 = vsel %vm773, %v1994, 0
      %v2041 = vsel %vm773, %v1997, 0
      %v2044 = vsel %vm773, %v2000, 0
      %v2047 = vsel %vm773, %v2003, 0
      %v2050 = vsel %vm773, %v2006, 0
      %v2053 = vsel %vm773, %v2009, 0
      %2055 = vmatprep.subr.bf16.mxu0 0
      %2056 = vmatpush1.bf16.msra.mxu0 %v733
      %2057 = vmatprep.subr.bf16.mxu0 0
      %2058 = vmatpush1.bf16.msra.mxu0 %v734
      %2059 = vmatprep.subr.bf16.mxu0 0
      %2060 = vmatpush1.bf16.msra.mxu0 %v735
      %2061 = vmatprep.subr.bf16.mxu0 0
      %2062 = vmatpush1.bf16.msra.mxu0 %v736
      %2063 = vmatprep.subr.bf16.mxu0 0
      %2064 = vmatpush1.bf16.msra.mxu0 %v737
      %2065 = vmatprep.subr.bf16.mxu0 0
      %2066 = vmatpush1.bf16.msra.mxu0 %v738
      %2067 = vmatprep.subr.bf16.mxu0 0
      %2068 = vmatpush1.bf16.msra.mxu0 %v739
      %2069 = vmatprep.subr.bf16.mxu0 0
      %2070 = vmatpush1.bf16.msra.mxu0 %v740
      %2071 = vmatprep.subr.bf16.mxu0 0
      %2072 = vmatpush1.bf16.msra.mxu0 %v741
      %2073 = vmatprep.subr.bf16.mxu0 0
      %2074 = vmatpush1.bf16.msra.mxu0 %v742
      %2075 = vmatprep.subr.bf16.mxu0 0
      %2076 = vmatpush1.bf16.msra.mxu0 %v743
      %2077 = vmatprep.subr.bf16.mxu0 0
      %2078 = vmatpush1.bf16.msra.mxu0 %v744
      %2079 = vmatprep.subr.bf16.mxu0 0
      %2080 = vmatpush1.bf16.msra.mxu0 %v745
      %2081 = vmatprep.subr.bf16.mxu0 0
      %2082 = vmatpush1.bf16.msra.mxu0 %v746
      %2083 = vmatprep.subr.bf16.mxu0 0
      %2084 = vmatpush1.bf16.msra.mxu0 %v747
      %2085 = vmatprep.subr.bf16.mxu0 0
      %2086 = vmatpush1.bf16.msra.mxu0 %v748
      %2087 = vmatprep.mubr.bf16.mxu0 %v1984
      %2088 = vmatmul.mubr.bf16.gmra.mrb[0].mxu0 %v1983
      %v2089 = vpop.f32.mrb[0].mxu0
      %v2090 = vadd.f32 0.0, %v2089
      %v2091 = vpop.f32.mrb[0].mxu0
      %v2092 = vpop.f32.mrb[0].mxu0
      %v2093 = vadd.f32 0.0, %v2092
      %v2094 = vpop.f32.mrb[0].mxu0
      %2095 = vmatprep.mubr.bf16.mxu0 %v1987
      %2096 = vmatmul.mubr.bf16.gmra.mrb[0].mxu0 %v1986
      %v2097 = vpop.f32.mrb[0].mxu0
      %v2098 = vadd.f32 0.0, %v2097
      %v2099 = vpop.f32.mrb[0].mxu0
      %v2100 = vpop.f32.mrb[0].mxu0
      %v2101 = vadd.f32 0.0, %v2100
      %v2102 = vpop.f32.mrb[0].mxu0
      %2103 = vmatprep.mubr.bf16.mxu0 %v1990
      %2104 = vmatmul.mubr.bf16.gmra.mrb[0].mxu0 %v1989
      %v2105 = vpop.f32.mrb[0].mxu0
      %v2106 = vadd.f32 0.0, %v2105
      %v2107 = vpop.f32.mrb[0].mxu0
      %v2108 = vpop.f32.mrb[0].mxu0
      %v2109 = vadd.f32 0.0, %v2108
      %v2110 = vpop.f32.mrb[0].mxu0
      %2111 = vmatprep.mubr.bf16.mxu0 %v1993
      %2112 = vmatmul.mubr.bf16.gmra.mrb[0].mxu0 %v1992
      %v2113 = vpop.f32.mrb[0].mxu0
      %v2114 = vadd.f32 0.0, %v2113
      %v2115 = vpop.f32.mrb[0].mxu0
      %v2116 = vpop.f32.mrb[0].mxu0
      %v2117 = vadd.f32 0.0, %v2116
      %v2118 = vpop.f32.mrb[0].mxu0
      %2119 = vmatprep.mubr.bf16.mxu0 %v1996
      %2120 = vmatmul.mubr.bf16.gmra.mrb[0].mxu0 %v1995
      %v2121 = vpop.f32.mrb[0].mxu0
      %v2122 = vadd.f32 0.0, %v2121
      %v2123 = vpop.f32.mrb[0].mxu0
      %v2124 = vpop.f32.mrb[0].mxu0
      %v2125 = vadd.f32 0.0, %v2124
      %v2126 = vpop.f32.mrb[0].mxu0
      %2127 = vmatprep.mubr.bf16.mxu0 %v1999
      %2128 = vmatmul.mubr.bf16.gmra.mrb[0].mxu0 %v1998
      %v2129 = vpop.f32.mrb[0].mxu0
      %v2130 = vadd.f32 0.0, %v2129
      %v2131 = vpop.f32.mrb[0].mxu0
      %v2132 = vpop.f32.mrb[0].mxu0
      %v2133 = vadd.f32 0.0, %v2132
      %v2134 = vpop.f32.mrb[0].mxu0
      %2135 = vmatprep.mubr.bf16.mxu0 %v2002
      %2136 = vmatmul.mubr.bf16.gmra.mrb[0].mxu0 %v2001
      %v2137 = vpop.f32.mrb[0].mxu0
      %v2138 = vadd.f32 0.0, %v2137
      %v2139 = vpop.f32.mrb[0].mxu0
      %v2140 = vpop.f32.mrb[0].mxu0
      %v2141 = vadd.f32 0.0, %v2140
      %v2142 = vpop.f32.mrb[0].mxu0
      %2143 = vmatprep.mubr.bf16.mxu0 %v2005
      %2144 = vmatmul.mubr.bf16.gmra.mrb[0].mxu0 %v2004
      %v2145 = vpop.f32.mrb[0].mxu0
      %v2146 = vadd.f32 0.0, %v2145
      %v2147 = vpop.f32.mrb[0].mxu0
      %v2148 = vpop.f32.mrb[0].mxu0
      %v2149 = vadd.f32 0.0, %v2148
      %v2150 = vpop.f32.mrb[0].mxu0
      %2151 = vmatprep.mubr.bf16.mxu0 %v2008
      %2152 = vmatmul.mubr.bf16.gmra.mrb[0].mxu0 %v2007
      %v2153 = vpop.f32.mrb[0].mxu0
      %v2154 = vadd.f32 0.0, %v2153
      %v2155 = vpop.f32.mrb[0].mxu0
      %v2156 = vpop.f32.mrb[0].mxu0
      %v2157 = vadd.f32 0.0, %v2156
      %v2158 = vpop.f32.mrb[0].mxu0
      %2159 = vdwg.mxu0
      %2160 = vmatprep.subr.bf16.mxu0 0
      %2161 = vmatpush1.bf16.msra.mxu0 %v749
      %2162 = vmatprep.subr.bf16.mxu0 0
      %2163 = vmatpush1.bf16.msra.mxu0 %v750
      %2164 = vmatprep.subr.bf16.mxu0 0
      %2165 = vmatpush1.bf16.msra.mxu0 %v751
      %2166 = vmatprep.subr.bf16.mxu0 0
      %2167 = vmatpush1.bf16.msra.mxu0 %v752
      %2168 = vmatprep.subr.bf16.mxu0 0
      %2169 = vmatpush1.bf16.msra.mxu0 0
      %2170 = vmatprep.subr.bf16.mxu0 0
      %2171 = vmatpush1.bf16.msra.mxu0 0
      %2172 = vmatprep.subr.bf16.mxu0 0
      %2173 = vmatpush1.bf16.msra.mxu0 0
      %2174 = vmatprep.subr.bf16.mxu0 0
      %2175 = vmatpush1.bf16.msra.mxu0 0
      %2176 = vmatprep.subr.bf16.mxu0 0
      %2177 = vmatpush1.bf16.msra.mxu0 0
      %2178 = vmatprep.subr.bf16.mxu0 0
      %2179 = vmatpush1.bf16.msra.mxu0 0
      %2180 = vmatprep.subr.bf16.mxu0 0
      %2181 = vmatpush1.bf16.msra.mxu0 0
      %2182 = vmatprep.subr.bf16.mxu0 0
      %2183 = vmatpush1.bf16.msra.mxu0 0
      %2184 = vmatprep.subr.bf16.mxu0 0
      %2185 = vmatpush1.bf16.msra.mxu0 0
      %2186 = vmatprep.subr.bf16.mxu0 0
      %2187 = vmatpush1.bf16.msra.mxu0 0
      %2188 = vmatprep.subr.bf16.mxu0 0
      %2189 = vmatpush1.bf16.msra.mxu0 0
      %2190 = vmatprep.subr.bf16.mxu0 0
      %2191 = vmatpush1.bf16.msra.mxu0 0
      %2192 = vmatprep.mubr.bf16.mxu0 0
      %2193 = vmatmul.mubr.bf16.gmra.mrb[0].mxu0 %v2029
      %v2194 = vpop.f32.mrb[0].mxu0
      %v2195 = vadd.f32 %v2090, %v2194
      %v2196 = vpop.f32.mrb[0].mxu0
      %v2197 = vpop.f32.mrb[0].mxu0
      %v2198 = vadd.f32 %v2093, %v2197
      %v2199 = vpop.f32.mrb[0].mxu0
      %2200 = vmatprep.mubr.bf16.mxu0 0
      %2201 = vmatmul.mubr.bf16.gmra.mrb[0].mxu0 %v2032
      %v2202 = vpop.f32.mrb[0].mxu0
      %v2203 = vadd.f32 %v2098, %v2202
      %v2204 = vpop.f32.mrb[0].mxu0
      %v2205 = vpop.f32.mrb[0].mxu0
      %v2206 = vadd.f32 %v2101, %v2205
      %v2207 = vpop.f32.mrb[0].mxu0
      %2208 = vmatprep.mubr.bf16.mxu0 0
      %2209 = vmatmul.mubr.bf16.gmra.mrb[0].mxu0 %v2035
      %v2210 = vpop.f32.mrb[0].mxu0
      %v2211 = vadd.f32 %v2106, %v2210
      %v2212 = vpop.f32.mrb[0].mxu0
      %v2213 = vpop.f32.mrb[0].mxu0
      %v2214 = vadd.f32 %v2109, %v2213
      %v2215 = vpop.f32.mrb[0].mxu0
      %2216 = vmatprep.mubr.bf16.mxu0 0
      %2217 = vmatmul.mubr.bf16.gmra.mrb[0].mxu0 %v2038
      %v2218 = vpop.f32.mrb[0].mxu0
      %v2219 = vadd.f32 %v2114, %v2218
      %v2220 = vpop.f32.mrb[0].mxu0
      %v2221 = vpop.f32.mrb[0].mxu0
      %v2222 = vadd.f32 %v2117, %v2221
      %v2223 = vpop.f32.mrb[0].mxu0
      %2224 = vmatprep.mubr.bf16.mxu0 0
      %2225 = vmatmul.mubr.bf16.gmra.mrb[0].mxu0 %v2041
      %v2226 = vpop.f32.mrb[0].mxu0
      %v2227 = vadd.f32 %v2122, %v2226
      %v2228 = vpop.f32.mrb[0].mxu0
      %v2229 = vpop.f32.mrb[0].mxu0
      %v2230 = vadd.f32 %v2125, %v2229
      %v2231 = vpop.f32.mrb[0].mxu0
      %2232 = vmatprep.mubr.bf16.mxu0 0
      %2233 = vmatmul.mubr.bf16.gmra.mrb[0].mxu0 %v2044
      %v2234 = vpop.f32.mrb[0].mxu0
      %v2235 = vadd.f32 %v2130, %v2234
      %v2236 = vpop.f32.mrb[0].mxu0
      %v2237 = vpop.f32.mrb[0].mxu0
      %v2238 = vadd.f32 %v2133, %v2237
      %v2239 = vpop.f32.mrb[0].mxu0
      %2240 = vmatprep.mubr.bf16.mxu0 0
      %2241 = vmatmul.mubr.bf16.gmra.mrb[0].mxu0 %v2047
      %v2242 = vpop.f32.mrb[0].mxu0
      %v2243 = vadd.f32 %v2138, %v2242
      %v2244 = vpop.f32.mrb[0].mxu0
      %v2245 = vpop.f32.mrb[0].mxu0
      %v2246 = vadd.f32 %v2141, %v2245
      %v2247 = vpop.f32.mrb[0].mxu0
      %2248 = vmatprep.mubr.bf16.mxu0 0
      %2249 = vmatmul.mubr.bf16.gmra.mrb[0].mxu0 %v2050
      %v2250 = vpop.f32.mrb[0].mxu0
      %v2251 = vadd.f32 %v2146, %v2250
      %v2252 = vpop.f32.mrb[0].mxu0
      %v2253 = vpop.f32.mrb[0].mxu0
      %v2254 = vadd.f32 %v2149, %v2253
      %v2255 = vpop.f32.mrb[0].mxu0
      %2256 = vmatprep.mubr.bf16.mxu0 0
      %2257 = vmatmul.mubr.bf16.gmra.mrb[0].mxu0 %v2053
      %v2258 = vpop.f32.mrb[0].mxu0
      %v2259 = vadd.f32 %v2154, %v2258
      %v2260 = vpop.f32.mrb[0].mxu0
      %v2261 = vpop.f32.mrb[0].mxu0
      %v2262 = vadd.f32 %v2157, %v2261
      %v2263 = vpop.f32.mrb[0].mxu0
      %2264 = vdwg.mxu0
      %v2265 = vpack.c.bf16 %v2198, %v2195
      %v2266 = vpack.c.bf16 %v2206, %v2203
      %v2267 = vpack.c.bf16 %v2214, %v2211
      %v2268 = vpack.c.bf16 %v2222, %v2219
      %v2269 = vpack.c.bf16 %v2230, %v2227
      %v2270 = vpack.c.bf16 %v2238, %v2235
      %v2271 = vpack.c.bf16 %v2246, %v2243
      %v2272 = vpack.c.bf16 %v2254, %v2251
      %v2273 = vpack.c.bf16 %v2262, %v2259
      %s2274 = scalar_lea.vmem %s1, 864
      %v2275 = vld [vmem:[%s2274] sm:$0xff]
      %v2276 = vld [vmem:[%s2274 + $0x8] sm:$0xf]
      %v2277 = vld [vmem:[%s2274 + $0xc] sm:$0xff]
      %v2278 = vld [vmem:[%s2274 + $0x14] sm:$0xf]
      %v2279 = vld [vmem:[%s2274 + $0x18] sm:$0xff]
      %v2280 = vld [vmem:[%s2274 + $0x20] sm:$0xf]
      %v2281 = vld [vmem:[%s2274 + $0x24] sm:$0xff]
      %v2282 = vld [vmem:[%s2274 + $0x2c] sm:$0xf]
      %v2283 = vld [vmem:[%s2274 + $0x30] sm:$0xff]
      %v2284 = vld [vmem:[%s2274 + $0x38] sm:$0xf]
      %v2285 = vld [vmem:[%s2274 + $0x3c] sm:$0xff]
      %v2286 = vld [vmem:[%s2274 + $0x44] sm:$0xf]
      %v2287 = vld [vmem:[%s2274 + $0x48] sm:$0xff]
      %v2288 = vld [vmem:[%s2274 + $0x50] sm:$0xf]
      %v2289 = vld [vmem:[%s2274 + $0x54] sm:$0xff]
      %v2290 = vld [vmem:[%s2274 + $0x5c] sm:$0xf]
      %v2291 = vld [vmem:[%s2274 + $0x60] sm:$0xff]
      %v2292 = vld [vmem:[%s2274 + $0x68] sm:$0xf]
      %v2293 = vld [vmem:[%s2274 + $0x6c] sm:$0xff]
      %v2294 = vld [vmem:[%s2274 + $0x74] sm:$0xf]
      %v2295 = vld [vmem:[%s2274 + $0x78] sm:$0xff]
      %v2296 = vld [vmem:[%s2274 + $0x80] sm:$0xf]
      %v2297 = vld [vmem:[%s2274 + $0x84] sm:$0xff]
      %v2298 = vld [vmem:[%s2274 + $0x8c] sm:$0xf]
      %v2299 = vld [vmem:[%s2274 + $0x90] sm:$0xff]
      %v2300 = vld [vmem:[%s2274 + $0x98] sm:$0xf]
      %v2301 = vld [vmem:[%s2274 + $0x9c] sm:$0xff]
      %v2302 = vld [vmem:[%s2274 + $0xa4] sm:$0xf]
      %v2303 = vld [vmem:[%s2274 + $0xa8] sm:$0xff]
      %v2304 = vld [vmem:[%s2274 + $0xb0] sm:$0xf]
      %v2305 = vld [vmem:[%s2274 + $0xb4] sm:$0xff]
      %v2306 = vld [vmem:[%s2274 + $0xbc] sm:$0xf]
      %v2307 = vld [vmem:[%s2274 + $0xc0] sm:$0xff]
      %v2308 = vld [vmem:[%s2274 + $0xc8] sm:$0xf]
      %v2309 = vld [vmem:[%s2274 + $0xcc] sm:$0xff]
      %v2310 = vld [vmem:[%s2274 + $0xd4] sm:$0xf]
      %v2347 = vunpack.c.l.b16 %v2275
      %v2348 = vunpack.c.h.b16 %v2275
      %v2349 = vunpack.c.l.b16 %v2276
      %v2350 = vunpack.c.l.b16 %v2277
      %v2351 = vunpack.c.h.b16 %v2277
      %v2352 = vunpack.c.l.b16 %v2278
      %v2353 = vunpack.c.l.b16 %v2279
      %v2354 = vunpack.c.h.b16 %v2279
      %v2355 = vunpack.c.l.b16 %v2280
      %v2356 = vunpack.c.l.b16 %v2281
      %v2357 = vunpack.c.h.b16 %v2281
      %v2358 = vunpack.c.l.b16 %v2282
      %v2359 = vunpack.c.l.b16 %v2283
      %v2360 = vunpack.c.h.b16 %v2283
      %v2361 = vunpack.c.l.b16 %v2284
      %v2362 = vunpack.c.l.b16 %v2285
      %v2363 = vunpack.c.h.b16 %v2285
      %v2364 = vunpack.c.l.b16 %v2286
      %v2365 = vunpack.c.l.b16 %v2287
      %v2366 = vunpack.c.h.b16 %v2287
      %v2367 = vunpack.c.l.b16 %v2288
      %v2368 = vunpack.c.l.b16 %v2289
      %v2369 = vunpack.c.h.b16 %v2289
      %v2370 = vunpack.c.l.b16 %v2290
      %v2371 = vunpack.c.l.b16 %v2291
      %v2372 = vunpack.c.h.b16 %v2291
      %v2373 = vunpack.c.l.b16 %v2292
      %v2374 = vunpack.c.l.b16 %v2293
      %v2375 = vunpack.c.h.b16 %v2293
      %v2376 = vunpack.c.l.b16 %v2294
      %v2377 = vunpack.c.l.b16 %v2295
      %v2378 = vunpack.c.h.b16 %v2295
      %v2379 = vunpack.c.l.b16 %v2296
      %v2380 = vunpack.c.l.b16 %v2297
      %v2381 = vunpack.c.h.b16 %v2297
      %v2382 = vunpack.c.l.b16 %v2298
      %v2383 = vunpack.c.l.b16 %v2299
      %v2384 = vunpack.c.h.b16 %v2299
      %v2385 = vunpack.c.l.b16 %v2300
      %v2386 = vunpack.c.l.b16 %v2301
      %v2387 = vunpack.c.h.b16 %v2301
      %v2388 = vunpack.c.l.b16 %v2302
      %v2389 = vunpack.c.l.b16 %v2303
      %v2390 = vunpack.c.h.b16 %v2303
      %v2391 = vunpack.c.l.b16 %v2304
      %v2392 = vunpack.c.l.b16 %v2305
      %v2393 = vunpack.c.h.b16 %v2305
      %v2394 = vunpack.c.l.b16 %v2306
      %v2395 = vunpack.c.l.b16 %v2307
      %v2396 = vunpack.c.h.b16 %v2307
      %v2397 = vunpack.c.l.b16 %v2308
      %v2398 = vunpack.c.l.b16 %v2309
      %v2399 = vunpack.c.h.b16 %v2309
      %v2400 = vunpack.c.l.b16 %v2310
      %v2401 = vpack.c.b16 %v2350, %v2347
      %v2402 = vpack.c.b16 %v2351, %v2348
      %v2403 = vpack.c.b16 %v2352, %v2349
      %v2404 = vpack.c.b16 %v2356, %v2353
      %v2405 = vpack.c.b16 %v2357, %v2354
      %v2406 = vpack.c.b16 %v2358, %v2355
      %v2407 = vpack.c.b16 %v2362, %v2359
      %v2408 = vpack.c.b16 %v2363, %v2360
      %v2409 = vpack.c.b16 %v2364, %v2361
      %v2410 = vpack.c.b16 %v2368, %v2365
      %v2411 = vpack.c.b16 %v2369, %v2366
      %v2412 = vpack.c.b16 %v2370, %v2367
      %v2413 = vpack.c.b16 %v2374, %v2371
      %v2414 = vpack.c.b16 %v2375, %v2372
      %v2415 = vpack.c.b16 %v2376, %v2373
      %v2416 = vpack.c.b16 %v2380, %v2377
      %v2417 = vpack.c.b16 %v2381, %v2378
      %v2418 = vpack.c.b16 %v2382, %v2379
      %v2419 = vpack.c.b16 %v2386, %v2383
      %v2420 = vpack.c.b16 %v2387, %v2384
      %v2421 = vpack.c.b16 %v2388, %v2385
      %v2422 = vpack.c.b16 %v2392, %v2389
      %v2423 = vpack.c.b16 %v2393, %v2390
      %v2424 = vpack.c.b16 %v2394, %v2391
      %v2425 = vpack.c.b16 %v2398, %v2395
      %v2426 = vpack.c.b16 %v2399, %v2396
      %v2427 = vpack.c.b16 %v2400, %v2397
      %v2447 = vsel %vm773, %v2403, 0
      %v2450 = vsel %vm773, %v2406, 0
      %v2453 = vsel %vm773, %v2409, 0
      %v2456 = vsel %vm773, %v2412, 0
      %v2459 = vsel %vm773, %v2415, 0
      %v2462 = vsel %vm773, %v2418, 0
      %v2465 = vsel %vm773, %v2421, 0
      %v2468 = vsel %vm773, %v2424, 0
      %v2471 = vsel %vm773, %v2427, 0
      %2473 = vmatprep.subr.bf16.mxu0 0
      %2474 = vmatpush1.bf16.msra.mxu0 %v733
      %2475 = vmatprep.subr.bf16.mxu0 0
      %2476 = vmatpush1.bf16.msra.mxu0 %v734
      %2477 = vmatprep.subr.bf16.mxu0 0
      %2478 = vmatpush1.bf16.msra.mxu0 %v735
      %2479 = vmatprep.subr.bf16.mxu0 0
      %2480 = vmatpush1.bf16.msra.mxu0 %v736
      %2481 = vmatprep.subr.bf16.mxu0 0
      %2482 = vmatpush1.bf16.msra.mxu0 %v737
      %2483 = vmatprep.subr.bf16.mxu0 0
      %2484 = vmatpush1.bf16.msra.mxu0 %v738
      %2485 = vmatprep.subr.bf16.mxu0 0
      %2486 = vmatpush1.bf16.msra.mxu0 %v739
      %2487 = vmatprep.subr.bf16.mxu0 0
      %2488 = vmatpush1.bf16.msra.mxu0 %v740
      %2489 = vmatprep.subr.bf16.mxu0 0
      %2490 = vmatpush1.bf16.msra.mxu0 %v741
      %2491 = vmatprep.subr.bf16.mxu0 0
      %2492 = vmatpush1.bf16.msra.mxu0 %v742
      %2493 = vmatprep.subr.bf16.mxu0 0
      %2494 = vmatpush1.bf16.msra.mxu0 %v743
      %2495 = vmatprep.subr.bf16.mxu0 0
      %2496 = vmatpush1.bf16.msra.mxu0 %v744
      %2497 = vmatprep.subr.bf16.mxu0 0
      %2498 = vmatpush1.bf16.msra.mxu0 %v745
      %2499 = vmatprep.subr.bf16.mxu0 0
      %2500 = vmatpush1.bf16.msra.mxu0 %v746
      %2501 = vmatprep.subr.bf16.mxu0 0
      %2502 = vmatpush1.bf16.msra.mxu0 %v747
      %2503 = vmatprep.subr.bf16.mxu0 0
      %2504 = vmatpush1.bf16.msra.mxu0 %v748
      %2505 = vmatprep.mubr.bf16.mxu0 %v2402
      %2506 = vmatmul.mubr.bf16.gmra.mrb[0].mxu0 %v2401
      %v2507 = vpop.f32.mrb[0].mxu0
      %v2508 = vadd.f32 0.0, %v2507
      %v2509 = vpop.f32.mrb[0].mxu0
      %v2510 = vpop.f32.mrb[0].mxu0
      %v2511 = vadd.f32 0.0, %v2510
      %v2512 = vpop.f32.mrb[0].mxu0
      %2513 = vmatprep.mubr.bf16.mxu0 %v2405
      %2514 = vmatmul.mubr.bf16.gmra.mrb[0].mxu0 %v2404
      %v2515 = vpop.f32.mrb[0].mxu0
      %v2516 = vadd.f32 0.0, %v2515
      %v2517 = vpop.f32.mrb[0].mxu0
      %v2518 = vpop.f32.mrb[0].mxu0
      %v2519 = vadd.f32 0.0, %v2518
      %v2520 = vpop.f32.mrb[0].mxu0
      %2521 = vmatprep.mubr.bf16.mxu0 %v2408
      %2522 = vmatmul.mubr.bf16.gmra.mrb[0].mxu0 %v2407
      %v2523 = vpop.f32.mrb[0].mxu0
      %v2524 = vadd.f32 0.0, %v2523
      %v2525 = vpop.f32.mrb[0].mxu0
      %v2526 = vpop.f32.mrb[0].mxu0
      %v2527 = vadd.f32 0.0, %v2526
      %v2528 = vpop.f32.mrb[0].mxu0
      %2529 = vmatprep.mubr.bf16.mxu0 %v2411
      %2530 = vmatmul.mubr.bf16.gmra.mrb[0].mxu0 %v2410
      %v2531 = vpop.f32.mrb[0].mxu0
      %v2532 = vadd.f32 0.0, %v2531
      %v2533 = vpop.f32.mrb[0].mxu0
      %v2534 = vpop.f32.mrb[0].mxu0
      %v2535 = vadd.f32 0.0, %v2534
      %v2536 = vpop.f32.mrb[0].mxu0
      %2537 = vmatprep.mubr.bf16.mxu0 %v2414
      %2538 = vmatmul.mubr.bf16.gmra.mrb[0].mxu0 %v2413
      %v2539 = vpop.f32.mrb[0].mxu0
      %v2540 = vadd.f32 0.0, %v2539
      %v2541 = vpop.f32.mrb[0].mxu0
      %v2542 = vpop.f32.mrb[0].mxu0
      %v2543 = vadd.f32 0.0, %v2542
      %v2544 = vpop.f32.mrb[0].mxu0
      %2545 = vmatprep.mubr.bf16.mxu0 %v2417
      %2546 = vmatmul.mubr.bf16.gmra.mrb[0].mxu0 %v2416
      %v2547 = vpop.f32.mrb[0].mxu0
      %v2548 = vadd.f32 0.0, %v2547
      %v2549 = vpop.f32.mrb[0].mxu0
      %v2550 = vpop.f32.mrb[0].mxu0
      %v2551 = vadd.f32 0.0, %v2550
      %v2552 = vpop.f32.mrb[0].mxu0
      %2553 = vmatprep.mubr.bf16.mxu0 %v2420
      %2554 = vmatmul.mubr.bf16.gmra.mrb[0].mxu0 %v2419
      %v2555 = vpop.f32.mrb[0].mxu0
      %v2556 = vadd.f32 0.0, %v2555
      %v2557 = vpop.f32.mrb[0].mxu0
      %v2558 = vpop.f32.mrb[0].mxu0
      %v2559 = vadd.f32 0.0, %v2558
      %v2560 = vpop.f32.mrb[0].mxu0
      %2561 = vmatprep.mubr.bf16.mxu0 %v2423
      %2562 = vmatmul.mubr.bf16.gmra.mrb[0].mxu0 %v2422
      %v2563 = vpop.f32.mrb[0].mxu0
      %v2564 = vadd.f32 0.0, %v2563
      %v2565 = vpop.f32.mrb[0].mxu0
      %v2566 = vpop.f32.mrb[0].mxu0
      %v2567 = vadd.f32 0.0, %v2566
      %v2568 = vpop.f32.mrb[0].mxu0
      %2569 = vmatprep.mubr.bf16.mxu0 %v2426
      %2570 = vmatmul.mubr.bf16.gmra.mrb[0].mxu0 %v2425
      %v2571 = vpop.f32.mrb[0].mxu0
      %v2572 = vadd.f32 0.0, %v2571
      %v2573 = vpop.f32.mrb[0].mxu0
      %v2574 = vpop.f32.mrb[0].mxu0
      %v2575 = vadd.f32 0.0, %v2574
      %v2576 = vpop.f32.mrb[0].mxu0
      %2577 = vdwg.mxu0
      %2578 = vmatprep.subr.bf16.mxu0 0
      %2579 = vmatpush1.bf16.msra.mxu0 %v749
      %2580 = vmatprep.subr.bf16.mxu0 0
      %2581 = vmatpush1.bf16.msra.mxu0 %v750
      %2582 = vmatprep.subr.bf16.mxu0 0
      %2583 = vmatpush1.bf16.msra.mxu0 %v751
      %2584 = vmatprep.subr.bf16.mxu0 0
      %2585 = vmatpush1.bf16.msra.mxu0 %v752
      %2586 = vmatprep.subr.bf16.mxu0 0
      %2587 = vmatpush1.bf16.msra.mxu0 0
      %2588 = vmatprep.subr.bf16.mxu0 0
      %2589 = vmatpush1.bf16.msra.mxu0 0
      %2590 = vmatprep.subr.bf16.mxu0 0
      %2591 = vmatpush1.bf16.msra.mxu0 0
      %2592 = vmatprep.subr.bf16.mxu0 0
      %2593 = vmatpush1.bf16.msra.mxu0 0
      %2594 = vmatprep.subr.bf16.mxu0 0
      %2595 = vmatpush1.bf16.msra.mxu0 0
      %2596 = vmatprep.subr.bf16.mxu0 0
      %2597 = vmatpush1.bf16.msra.mxu0 0
      %2598 = vmatprep.subr.bf16.mxu0 0
      %2599 = vmatpush1.bf16.msra.mxu0 0
      %2600 = vmatprep.subr.bf16.mxu0 0
      %2601 = vmatpush1.bf16.msra.mxu0 0
      %2602 = vmatprep.subr.bf16.mxu0 0
      %2603 = vmatpush1.bf16.msra.mxu0 0
      %2604 = vmatprep.subr.bf16.mxu0 0
      %2605 = vmatpush1.bf16.msra.mxu0 0
      %2606 = vmatprep.subr.bf16.mxu0 0
      %2607 = vmatpush1.bf16.msra.mxu0 0
      %2608 = vmatprep.subr.bf16.mxu0 0
      %2609 = vmatpush1.bf16.msra.mxu0 0
      %2610 = vmatprep.mubr.bf16.mxu0 0
      %2611 = vmatmul.mubr.bf16.gmra.mrb[0].mxu0 %v2447
      %v2612 = vpop.f32.mrb[0].mxu0
      %v2613 = vadd.f32 %v2508, %v2612
      %v2614 = vpop.f32.mrb[0].mxu0
      %v2615 = vpop.f32.mrb[0].mxu0
      %v2616 = vadd.f32 %v2511, %v2615
      %v2617 = vpop.f32.mrb[0].mxu0
      %2618 = vmatprep.mubr.bf16.mxu0 0
      %2619 = vmatmul.mubr.bf16.gmra.mrb[0].mxu0 %v2450
      %v2620 = vpop.f32.mrb[0].mxu0
      %v2621 = vadd.f32 %v2516, %v2620
      %v2622 = vpop.f32.mrb[0].mxu0
      %v2623 = vpop.f32.mrb[0].mxu0
      %v2624 = vadd.f32 %v2519, %v2623
      %v2625 = vpop.f32.mrb[0].mxu0
      %2626 = vmatprep.mubr.bf16.mxu0 0
      %2627 = vmatmul.mubr.bf16.gmra.mrb[0].mxu0 %v2453
      %v2628 = vpop.f32.mrb[0].mxu0
      %v2629 = vadd.f32 %v2524, %v2628
      %v2630 = vpop.f32.mrb[0].mxu0
      %v2631 = vpop.f32.mrb[0].mxu0
      %v2632 = vadd.f32 %v2527, %v2631
      %v2633 = vpop.f32.mrb[0].mxu0
      %2634 = vmatprep.mubr.bf16.mxu0 0
      %2635 = vmatmul.mubr.bf16.gmra.mrb[0].mxu0 %v2456
      %v2636 = vpop.f32.mrb[0].mxu0
      %v2637 = vadd.f32 %v2532, %v2636
      %v2638 = vpop.f32.mrb[0].mxu0
      %v2639 = vpop.f32.mrb[0].mxu0
      %v2640 = vadd.f32 %v2535, %v2639
      %v2641 = vpop.f32.mrb[0].mxu0
      %2642 = vmatprep.mubr.bf16.mxu0 0
      %2643 = vmatmul.mubr.bf16.gmra.mrb[0].mxu0 %v2459
      %v2644 = vpop.f32.mrb[0].mxu0
      %v2645 = vadd.f32 %v2540, %v2644
      %v2646 = vpop.f32.mrb[0].mxu0
      %v2647 = vpop.f32.mrb[0].mxu0
      %v2648 = vadd.f32 %v2543, %v2647
      %v2649 = vpop.f32.mrb[0].mxu0
      %2650 = vmatprep.mubr.bf16.mxu0 0
      %2651 = vmatmul.mubr.bf16.gmra.mrb[0].mxu0 %v2462
      %v2652 = vpop.f32.mrb[0].mxu0
      %v2653 = vadd.f32 %v2548, %v2652
      %v2654 = vpop.f32.mrb[0].mxu0
      %v2655 = vpop.f32.mrb[0].mxu0
      %v2656 = vadd.f32 %v2551, %v2655
      %v2657 = vpop.f32.mrb[0].mxu0
      %2658 = vmatprep.mubr.bf16.mxu0 0
      %2659 = vmatmul.mubr.bf16.gmra.mrb[0].mxu0 %v2465
      %v2660 = vpop.f32.mrb[0].mxu0
      %v2661 = vadd.f32 %v2556, %v2660
      %v2662 = vpop.f32.mrb[0].mxu0
      %v2663 = vpop.f32.mrb[0].mxu0
      %v2664 = vadd.f32 %v2559, %v2663
      %v2665 = vpop.f32.mrb[0].mxu0
      %2666 = vmatprep.mubr.bf16.mxu0 0
      %2667 = vmatmul.mubr.bf16.gmra.mrb[0].mxu0 %v2468
      %v2668 = vpop.f32.mrb[0].mxu0
      %v2669 = vadd.f32 %v2564, %v2668
      %v2670 = vpop.f32.mrb[0].mxu0
      %v2671 = vpop.f32.mrb[0].mxu0
      %v2672 = vadd.f32 %v2567, %v2671
      %v2673 = vpop.f32.mrb[0].mxu0
      %2674 = vmatprep.mubr.bf16.mxu0 0
      %2675 = vmatmul.mubr.bf16.gmra.mrb[0].mxu0 %v2471
      %v2676 = vpop.f32.mrb[0].mxu0
      %v2677 = vadd.f32 %v2572, %v2676
      %v2678 = vpop.f32.mrb[0].mxu0
      %v2679 = vpop.f32.mrb[0].mxu0
      %v2680 = vadd.f32 %v2575, %v2679
      %v2681 = vpop.f32.mrb[0].mxu0
      %2682 = vdwg.mxu0
      %v2683 = vpack.c.bf16 %v2616, %v2613
      %v2684 = vpack.c.bf16 %v2624, %v2621
      %v2685 = vpack.c.bf16 %v2632, %v2629
      %v2686 = vpack.c.bf16 %v2640, %v2637
      %v2687 = vpack.c.bf16 %v2648, %v2645
      %v2688 = vpack.c.bf16 %v2656, %v2653
      %v2689 = vpack.c.bf16 %v2664, %v2661
      %v2690 = vpack.c.bf16 %v2672, %v2669
      %v2691 = vpack.c.bf16 %v2680, %v2677
      %v2692 = vld [vmem:[%s2] sm:$0xff]
      %v2693 = vld [vmem:[%s2 + $0x8] sm:$0xf]
      %v2694 = vld [vmem:[%s2 + $0xc] sm:$0xff]
      %v2695 = vld [vmem:[%s2 + $0x14] sm:$0xf]
      %v2696 = vld [vmem:[%s2 + $0x18] sm:$0xff]
      %v2697 = vld [vmem:[%s2 + $0x20] sm:$0xf]
      %v2698 = vld [vmem:[%s2 + $0x24] sm:$0xff]
      %v2699 = vld [vmem:[%s2 + $0x2c] sm:$0xf]
      %v2700 = vld [vmem:[%s2 + $0x30] sm:$0xff]
      %v2701 = vld [vmem:[%s2 + $0x38] sm:$0xf]
      %v2702 = vld [vmem:[%s2 + $0x3c] sm:$0xff]
      %v2703 = vld [vmem:[%s2 + $0x44] sm:$0xf]
      %v2704 = vld [vmem:[%s2 + $0x48] sm:$0xff]
      %v2705 = vld [vmem:[%s2 + $0x50] sm:$0xf]
      %v2706 = vld [vmem:[%s2 + $0x54] sm:$0xff]
      %v2707 = vld [vmem:[%s2 + $0x5c] sm:$0xf]
      %v2708 = vld [vmem:[%s2 + $0x60] sm:$0xff]
      %v2709 = vld [vmem:[%s2 + $0x68] sm:$0xf]
      %v2710 = vld [vmem:[%s2 + $0x6c] sm:$0xff]
      %v2711 = vld [vmem:[%s2 + $0x74] sm:$0xf]
      %v2712 = vld [vmem:[%s2 + $0x78] sm:$0xff]
      %v2713 = vld [vmem:[%s2 + $0x80] sm:$0xf]
      %v2714 = vld [vmem:[%s2 + $0x84] sm:$0xff]
      %v2715 = vld [vmem:[%s2 + $0x8c] sm:$0xf]
      %v2716 = vld [vmem:[%s2 + $0x90] sm:$0xff]
      %v2717 = vld [vmem:[%s2 + $0x98] sm:$0xf]
      %v2718 = vld [vmem:[%s2 + $0x9c] sm:$0xff]
      %v2719 = vld [vmem:[%s2 + $0xa4] sm:$0xf]
      %v2720 = vld [vmem:[%s2 + $0xa8] sm:$0xff]
      %v2721 = vld [vmem:[%s2 + $0xb0] sm:$0xf]
      %v2722 = vld [vmem:[%s2 + $0xb4] sm:$0xff]
      %v2723 = vld [vmem:[%s2 + $0xbc] sm:$0xf]
      %v2724 = vld [vmem:[%s2 + $0xc0] sm:$0xff]
      %v2725 = vld [vmem:[%s2 + $0xc8] sm:$0xf]
      %v2726 = vld [vmem:[%s2 + $0xcc] sm:$0xff]
      %v2727 = vld [vmem:[%s2 + $0xd4] sm:$0xf]
      %v2728 = vld [vmem:[%s2 + $0xd8] sm:$0xff]
      %v2729 = vld [vmem:[%s2 + $0xe0] sm:$0xf]
      %v2730 = vld [vmem:[%s2 + $0xe4] sm:$0xff]
      %v2731 = vld [vmem:[%s2 + $0xec] sm:$0xf]
      %v2732 = vld [vmem:[%s2 + $0xf0] sm:$0xff]
      %v2733 = vld [vmem:[%s2 + $0xf8] sm:$0xf]
      %v2734 = vld [vmem:[%s2 + $0xfc] sm:$0xff]
      %v2735 = vld [vmem:[%s2 + $0x104] sm:$0xf]
      %v2736 = vld [vmem:[%s2 + $0x108] sm:$0xff]
      %v2737 = vld [vmem:[%s2 + $0x110] sm:$0xf]
      %v2738 = vld [vmem:[%s2 + $0x114] sm:$0xff]
      %v2739 = vld [vmem:[%s2 + $0x11c] sm:$0xf]
      %v2740 = vld [vmem:[%s2 + $0x120] sm:$0xff]
      %v2741 = vld [vmem:[%s2 + $0x128] sm:$0xf]
      %v2742 = vld [vmem:[%s2 + $0x12c] sm:$0xff]
      %v2743 = vld [vmem:[%s2 + $0x134] sm:$0xf]
      %v2744 = vld [vmem:[%s2 + $0x138] sm:$0xff]
      %v2745 = vld [vmem:[%s2 + $0x140] sm:$0xf]
      %v2746 = vld [vmem:[%s2 + $0x144] sm:$0xff]
      %v2747 = vld [vmem:[%s2 + $0x14c] sm:$0xf]
      %v2748 = vld [vmem:[%s2 + $0x150] sm:$0xff]
      %v2749 = vld [vmem:[%s2 + $0x158] sm:$0xf]
      %v2750 = vld [vmem:[%s2 + $0x15c] sm:$0xff]
      %v2751 = vld [vmem:[%s2 + $0x164] sm:$0xf]
      %v2752 = vld [vmem:[%s2 + $0x168] sm:$0xff]
      %v2753 = vld [vmem:[%s2 + $0x170] sm:$0xf]
      %v2754 = vld [vmem:[%s2 + $0x174] sm:$0xff]
      %v2755 = vld [vmem:[%s2 + $0x17c] sm:$0xf]
      %v2756 = vld [vmem:[%s2 + $0x180] sm:$0xff]
      %v2757 = vld [vmem:[%s2 + $0x188] sm:$0xf]
      %v2758 = vld [vmem:[%s2 + $0x18c] sm:$0xff]
      %v2759 = vld [vmem:[%s2 + $0x194] sm:$0xf]
      %v2760 = vld [vmem:[%s2 + $0x198] sm:$0xff]
      %v2761 = vld [vmem:[%s2 + $0x1a0] sm:$0xf]
      %v2762 = vld [vmem:[%s2 + $0x1a4] sm:$0xff]
      %v2763 = vld [vmem:[%s2 + $0x1ac] sm:$0xf]
      %v2764 = vld [vmem:[%s2 + $0x1b0] sm:$0xff]
      %v2765 = vld [vmem:[%s2 + $0x1b8] sm:$0xf]
      %v2766 = vld [vmem:[%s2 + $0x1bc] sm:$0xff]
      %v2767 = vld [vmem:[%s2 + $0x1c4] sm:$0xf]
      %v2768 = vld [vmem:[%s2 + $0x1c8] sm:$0xff]
      %v2769 = vld [vmem:[%s2 + $0x1d0] sm:$0xf]
      %v2770 = vld [vmem:[%s2 + $0x1d4] sm:$0xff]
      %v2771 = vld [vmem:[%s2 + $0x1dc] sm:$0xf]
      %v2772 = vld [vmem:[%s2 + $0x1e0] sm:$0xff]
      %v2773 = vld [vmem:[%s2 + $0x1e8] sm:$0xf]
      %v2774 = vld [vmem:[%s2 + $0x1ec] sm:$0xff]
      %v2775 = vld [vmem:[%s2 + $0x1f4] sm:$0xf]
      %v2776 = vld [vmem:[%s2 + $0x1f8] sm:$0xff]
      %v2777 = vld [vmem:[%s2 + $0x200] sm:$0xf]
      %v2778 = vld [vmem:[%s2 + $0x204] sm:$0xff]
      %v2779 = vld [vmem:[%s2 + $0x20c] sm:$0xf]
      %v2780 = vld [vmem:[%s2 + $0x210] sm:$0xff]
      %v2781 = vld [vmem:[%s2 + $0x218] sm:$0xf]
      %v2782 = vld [vmem:[%s2 + $0x21c] sm:$0xff]
      %v2783 = vld [vmem:[%s2 + $0x224] sm:$0xf]
      %v2784 = vld [vmem:[%s2 + $0x228] sm:$0xff]
      %v2785 = vld [vmem:[%s2 + $0x230] sm:$0xf]
      %v2786 = vld [vmem:[%s2 + $0x234] sm:$0xff]
      %v2787 = vld [vmem:[%s2 + $0x23c] sm:$0xf]
      %v2788 = vld [vmem:[%s2 + $0x240] sm:$0xff]
      %v2789 = vld [vmem:[%s2 + $0x248] sm:$0xf]
      %v2790 = vld [vmem:[%s2 + $0x24c] sm:$0xff]
      %v2791 = vld [vmem:[%s2 + $0x254] sm:$0xf]
      %v2792 = vld [vmem:[%s2 + $0x258] sm:$0xff]
      %v2793 = vld [vmem:[%s2 + $0x260] sm:$0xf]
      %v2794 = vld [vmem:[%s2 + $0x264] sm:$0xff]
      %v2795 = vld [vmem:[%s2 + $0x26c] sm:$0xf]
      %v2796 = vld [vmem:[%s2 + $0x270] sm:$0xff]
      %v2797 = vld [vmem:[%s2 + $0x278] sm:$0xf]
      %v2798 = vld [vmem:[%s2 + $0x27c] sm:$0xff]
      %v2799 = vld [vmem:[%s2 + $0x284] sm:$0xf]
      %v2800 = vld [vmem:[%s2 + $0x288] sm:$0xff]
      %v2801 = vld [vmem:[%s2 + $0x290] sm:$0xf]
      %v2802 = vld [vmem:[%s2 + $0x294] sm:$0xff]
      %v2803 = vld [vmem:[%s2 + $0x29c] sm:$0xf]
      %v2804 = vld [vmem:[%s2 + $0x2a0] sm:$0xff]
      %v2805 = vld [vmem:[%s2 + $0x2a8] sm:$0xf]
      %v2806 = vld [vmem:[%s2 + $0x2ac] sm:$0xff]
      %v2807 = vld [vmem:[%s2 + $0x2b4] sm:$0xf]
      %v2808 = vld [vmem:[%s2 + $0x2b8] sm:$0xff]
      %v2809 = vld [vmem:[%s2 + $0x2c0] sm:$0xf]
      %v2810 = vld [vmem:[%s2 + $0x2c4] sm:$0xff]
      %v2811 = vld [vmem:[%s2 + $0x2cc] sm:$0xf]
      %v2812 = vld [vmem:[%s2 + $0x2d0] sm:$0xff]
      %v2813 = vld [vmem:[%s2 + $0x2d8] sm:$0xf]
      %v2814 = vld [vmem:[%s2 + $0x2dc] sm:$0xff]
      %v2815 = vld [vmem:[%s2 + $0x2e4] sm:$0xf]
      %v2816 = vld [vmem:[%s2 + $0x2e8] sm:$0xff]
      %v2817 = vld [vmem:[%s2 + $0x2f0] sm:$0xf]
      %v2818 = vld [vmem:[%s2 + $0x2f4] sm:$0xff]
      %v2819 = vld [vmem:[%s2 + $0x2fc] sm:$0xf]
      %v2820 = vld [vmem:[%s2 + $0x300] sm:$0xff]
      %v2821 = vld [vmem:[%s2 + $0x308] sm:$0xf]
      %v2822 = vld [vmem:[%s2 + $0x30c] sm:$0xff]
      %v2823 = vld [vmem:[%s2 + $0x314] sm:$0xf]
      %v2824 = vld [vmem:[%s2 + $0x318] sm:$0xff]
      %v2825 = vld [vmem:[%s2 + $0x320] sm:$0xf]
      %v2826 = vld [vmem:[%s2 + $0x324] sm:$0xff]
      %v2827 = vld [vmem:[%s2 + $0x32c] sm:$0xf]
      %v2828 = vld [vmem:[%s2 + $0x330] sm:$0xff]
      %v2829 = vld [vmem:[%s2 + $0x338] sm:$0xf]
      %v2830 = vld [vmem:[%s2 + $0x33c] sm:$0xff]
      %v2831 = vld [vmem:[%s2 + $0x344] sm:$0xf]
      %v2832 = vld [vmem:[%s2 + $0x348] sm:$0xff]
      %v2833 = vld [vmem:[%s2 + $0x350] sm:$0xf]
      %v2834 = vld [vmem:[%s2 + $0x354] sm:$0xff]
      %v2835 = vld [vmem:[%s2 + $0x35c] sm:$0xf]
      %v2836 = vld [vmem:[%s2 + $0x360] sm:$0xff]
      %v2837 = vld [vmem:[%s2 + $0x368] sm:$0xf]
      %v2838 = vld [vmem:[%s2 + $0x36c] sm:$0xff]
      %v2839 = vld [vmem:[%s2 + $0x374] sm:$0xf]
      %v2840 = vld [vmem:[%s2 + $0x378] sm:$0xff]
      %v2841 = vld [vmem:[%s2 + $0x380] sm:$0xf]
      %v2842 = vld [vmem:[%s2 + $0x384] sm:$0xff]
      %v2843 = vld [vmem:[%s2 + $0x38c] sm:$0xf]
      %v2844 = vld [vmem:[%s2 + $0x390] sm:$0xff]
      %v2845 = vld [vmem:[%s2 + $0x398] sm:$0xf]
      %v2846 = vld [vmem:[%s2 + $0x39c] sm:$0xff]
      %v2847 = vld [vmem:[%s2 + $0x3a4] sm:$0xf]
      %v2848 = vld [vmem:[%s2 + $0x3a8] sm:$0xff]
      %v2849 = vld [vmem:[%s2 + $0x3b0] sm:$0xf]
      %v2850 = vld [vmem:[%s2 + $0x3b4] sm:$0xff]
      %v2851 = vld [vmem:[%s2 + $0x3bc] sm:$0xf]
      %v2852 = vld [vmem:[%s3] sm:$0x7]
      %v2854 = vlaneseq
      %v2855 = vshrl.u32 %v2854, 7
      %v2856 = vsub.s32 0, %v2855
      %v2857 = vrot.slane %v2852, %v2856
      %v2858 = vlaneseq
      %v2859 = vshrl.u32 %v2858, 7
      %v2860 = vsub.s32 1, %v2859
      %v2861 = vrot.slane %v2852, %v2860
      %v2862 = vlaneseq
      %v2863 = vshrl.u32 %v2862, 7
      %v2864 = vsub.s32 2, %v2863
      %v2865 = vrot.slane %v2852, %v2864
      %v3029 = vunpack.c.l.b16 %v2692
      %v3030 = vunpack.c.h.b16 %v2692
      %v3031 = vunpack.c.l.b16 %v2693
      %v3032 = vunpack.c.l.b16 %v2694
      %v3033 = vunpack.c.h.b16 %v2694
      %v3034 = vunpack.c.l.b16 %v2695
      %v3035 = vunpack.c.l.b16 %v2696
      %v3036 = vunpack.c.h.b16 %v2696
      %v3037 = vunpack.c.l.b16 %v2697
      %v3038 = vunpack.c.l.b16 %v2698
      %v3039 = vunpack.c.h.b16 %v2698
      %v3040 = vunpack.c.l.b16 %v2699
      %v3041 = vunpack.c.l.b16 %v2700
      %v3042 = vunpack.c.h.b16 %v2700
      %v3043 = vunpack.c.l.b16 %v2701
      %v3044 = vunpack.c.l.b16 %v2702
      %v3045 = vunpack.c.h.b16 %v2702
      %v3046 = vunpack.c.l.b16 %v2703
      %v3047 = vunpack.c.l.b16 %v2704
      %v3048 = vunpack.c.h.b16 %v2704
      %v3049 = vunpack.c.l.b16 %v2705
      %v3050 = vunpack.c.l.b16 %v2706
      %v3051 = vunpack.c.h.b16 %v2706
      %v3052 = vunpack.c.l.b16 %v2707
      %v3053 = vunpack.c.l.b16 %v2708
      %v3054 = vunpack.c.h.b16 %v2708
      %v3055 = vunpack.c.l.b16 %v2709
      %v3056 = vunpack.c.l.b16 %v2710
      %v3057 = vunpack.c.h.b16 %v2710
      %v3058 = vunpack.c.l.b16 %v2711
      %v3059 = vunpack.c.l.b16 %v2712
      %v3060 = vunpack.c.h.b16 %v2712
      %v3061 = vunpack.c.l.b16 %v2713
      %v3062 = vunpack.c.l.b16 %v2714
      %v3063 = vunpack.c.h.b16 %v2714
      %v3064 = vunpack.c.l.b16 %v2715
      %v3065 = vunpack.c.l.b16 %v2716
      %v3066 = vunpack.c.h.b16 %v2716
      %v3067 = vunpack.c.l.b16 %v2717
      %v3068 = vunpack.c.l.b16 %v2718
      %v3069 = vunpack.c.h.b16 %v2718
      %v3070 = vunpack.c.l.b16 %v2719
      %v3071 = vunpack.c.l.b16 %v2720
      %v3072 = vunpack.c.h.b16 %v2720
      %v3073 = vunpack.c.l.b16 %v2721
      %v3074 = vunpack.c.l.b16 %v2722
      %v3075 = vunpack.c.h.b16 %v2722
      %v3076 = vunpack.c.l.b16 %v2723
      %v3077 = vunpack.c.l.b16 %v2724
      %v3078 = vunpack.c.h.b16 %v2724
      %v3079 = vunpack.c.l.b16 %v2725
      %v3080 = vunpack.c.l.b16 %v2726
      %v3081 = vunpack.c.h.b16 %v2726
      %v3082 = vunpack.c.l.b16 %v2727
      %v3083 = vunpack.c.l.b16 %v2728
      %v3084 = vunpack.c.h.b16 %v2728
      %v3085 = vunpack.c.l.b16 %v2729
      %v3086 = vunpack.c.l.b16 %v2730
      %v3087 = vunpack.c.h.b16 %v2730
      %v3088 = vunpack.c.l.b16 %v2731
      %v3089 = vunpack.c.l.b16 %v2732
      %v3090 = vunpack.c.h.b16 %v2732
      %v3091 = vunpack.c.l.b16 %v2733
      %v3092 = vunpack.c.l.b16 %v2734
      %v3093 = vunpack.c.h.b16 %v2734
      %v3094 = vunpack.c.l.b16 %v2735
      %v3095 = vunpack.c.l.b16 %v2736
      %v3096 = vunpack.c.h.b16 %v2736
      %v3097 = vunpack.c.l.b16 %v2737
      %v3098 = vunpack.c.l.b16 %v2738
      %v3099 = vunpack.c.h.b16 %v2738
      %v3100 = vunpack.c.l.b16 %v2739
      %v3101 = vunpack.c.l.b16 %v2740
      %v3102 = vunpack.c.h.b16 %v2740
      %v3103 = vunpack.c.l.b16 %v2741
      %v3104 = vunpack.c.l.b16 %v2742
      %v3105 = vunpack.c.h.b16 %v2742
      %v3106 = vunpack.c.l.b16 %v2743
      %v3107 = vunpack.c.l.b16 %v2744
      %v3108 = vunpack.c.h.b16 %v2744
      %v3109 = vunpack.c.l.b16 %v2745
      %v3110 = vunpack.c.l.b16 %v2746
      %v3111 = vunpack.c.h.b16 %v2746
      %v3112 = vunpack.c.l.b16 %v2747
      %v3113 = vunpack.c.l.b16 %v2748
      %v3114 = vunpack.c.h.b16 %v2748
      %v3115 = vunpack.c.l.b16 %v2749
      %v3116 = vunpack.c.l.b16 %v2750
      %v3117 = vunpack.c.h.b16 %v2750
      %v3118 = vunpack.c.l.b16 %v2751
      %v3119 = vunpack.c.l.b16 %v2752
      %v3120 = vunpack.c.h.b16 %v2752
      %v3121 = vunpack.c.l.b16 %v2753
      %v3122 = vunpack.c.l.b16 %v2754
      %v3123 = vunpack.c.h.b16 %v2754
      %v3124 = vunpack.c.l.b16 %v2755
      %v3125 = vunpack.c.l.b16 %v2756
      %v3126 = vunpack.c.h.b16 %v2756
      %v3127 = vunpack.c.l.b16 %v2757
      %v3128 = vunpack.c.l.b16 %v2758
      %v3129 = vunpack.c.h.b16 %v2758
      %v3130 = vunpack.c.l.b16 %v2759
      %v3131 = vunpack.c.l.b16 %v2760
      %v3132 = vunpack.c.h.b16 %v2760
      %v3133 = vunpack.c.l.b16 %v2761
      %v3134 = vunpack.c.l.b16 %v2762
      %v3135 = vunpack.c.h.b16 %v2762
      %v3136 = vunpack.c.l.b16 %v2763
      %v3137 = vunpack.c.l.b16 %v2764
      %v3138 = vunpack.c.h.b16 %v2764
      %v3139 = vunpack.c.l.b16 %v2765
      %v3140 = vunpack.c.l.b16 %v2766
      %v3141 = vunpack.c.h.b16 %v2766
      %v3142 = vunpack.c.l.b16 %v2767
      %v3143 = vunpack.c.l.b16 %v2768
      %v3144 = vunpack.c.h.b16 %v2768
      %v3145 = vunpack.c.l.b16 %v2769
      %v3146 = vunpack.c.l.b16 %v2770
      %v3147 = vunpack.c.h.b16 %v2770
      %v3148 = vunpack.c.l.b16 %v2771
      %v3149 = vunpack.c.l.b16 %v2772
      %v3150 = vunpack.c.h.b16 %v2772
      %v3151 = vunpack.c.l.b16 %v2773
      %v3152 = vunpack.c.l.b16 %v2774
      %v3153 = vunpack.c.h.b16 %v2774
      %v3154 = vunpack.c.l.b16 %v2775
      %v3155 = vunpack.c.l.b16 %v2776
      %v3156 = vunpack.c.h.b16 %v2776
      %v3157 = vunpack.c.l.b16 %v2777
      %v3158 = vunpack.c.l.b16 %v2778
      %v3159 = vunpack.c.h.b16 %v2778
      %v3160 = vunpack.c.l.b16 %v2779
      %v3161 = vunpack.c.l.b16 %v2780
      %v3162 = vunpack.c.h.b16 %v2780
      %v3163 = vunpack.c.l.b16 %v2781
      %v3164 = vunpack.c.l.b16 %v2782
      %v3165 = vunpack.c.h.b16 %v2782
      %v3166 = vunpack.c.l.b16 %v2783
      %v3167 = vunpack.c.l.b16 %v2784
      %v3168 = vunpack.c.h.b16 %v2784
      %v3169 = vunpack.c.l.b16 %v2785
      %v3170 = vunpack.c.l.b16 %v2786
      %v3171 = vunpack.c.h.b16 %v2786
      %v3172 = vunpack.c.l.b16 %v2787
      %v3173 = vunpack.c.l.b16 %v2788
      %v3174 = vunpack.c.h.b16 %v2788
      %v3175 = vunpack.c.l.b16 %v2789
      %v3176 = vunpack.c.l.b16 %v2790
      %v3177 = vunpack.c.h.b16 %v2790
      %v3178 = vunpack.c.l.b16 %v2791
      %v3179 = vunpack.c.l.b16 %v2792
      %v3180 = vunpack.c.h.b16 %v2792
      %v3181 = vunpack.c.l.b16 %v2793
      %v3182 = vunpack.c.l.b16 %v2794
      %v3183 = vunpack.c.h.b16 %v2794
      %v3184 = vunpack.c.l.b16 %v2795
      %v3185 = vunpack.c.l.b16 %v2796
      %v3186 = vunpack.c.h.b16 %v2796
      %v3187 = vunpack.c.l.b16 %v2797
      %v3188 = vunpack.c.l.b16 %v2798
      %v3189 = vunpack.c.h.b16 %v2798
      %v3190 = vunpack.c.l.b16 %v2799
      %v3191 = vunpack.c.l.b16 %v2800
      %v3192 = vunpack.c.h.b16 %v2800
      %v3193 = vunpack.c.l.b16 %v2801
      %v3194 = vunpack.c.l.b16 %v2802
      %v3195 = vunpack.c.h.b16 %v2802
      %v3196 = vunpack.c.l.b16 %v2803
      %v3197 = vunpack.c.l.b16 %v2804
      %v3198 = vunpack.c.h.b16 %v2804
      %v3199 = vunpack.c.l.b16 %v2805
      %v3200 = vunpack.c.l.b16 %v2806
      %v3201 = vunpack.c.h.b16 %v2806
      %v3202 = vunpack.c.l.b16 %v2807
      %v3203 = vunpack.c.l.b16 %v2808
      %v3204 = vunpack.c.h.b16 %v2808
      %v3205 = vunpack.c.l.b16 %v2809
      %v3206 = vunpack.c.l.b16 %v2810
      %v3207 = vunpack.c.h.b16 %v2810
      %v3208 = vunpack.c.l.b16 %v2811
      %v3209 = vunpack.c.l.b16 %v2812
      %v3210 = vunpack.c.h.b16 %v2812
      %v3211 = vunpack.c.l.b16 %v2813
      %v3212 = vunpack.c.l.b16 %v2814
      %v3213 = vunpack.c.h.b16 %v2814
      %v3214 = vunpack.c.l.b16 %v2815
      %v3215 = vunpack.c.l.b16 %v2816
      %v3216 = vunpack.c.h.b16 %v2816
      %v3217 = vunpack.c.l.b16 %v2817
      %v3218 = vunpack.c.l.b16 %v2818
      %v3219 = vunpack.c.h.b16 %v2818
      %v3220 = vunpack.c.l.b16 %v2819
      %v3221 = vunpack.c.l.b16 %v2820
      %v3222 = vunpack.c.h.b16 %v2820
      %v3223 = vunpack.c.l.b16 %v2821
      %v3224 = vunpack.c.l.b16 %v2822
      %v3225 = vunpack.c.h.b16 %v2822
      %v3226 = vunpack.c.l.b16 %v2823
      %v3227 = vunpack.c.l.b16 %v2824
      %v3228 = vunpack.c.h.b16 %v2824
      %v3229 = vunpack.c.l.b16 %v2825
      %v3230 = vunpack.c.l.b16 %v2826
      %v3231 = vunpack.c.h.b16 %v2826
      %v3232 = vunpack.c.l.b16 %v2827
      %v3233 = vunpack.c.l.b16 %v2828
      %v3234 = vunpack.c.h.b16 %v2828
      %v3235 = vunpack.c.l.b16 %v2829
      %v3236 = vunpack.c.l.b16 %v2830
      %v3237 = vunpack.c.h.b16 %v2830
      %v3238 = vunpack.c.l.b16 %v2831
      %v3239 = vunpack.c.l.b16 %v2832
      %v3240 = vunpack.c.h.b16 %v2832
      %v3241 = vunpack.c.l.b16 %v2833
      %v3242 = vunpack.c.l.b16 %v2834
      %v3243 = vunpack.c.h.b16 %v2834
      %v3244 = vunpack.c.l.b16 %v2835
      %v3245 = vunpack.c.l.b16 %v2836
      %v3246 = vunpack.c.h.b16 %v2836
      %v3247 = vunpack.c.l.b16 %v2837
      %v3248 = vunpack.c.l.b16 %v2838
      %v3249 = vunpack.c.h.b16 %v2838
      %v3250 = vunpack.c.l.b16 %v2839
      %v3251 = vunpack.c.l.b16 %v2840
      %v3252 = vunpack.c.h.b16 %v2840
      %v3253 = vunpack.c.l.b16 %v2841
      %v3254 = vunpack.c.l.b16 %v2842
      %v3255 = vunpack.c.h.b16 %v2842
      %v3256 = vunpack.c.l.b16 %v2843
      %v3257 = vunpack.c.l.b16 %v2844
      %v3258 = vunpack.c.h.b16 %v2844
      %v3259 = vunpack.c.l.b16 %v2845
      %v3260 = vunpack.c.l.b16 %v2846
      %v3261 = vunpack.c.h.b16 %v2846
      %v3262 = vunpack.c.l.b16 %v2847
      %v3263 = vunpack.c.l.b16 %v2848
      %v3264 = vunpack.c.h.b16 %v2848
      %v3265 = vunpack.c.l.b16 %v2849
      %v3266 = vunpack.c.l.b16 %v2850
      %v3267 = vunpack.c.h.b16 %v2850
      %v3268 = vunpack.c.l.b16 %v2851
      %v3269 = vpack.c.b16 %v3032, %v3029
      %v3270 = vpack.c.b16 %v3033, %v3030
      %v3271 = vpack.c.b16 %v3034, %v3031
      %v3272 = vpack.c.b16 %v3038, %v3035
      %v3273 = vpack.c.b16 %v3039, %v3036
      %v3274 = vpack.c.b16 %v3040, %v3037
      %v3275 = vpack.c.b16 %v3044, %v3041
      %v3276 = vpack.c.b16 %v3045, %v3042
      %v3277 = vpack.c.b16 %v3046, %v3043
      %v3278 = vpack.c.b16 %v3050, %v3047
      %v3279 = vpack.c.b16 %v3051, %v3048
      %v3280 = vpack.c.b16 %v3052, %v3049
      %v3281 = vpack.c.b16 %v3056, %v3053
      %v3282 = vpack.c.b16 %v3057, %v3054
      %v3283 = vpack.c.b16 %v3058, %v3055
      %v3284 = vpack.c.b16 %v3062, %v3059
      %v3285 = vpack.c.b16 %v3063, %v3060
      %v3286 = vpack.c.b16 %v3064, %v3061
      %v3287 = vpack.c.b16 %v3068, %v3065
      %v3288 = vpack.c.b16 %v3069, %v3066
      %v3289 = vpack.c.b16 %v3070, %v3067
      %v3290 = vpack.c.b16 %v3074, %v3071
      %v3291 = vpack.c.b16 %v3075, %v3072
      %v3292 = vpack.c.b16 %v3076, %v3073
      %v3293 = vpack.c.b16 %v3080, %v3077
      %v3294 = vpack.c.b16 %v3081, %v3078
      %v3295 = vpack.c.b16 %v3082, %v3079
      %v3296 = vpack.c.b16 %v3086, %v3083
      %v3297 = vpack.c.b16 %v3087, %v3084
      %v3298 = vpack.c.b16 %v3088, %v3085
      %v3299 = vpack.c.b16 %v3092, %v3089
      %v3300 = vpack.c.b16 %v3093, %v3090
      %v3301 = vpack.c.b16 %v3094, %v3091
      %v3302 = vpack.c.b16 %v3098, %v3095
      %v3303 = vpack.c.b16 %v3099, %v3096
      %v3304 = vpack.c.b16 %v3100, %v3097
      %v3305 = vpack.c.b16 %v3104, %v3101
      %v3306 = vpack.c.b16 %v3105, %v3102
      %v3307 = vpack.c.b16 %v3106, %v3103
      %v3308 = vpack.c.b16 %v3110, %v3107
      %v3309 = vpack.c.b16 %v3111, %v3108
      %v3310 = vpack.c.b16 %v3112, %v3109
      %v3311 = vpack.c.b16 %v3116, %v3113
      %v3312 = vpack.c.b16 %v3117, %v3114
      %v3313 = vpack.c.b16 %v3118, %v3115
      %v3314 = vpack.c.b16 %v3122, %v3119
      %v3315 = vpack.c.b16 %v3123, %v3120
      %v3316 = vpack.c.b16 %v3124, %v3121
      %v3317 = vpack.c.b16 %v3128, %v3125
      %v3318 = vpack.c.b16 %v3129, %v3126
      %v3319 = vpack.c.b16 %v3130, %v3127
      %v3320 = vpack.c.b16 %v3134, %v3131
      %v3321 = vpack.c.b16 %v3135, %v3132
      %v3322 = vpack.c.b16 %v3136, %v3133
      %v3323 = vpack.c.b16 %v3140, %v3137
      %v3324 = vpack.c.b16 %v3141, %v3138
      %v3325 = vpack.c.b16 %v3142, %v3139
      %v3326 = vpack.c.b16 %v3146, %v3143
      %v3327 = vpack.c.b16 %v3147, %v3144
      %v3328 = vpack.c.b16 %v3148, %v3145
      %v3329 = vpack.c.b16 %v3152, %v3149
      %v3330 = vpack.c.b16 %v3153, %v3150
      %v3331 = vpack.c.b16 %v3154, %v3151
      %v3332 = vpack.c.b16 %v3158, %v3155
      %v3333 = vpack.c.b16 %v3159, %v3156
      %v3334 = vpack.c.b16 %v3160, %v3157
      %v3335 = vpack.c.b16 %v3164, %v3161
      %v3336 = vpack.c.b16 %v3165, %v3162
      %v3337 = vpack.c.b16 %v3166, %v3163
      %v3338 = vpack.c.b16 %v3170, %v3167
      %v3339 = vpack.c.b16 %v3171, %v3168
      %v3340 = vpack.c.b16 %v3172, %v3169
      %v3341 = vpack.c.b16 %v3176, %v3173
      %v3342 = vpack.c.b16 %v3177, %v3174
      %v3343 = vpack.c.b16 %v3178, %v3175
      %v3344 = vpack.c.b16 %v3182, %v3179
      %v3345 = vpack.c.b16 %v3183, %v3180
      %v3346 = vpack.c.b16 %v3184, %v3181
      %v3347 = vpack.c.b16 %v3188, %v3185
      %v3348 = vpack.c.b16 %v3189, %v3186
      %v3349 = vpack.c.b16 %v3190, %v3187
      %v3350 = vpack.c.b16 %v3194, %v3191
      %v3351 = vpack.c.b16 %v3195, %v3192
      %v3352 = vpack.c.b16 %v3196, %v3193
      %v3353 = vpack.c.b16 %v3200, %v3197
      %v3354 = vpack.c.b16 %v3201, %v3198
      %v3355 = vpack.c.b16 %v3202, %v3199
      %v3356 = vpack.c.b16 %v3206, %v3203
      %v3357 = vpack.c.b16 %v3207, %v3204
      %v3358 = vpack.c.b16 %v3208, %v3205
      %v3359 = vpack.c.b16 %v3212, %v3209
      %v3360 = vpack.c.b16 %v3213, %v3210
      %v3361 = vpack.c.b16 %v3214, %v3211
      %v3362 = vpack.c.b16 %v3218, %v3215
      %v3363 = vpack.c.b16 %v3219, %v3216
      %v3364 = vpack.c.b16 %v3220, %v3217
      %v3365 = vpack.c.b16 %v3224, %v3221
      %v3366 = vpack.c.b16 %v3225, %v3222
      %v3367 = vpack.c.b16 %v3226, %v3223
      %v3368 = vpack.c.b16 %v3230, %v3227
      %v3369 = vpack.c.b16 %v3231, %v3228
      %v3370 = vpack.c.b16 %v3232, %v3229
      %v3371 = vpack.c.b16 %v3236, %v3233
      %v3372 = vpack.c.b16 %v3237, %v3234
      %v3373 = vpack.c.b16 %v3238, %v3235
      %v3374 = vpack.c.b16 %v3242, %v3239
      %v3375 = vpack.c.b16 %v3243, %v3240
      %v3376 = vpack.c.b16 %v3244, %v3241
      %v3377 = vpack.c.b16 %v3248, %v3245
      %v3378 = vpack.c.b16 %v3249, %v3246
      %v3379 = vpack.c.b16 %v3250, %v3247
      %v3380 = vpack.c.b16 %v3254, %v3251
      %v3381 = vpack.c.b16 %v3255, %v3252
      %v3382 = vpack.c.b16 %v3256, %v3253
      %v3383 = vpack.c.b16 %v3260, %v3257
      %v3384 = vpack.c.b16 %v3261, %v3258
      %v3385 = vpack.c.b16 %v3262, %v3259
      %v3386 = vpack.c.b16 %v3266, %v3263
      %v3387 = vpack.c.b16 %v3267, %v3264
      %v3388 = vpack.c.b16 %v3268, %v3265
      %3509 = vmatprep.subr.bf16.mxu0 %v3270
      %3510 = vmatpush1.bf16.msra.mxu0 %v3269
      %3511 = vmatprep.subr.bf16.mxu0 %v3273
      %3512 = vmatpush1.bf16.msra.mxu0 %v3272
      %3513 = vmatprep.subr.bf16.mxu0 %v3276
      %3514 = vmatpush1.bf16.msra.mxu0 %v3275
      %3515 = vmatprep.subr.bf16.mxu0 %v3279
      %3516 = vmatpush1.bf16.msra.mxu0 %v3278
      %3517 = vmatprep.subr.bf16.mxu0 %v3282
      %3518 = vmatpush1.bf16.msra.mxu0 %v3281
      %3519 = vmatprep.subr.bf16.mxu0 %v3285
      %3520 = vmatpush1.bf16.msra.mxu0 %v3284
      %3521 = vmatprep.subr.bf16.mxu0 %v3288
      %3522 = vmatpush1.bf16.msra.mxu0 %v3287
      %3523 = vmatprep.subr.bf16.mxu0 %v3291
      %3524 = vmatpush1.bf16.msra.mxu0 %v3290
      %3525 = vmatprep.subr.bf16.mxu0 %v3294
      %3526 = vmatpush1.bf16.msra.mxu0 %v3293
      %3527 = vmatprep.subr.bf16.mxu0 %v3297
      %3528 = vmatpush1.bf16.msra.mxu0 %v3296
      %3529 = vmatprep.subr.bf16.mxu0 %v3300
      %3530 = vmatpush1.bf16.msra.mxu0 %v3299
      %3531 = vmatprep.subr.bf16.mxu0 %v3303
      %3532 = vmatpush1.bf16.msra.mxu0 %v3302
      %3533 = vmatprep.subr.bf16.mxu0 %v3306
      %3534 = vmatpush1.bf16.msra.mxu0 %v3305
      %3535 = vmatprep.subr.bf16.mxu0 %v3309
      %3536 = vmatpush1.bf16.msra.mxu0 %v3308
      %3537 = vmatprep.subr.bf16.mxu0 %v3312
      %3538 = vmatpush1.bf16.msra.mxu0 %v3311
      %3539 = vmatprep.subr.bf16.mxu0 %v3315
      %3540 = vmatpush1.bf16.msra.mxu0 %v3314
      %3541 = vmatprep.mubr.bf16.mxu0 %v1429
      %3542 = vmatmul.mubr.bf16.gmra.mrb[0].mxu0 %v1011
      %v3543 = vpop.f32.mrb[0].mxu0
      %v3544 = vadd.f32 %v2857, %v3543
      %v3545 = vpop.f32.mrb[0].mxu0
      %v3546 = vadd.f32 %v2861, %v3545
      %v3547 = vpop.f32.mrb[0].mxu0
      %v3548 = vadd.f32 %v2857, %v3547
      %v3549 = vpop.f32.mrb[0].mxu0
      %v3550 = vadd.f32 %v2861, %v3549
      %3551 = vmatprep.mubr.bf16.mxu0 %v1430
      %3552 = vmatmul.mubr.bf16.gmra.mrb[0].mxu0 %v1012
      %v3553 = vpop.f32.mrb[0].mxu0
      %v3554 = vadd.f32 %v2857, %v3553
      %v3555 = vpop.f32.mrb[0].mxu0
      %v3556 = vadd.f32 %v2861, %v3555
      %v3557 = vpop.f32.mrb[0].mxu0
      %v3558 = vadd.f32 %v2857, %v3557
      %v3559 = vpop.f32.mrb[0].mxu0
      %v3560 = vadd.f32 %v2861, %v3559
      %3561 = vmatprep.mubr.bf16.mxu0 %v1431
      %3562 = vmatmul.mubr.bf16.gmra.mrb[0].mxu0 %v1013
      %v3563 = vpop.f32.mrb[0].mxu0
      %v3564 = vadd.f32 %v2857, %v3563
      %v3565 = vpop.f32.mrb[0].mxu0
      %v3566 = vadd.f32 %v2861, %v3565
      %v3567 = vpop.f32.mrb[0].mxu0
      %v3568 = vadd.f32 %v2857, %v3567
      %v3569 = vpop.f32.mrb[0].mxu0
      %v3570 = vadd.f32 %v2861, %v3569
      %3571 = vmatprep.mubr.bf16.mxu0 %v1432
      %3572 = vmatmul.mubr.bf16.gmra.mrb[0].mxu0 %v1014
      %v3573 = vpop.f32.mrb[0].mxu0
      %v3574 = vadd.f32 %v2857, %v3573
      %v3575 = vpop.f32.mrb[0].mxu0
      %v3576 = vadd.f32 %v2861, %v3575
      %v3577 = vpop.f32.mrb[0].mxu0
      %v3578 = vadd.f32 %v2857, %v3577
      %v3579 = vpop.f32.mrb[0].mxu0
      %v3580 = vadd.f32 %v2861, %v3579
      %3581 = vmatprep.mubr.bf16.mxu0 %v1433
      %3582 = vmatmul.mubr.bf16.gmra.mrb[0].mxu0 %v1015
      %v3583 = vpop.f32.mrb[0].mxu0
      %v3584 = vadd.f32 %v2857, %v3583
      %v3585 = vpop.f32.mrb[0].mxu0
      %v3586 = vadd.f32 %v2861, %v3585
      %v3587 = vpop.f32.mrb[0].mxu0
      %v3588 = vadd.f32 %v2857, %v3587
      %v3589 = vpop.f32.mrb[0].mxu0
      %v3590 = vadd.f32 %v2861, %v3589
      %3591 = vmatprep.mubr.bf16.mxu0 %v1434
      %3592 = vmatmul.mubr.bf16.gmra.mrb[0].mxu0 %v1016
      %v3593 = vpop.f32.mrb[0].mxu0
      %v3594 = vadd.f32 %v2857, %v3593
      %v3595 = vpop.f32.mrb[0].mxu0
      %v3596 = vadd.f32 %v2861, %v3595
      %v3597 = vpop.f32.mrb[0].mxu0
      %v3598 = vadd.f32 %v2857, %v3597
      %v3599 = vpop.f32.mrb[0].mxu0
      %v3600 = vadd.f32 %v2861, %v3599
      %3601 = vmatprep.mubr.bf16.mxu0 %v1435
      %3602 = vmatmul.mubr.bf16.gmra.mrb[0].mxu0 %v1017
      %v3603 = vpop.f32.mrb[0].mxu0
      %v3604 = vadd.f32 %v2857, %v3603
      %v3605 = vpop.f32.mrb[0].mxu0
      %v3606 = vadd.f32 %v2861, %v3605
      %v3607 = vpop.f32.mrb[0].mxu0
      %v3608 = vadd.f32 %v2857, %v3607
      %v3609 = vpop.f32.mrb[0].mxu0
      %v3610 = vadd.f32 %v2861, %v3609
      %3611 = vmatprep.mubr.bf16.mxu0 %v1436
      %3612 = vmatmul.mubr.bf16.gmra.mrb[0].mxu0 %v1018
      %v3613 = vpop.f32.mrb[0].mxu0
      %v3614 = vadd.f32 %v2857, %v3613
      %v3615 = vpop.f32.mrb[0].mxu0
      %v3616 = vadd.f32 %v2861, %v3615
      %v3617 = vpop.f32.mrb[0].mxu0
      %v3618 = vadd.f32 %v2857, %v3617
      %v3619 = vpop.f32.mrb[0].mxu0
      %v3620 = vadd.f32 %v2861, %v3619
      %3621 = vmatprep.mubr.bf16.mxu0 %v1437
      %3622 = vmatmul.mubr.bf16.gmra.mrb[0].mxu0 %v1019
      %v3623 = vpop.f32.mrb[0].mxu0
      %v3624 = vadd.f32 %v2857, %v3623
      %v3625 = vpop.f32.mrb[0].mxu0
      %v3626 = vadd.f32 %v2861, %v3625
      %v3627 = vpop.f32.mrb[0].mxu0
      %v3628 = vadd.f32 %v2857, %v3627
      %v3629 = vpop.f32.mrb[0].mxu0
      %v3630 = vadd.f32 %v2861, %v3629
      %3631 = vdwg.mxu0
      %3632 = vmatprep.subr.bf16.mxu0 %v3318
      %3633 = vmatpush1.bf16.msra.mxu0 %v3317
      %3634 = vmatprep.subr.bf16.mxu0 %v3321
      %3635 = vmatpush1.bf16.msra.mxu0 %v3320
      %3636 = vmatprep.subr.bf16.mxu0 %v3324
      %3637 = vmatpush1.bf16.msra.mxu0 %v3323
      %3638 = vmatprep.subr.bf16.mxu0 %v3327
      %3639 = vmatpush1.bf16.msra.mxu0 %v3326
      %3640 = vmatprep.subr.bf16.mxu0 %v3330
      %3641 = vmatpush1.bf16.msra.mxu0 %v3329
      %3642 = vmatprep.subr.bf16.mxu0 %v3333
      %3643 = vmatpush1.bf16.msra.mxu0 %v3332
      %3644 = vmatprep.subr.bf16.mxu0 %v3336
      %3645 = vmatpush1.bf16.msra.mxu0 %v3335
      %3646 = vmatprep.subr.bf16.mxu0 %v3339
      %3647 = vmatpush1.bf16.msra.mxu0 %v3338
      %3648 = vmatprep.subr.bf16.mxu0 %v3342
      %3649 = vmatpush1.bf16.msra.mxu0 %v3341
      %3650 = vmatprep.subr.bf16.mxu0 %v3345
      %3651 = vmatpush1.bf16.msra.mxu0 %v3344
      %3652 = vmatprep.subr.bf16.mxu0 %v3348
      %3653 = vmatpush1.bf16.msra.mxu0 %v3347
      %3654 = vmatprep.subr.bf16.mxu0 %v3351
      %3655 = vmatpush1.bf16.msra.mxu0 %v3350
      %3656 = vmatprep.subr.bf16.mxu0 %v3354
      %3657 = vmatpush1.bf16.msra.mxu0 %v3353
      %3658 = vmatprep.subr.bf16.mxu0 %v3357
      %3659 = vmatpush1.bf16.msra.mxu0 %v3356
      %3660 = vmatprep.subr.bf16.mxu0 %v3360
      %3661 = vmatpush1.bf16.msra.mxu0 %v3359
      %3662 = vmatprep.subr.bf16.mxu0 %v3363
      %3663 = vmatpush1.bf16.msra.mxu0 %v3362
      %3664 = vmatprep.mubr.bf16.mxu0 %v2265
      %3665 = vmatmul.mubr.bf16.gmra.mrb[0].mxu0 %v1847
      %v3666 = vpop.f32.mrb[0].mxu0
      %v3667 = vadd.f32 %v3544, %v3666
      %v3668 = vpop.f32.mrb[0].mxu0
      %v3669 = vadd.f32 %v3546, %v3668
      %v3670 = vpop.f32.mrb[0].mxu0
      %v3671 = vadd.f32 %v3548, %v3670
      %v3672 = vpop.f32.mrb[0].mxu0
      %v3673 = vadd.f32 %v3550, %v3672
      %3674 = vmatprep.mubr.bf16.mxu0 %v2266
      %3675 = vmatmul.mubr.bf16.gmra.mrb[0].mxu0 %v1848
      %v3676 = vpop.f32.mrb[0].mxu0
      %v3677 = vadd.f32 %v3554, %v3676
      %v3678 = vpop.f32.mrb[0].mxu0
      %v3679 = vadd.f32 %v3556, %v3678
      %v3680 = vpop.f32.mrb[0].mxu0
      %v3681 = vadd.f32 %v3558, %v3680
      %v3682 = vpop.f32.mrb[0].mxu0
      %v3683 = vadd.f32 %v3560, %v3682
      %3684 = vmatprep.mubr.bf16.mxu0 %v2267
      %3685 = vmatmul.mubr.bf16.gmra.mrb[0].mxu0 %v1849
      %v3686 = vpop.f32.mrb[0].mxu0
      %v3687 = vadd.f32 %v3564, %v3686
      %v3688 = vpop.f32.mrb[0].mxu0
      %v3689 = vadd.f32 %v3566, %v3688
      %v3690 = vpop.f32.mrb[0].mxu0
      %v3691 = vadd.f32 %v3568, %v3690
      %v3692 = vpop.f32.mrb[0].mxu0
      %v3693 = vadd.f32 %v3570, %v3692
      %3694 = vmatprep.mubr.bf16.mxu0 %v2268
      %3695 = vmatmul.mubr.bf16.gmra.mrb[0].mxu0 %v1850
      %v3696 = vpop.f32.mrb[0].mxu0
      %v3697 = vadd.f32 %v3574, %v3696
      %v3698 = vpop.f32.mrb[0].mxu0
      %v3699 = vadd.f32 %v3576, %v3698
      %v3700 = vpop.f32.mrb[0].mxu0
      %v3701 = vadd.f32 %v3578, %v3700
      %v3702 = vpop.f32.mrb[0].mxu0
      %v3703 = vadd.f32 %v3580, %v3702
      %3704 = vmatprep.mubr.bf16.mxu0 %v2269
      %3705 = vmatmul.mubr.bf16.gmra.mrb[0].mxu0 %v1851
      %v3706 = vpop.f32.mrb[0].mxu0
      %v3707 = vadd.f32 %v3584, %v3706
      %v3708 = vpop.f32.mrb[0].mxu0
      %v3709 = vadd.f32 %v3586, %v3708
      %v3710 = vpop.f32.mrb[0].mxu0
      %v3711 = vadd.f32 %v3588, %v3710
      %v3712 = vpop.f32.mrb[0].mxu0
      %v3713 = vadd.f32 %v3590, %v3712
      %3714 = vmatprep.mubr.bf16.mxu0 %v2270
      %3715 = vmatmul.mubr.bf16.gmra.mrb[0].mxu0 %v1852
      %v3716 = vpop.f32.mrb[0].mxu0
      %v3717 = vadd.f32 %v3594, %v3716
      %v3718 = vpop.f32.mrb[0].mxu0
      %v3719 = vadd.f32 %v3596, %v3718
      %v3720 = vpop.f32.mrb[0].mxu0
      %v3721 = vadd.f32 %v3598, %v3720
      %v3722 = vpop.f32.mrb[0].mxu0
      %v3723 = vadd.f32 %v3600, %v3722
      %3724 = vmatprep.mubr.bf16.mxu0 %v2271
      %3725 = vmatmul.mubr.bf16.gmra.mrb[0].mxu0 %v1853
      %v3726 = vpop.f32.mrb[0].mxu0
      %v3727 = vadd.f32 %v3604, %v3726
      %v3728 = vpop.f32.mrb[0].mxu0
      %v3729 = vadd.f32 %v3606, %v3728
      %v3730 = vpop.f32.mrb[0].mxu0
      %v3731 = vadd.f32 %v3608, %v3730
      %v3732 = vpop.f32.mrb[0].mxu0
      %v3733 = vadd.f32 %v3610, %v3732
      %3734 = vmatprep.mubr.bf16.mxu0 %v2272
      %3735 = vmatmul.mubr.bf16.gmra.mrb[0].mxu0 %v1854
      %v3736 = vpop.f32.mrb[0].mxu0
      %v3737 = vadd.f32 %v3614, %v3736
      %v3738 = vpop.f32.mrb[0].mxu0
      %v3739 = vadd.f32 %v3616, %v3738
      %v3740 = vpop.f32.mrb[0].mxu0
      %v3741 = vadd.f32 %v3618, %v3740
      %v3742 = vpop.f32.mrb[0].mxu0
      %v3743 = vadd.f32 %v3620, %v3742
      %3744 = vmatprep.mubr.bf16.mxu0 %v2273
      %3745 = vmatmul.mubr.bf16.gmra.mrb[0].mxu0 %v1855
      %v3746 = vpop.f32.mrb[0].mxu0
      %v3747 = vadd.f32 %v3624, %v3746
      %v3748 = vpop.f32.mrb[0].mxu0
      %v3749 = vadd.f32 %v3626, %v3748
      %v3750 = vpop.f32.mrb[0].mxu0
      %v3751 = vadd.f32 %v3628, %v3750
      %v3752 = vpop.f32.mrb[0].mxu0
      %v3753 = vadd.f32 %v3630, %v3752
      %3754 = vdwg.mxu0
      %3755 = vmatprep.subr.bf16.mxu0 %v3366
      %3756 = vmatpush1.bf16.msra.mxu0 %v3365
      %3757 = vmatprep.subr.bf16.mxu0 %v3369
      %3758 = vmatpush1.bf16.msra.mxu0 %v3368
      %3759 = vmatprep.subr.bf16.mxu0 %v3372
      %3760 = vmatpush1.bf16.msra.mxu0 %v3371
      %3761 = vmatprep.subr.bf16.mxu0 %v3375
      %3762 = vmatpush1.bf16.msra.mxu0 %v3374
      %3763 = vmatprep.subr.bf16.mxu0 %v3378
      %3764 = vmatpush1.bf16.msra.mxu0 %v3377
      %3765 = vmatprep.subr.bf16.mxu0 %v3381
      %3766 = vmatpush1.bf16.msra.mxu0 %v3380
      %3767 = vmatprep.subr.bf16.mxu0 %v3384
      %3768 = vmatpush1.bf16.msra.mxu0 %v3383
      %3769 = vmatprep.subr.bf16.mxu0 %v3387
      %3770 = vmatpush1.bf16.msra.mxu0 %v3386
      %3771 = vmatprep.subr.bf16.mxu0 0
      %3772 = vmatpush1.bf16.msra.mxu0 0
      %3773 = vmatprep.subr.bf16.mxu0 0
      %3774 = vmatpush1.bf16.msra.mxu0 0
      %3775 = vmatprep.subr.bf16.mxu0 0
      %3776 = vmatpush1.bf16.msra.mxu0 0
      %3777 = vmatprep.subr.bf16.mxu0 0
      %3778 = vmatpush1.bf16.msra.mxu0 0
      %3779 = vmatprep.subr.bf16.mxu0 0
      %3780 = vmatpush1.bf16.msra.mxu0 0
      %3781 = vmatprep.subr.bf16.mxu0 0
      %3782 = vmatpush1.bf16.msra.mxu0 0
      %3783 = vmatprep.subr.bf16.mxu0 0
      %3784 = vmatpush1.bf16.msra.mxu0 0
      %3785 = vmatprep.subr.bf16.mxu0 0
      %3786 = vmatpush1.bf16.msra.mxu0 0
      %3787 = vmatprep.mubr.bf16.mxu0 0
      %3788 = vmatmul.mubr.bf16.gmra.mrb[0].mxu0 %v2683
      %v3789 = vpop.f32.mrb[0].mxu0
      %v3790 = vadd.f32 %v3667, %v3789
      %v3791 = vpop.f32.mrb[0].mxu0
      %v3792 = vadd.f32 %v3669, %v3791
      %v3793 = vpop.f32.mrb[0].mxu0
      %v3794 = vadd.f32 %v3671, %v3793
      %v3795 = vpop.f32.mrb[0].mxu0
      %v3796 = vadd.f32 %v3673, %v3795
      %3797 = vmatprep.mubr.bf16.mxu0 0
      %3798 = vmatmul.mubr.bf16.gmra.mrb[0].mxu0 %v2684
      %v3799 = vpop.f32.mrb[0].mxu0
      %v3800 = vadd.f32 %v3677, %v3799
      %v3801 = vpop.f32.mrb[0].mxu0
      %v3802 = vadd.f32 %v3679, %v3801
      %v3803 = vpop.f32.mrb[0].mxu0
      %v3804 = vadd.f32 %v3681, %v3803
      %v3805 = vpop.f32.mrb[0].mxu0
      %v3806 = vadd.f32 %v3683, %v3805
      %3807 = vmatprep.mubr.bf16.mxu0 0
      %3808 = vmatmul.mubr.bf16.gmra.mrb[0].mxu0 %v2685
      %v3809 = vpop.f32.mrb[0].mxu0
      %v3810 = vadd.f32 %v3687, %v3809
      %v3811 = vpop.f32.mrb[0].mxu0
      %v3812 = vadd.f32 %v3689, %v3811
      %v3813 = vpop.f32.mrb[0].mxu0
      %v3814 = vadd.f32 %v3691, %v3813
      %v3815 = vpop.f32.mrb[0].mxu0
      %v3816 = vadd.f32 %v3693, %v3815
      %3817 = vmatprep.mubr.bf16.mxu0 0
      %3818 = vmatmul.mubr.bf16.gmra.mrb[0].mxu0 %v2686
      %v3819 = vpop.f32.mrb[0].mxu0
      %v3820 = vadd.f32 %v3697, %v3819
      %v3821 = vpop.f32.mrb[0].mxu0
      %v3822 = vadd.f32 %v3699, %v3821
      %v3823 = vpop.f32.mrb[0].mxu0
      %v3824 = vadd.f32 %v3701, %v3823
      %v3825 = vpop.f32.mrb[0].mxu0
      %v3826 = vadd.f32 %v3703, %v3825
      %3827 = vmatprep.mubr.bf16.mxu0 0
      %3828 = vmatmul.mubr.bf16.gmra.mrb[0].mxu0 %v2687
      %v3829 = vpop.f32.mrb[0].mxu0
      %v3830 = vadd.f32 %v3707, %v3829
      %v3831 = vpop.f32.mrb[0].mxu0
      %v3832 = vadd.f32 %v3709, %v3831
      %v3833 = vpop.f32.mrb[0].mxu0
      %v3834 = vadd.f32 %v3711, %v3833
      %v3835 = vpop.f32.mrb[0].mxu0
      %v3836 = vadd.f32 %v3713, %v3835
      %3837 = vmatprep.mubr.bf16.mxu0 0
      %3838 = vmatmul.mubr.bf16.gmra.mrb[0].mxu0 %v2688
      %v3839 = vpop.f32.mrb[0].mxu0
      %v3840 = vadd.f32 %v3717, %v3839
      %v3841 = vpop.f32.mrb[0].mxu0
      %v3842 = vadd.f32 %v3719, %v3841
      %v3843 = vpop.f32.mrb[0].mxu0
      %v3844 = vadd.f32 %v3721, %v3843
      %v3845 = vpop.f32.mrb[0].mxu0
      %v3846 = vadd.f32 %v3723, %v3845
      %3847 = vmatprep.mubr.bf16.mxu0 0
      %3848 = vmatmul.mubr.bf16.gmra.mrb[0].mxu0 %v2689
      %v3849 = vpop.f32.mrb[0].mxu0
      %v3850 = vadd.f32 %v3727, %v3849
      %v3851 = vpop.f32.mrb[0].mxu0
      %v3852 = vadd.f32 %v3729, %v3851
      %v3853 = vpop.f32.mrb[0].mxu0
      %v3854 = vadd.f32 %v3731, %v3853
      %v3855 = vpop.f32.mrb[0].mxu0
      %v3856 = vadd.f32 %v3733, %v3855
      %3857 = vmatprep.mubr.bf16.mxu0 0
      %3858 = vmatmul.mubr.bf16.gmra.mrb[0].mxu0 %v2690
      %v3859 = vpop.f32.mrb[0].mxu0
      %v3860 = vadd.f32 %v3737, %v3859
      %v3861 = vpop.f32.mrb[0].mxu0
      %v3862 = vadd.f32 %v3739, %v3861
      %v3863 = vpop.f32.mrb[0].mxu0
      %v3864 = vadd.f32 %v3741, %v3863
      %v3865 = vpop.f32.mrb[0].mxu0
      %v3866 = vadd.f32 %v3743, %v3865
      %3867 = vmatprep.mubr.bf16.mxu0 0
      %3868 = vmatmul.mubr.bf16.gmra.mrb[0].mxu0 %v2691
      %v3869 = vpop.f32.mrb[0].mxu0
      %v3870 = vadd.f32 %v3747, %v3869
      %v3871 = vpop.f32.mrb[0].mxu0
      %v3872 = vadd.f32 %v3749, %v3871
      %v3873 = vpop.f32.mrb[0].mxu0
      %v3874 = vadd.f32 %v3751, %v3873
      %v3875 = vpop.f32.mrb[0].mxu0
      %v3876 = vadd.f32 %v3753, %v3875
      %3877 = vdwg.mxu0
      %3878 = vmatprep.subr.bf16.mxu0 0
      %3879 = vmatpush1.bf16.msra.mxu0 %v3271
      %3880 = vmatprep.subr.bf16.mxu0 0
      %3881 = vmatpush1.bf16.msra.mxu0 %v3274
      %3882 = vmatprep.subr.bf16.mxu0 0
      %3883 = vmatpush1.bf16.msra.mxu0 %v3277
      %3884 = vmatprep.subr.bf16.mxu0 0
      %3885 = vmatpush1.bf16.msra.mxu0 %v3280
      %3886 = vmatprep.subr.bf16.mxu0 0
      %3887 = vmatpush1.bf16.msra.mxu0 %v3283
      %3888 = vmatprep.subr.bf16.mxu0 0
      %3889 = vmatpush1.bf16.msra.mxu0 %v3286
      %3890 = vmatprep.subr.bf16.mxu0 0
      %3891 = vmatpush1.bf16.msra.mxu0 %v3289
      %3892 = vmatprep.subr.bf16.mxu0 0
      %3893 = vmatpush1.bf16.msra.mxu0 %v3292
      %3894 = vmatprep.subr.bf16.mxu0 0
      %3895 = vmatpush1.bf16.msra.mxu0 %v3295
      %3896 = vmatprep.subr.bf16.mxu0 0
      %3897 = vmatpush1.bf16.msra.mxu0 %v3298
      %3898 = vmatprep.subr.bf16.mxu0 0
      %3899 = vmatpush1.bf16.msra.mxu0 %v3301
      %3900 = vmatprep.subr.bf16.mxu0 0
      %3901 = vmatpush1.bf16.msra.mxu0 %v3304
      %3902 = vmatprep.subr.bf16.mxu0 0
      %3903 = vmatpush1.bf16.msra.mxu0 %v3307
      %3904 = vmatprep.subr.bf16.mxu0 0
      %3905 = vmatpush1.bf16.msra.mxu0 %v3310
      %3906 = vmatprep.subr.bf16.mxu0 0
      %3907 = vmatpush1.bf16.msra.mxu0 %v3313
      %3908 = vmatprep.subr.bf16.mxu0 0
      %3909 = vmatpush1.bf16.msra.mxu0 %v3316
      %3910 = vmatprep.mubr.bf16.mxu0 %v1429
      %3911 = vmatmul.mubr.bf16.gmra.mrb[0].mxu0 %v1011
      %v3912 = vpop.f32.mrb[0].mxu0
      %v3913 = vadd.f32 %v2865, %v3912
      %v3914 = vpop.f32.mrb[0].mxu0
      %v3915 = vpop.f32.mrb[0].mxu0
      %v3916 = vadd.f32 %v2865, %v3915
      %v3917 = vpop.f32.mrb[0].mxu0
      %3918 = vmatprep.mubr.bf16.mxu0 %v1430
      %3919 = vmatmul.mubr.bf16.gmra.mrb[0].mxu0 %v1012
      %v3920 = vpop.f32.mrb[0].mxu0
      %v3921 = vadd.f32 %v2865, %v3920
      %v3922 = vpop.f32.mrb[0].mxu0
      %v3923 = vpop.f32.mrb[0].mxu0
      %v3924 = vadd.f32 %v2865, %v3923
      %v3925 = vpop.f32.mrb[0].mxu0
      %3926 = vmatprep.mubr.bf16.mxu0 %v1431
      %3927 = vmatmul.mubr.bf16.gmra.mrb[0].mxu0 %v1013
      %v3928 = vpop.f32.mrb[0].mxu0
      %v3929 = vadd.f32 %v2865, %v3928
      %v3930 = vpop.f32.mrb[0].mxu0
      %v3931 = vpop.f32.mrb[0].mxu0
      %v3932 = vadd.f32 %v2865, %v3931
      %v3933 = vpop.f32.mrb[0].mxu0
      %3934 = vmatprep.mubr.bf16.mxu0 %v1432
      %3935 = vmatmul.mubr.bf16.gmra.mrb[0].mxu0 %v1014
      %v3936 = vpop.f32.mrb[0].mxu0
      %v3937 = vadd.f32 %v2865, %v3936
      %v3938 = vpop.f32.mrb[0].mxu0
      %v3939 = vpop.f32.mrb[0].mxu0
      %v3940 = vadd.f32 %v2865, %v3939
      %v3941 = vpop.f32.mrb[0].mxu0
      %3942 = vmatprep.mubr.bf16.mxu0 %v1433
      %3943 = vmatmul.mubr.bf16.gmra.mrb[0].mxu0 %v1015
      %v3944 = vpop.f32.mrb[0].mxu0
      %v3945 = vadd.f32 %v2865, %v3944
      %v3946 = vpop.f32.mrb[0].mxu0
      %v3947 = vpop.f32.mrb[0].mxu0
      %v3948 = vadd.f32 %v2865, %v3947
      %v3949 = vpop.f32.mrb[0].mxu0
      %3950 = vmatprep.mubr.bf16.mxu0 %v1434
      %3951 = vmatmul.mubr.bf16.gmra.mrb[0].mxu0 %v1016
      %v3952 = vpop.f32.mrb[0].mxu0
      %v3953 = vadd.f32 %v2865, %v3952
      %v3954 = vpop.f32.mrb[0].mxu0
      %v3955 = vpop.f32.mrb[0].mxu0
      %v3956 = vadd.f32 %v2865, %v3955
      %v3957 = vpop.f32.mrb[0].mxu0
      %3958 = vmatprep.mubr.bf16.mxu0 %v1435
      %3959 = vmatmul.mubr.bf16.gmra.mrb[0].mxu0 %v1017
      %v3960 = vpop.f32.mrb[0].mxu0
      %v3961 = vadd.f32 %v2865, %v3960
      %v3962 = vpop.f32.mrb[0].mxu0
      %v3963 = vpop.f32.mrb[0].mxu0
      %v3964 = vadd.f32 %v2865, %v3963
      %v3965 = vpop.f32.mrb[0].mxu0
      %3966 = vmatprep.mubr.bf16.mxu0 %v1436
      %3967 = vmatmul.mubr.bf16.gmra.mrb[0].mxu0 %v1018
      %v3968 = vpop.f32.mrb[0].mxu0
      %v3969 = vadd.f32 %v2865, %v3968
      %v3970 = vpop.f32.mrb[0].mxu0
      %v3971 = vpop.f32.mrb[0].mxu0
      %v3972 = vadd.f32 %v2865, %v3971
      %v3973 = vpop.f32.mrb[0].mxu0
      %3974 = vmatprep.mubr.bf16.mxu0 %v1437
      %3975 = vmatmul.mubr.bf16.gmra.mrb[0].mxu0 %v1019
      %v3976 = vpop.f32.mrb[0].mxu0
      %v3977 = vadd.f32 %v2865, %v3976
      %v3978 = vpop.f32.mrb[0].mxu0
      %v3979 = vpop.f32.mrb[0].mxu0
      %v3980 = vadd.f32 %v2865, %v3979
      %v3981 = vpop.f32.mrb[0].mxu0
      %3982 = vdwg.mxu0
      %3983 = vmatprep.subr.bf16.mxu0 0
      %3984 = vmatpush1.bf16.msra.mxu0 %v3319
      %3985 = vmatprep.subr.bf16.mxu0 0
      %3986 = vmatpush1.bf16.msra.mxu0 %v3322
      %3987 = vmatprep.subr.bf16.mxu0 0
      %3988 = vmatpush1.bf16.msra.mxu0 %v3325
      %3989 = vmatprep.subr.bf16.mxu0 0
      %3990 = vmatpush1.bf16.msra.mxu0 %v3328
      %3991 = vmatprep.subr.bf16.mxu0 0
      %3992 = vmatpush1.bf16.msra.mxu0 %v3331
      %3993 = vmatprep.subr.bf16.mxu0 0
      %3994 = vmatpush1.bf16.msra.mxu0 %v3334
      %3995 = vmatprep.subr.bf16.mxu0 0
      %3996 = vmatpush1.bf16.msra.mxu0 %v3337
      %3997 = vmatprep.subr.bf16.mxu0 0
      %3998 = vmatpush1.bf16.msra.mxu0 %v3340
      %3999 = vmatprep.subr.bf16.mxu0 0
      %4000 = vmatpush1.bf16.msra.mxu0 %v3343
      %4001 = vmatprep.subr.bf16.mxu0 0
      %4002 = vmatpush1.bf16.msra.mxu0 %v3346
      %4003 = vmatprep.subr.bf16.mxu0 0
      %4004 = vmatpush1.bf16.msra.mxu0 %v3349
      %4005 = vmatprep.subr.bf16.mxu0 0
      %4006 = vmatpush1.bf16.msra.mxu0 %v3352
      %4007 = vmatprep.subr.bf16.mxu0 0
      %4008 = vmatpush1.bf16.msra.mxu0 %v3355
      %4009 = vmatprep.subr.bf16.mxu0 0
      %4010 = vmatpush1.bf16.msra.mxu0 %v3358
      %4011 = vmatprep.subr.bf16.mxu0 0
      %4012 = vmatpush1.bf16.msra.mxu0 %v3361
      %4013 = vmatprep.subr.bf16.mxu0 0
      %4014 = vmatpush1.bf16.msra.mxu0 %v3364
      %4015 = vmatprep.mubr.bf16.mxu0 %v2265
      %4016 = vmatmul.mubr.bf16.gmra.mrb[0].mxu0 %v1847
      %v4017 = vpop.f32.mrb[0].mxu0
      %v4018 = vadd.f32 %v3913, %v4017
      %v4019 = vpop.f32.mrb[0].mxu0
      %v4020 = vpop.f32.mrb[0].mxu0
      %v4021 = vadd.f32 %v3916, %v4020
      %v4022 = vpop.f32.mrb[0].mxu0
      %4023 = vmatprep.mubr.bf16.mxu0 %v2266
      %4024 = vmatmul.mubr.bf16.gmra.mrb[0].mxu0 %v1848
      %v4025 = vpop.f32.mrb[0].mxu0
      %v4026 = vadd.f32 %v3921, %v4025
      %v4027 = vpop.f32.mrb[0].mxu0
      %v4028 = vpop.f32.mrb[0].mxu0
      %v4029 = vadd.f32 %v3924, %v4028
      %v4030 = vpop.f32.mrb[0].mxu0
      %4031 = vmatprep.mubr.bf16.mxu0 %v2267
      %4032 = vmatmul.mubr.bf16.gmra.mrb[0].mxu0 %v1849
      %v4033 = vpop.f32.mrb[0].mxu0
      %v4034 = vadd.f32 %v3929, %v4033
      %v4035 = vpop.f32.mrb[0].mxu0
      %v4036 = vpop.f32.mrb[0].mxu0
      %v4037 = vadd.f32 %v3932, %v4036
      %v4038 = vpop.f32.mrb[0].mxu0
      %4039 = vmatprep.mubr.bf16.mxu0 %v2268
      %4040 = vmatmul.mubr.bf16.gmra.mrb[0].mxu0 %v1850
      %v4041 = vpop.f32.mrb[0].mxu0
      %v4042 = vadd.f32 %v3937, %v4041
      %v4043 = vpop.f32.mrb[0].mxu0
      %v4044 = vpop.f32.mrb[0].mxu0
      %v4045 = vadd.f32 %v3940, %v4044
      %v4046 = vpop.f32.mrb[0].mxu0
      %4047 = vmatprep.mubr.bf16.mxu0 %v2269
      %4048 = vmatmul.mubr.bf16.gmra.mrb[0].mxu0 %v1851
      %v4049 = vpop.f32.mrb[0].mxu0
      %v4050 = vadd.f32 %v3945, %v4049
      %v4051 = vpop.f32.mrb[0].mxu0
      %v4052 = vpop.f32.mrb[0].mxu0
      %v4053 = vadd.f32 %v3948, %v4052
      %v4054 = vpop.f32.mrb[0].mxu0
      %4055 = vmatprep.mubr.bf16.mxu0 %v2270
      %4056 = vmatmul.mubr.bf16.gmra.mrb[0].mxu0 %v1852
      %v4057 = vpop.f32.mrb[0].mxu0
      %v4058 = vadd.f32 %v3953, %v4057
      %v4059 = vpop.f32.mrb[0].mxu0
      %v4060 = vpop.f32.mrb[0].mxu0
      %v4061 = vadd.f32 %v3956, %v4060
      %v4062 = vpop.f32.mrb[0].mxu0
      %4063 = vmatprep.mubr.bf16.mxu0 %v2271
      %4064 = vmatmul.mubr.bf16.gmra.mrb[0].mxu0 %v1853
      %v4065 = vpop.f32.mrb[0].mxu0
      %v4066 = vadd.f32 %v3961, %v4065
      %v4067 = vpop.f32.mrb[0].mxu0
      %v4068 = vpop.f32.mrb[0].mxu0
      %v4069 = vadd.f32 %v3964, %v4068
      %v4070 = vpop.f32.mrb[0].mxu0
      %4071 = vmatprep.mubr.bf16.mxu0 %v2272
      %4072 = vmatmul.mubr.bf16.gmra.mrb[0].mxu0 %v1854
      %v4073 = vpop.f32.mrb[0].mxu0
      %v4074 = vadd.f32 %v3969, %v4073
      %v4075 = vpop.f32.mrb[0].mxu0
      %v4076 = vpop.f32.mrb[0].mxu0
      %v4077 = vadd.f32 %v3972, %v4076
      %v4078 = vpop.f32.mrb[0].mxu0
      %4079 = vmatprep.mubr.bf16.mxu0 %v2273
      %4080 = vmatmul.mubr.bf16.gmra.mrb[0].mxu0 %v1855
      %v4081 = vpop.f32.mrb[0].mxu0
      %v4082 = vadd.f32 %v3977, %v4081
      %v4083 = vpop.f32.mrb[0].mxu0
      %v4084 = vpop.f32.mrb[0].mxu0
      %v4085 = vadd.f32 %v3980, %v4084
      %v4086 = vpop.f32.mrb[0].mxu0
      %4087 = vdwg.mxu0
      %4088 = vmatprep.subr.bf16.mxu0 0
      %4089 = vmatpush1.bf16.msra.mxu0 %v3367
      %4090 = vmatprep.subr.bf16.mxu0 0
      %4091 = vmatpush1.bf16.msra.mxu0 %v3370
      %4092 = vmatprep.subr.bf16.mxu0 0
      %4093 = vmatpush1.bf16.msra.mxu0 %v3373
      %4094 = vmatprep.subr.bf16.mxu0 0
      %4095 = vmatpush1.bf16.msra.mxu0 %v3376
      %4096 = vmatprep.subr.bf16.mxu0 0
      %4097 = vmatpush1.bf16.msra.mxu0 %v3379
      %4098 = vmatprep.subr.bf16.mxu0 0
      %4099 = vmatpush1.bf16.msra.mxu0 %v3382
      %4100 = vmatprep.subr.bf16.mxu0 0
      %4101 = vmatpush1.bf16.msra.mxu0 %v3385
      %4102 = vmatprep.subr.bf16.mxu0 0
      %4103 = vmatpush1.bf16.msra.mxu0 %v3388
      %4104 = vmatprep.subr.bf16.mxu0 0
      %4105 = vmatpush1.bf16.msra.mxu0 0
      %4106 = vmatprep.subr.bf16.mxu0 0
      %4107 = vmatpush1.bf16.msra.mxu0 0
      %4108 = vmatprep.subr.bf16.mxu0 0
      %4109 = vmatpush1.bf16.msra.mxu0 0
      %4110 = vmatprep.subr.bf16.mxu0 0
      %4111 = vmatpush1.bf16.msra.mxu0 0
      %4112 = vmatprep.subr.bf16.mxu0 0
      %4113 = vmatpush1.bf16.msra.mxu0 0
      %4114 = vmatprep.subr.bf16.mxu0 0
      %4115 = vmatpush1.bf16.msra.mxu0 0
      %4116 = vmatprep.subr.bf16.mxu0 0
      %4117 = vmatpush1.bf16.msra.mxu0 0
      %4118 = vmatprep.subr.bf16.mxu0 0
      %4119 = vmatpush1.bf16.msra.mxu0 0
      %4120 = vmatprep.mubr.bf16.mxu0 0
      %4121 = vmatmul.mubr.bf16.gmra.mrb[0].mxu0 %v2683
      %v4122 = vpop.f32.mrb[0].mxu0
      %v4123 = vadd.f32 %v4018, %v4122
      %v4124 = vpop.f32.mrb[0].mxu0
      %v4125 = vpop.f32.mrb[0].mxu0
      %v4126 = vadd.f32 %v4021, %v4125
      %v4127 = vpop.f32.mrb[0].mxu0
      %4128 = vmatprep.mubr.bf16.mxu0 0
      %4129 = vmatmul.mubr.bf16.gmra.mrb[0].mxu0 %v2684
      %v4130 = vpop.f32.mrb[0].mxu0
      %v4131 = vadd.f32 %v4026, %v4130
      %v4132 = vpop.f32.mrb[0].mxu0
      %v4133 = vpop.f32.mrb[0].mxu0
      %v4134 = vadd.f32 %v4029, %v4133
      %v4135 = vpop.f32.mrb[0].mxu0
      %4136 = vmatprep.mubr.bf16.mxu0 0
      %4137 = vmatmul.mubr.bf16.gmra.mrb[0].mxu0 %v2685
      %v4138 = vpop.f32.mrb[0].mxu0
      %v4139 = vadd.f32 %v4034, %v4138
      %v4140 = vpop.f32.mrb[0].mxu0
      %v4141 = vpop.f32.mrb[0].mxu0
      %v4142 = vadd.f32 %v4037, %v4141
      %v4143 = vpop.f32.mrb[0].mxu0
      %4144 = vmatprep.mubr.bf16.mxu0 0
      %4145 = vmatmul.mubr.bf16.gmra.mrb[0].mxu0 %v2686
      %v4146 = vpop.f32.mrb[0].mxu0
      %v4147 = vadd.f32 %v4042, %v4146
      %v4148 = vpop.f32.mrb[0].mxu0
      %v4149 = vpop.f32.mrb[0].mxu0
      %v4150 = vadd.f32 %v4045, %v4149
      %v4151 = vpop.f32.mrb[0].mxu0
      %4152 = vmatprep.mubr.bf16.mxu0 0
      %4153 = vmatmul.mubr.bf16.gmra.mrb[0].mxu0 %v2687
      %v4154 = vpop.f32.mrb[0].mxu0
      %v4155 = vadd.f32 %v4050, %v4154
      %v4156 = vpop.f32.mrb[0].mxu0
      %v4157 = vpop.f32.mrb[0].mxu0
      %v4158 = vadd.f32 %v4053, %v4157
      %v4159 = vpop.f32.mrb[0].mxu0
      %4160 = vmatprep.mubr.bf16.mxu0 0
      %4161 = vmatmul.mubr.bf16.gmra.mrb[0].mxu0 %v2688
      %v4162 = vpop.f32.mrb[0].mxu0
      %v4163 = vadd.f32 %v4058, %v4162
      %v4164 = vpop.f32.mrb[0].mxu0
      %v4165 = vpop.f32.mrb[0].mxu0
      %v4166 = vadd.f32 %v4061, %v4165
      %v4167 = vpop.f32.mrb[0].mxu0
      %4168 = vmatprep.mubr.bf16.mxu0 0
      %4169 = vmatmul.mubr.bf16.gmra.mrb[0].mxu0 %v2689
      %v4170 = vpop.f32.mrb[0].mxu0
      %v4171 = vadd.f32 %v4066, %v4170
      %v4172 = vpop.f32.mrb[0].mxu0
      %v4173 = vpop.f32.mrb[0].mxu0
      %v4174 = vadd.f32 %v4069, %v4173
      %v4175 = vpop.f32.mrb[0].mxu0
      %4176 = vmatprep.mubr.bf16.mxu0 0
      %4177 = vmatmul.mubr.bf16.gmra.mrb[0].mxu0 %v2690
      %v4178 = vpop.f32.mrb[0].mxu0
      %v4179 = vadd.f32 %v4074, %v4178
      %v4180 = vpop.f32.mrb[0].mxu0
      %v4181 = vpop.f32.mrb[0].mxu0
      %v4182 = vadd.f32 %v4077, %v4181
      %v4183 = vpop.f32.mrb[0].mxu0
      %4184 = vmatprep.mubr.bf16.mxu0 0
      %4185 = vmatmul.mubr.bf16.gmra.mrb[0].mxu0 %v2691
      %v4186 = vpop.f32.mrb[0].mxu0
      %v4187 = vadd.f32 %v4082, %v4186
      %v4188 = vpop.f32.mrb[0].mxu0
      %v4189 = vpop.f32.mrb[0].mxu0
      %v4190 = vadd.f32 %v4085, %v4189
      %v4191 = vpop.f32.mrb[0].mxu0
      %4192 = vdwg.mxu0
      %v4193 = vmax.f32 %v3790, 0.0
      %v4194 = vmax.f32 %v3792, 0.0
      %v4195 = vmax.f32 %v4123, 0.0
      %v4196 = vmax.f32 %v3794, 0.0
      %v4197 = vmax.f32 %v3796, 0.0
      %v4198 = vmax.f32 %v4126, 0.0
      %v4199 = vmax.f32 %v3800, 0.0
      %v4200 = vmax.f32 %v3802, 0.0
      %v4201 = vmax.f32 %v4131, 0.0
      %v4202 = vmax.f32 %v3804, 0.0
      %v4203 = vmax.f32 %v3806, 0.0
      %v4204 = vmax.f32 %v4134, 0.0
      %v4205 = vmax.f32 %v3810, 0.0
      %v4206 = vmax.f32 %v3812, 0.0
      %v4207 = vmax.f32 %v4139, 0.0
      %v4208 = vmax.f32 %v3814, 0.0
      %v4209 = vmax.f32 %v3816, 0.0
      %v4210 = vmax.f32 %v4142, 0.0
      %v4211 = vmax.f32 %v3820, 0.0
      %v4212 = vmax.f32 %v3822, 0.0
      %v4213 = vmax.f32 %v4147, 0.0
      %v4214 = vmax.f32 %v3824, 0.0
      %v4215 = vmax.f32 %v3826, 0.0
      %v4216 = vmax.f32 %v4150, 0.0
      %v4217 = vmax.f32 %v3830, 0.0
      %v4218 = vmax.f32 %v3832, 0.0
      %v4219 = vmax.f32 %v4155, 0.0
      %v4220 = vmax.f32 %v3834, 0.0
      %v4221 = vmax.f32 %v3836, 0.0
      %v4222 = vmax.f32 %v4158, 0.0
      %v4223 = vmax.f32 %v3840, 0.0
      %v4224 = vmax.f32 %v3842, 0.0
      %v4225 = vmax.f32 %v4163, 0.0
      %v4226 = vmax.f32 %v3844, 0.0
      %v4227 = vmax.f32 %v3846, 0.0
      %v4228 = vmax.f32 %v4166, 0.0
      %v4229 = vmax.f32 %v3850, 0.0
      %v4230 = vmax.f32 %v3852, 0.0
      %v4231 = vmax.f32 %v4171, 0.0
      %v4232 = vmax.f32 %v3854, 0.0
      %v4233 = vmax.f32 %v3856, 0.0
      %v4234 = vmax.f32 %v4174, 0.0
      %v4235 = vmax.f32 %v3860, 0.0
      %v4236 = vmax.f32 %v3862, 0.0
      %v4237 = vmax.f32 %v4179, 0.0
      %v4238 = vmax.f32 %v3864, 0.0
      %v4239 = vmax.f32 %v3866, 0.0
      %v4240 = vmax.f32 %v4182, 0.0
      %v4241 = vmax.f32 %v3870, 0.0
      %v4242 = vmax.f32 %v3872, 0.0
      %v4243 = vmax.f32 %v4187, 0.0
      %v4244 = vmax.f32 %v3874, 0.0
      %v4245 = vmax.f32 %v3876, 0.0
      %v4246 = vmax.f32 %v4190, 0.0
      %v4247 = vpack.c.bf16 %v4196, %v4193
      %v4248 = vpack.c.bf16 %v4197, %v4194
      %v4249 = vpack.c.bf16 %v4198, %v4195
      %v4250 = vpack.c.bf16 %v4202, %v4199
      %v4251 = vpack.c.bf16 %v4203, %v4200
      %v4252 = vpack.c.bf16 %v4204, %v4201
      %v4253 = vpack.c.bf16 %v4208, %v4205
      %v4254 = vpack.c.bf16 %v4209, %v4206
      %v4255 = vpack.c.bf16 %v4210, %v4207
      %v4256 = vpack.c.bf16 %v4214, %v4211
      %v4257 = vpack.c.bf16 %v4215, %v4212
      %v4258 = vpack.c.bf16 %v4216, %v4213
      %v4259 = vpack.c.bf16 %v4220, %v4217
      %v4260 = vpack.c.bf16 %v4221, %v4218
      %v4261 = vpack.c.bf16 %v4222, %v4219
      %v4262 = vpack.c.bf16 %v4226, %v4223
      %v4263 = vpack.c.bf16 %v4227, %v4224
      %v4264 = vpack.c.bf16 %v4228, %v4225
      %v4265 = vpack.c.bf16 %v4232, %v4229
      %v4266 = vpack.c.bf16 %v4233, %v4230
      %v4267 = vpack.c.bf16 %v4234, %v4231
      %v4268 = vpack.c.bf16 %v4238, %v4235
      %v4269 = vpack.c.bf16 %v4239, %v4236
      %v4270 = vpack.c.bf16 %v4240, %v4237
      %v4271 = vpack.c.bf16 %v4244, %v4241
      %v4272 = vpack.c.bf16 %v4245, %v4242
      %v4273 = vpack.c.bf16 %v4246, %v4243
      %v4274 = vld [vmem:[%s4] sm:$0xff]
      %v4275 = vld [vmem:[%s4 + $0x8] sm:$0xff]
      %v4276 = vld [vmem:[%s4 + $0x10] sm:$0xff]
      %v4277 = vld [vmem:[%s4 + $0x18] sm:$0xff]
      %v4278 = vld [vmem:[%s4 + $0x20] sm:$0xff]
      %v4279 = vld [vmem:[%s4 + $0x28] sm:$0xff]
      %v4280 = vld [vmem:[%s4 + $0x30] sm:$0xff]
      %v4288 = vunpack.c.l.b16 %v4274
      %v4289 = vunpack.c.h.b16 %v4274
      %v4290 = vunpack.c.l.b16 %v4275
      %v4291 = vunpack.c.h.b16 %v4275
      %v4292 = vunpack.c.l.b16 %v4276
      %v4293 = vunpack.c.h.b16 %v4276
      %v4294 = vunpack.c.l.b16 %v4277
      %v4295 = vunpack.c.h.b16 %v4277
      %v4296 = vunpack.c.l.b16 %v4278
      %v4297 = vunpack.c.h.b16 %v4278
      %v4298 = vunpack.c.l.b16 %v4279
      %v4299 = vunpack.c.h.b16 %v4279
      %v4300 = vunpack.c.l.b16 %v4280
      %v4301 = vunpack.c.h.b16 %v4280
      %v4302 = vpack.c.b16 %v4290, %v4288
      %v4303 = vpack.c.b16 %v4291, %v4289
      %v4304 = vpack.c.b16 %v4294, %v4292
      %v4305 = vpack.c.b16 %v4295, %v4293
      %v4306 = vpack.c.b16 %v4298, %v4296
      %v4307 = vpack.c.b16 %v4299, %v4297
      %v4308 = vpack.c.b16 %v4300, %v4300
      %v4309 = vpack.c.b16 %v4301, %v4301
      %vm4314 = vcmask 130048
      %v4316 = vsel %vm4314, %v4303, 0
      %v4319 = vsel %vm4314, %v4305, 0
      %v4322 = vsel %vm4314, %v4307, 0
      %v4325 = vsel %vm4314, %v4309, 0
      %4327 = vmatprep.subr.bf16.mxu0 %v4248
      %4328 = vmatpush1.bf16.msra.mxu0 %v4247
      %4329 = vmatprep.subr.bf16.mxu0 %v4251
      %4330 = vmatpush1.bf16.msra.mxu0 %v4250
      %4331 = vmatprep.subr.bf16.mxu0 %v4254
      %4332 = vmatpush1.bf16.msra.mxu0 %v4253
      %4333 = vmatprep.subr.bf16.mxu0 %v4257
      %4334 = vmatpush1.bf16.msra.mxu0 %v4256
      %4335 = vmatprep.subr.bf16.mxu0 %v4260
      %4336 = vmatpush1.bf16.msra.mxu0 %v4259
      %4337 = vmatprep.subr.bf16.mxu0 %v4263
      %4338 = vmatpush1.bf16.msra.mxu0 %v4262
      %4339 = vmatprep.subr.bf16.mxu0 %v4266
      %4340 = vmatpush1.bf16.msra.mxu0 %v4265
      %4341 = vmatprep.subr.bf16.mxu0 %v4269
      %4342 = vmatpush1.bf16.msra.mxu0 %v4268
      %4343 = vmatprep.subr.bf16.mxu0 %v4272
      %4344 = vmatpush1.bf16.msra.mxu0 %v4271
      %4345 = vmatprep.subr.bf16.mxu0 0
      %4346 = vmatpush1.bf16.msra.mxu0 0
      %4347 = vmatprep.subr.bf16.mxu0 0
      %4348 = vmatpush1.bf16.msra.mxu0 0
      %4349 = vmatprep.subr.bf16.mxu0 0
      %4350 = vmatpush1.bf16.msra.mxu0 0
      %4351 = vmatprep.subr.bf16.mxu0 0
      %4352 = vmatpush1.bf16.msra.mxu0 0
      %4353 = vmatprep.subr.bf16.mxu0 0
      %4354 = vmatpush1.bf16.msra.mxu0 0
      %4355 = vmatprep.subr.bf16.mxu0 0
      %4356 = vmatpush1.bf16.msra.mxu0 0
      %4357 = vmatprep.subr.bf16.mxu0 0
      %4358 = vmatpush1.bf16.msra.mxu0 0
      %4359 = vmatprep.mubr.bf16.mxu0 %v4316
      %4360 = vmatmul.mubr.bf16.gmra.mrb[0].mxu0 %v4302
      %v4361 = vpop.f32.mrb[0].mxu0
      %v4362 = vadd.f32 0.0, %v4361
      %v4363 = vpop.f32.mrb[0].mxu0
      %v4364 = vadd.f32 0.0, %v4363
      %v4365 = vpop.f32.mrb[0].mxu0
      %v4366 = vadd.f32 0.0, %v4365
      %v4367 = vpop.f32.mrb[0].mxu0
      %v4368 = vadd.f32 0.0, %v4367
      %4369 = vmatprep.mubr.bf16.mxu0 %v4319
      %4370 = vmatmul.mubr.bf16.gmra.mrb[0].mxu0 %v4304
      %v4371 = vpop.f32.mrb[0].mxu0
      %v4372 = vadd.f32 0.0, %v4371
      %v4373 = vpop.f32.mrb[0].mxu0
      %v4374 = vadd.f32 0.0, %v4373
      %v4375 = vpop.f32.mrb[0].mxu0
      %v4376 = vadd.f32 0.0, %v4375
      %v4377 = vpop.f32.mrb[0].mxu0
      %v4378 = vadd.f32 0.0, %v4377
      %4379 = vmatprep.mubr.bf16.mxu0 %v4322
      %4380 = vmatmul.mubr.bf16.gmra.mrb[0].mxu0 %v4306
      %v4381 = vpop.f32.mrb[0].mxu0
      %v4382 = vadd.f32 0.0, %v4381
      %v4383 = vpop.f32.mrb[0].mxu0
      %v4384 = vadd.f32 0.0, %v4383
      %v4385 = vpop.f32.mrb[0].mxu0
      %v4386 = vadd.f32 0.0, %v4385
      %v4387 = vpop.f32.mrb[0].mxu0
      %v4388 = vadd.f32 0.0, %v4387
      %4389 = vmatprep.mubr.bf16.mxu0 %v4325
      %4390 = vmatmul.mubr.bf16.gmra.mrb[0].mxu0 %v4308
      %v4391 = vpop.f32.mrb[0].mxu0
      %v4392 = vadd.f32 0.0, %v4391
      %v4393 = vpop.f32.mrb[0].mxu0
      %v4394 = vadd.f32 0.0, %v4393
      %v4395 = vpop.f32.mrb[0].mxu0
      %v4396 = vpop.f32.mrb[0].mxu0
      %4397 = vdwg.mxu0
      %4398 = vmatprep.subr.bf16.mxu0 0
      %4399 = vmatpush1.bf16.msra.mxu0 %v4249
      %4400 = vmatprep.subr.bf16.mxu0 0
      %4401 = vmatpush1.bf16.msra.mxu0 %v4252
      %4402 = vmatprep.subr.bf16.mxu0 0
      %4403 = vmatpush1.bf16.msra.mxu0 %v4255
      %4404 = vmatprep.subr.bf16.mxu0 0
      %4405 = vmatpush1.bf16.msra.mxu0 %v4258
      %4406 = vmatprep.subr.bf16.mxu0 0
      %4407 = vmatpush1.bf16.msra.mxu0 %v4261
      %4408 = vmatprep.subr.bf16.mxu0 0
      %4409 = vmatpush1.bf16.msra.mxu0 %v4264
      %4410 = vmatprep.subr.bf16.mxu0 0
      %4411 = vmatpush1.bf16.msra.mxu0 %v4267
      %4412 = vmatprep.subr.bf16.mxu0 0
      %4413 = vmatpush1.bf16.msra.mxu0 %v4270
      %4414 = vmatprep.subr.bf16.mxu0 0
      %4415 = vmatpush1.bf16.msra.mxu0 %v4273
      %4416 = vmatprep.subr.bf16.mxu0 0
      %4417 = vmatpush1.bf16.msra.mxu0 0
      %4418 = vmatprep.subr.bf16.mxu0 0
      %4419 = vmatpush1.bf16.msra.mxu0 0
      %4420 = vmatprep.subr.bf16.mxu0 0
      %4421 = vmatpush1.bf16.msra.mxu0 0
      %4422 = vmatprep.subr.bf16.mxu0 0
      %4423 = vmatpush1.bf16.msra.mxu0 0
      %4424 = vmatprep.subr.bf16.mxu0 0
      %4425 = vmatpush1.bf16.msra.mxu0 0
      %4426 = vmatprep.subr.bf16.mxu0 0
      %4427 = vmatpush1.bf16.msra.mxu0 0
      %4428 = vmatprep.subr.bf16.mxu0 0
      %4429 = vmatpush1.bf16.msra.mxu0 0
      %4430 = vmatprep.mubr.bf16.mxu0 %v4316
      %4431 = vmatmul.mubr.bf16.gmra.mrb[0].mxu0 %v4302
      %v4432 = vpop.f32.mrb[0].mxu0
      %v4433 = vadd.f32 0.0, %v4432
      %v4434 = vpop.f32.mrb[0].mxu0
      %v4435 = vpop.f32.mrb[0].mxu0
      %v4436 = vadd.f32 0.0, %v4435
      %v4437 = vpop.f32.mrb[0].mxu0
      %4438 = vmatprep.mubr.bf16.mxu0 %v4319
      %4439 = vmatmul.mubr.bf16.gmra.mrb[0].mxu0 %v4304
      %v4440 = vpop.f32.mrb[0].mxu0
      %v4441 = vadd.f32 0.0, %v4440
      %v4442 = vpop.f32.mrb[0].mxu0
      %v4443 = vpop.f32.mrb[0].mxu0
      %v4444 = vadd.f32 0.0, %v4443
      %v4445 = vpop.f32.mrb[0].mxu0
      %4446 = vmatprep.mubr.bf16.mxu0 %v4322
      %4447 = vmatmul.mubr.bf16.gmra.mrb[0].mxu0 %v4306
      %v4448 = vpop.f32.mrb[0].mxu0
      %v4449 = vadd.f32 0.0, %v4448
      %v4450 = vpop.f32.mrb[0].mxu0
      %v4451 = vpop.f32.mrb[0].mxu0
      %v4452 = vadd.f32 0.0, %v4451
      %v4453 = vpop.f32.mrb[0].mxu0
      %4454 = vmatprep.mubr.bf16.mxu0 %v4325
      %4455 = vmatmul.mubr.bf16.gmra.mrb[0].mxu0 %v4308
      %v4456 = vpop.f32.mrb[0].mxu0
      %v4457 = vadd.f32 0.0, %v4456
      %v4458 = vpop.f32.mrb[0].mxu0
      %v4459 = vpop.f32.mrb[0].mxu0
      %v4460 = vpop.f32.mrb[0].mxu0
      %4461 = vdwg.mxu0
      %v4462 = vpack.c.bf16 %v4366, %v4362
      %v4463 = vpack.c.bf16 %v4368, %v4364
      %v4464 = vpack.c.bf16 %v4436, %v4433
      %v4465 = vpack.c.bf16 %v4376, %v4372
      %v4466 = vpack.c.bf16 %v4378, %v4374
      %v4467 = vpack.c.bf16 %v4444, %v4441
      %v4468 = vpack.c.bf16 %v4386, %v4382
      %v4469 = vpack.c.bf16 %v4388, %v4384
      %v4470 = vpack.c.bf16 %v4452, %v4449
      %v4471 = vpack.c.bf16 %v4392, %v4392
      %v4472 = vpack.c.bf16 %v4394, %v4394
      %v4473 = vpack.c.bf16 %v4457, %v4457
      %s4474 = scalar_lea.vmem %s4, 56
      %v4475 = vld [vmem:[%s4474] sm:$0xff]
      %v4476 = vld [vmem:[%s4474 + $0x8] sm:$0xff]
      %v4477 = vld [vmem:[%s4474 + $0x10] sm:$0xff]
      %v4478 = vld [vmem:[%s4474 + $0x18] sm:$0xff]
      %v4479 = vld [vmem:[%s4474 + $0x20] sm:$0xff]
      %v4480 = vld [vmem:[%s4474 + $0x28] sm:$0xff]
      %v4481 = vld [vmem:[%s4474 + $0x30] sm:$0xff]
      %v4489 = vunpack.c.l.b16 %v4475
      %v4490 = vunpack.c.h.b16 %v4475
      %v4491 = vunpack.c.l.b16 %v4476
      %v4492 = vunpack.c.h.b16 %v4476
      %v4493 = vunpack.c.l.b16 %v4477
      %v4494 = vunpack.c.h.b16 %v4477
      %v4495 = vunpack.c.l.b16 %v4478
      %v4496 = vunpack.c.h.b16 %v4478
      %v4497 = vunpack.c.l.b16 %v4479
      %v4498 = vunpack.c.h.b16 %v4479
      %v4499 = vunpack.c.l.b16 %v4480
      %v4500 = vunpack.c.h.b16 %v4480
      %v4501 = vunpack.c.l.b16 %v4481
      %v4502 = vunpack.c.h.b16 %v4481
      %v4503 = vpack.c.b16 %v4491, %v4489
      %v4504 = vpack.c.b16 %v4492, %v4490
      %v4505 = vpack.c.b16 %v4495, %v4493
      %v4506 = vpack.c.b16 %v4496, %v4494
      %v4507 = vpack.c.b16 %v4499, %v4497
      %v4508 = vpack.c.b16 %v4500, %v4498
      %v4509 = vpack.c.b16 %v4501, %v4501
      %v4510 = vpack.c.b16 %v4502, %v4502
      %v4516 = vsel %vm4314, %v4504, 0
      %v4519 = vsel %vm4314, %v4506, 0
      %v4522 = vsel %vm4314, %v4508, 0
      %v4525 = vsel %vm4314, %v4510, 0
      %4527 = vmatprep.subr.bf16.mxu0 %v4248
      %4528 = vmatpush1.bf16.msra.mxu0 %v4247
      %4529 = vmatprep.subr.bf16.mxu0 %v4251
      %4530 = vmatpush1.bf16.msra.mxu0 %v4250
      %4531 = vmatprep.subr.bf16.mxu0 %v4254
      %4532 = vmatpush1.bf16.msra.mxu0 %v4253
      %4533 = vmatprep.subr.bf16.mxu0 %v4257
      %4534 = vmatpush1.bf16.msra.mxu0 %v4256
      %4535 = vmatprep.subr.bf16.mxu0 %v4260
      %4536 = vmatpush1.bf16.msra.mxu0 %v4259
      %4537 = vmatprep.subr.bf16.mxu0 %v4263
      %4538 = vmatpush1.bf16.msra.mxu0 %v4262
      %4539 = vmatprep.subr.bf16.mxu0 %v4266
      %4540 = vmatpush1.bf16.msra.mxu0 %v4265
      %4541 = vmatprep.subr.bf16.mxu0 %v4269
      %4542 = vmatpush1.bf16.msra.mxu0 %v4268
      %4543 = vmatprep.subr.bf16.mxu0 %v4272
      %4544 = vmatpush1.bf16.msra.mxu0 %v4271
      %4545 = vmatprep.subr.bf16.mxu0 0
      %4546 = vmatpush1.bf16.msra.mxu0 0
      %4547 = vmatprep.subr.bf16.mxu0 0
      %4548 = vmatpush1.bf16.msra.mxu0 0
      %4549 = vmatprep.subr.bf16.mxu0 0
      %4550 = vmatpush1.bf16.msra.mxu0 0
      %4551 = vmatprep.subr.bf16.mxu0 0
      %4552 = vmatpush1.bf16.msra.mxu0 0
      %4553 = vmatprep.subr.bf16.mxu0 0
      %4554 = vmatpush1.bf16.msra.mxu0 0
      %4555 = vmatprep.subr.bf16.mxu0 0
      %4556 = vmatpush1.bf16.msra.mxu0 0
      %4557 = vmatprep.subr.bf16.mxu0 0
      %4558 = vmatpush1.bf16.msra.mxu0 0
      %4559 = vmatprep.mubr.bf16.mxu0 %v4516
      %4560 = vmatmul.mubr.bf16.gmra.mrb[0].mxu0 %v4503
      %v4561 = vpop.f32.mrb[0].mxu0
      %v4562 = vadd.f32 0.0, %v4561
      %v4563 = vpop.f32.mrb[0].mxu0
      %v4564 = vadd.f32 0.0, %v4563
      %v4565 = vpop.f32.mrb[0].mxu0
      %v4566 = vadd.f32 0.0, %v4565
      %v4567 = vpop.f32.mrb[0].mxu0
      %v4568 = vadd.f32 0.0, %v4567
      %4569 = vmatprep.mubr.bf16.mxu0 %v4519
      %4570 = vmatmul.mubr.bf16.gmra.mrb[0].mxu0 %v4505
      %v4571 = vpop.f32.mrb[0].mxu0
      %v4572 = vadd.f32 0.0, %v4571
      %v4573 = vpop.f32.mrb[0].mxu0
      %v4574 = vadd.f32 0.0, %v4573
      %v4575 = vpop.f32.mrb[0].mxu0
      %v4576 = vadd.f32 0.0, %v4575
      %v4577 = vpop.f32.mrb[0].mxu0
      %v4578 = vadd.f32 0.0, %v4577
      %4579 = vmatprep.mubr.bf16.mxu0 %v4522
      %4580 = vmatmul.mubr.bf16.gmra.mrb[0].mxu0 %v4507
      %v4581 = vpop.f32.mrb[0].mxu0
      %v4582 = vadd.f32 0.0, %v4581
      %v4583 = vpop.f32.mrb[0].mxu0
      %v4584 = vadd.f32 0.0, %v4583
      %v4585 = vpop.f32.mrb[0].mxu0
      %v4586 = vadd.f32 0.0, %v4585
      %v4587 = vpop.f32.mrb[0].mxu0
      %v4588 = vadd.f32 0.0, %v4587
      %4589 = vmatprep.mubr.bf16.mxu0 %v4525
      %4590 = vmatmul.mubr.bf16.gmra.mrb[0].mxu0 %v4509
      %v4591 = vpop.f32.mrb[0].mxu0
      %v4592 = vadd.f32 0.0, %v4591
      %v4593 = vpop.f32.mrb[0].mxu0
      %v4594 = vadd.f32 0.0, %v4593
      %v4595 = vpop.f32.mrb[0].mxu0
      %v4596 = vpop.f32.mrb[0].mxu0
      %4597 = vdwg.mxu0
      %4598 = vmatprep.subr.bf16.mxu0 0
      %4599 = vmatpush1.bf16.msra.mxu0 %v4249
      %4600 = vmatprep.subr.bf16.mxu0 0
      %4601 = vmatpush1.bf16.msra.mxu0 %v4252
      %4602 = vmatprep.subr.bf16.mxu0 0
      %4603 = vmatpush1.bf16.msra.mxu0 %v4255
      %4604 = vmatprep.subr.bf16.mxu0 0
      %4605 = vmatpush1.bf16.msra.mxu0 %v4258
      %4606 = vmatprep.subr.bf16.mxu0 0
      %4607 = vmatpush1.bf16.msra.mxu0 %v4261
      %4608 = vmatprep.subr.bf16.mxu0 0
      %4609 = vmatpush1.bf16.msra.mxu0 %v4264
      %4610 = vmatprep.subr.bf16.mxu0 0
      %4611 = vmatpush1.bf16.msra.mxu0 %v4267
      %4612 = vmatprep.subr.bf16.mxu0 0
      %4613 = vmatpush1.bf16.msra.mxu0 %v4270
      %4614 = vmatprep.subr.bf16.mxu0 0
      %4615 = vmatpush1.bf16.msra.mxu0 %v4273
      %4616 = vmatprep.subr.bf16.mxu0 0
      %4617 = vmatpush1.bf16.msra.mxu0 0
      %4618 = vmatprep.subr.bf16.mxu0 0
      %4619 = vmatpush1.bf16.msra.mxu0 0
      %4620 = vmatprep.subr.bf16.mxu0 0
      %4621 = vmatpush1.bf16.msra.mxu0 0
      %4622 = vmatprep.subr.bf16.mxu0 0
      %4623 = vmatpush1.bf16.msra.mxu0 0
      %4624 = vmatprep.subr.bf16.mxu0 0
      %4625 = vmatpush1.bf16.msra.mxu0 0
      %4626 = vmatprep.subr.bf16.mxu0 0
      %4627 = vmatpush1.bf16.msra.mxu0 0
      %4628 = vmatprep.subr.bf16.mxu0 0
      %4629 = vmatpush1.bf16.msra.mxu0 0
      %4630 = vmatprep.mubr.bf16.mxu0 %v4516
      %4631 = vmatmul.mubr.bf16.gmra.mrb[0].mxu0 %v4503
      %v4632 = vpop.f32.mrb[0].mxu0
      %v4633 = vadd.f32 0.0, %v4632
      %v4634 = vpop.f32.mrb[0].mxu0
      %v4635 = vpop.f32.mrb[0].mxu0
      %v4636 = vadd.f32 0.0, %v4635
      %v4637 = vpop.f32.mrb[0].mxu0
      %4638 = vmatprep.mubr.bf16.mxu0 %v4519
      %4639 = vmatmul.mubr.bf16.gmra.mrb[0].mxu0 %v4505
      %v4640 = vpop.f32.mrb[0].mxu0
      %v4641 = vadd.f32 0.0, %v4640
      %v4642 = vpop.f32.mrb[0].mxu0
      %v4643 = vpop.f32.mrb[0].mxu0
      %v4644 = vadd.f32 0.0, %v4643
      %v4645 = vpop.f32.mrb[0].mxu0
      %4646 = vmatprep.mubr.bf16.mxu0 %v4522
      %4647 = vmatmul.mubr.bf16.gmra.mrb[0].mxu0 %v4507
      %v4648 = vpop.f32.mrb[0].mxu0
      %v4649 = vadd.f32 0.0, %v4648
      %v4650 = vpop.f32.mrb[0].mxu0
      %v4651 = vpop.f32.mrb[0].mxu0
      %v4652 = vadd.f32 0.0, %v4651
      %v4653 = vpop.f32.mrb[0].mxu0
      %4654 = vmatprep.mubr.bf16.mxu0 %v4525
      %4655 = vmatmul.mubr.bf16.gmra.mrb[0].mxu0 %v4509
      %v4656 = vpop.f32.mrb[0].mxu0
      %v4657 = vadd.f32 0.0, %v4656
      %v4658 = vpop.f32.mrb[0].mxu0
      %v4659 = vpop.f32.mrb[0].mxu0
      %v4660 = vpop.f32.mrb[0].mxu0
      %4661 = vdwg.mxu0
      %v4662 = vpack.c.bf16 %v4566, %v4562
      %v4663 = vpack.c.bf16 %v4568, %v4564
      %v4664 = vpack.c.bf16 %v4636, %v4633
      %v4665 = vpack.c.bf16 %v4576, %v4572
      %v4666 = vpack.c.bf16 %v4578, %v4574
      %v4667 = vpack.c.bf16 %v4644, %v4641
      %v4668 = vpack.c.bf16 %v4586, %v4582
      %v4669 = vpack.c.bf16 %v4588, %v4584
      %v4670 = vpack.c.bf16 %v4652, %v4649
      %v4671 = vpack.c.bf16 %v4592, %v4592
      %v4672 = vpack.c.bf16 %v4594, %v4594
      %v4673 = vpack.c.bf16 %v4657, %v4657
      %s4674 = scalar_lea.vmem %s4, 112
      %v4675 = vld [vmem:[%s4674] sm:$0xff]
      %v4676 = vld [vmem:[%s4674 + $0x8] sm:$0xff]
      %v4677 = vld [vmem:[%s4674 + $0x10] sm:$0xff]
      %v4678 = vld [vmem:[%s4674 + $0x18] sm:$0xff]
      %v4679 = vld [vmem:[%s4674 + $0x20] sm:$0xff]
      %v4680 = vld [vmem:[%s4674 + $0x28] sm:$0xff]
      %v4681 = vld [vmem:[%s4674 + $0x30] sm:$0xff]
      %v4689 = vunpack.c.l.b16 %v4675
      %v4690 = vunpack.c.h.b16 %v4675
      %v4691 = vunpack.c.l.b16 %v4676
      %v4692 = vunpack.c.h.b16 %v4676
      %v4693 = vunpack.c.l.b16 %v4677
      %v4694 = vunpack.c.h.b16 %v4677
      %v4695 = vunpack.c.l.b16 %v4678
      %v4696 = vunpack.c.h.b16 %v4678
      %v4697 = vunpack.c.l.b16 %v4679
      %v4698 = vunpack.c.h.b16 %v4679
      %v4699 = vunpack.c.l.b16 %v4680
      %v4700 = vunpack.c.h.b16 %v4680
      %v4701 = vunpack.c.l.b16 %v4681
      %v4702 = vunpack.c.h.b16 %v4681
      %v4703 = vpack.c.b16 %v4691, %v4689
      %v4704 = vpack.c.b16 %v4692, %v4690
      %v4705 = vpack.c.b16 %v4695, %v4693
      %v4706 = vpack.c.b16 %v4696, %v4694
      %v4707 = vpack.c.b16 %v4699, %v4697
      %v4708 = vpack.c.b16 %v4700, %v4698
      %v4709 = vpack.c.b16 %v4701, %v4701
      %v4710 = vpack.c.b16 %v4702, %v4702
      %v4716 = vsel %vm4314, %v4704, 0
      %v4719 = vsel %vm4314, %v4706, 0
      %v4722 = vsel %vm4314, %v4708, 0
      %v4725 = vsel %vm4314, %v4710, 0
      %4727 = vmatprep.subr.bf16.mxu0 %v4248
      %4728 = vmatpush1.bf16.msra.mxu0 %v4247
      %4729 = vmatprep.subr.bf16.mxu0 %v4251
      %4730 = vmatpush1.bf16.msra.mxu0 %v4250
      %4731 = vmatprep.subr.bf16.mxu0 %v4254
      %4732 = vmatpush1.bf16.msra.mxu0 %v4253
      %4733 = vmatprep.subr.bf16.mxu0 %v4257
      %4734 = vmatpush1.bf16.msra.mxu0 %v4256
      %4735 = vmatprep.subr.bf16.mxu0 %v4260
      %4736 = vmatpush1.bf16.msra.mxu0 %v4259
      %4737 = vmatprep.subr.bf16.mxu0 %v4263
      %4738 = vmatpush1.bf16.msra.mxu0 %v4262
      %4739 = vmatprep.subr.bf16.mxu0 %v4266
      %4740 = vmatpush1.bf16.msra.mxu0 %v4265
      %4741 = vmatprep.subr.bf16.mxu0 %v4269
      %4742 = vmatpush1.bf16.msra.mxu0 %v4268
      %4743 = vmatprep.subr.bf16.mxu0 %v4272
      %4744 = vmatpush1.bf16.msra.mxu0 %v4271
      %4745 = vmatprep.subr.bf16.mxu0 0
      %4746 = vmatpush1.bf16.msra.mxu0 0
      %4747 = vmatprep.subr.bf16.mxu0 0
      %4748 = vmatpush1.bf16.msra.mxu0 0
      %4749 = vmatprep.subr.bf16.mxu0 0
      %4750 = vmatpush1.bf16.msra.mxu0 0
      %4751 = vmatprep.subr.bf16.mxu0 0
      %4752 = vmatpush1.bf16.msra.mxu0 0
      %4753 = vmatprep.subr.bf16.mxu0 0
      %4754 = vmatpush1.bf16.msra.mxu0 0
      %4755 = vmatprep.subr.bf16.mxu0 0
      %4756 = vmatpush1.bf16.msra.mxu0 0
      %4757 = vmatprep.subr.bf16.mxu0 0
      %4758 = vmatpush1.bf16.msra.mxu0 0
      %4759 = vmatprep.mubr.bf16.mxu0 %v4716
      %4760 = vmatmul.mubr.bf16.gmra.mrb[0].mxu0 %v4703
      %v4761 = vpop.f32.mrb[0].mxu0
      %v4762 = vadd.f32 0.0, %v4761
      %v4763 = vpop.f32.mrb[0].mxu0
      %v4764 = vadd.f32 0.0, %v4763
      %v4765 = vpop.f32.mrb[0].mxu0
      %v4766 = vadd.f32 0.0, %v4765
      %v4767 = vpop.f32.mrb[0].mxu0
      %v4768 = vadd.f32 0.0, %v4767
      %4769 = vmatprep.mubr.bf16.mxu0 %v4719
      %4770 = vmatmul.mubr.bf16.gmra.mrb[0].mxu0 %v4705
      %v4771 = vpop.f32.mrb[0].mxu0
      %v4772 = vadd.f32 0.0, %v4771
      %v4773 = vpop.f32.mrb[0].mxu0
      %v4774 = vadd.f32 0.0, %v4773
      %v4775 = vpop.f32.mrb[0].mxu0
      %v4776 = vadd.f32 0.0, %v4775
      %v4777 = vpop.f32.mrb[0].mxu0
      %v4778 = vadd.f32 0.0, %v4777
      %4779 = vmatprep.mubr.bf16.mxu0 %v4722
      %4780 = vmatmul.mubr.bf16.gmra.mrb[0].mxu0 %v4707
      %v4781 = vpop.f32.mrb[0].mxu0
      %v4782 = vadd.f32 0.0, %v4781
      %v4783 = vpop.f32.mrb[0].mxu0
      %v4784 = vadd.f32 0.0, %v4783
      %v4785 = vpop.f32.mrb[0].mxu0
      %v4786 = vadd.f32 0.0, %v4785
      %v4787 = vpop.f32.mrb[0].mxu0
      %v4788 = vadd.f32 0.0, %v4787
      %4789 = vmatprep.mubr.bf16.mxu0 %v4725
      %4790 = vmatmul.mubr.bf16.gmra.mrb[0].mxu0 %v4709
      %v4791 = vpop.f32.mrb[0].mxu0
      %v4792 = vadd.f32 0.0, %v4791
      %v4793 = vpop.f32.mrb[0].mxu0
      %v4794 = vadd.f32 0.0, %v4793
      %v4795 = vpop.f32.mrb[0].mxu0
      %v4796 = vpop.f32.mrb[0].mxu0
      %4797 = vdwg.mxu0
      %4798 = vmatprep.subr.bf16.mxu0 0
      %4799 = vmatpush1.bf16.msra.mxu0 %v4249
      %4800 = vmatprep.subr.bf16.mxu0 0
      %4801 = vmatpush1.bf16.msra.mxu0 %v4252
      %4802 = vmatprep.subr.bf16.mxu0 0
      %4803 = vmatpush1.bf16.msra.mxu0 %v4255
      %4804 = vmatprep.subr.bf16.mxu0 0
      %4805 = vmatpush1.bf16.msra.mxu0 %v4258
      %4806 = vmatprep.subr.bf16.mxu0 0
      %4807 = vmatpush1.bf16.msra.mxu0 %v4261
      %4808 = vmatprep.subr.bf16.mxu0 0
      %4809 = vmatpush1.bf16.msra.mxu0 %v4264
      %4810 = vmatprep.subr.bf16.mxu0 0
      %4811 = vmatpush1.bf16.msra.mxu0 %v4267
      %4812 = vmatprep.subr.bf16.mxu0 0
      %4813 = vmatpush1.bf16.msra.mxu0 %v4270
      %4814 = vmatprep.subr.bf16.mxu0 0
      %4815 = vmatpush1.bf16.msra.mxu0 %v4273
      %4816 = vmatprep.subr.bf16.mxu0 0
      %4817 = vmatpush1.bf16.msra.mxu0 0
      %4818 = vmatprep.subr.bf16.mxu0 0
      %4819 = vmatpush1.bf16.msra.mxu0 0
      %4820 = vmatprep.subr.bf16.mxu0 0
      %4821 = vmatpush1.bf16.msra.mxu0 0
      %4822 = vmatprep.subr.bf16.mxu0 0
      %4823 = vmatpush1.bf16.msra.mxu0 0
      %4824 = vmatprep.subr.bf16.mxu0 0
      %4825 = vmatpush1.bf16.msra.mxu0 0
      %4826 = vmatprep.subr.bf16.mxu0 0
      %4827 = vmatpush1.bf16.msra.mxu0 0
      %4828 = vmatprep.subr.bf16.mxu0 0
      %4829 = vmatpush1.bf16.msra.mxu0 0
      %4830 = vmatprep.mubr.bf16.mxu0 %v4716
      %4831 = vmatmul.mubr.bf16.gmra.mrb[0].mxu0 %v4703
      %v4832 = vpop.f32.mrb[0].mxu0
      %v4833 = vadd.f32 0.0, %v4832
      %v4834 = vpop.f32.mrb[0].mxu0
      %v4835 = vpop.f32.mrb[0].mxu0
      %v4836 = vadd.f32 0.0, %v4835
      %v4837 = vpop.f32.mrb[0].mxu0
      %4838 = vmatprep.mubr.bf16.mxu0 %v4719
      %4839 = vmatmul.mubr.bf16.gmra.mrb[0].mxu0 %v4705
      %v4840 = vpop.f32.mrb[0].mxu0
      %v4841 = vadd.f32 0.0, %v4840
      %v4842 = vpop.f32.mrb[0].mxu0
      %v4843 = vpop.f32.mrb[0].mxu0
      %v4844 = vadd.f32 0.0, %v4843
      %v4845 = vpop.f32.mrb[0].mxu0
      %4846 = vmatprep.mubr.bf16.mxu0 %v4722
      %4847 = vmatmul.mubr.bf16.gmra.mrb[0].mxu0 %v4707
      %v4848 = vpop.f32.mrb[0].mxu0
      %v4849 = vadd.f32 0.0, %v4848
      %v4850 = vpop.f32.mrb[0].mxu0
      %v4851 = vpop.f32.mrb[0].mxu0
      %v4852 = vadd.f32 0.0, %v4851
      %v4853 = vpop.f32.mrb[0].mxu0
      %4854 = vmatprep.mubr.bf16.mxu0 %v4725
      %4855 = vmatmul.mubr.bf16.gmra.mrb[0].mxu0 %v4709
      %v4856 = vpop.f32.mrb[0].mxu0
      %v4857 = vadd.f32 0.0, %v4856
      %v4858 = vpop.f32.mrb[0].mxu0
      %v4859 = vpop.f32.mrb[0].mxu0
      %v4860 = vpop.f32.mrb[0].mxu0
      %4861 = vdwg.mxu0
      %v4862 = vpack.c.bf16 %v4766, %v4762
      %v4863 = vpack.c.bf16 %v4768, %v4764
      %v4864 = vpack.c.bf16 %v4836, %v4833
      %v4865 = vpack.c.bf16 %v4776, %v4772
      %v4866 = vpack.c.bf16 %v4778, %v4774
      %v4867 = vpack.c.bf16 %v4844, %v4841
      %v4868 = vpack.c.bf16 %v4786, %v4782
      %v4869 = vpack.c.bf16 %v4788, %v4784
      %v4870 = vpack.c.bf16 %v4852, %v4849
      %v4871 = vpack.c.bf16 %v4792, %v4792
      %v4872 = vpack.c.bf16 %v4794, %v4794
      %v4873 = vpack.c.bf16 %v4857, %v4857
      %s4874 = scalar_lea.vmem %s4, 168
      %v4875 = vld [vmem:[%s4874] sm:$0xff]
      %v4876 = vld [vmem:[%s4874 + $0x8] sm:$0xff]
      %v4877 = vld [vmem:[%s4874 + $0x10] sm:$0xff]
      %v4878 = vld [vmem:[%s4874 + $0x18] sm:$0xff]
      %v4879 = vld [vmem:[%s4874 + $0x20] sm:$0xff]
      %v4880 = vld [vmem:[%s4874 + $0x28] sm:$0xff]
      %v4881 = vld [vmem:[%s4874 + $0x30] sm:$0xff]
      %v4889 = vunpack.c.l.b16 %v4875
      %v4890 = vunpack.c.h.b16 %v4875
      %v4891 = vunpack.c.l.b16 %v4876
      %v4892 = vunpack.c.h.b16 %v4876
      %v4893 = vunpack.c.l.b16 %v4877
      %v4894 = vunpack.c.h.b16 %v4877
      %v4895 = vunpack.c.l.b16 %v4878
      %v4896 = vunpack.c.h.b16 %v4878
      %v4897 = vunpack.c.l.b16 %v4879
      %v4898 = vunpack.c.h.b16 %v4879
      %v4899 = vunpack.c.l.b16 %v4880
      %v4900 = vunpack.c.h.b16 %v4880
      %v4901 = vunpack.c.l.b16 %v4881
      %v4902 = vunpack.c.h.b16 %v4881
      %v4903 = vpack.c.b16 %v4891, %v4889
      %v4904 = vpack.c.b16 %v4892, %v4890
      %v4905 = vpack.c.b16 %v4895, %v4893
      %v4906 = vpack.c.b16 %v4896, %v4894
      %v4907 = vpack.c.b16 %v4899, %v4897
      %v4908 = vpack.c.b16 %v4900, %v4898
      %v4909 = vpack.c.b16 %v4901, %v4901
      %v4910 = vpack.c.b16 %v4902, %v4902
      %v4916 = vsel %vm4314, %v4904, 0
      %v4919 = vsel %vm4314, %v4906, 0
      %v4922 = vsel %vm4314, %v4908, 0
      %v4925 = vsel %vm4314, %v4910, 0
      %4927 = vmatprep.subr.bf16.mxu0 %v4248
      %4928 = vmatpush1.bf16.msra.mxu0 %v4247
      %4929 = vmatprep.subr.bf16.mxu0 %v4251
      %4930 = vmatpush1.bf16.msra.mxu0 %v4250
      %4931 = vmatprep.subr.bf16.mxu0 %v4254
      %4932 = vmatpush1.bf16.msra.mxu0 %v4253
      %4933 = vmatprep.subr.bf16.mxu0 %v4257
      %4934 = vmatpush1.bf16.msra.mxu0 %v4256
      %4935 = vmatprep.subr.bf16.mxu0 %v4260
      %4936 = vmatpush1.bf16.msra.mxu0 %v4259
      %4937 = vmatprep.subr.bf16.mxu0 %v4263
      %4938 = vmatpush1.bf16.msra.mxu0 %v4262
      %4939 = vmatprep.subr.bf16.mxu0 %v4266
      %4940 = vmatpush1.bf16.msra.mxu0 %v4265
      %4941 = vmatprep.subr.bf16.mxu0 %v4269
      %4942 = vmatpush1.bf16.msra.mxu0 %v4268
      %4943 = vmatprep.subr.bf16.mxu0 %v4272
      %4944 = vmatpush1.bf16.msra.mxu0 %v4271
      %4945 = vmatprep.subr.bf16.mxu0 0
      %4946 = vmatpush1.bf16.msra.mxu0 0
      %4947 = vmatprep.subr.bf16.mxu0 0
      %4948 = vmatpush1.bf16.msra.mxu0 0
      %4949 = vmatprep.subr.bf16.mxu0 0
      %4950 = vmatpush1.bf16.msra.mxu0 0
      %4951 = vmatprep.subr.bf16.mxu0 0
      %4952 = vmatpush1.bf16.msra.mxu0 0
      %4953 = vmatprep.subr.bf16.mxu0 0
      %4954 = vmatpush1.bf16.msra.mxu0 0
      %4955 = vmatprep.subr.bf16.mxu0 0
      %4956 = vmatpush1.bf16.msra.mxu0 0
      %4957 = vmatprep.subr.bf16.mxu0 0
      %4958 = vmatpush1.bf16.msra.mxu0 0
      %4959 = vmatprep.mubr.bf16.mxu0 %v4916
      %4960 = vmatmul.mubr.bf16.gmra.mrb[0].mxu0 %v4903
      %v4961 = vpop.f32.mrb[0].mxu0
      %v4962 = vadd.f32 0.0, %v4961
      %v4963 = vpop.f32.mrb[0].mxu0
      %v4964 = vadd.f32 0.0, %v4963
      %v4965 = vpop.f32.mrb[0].mxu0
      %v4966 = vadd.f32 0.0, %v4965
      %v4967 = vpop.f32.mrb[0].mxu0
      %v4968 = vadd.f32 0.0, %v4967
      %4969 = vmatprep.mubr.bf16.mxu0 %v4919
      %4970 = vmatmul.mubr.bf16.gmra.mrb[0].mxu0 %v4905
      %v4971 = vpop.f32.mrb[0].mxu0
      %v4972 = vadd.f32 0.0, %v4971
      %v4973 = vpop.f32.mrb[0].mxu0
      %v4974 = vadd.f32 0.0, %v4973
      %v4975 = vpop.f32.mrb[0].mxu0
      %v4976 = vadd.f32 0.0, %v4975
      %v4977 = vpop.f32.mrb[0].mxu0
      %v4978 = vadd.f32 0.0, %v4977
      %4979 = vmatprep.mubr.bf16.mxu0 %v4922
      %4980 = vmatmul.mubr.bf16.gmra.mrb[0].mxu0 %v4907
      %v4981 = vpop.f32.mrb[0].mxu0
      %v4982 = vadd.f32 0.0, %v4981
      %v4983 = vpop.f32.mrb[0].mxu0
      %v4984 = vadd.f32 0.0, %v4983
      %v4985 = vpop.f32.mrb[0].mxu0
      %v4986 = vadd.f32 0.0, %v4985
      %v4987 = vpop.f32.mrb[0].mxu0
      %v4988 = vadd.f32 0.0, %v4987
      %4989 = vmatprep.mubr.bf16.mxu0 %v4925
      %4990 = vmatmul.mubr.bf16.gmra.mrb[0].mxu0 %v4909
      %v4991 = vpop.f32.mrb[0].mxu0
      %v4992 = vadd.f32 0.0, %v4991
      %v4993 = vpop.f32.mrb[0].mxu0
      %v4994 = vadd.f32 0.0, %v4993
      %v4995 = vpop.f32.mrb[0].mxu0
      %v4996 = vpop.f32.mrb[0].mxu0
      %4997 = vdwg.mxu0
      %4998 = vmatprep.subr.bf16.mxu0 0
      %4999 = vmatpush1.bf16.msra.mxu0 %v4249
      %5000 = vmatprep.subr.bf16.mxu0 0
      %5001 = vmatpush1.bf16.msra.mxu0 %v4252
      %5002 = vmatprep.subr.bf16.mxu0 0
      %5003 = vmatpush1.bf16.msra.mxu0 %v4255
      %5004 = vmatprep.subr.bf16.mxu0 0
      %5005 = vmatpush1.bf16.msra.mxu0 %v4258
      %5006 = vmatprep.subr.bf16.mxu0 0
      %5007 = vmatpush1.bf16.msra.mxu0 %v4261
      %5008 = vmatprep.subr.bf16.mxu0 0
      %5009 = vmatpush1.bf16.msra.mxu0 %v4264
      %5010 = vmatprep.subr.bf16.mxu0 0
      %5011 = vmatpush1.bf16.msra.mxu0 %v4267
      %5012 = vmatprep.subr.bf16.mxu0 0
      %5013 = vmatpush1.bf16.msra.mxu0 %v4270
      %5014 = vmatprep.subr.bf16.mxu0 0
      %5015 = vmatpush1.bf16.msra.mxu0 %v4273
      %5016 = vmatprep.subr.bf16.mxu0 0
      %5017 = vmatpush1.bf16.msra.mxu0 0
      %5018 = vmatprep.subr.bf16.mxu0 0
      %5019 = vmatpush1.bf16.msra.mxu0 0
      %5020 = vmatprep.subr.bf16.mxu0 0
      %5021 = vmatpush1.bf16.msra.mxu0 0
      %5022 = vmatprep.subr.bf16.mxu0 0
      %5023 = vmatpush1.bf16.msra.mxu0 0
      %5024 = vmatprep.subr.bf16.mxu0 0
      %5025 = vmatpush1.bf16.msra.mxu0 0
      %5026 = vmatprep.subr.bf16.mxu0 0
      %5027 = vmatpush1.bf16.msra.mxu0 0
      %5028 = vmatprep.subr.bf16.mxu0 0
      %5029 = vmatpush1.bf16.msra.mxu0 0
      %5030 = vmatprep.mubr.bf16.mxu0 %v4916
      %5031 = vmatmul.mubr.bf16.gmra.mrb[0].mxu0 %v4903
      %v5032 = vpop.f32.mrb[0].mxu0
      %v5033 = vadd.f32 0.0, %v5032
      %v5034 = vpop.f32.mrb[0].mxu0
      %v5035 = vpop.f32.mrb[0].mxu0
      %v5036 = vadd.f32 0.0, %v5035
      %v5037 = vpop.f32.mrb[0].mxu0
      %5038 = vmatprep.mubr.bf16.mxu0 %v4919
      %5039 = vmatmul.mubr.bf16.gmra.mrb[0].mxu0 %v4905
      %v5040 = vpop.f32.mrb[0].mxu0
      %v5041 = vadd.f32 0.0, %v5040
      %v5042 = vpop.f32.mrb[0].mxu0
      %v5043 = vpop.f32.mrb[0].mxu0
      %v5044 = vadd.f32 0.0, %v5043
      %v5045 = vpop.f32.mrb[0].mxu0
      %5046 = vmatprep.mubr.bf16.mxu0 %v4922
      %5047 = vmatmul.mubr.bf16.gmra.mrb[0].mxu0 %v4907
      %v5048 = vpop.f32.mrb[0].mxu0
      %v5049 = vadd.f32 0.0, %v5048
      %v5050 = vpop.f32.mrb[0].mxu0
      %v5051 = vpop.f32.mrb[0].mxu0
      %v5052 = vadd.f32 0.0, %v5051
      %v5053 = vpop.f32.mrb[0].mxu0
      %5054 = vmatprep.mubr.bf16.mxu0 %v4925
      %5055 = vmatmul.mubr.bf16.gmra.mrb[0].mxu0 %v4909
      %v5056 = vpop.f32.mrb[0].mxu0
      %v5057 = vadd.f32 0.0, %v5056
      %v5058 = vpop.f32.mrb[0].mxu0
      %v5059 = vpop.f32.mrb[0].mxu0
      %v5060 = vpop.f32.mrb[0].mxu0
      %5061 = vdwg.mxu0
      %v5062 = vpack.c.bf16 %v4966, %v4962
      %v5063 = vpack.c.bf16 %v4968, %v4964
      %v5064 = vpack.c.bf16 %v5036, %v5033
      %v5065 = vpack.c.bf16 %v4976, %v4972
      %v5066 = vpack.c.bf16 %v4978, %v4974
      %v5067 = vpack.c.bf16 %v5044, %v5041
      %v5068 = vpack.c.bf16 %v4986, %v4982
      %v5069 = vpack.c.bf16 %v4988, %v4984
      %v5070 = vpack.c.bf16 %v5052, %v5049
      %v5071 = vpack.c.bf16 %v4992, %v4992
      %v5072 = vpack.c.bf16 %v4994, %v4994
      %v5073 = vpack.c.bf16 %v5057, %v5057
      %s5074 = scalar_lea.vmem %s4, 224
      %v5075 = vld [vmem:[%s5074] sm:$0xff]
      %v5076 = vld [vmem:[%s5074 + $0x8] sm:$0xff]
      %v5077 = vld [vmem:[%s5074 + $0x10] sm:$0xff]
      %v5078 = vld [vmem:[%s5074 + $0x18] sm:$0xff]
      %v5079 = vld [vmem:[%s5074 + $0x20] sm:$0xff]
      %v5080 = vld [vmem:[%s5074 + $0x28] sm:$0xff]
      %v5081 = vld [vmem:[%s5074 + $0x30] sm:$0xff]
      %v5089 = vunpack.c.l.b16 %v5075
      %v5090 = vunpack.c.h.b16 %v5075
      %v5091 = vunpack.c.l.b16 %v5076
      %v5092 = vunpack.c.h.b16 %v5076
      %v5093 = vunpack.c.l.b16 %v5077
      %v5094 = vunpack.c.h.b16 %v5077
      %v5095 = vunpack.c.l.b16 %v5078
      %v5096 = vunpack.c.h.b16 %v5078
      %v5097 = vunpack.c.l.b16 %v5079
      %v5098 = vunpack.c.h.b16 %v5079
      %v5099 = vunpack.c.l.b16 %v5080
      %v5100 = vunpack.c.h.b16 %v5080
      %v5101 = vunpack.c.l.b16 %v5081
      %v5102 = vunpack.c.h.b16 %v5081
      %v5103 = vpack.c.b16 %v5091, %v5089
      %v5104 = vpack.c.b16 %v5092, %v5090
      %v5105 = vpack.c.b16 %v5095, %v5093
      %v5106 = vpack.c.b16 %v5096, %v5094
      %v5107 = vpack.c.b16 %v5099, %v5097
      %v5108 = vpack.c.b16 %v5100, %v5098
      %v5109 = vpack.c.b16 %v5101, %v5101
      %v5110 = vpack.c.b16 %v5102, %v5102
      %v5116 = vsel %vm4314, %v5104, 0
      %v5119 = vsel %vm4314, %v5106, 0
      %v5122 = vsel %vm4314, %v5108, 0
      %v5125 = vsel %vm4314, %v5110, 0
      %5127 = vmatprep.subr.bf16.mxu0 %v4248
      %5128 = vmatpush1.bf16.msra.mxu0 %v4247
      %5129 = vmatprep.subr.bf16.mxu0 %v4251
      %5130 = vmatpush1.bf16.msra.mxu0 %v4250
      %5131 = vmatprep.subr.bf16.mxu0 %v4254
      %5132 = vmatpush1.bf16.msra.mxu0 %v4253
      %5133 = vmatprep.subr.bf16.mxu0 %v4257
      %5134 = vmatpush1.bf16.msra.mxu0 %v4256
      %5135 = vmatprep.subr.bf16.mxu0 %v4260
      %5136 = vmatpush1.bf16.msra.mxu0 %v4259
      %5137 = vmatprep.subr.bf16.mxu0 %v4263
      %5138 = vmatpush1.bf16.msra.mxu0 %v4262
      %5139 = vmatprep.subr.bf16.mxu0 %v4266
      %5140 = vmatpush1.bf16.msra.mxu0 %v4265
      %5141 = vmatprep.subr.bf16.mxu0 %v4269
      %5142 = vmatpush1.bf16.msra.mxu0 %v4268
      %5143 = vmatprep.subr.bf16.mxu0 %v4272
      %5144 = vmatpush1.bf16.msra.mxu0 %v4271
      %5145 = vmatprep.subr.bf16.mxu0 0
      %5146 = vmatpush1.bf16.msra.mxu0 0
      %5147 = vmatprep.subr.bf16.mxu0 0
      %5148 = vmatpush1.bf16.msra.mxu0 0
      %5149 = vmatprep.subr.bf16.mxu0 0
      %5150 = vmatpush1.bf16.msra.mxu0 0
      %5151 = vmatprep.subr.bf16.mxu0 0
      %5152 = vmatpush1.bf16.msra.mxu0 0
      %5153 = vmatprep.subr.bf16.mxu0 0
      %5154 = vmatpush1.bf16.msra.mxu0 0
      %5155 = vmatprep.subr.bf16.mxu0 0
      %5156 = vmatpush1.bf16.msra.mxu0 0
      %5157 = vmatprep.subr.bf16.mxu0 0
      %5158 = vmatpush1.bf16.msra.mxu0 0
      %5159 = vmatprep.mubr.bf16.mxu0 %v5116
      %5160 = vmatmul.mubr.bf16.gmra.mrb[0].mxu0 %v5103
      %v5161 = vpop.f32.mrb[0].mxu0
      %v5162 = vadd.f32 0.0, %v5161
      %v5163 = vpop.f32.mrb[0].mxu0
      %v5164 = vadd.f32 0.0, %v5163
      %v5165 = vpop.f32.mrb[0].mxu0
      %v5166 = vadd.f32 0.0, %v5165
      %v5167 = vpop.f32.mrb[0].mxu0
      %v5168 = vadd.f32 0.0, %v5167
      %5169 = vmatprep.mubr.bf16.mxu0 %v5119
      %5170 = vmatmul.mubr.bf16.gmra.mrb[0].mxu0 %v5105
      %v5171 = vpop.f32.mrb[0].mxu0
      %v5172 = vadd.f32 0.0, %v5171
      %v5173 = vpop.f32.mrb[0].mxu0
      %v5174 = vadd.f32 0.0, %v5173
      %v5175 = vpop.f32.mrb[0].mxu0
      %v5176 = vadd.f32 0.0, %v5175
      %v5177 = vpop.f32.mrb[0].mxu0
      %v5178 = vadd.f32 0.0, %v5177
      %5179 = vmatprep.mubr.bf16.mxu0 %v5122
      %5180 = vmatmul.mubr.bf16.gmra.mrb[0].mxu0 %v5107
      %v5181 = vpop.f32.mrb[0].mxu0
      %v5182 = vadd.f32 0.0, %v5181
      %v5183 = vpop.f32.mrb[0].mxu0
      %v5184 = vadd.f32 0.0, %v5183
      %v5185 = vpop.f32.mrb[0].mxu0
      %v5186 = vadd.f32 0.0, %v5185
      %v5187 = vpop.f32.mrb[0].mxu0
      %v5188 = vadd.f32 0.0, %v5187
      %5189 = vmatprep.mubr.bf16.mxu0 %v5125
      %5190 = vmatmul.mubr.bf16.gmra.mrb[0].mxu0 %v5109
      %v5191 = vpop.f32.mrb[0].mxu0
      %v5192 = vadd.f32 0.0, %v5191
      %v5193 = vpop.f32.mrb[0].mxu0
      %v5194 = vadd.f32 0.0, %v5193
      %v5195 = vpop.f32.mrb[0].mxu0
      %v5196 = vpop.f32.mrb[0].mxu0
      %5197 = vdwg.mxu0
      %5198 = vmatprep.subr.bf16.mxu0 0
      %5199 = vmatpush1.bf16.msra.mxu0 %v4249
      %5200 = vmatprep.subr.bf16.mxu0 0
      %5201 = vmatpush1.bf16.msra.mxu0 %v4252
      %5202 = vmatprep.subr.bf16.mxu0 0
      %5203 = vmatpush1.bf16.msra.mxu0 %v4255
      %5204 = vmatprep.subr.bf16.mxu0 0
      %5205 = vmatpush1.bf16.msra.mxu0 %v4258
      %5206 = vmatprep.subr.bf16.mxu0 0
      %5207 = vmatpush1.bf16.msra.mxu0 %v4261
      %5208 = vmatprep.subr.bf16.mxu0 0
      %5209 = vmatpush1.bf16.msra.mxu0 %v4264
      %5210 = vmatprep.subr.bf16.mxu0 0
      %5211 = vmatpush1.bf16.msra.mxu0 %v4267
      %5212 = vmatprep.subr.bf16.mxu0 0
      %5213 = vmatpush1.bf16.msra.mxu0 %v4270
      %5214 = vmatprep.subr.bf16.mxu0 0
      %5215 = vmatpush1.bf16.msra.mxu0 %v4273
      %5216 = vmatprep.subr.bf16.mxu0 0
      %5217 = vmatpush1.bf16.msra.mxu0 0
      %5218 = vmatprep.subr.bf16.mxu0 0
      %5219 = vmatpush1.bf16.msra.mxu0 0
      %5220 = vmatprep.subr.bf16.mxu0 0
      %5221 = vmatpush1.bf16.msra.mxu0 0
      %5222 = vmatprep.subr.bf16.mxu0 0
      %5223 = vmatpush1.bf16.msra.mxu0 0
      %5224 = vmatprep.subr.bf16.mxu0 0
      %5225 = vmatpush1.bf16.msra.mxu0 0
      %5226 = vmatprep.subr.bf16.mxu0 0
      %5227 = vmatpush1.bf16.msra.mxu0 0
      %5228 = vmatprep.subr.bf16.mxu0 0
      %5229 = vmatpush1.bf16.msra.mxu0 0
      %5230 = vmatprep.mubr.bf16.mxu0 %v5116
      %5231 = vmatmul.mubr.bf16.gmra.mrb[0].mxu0 %v5103
      %v5232 = vpop.f32.mrb[0].mxu0
      %v5233 = vadd.f32 0.0, %v5232
      %v5234 = vpop.f32.mrb[0].mxu0
      %v5235 = vpop.f32.mrb[0].mxu0
      %v5236 = vadd.f32 0.0, %v5235
      %v5237 = vpop.f32.mrb[0].mxu0
      %5238 = vmatprep.mubr.bf16.mxu0 %v5119
      %5239 = vmatmul.mubr.bf16.gmra.mrb[0].mxu0 %v5105
      %v5240 = vpop.f32.mrb[0].mxu0
      %v5241 = vadd.f32 0.0, %v5240
      %v5242 = vpop.f32.mrb[0].mxu0
      %v5243 = vpop.f32.mrb[0].mxu0
      %v5244 = vadd.f32 0.0, %v5243
      %v5245 = vpop.f32.mrb[0].mxu0
      %5246 = vmatprep.mubr.bf16.mxu0 %v5122
      %5247 = vmatmul.mubr.bf16.gmra.mrb[0].mxu0 %v5107
      %v5248 = vpop.f32.mrb[0].mxu0
      %v5249 = vadd.f32 0.0, %v5248
      %v5250 = vpop.f32.mrb[0].mxu0
      %v5251 = vpop.f32.mrb[0].mxu0
      %v5252 = vadd.f32 0.0, %v5251
      %v5253 = vpop.f32.mrb[0].mxu0
      %5254 = vmatprep.mubr.bf16.mxu0 %v5125
      %5255 = vmatmul.mubr.bf16.gmra.mrb[0].mxu0 %v5109
      %v5256 = vpop.f32.mrb[0].mxu0
      %v5257 = vadd.f32 0.0, %v5256
      %v5258 = vpop.f32.mrb[0].mxu0
      %v5259 = vpop.f32.mrb[0].mxu0
      %v5260 = vpop.f32.mrb[0].mxu0
      %5261 = vdwg.mxu0
      %v5262 = vpack.c.bf16 %v5166, %v5162
      %v5263 = vpack.c.bf16 %v5168, %v5164
      %v5264 = vpack.c.bf16 %v5236, %v5233
      %v5265 = vpack.c.bf16 %v5176, %v5172
      %v5266 = vpack.c.bf16 %v5178, %v5174
      %v5267 = vpack.c.bf16 %v5244, %v5241
      %v5268 = vpack.c.bf16 %v5186, %v5182
      %v5269 = vpack.c.bf16 %v5188, %v5184
      %v5270 = vpack.c.bf16 %v5252, %v5249
      %v5271 = vpack.c.bf16 %v5192, %v5192
      %v5272 = vpack.c.bf16 %v5194, %v5194
      %v5273 = vpack.c.bf16 %v5257, %v5257
      %v5274 = vld [vmem:[%s5] sm:$0xff]
      %v5275 = vld [vmem:[%s5 + $0x8] sm:$0xff]
      %v5276 = vld [vmem:[%s5 + $0x10] sm:$0xff]
      %v5277 = vld [vmem:[%s5 + $0x18] sm:$0xff]
      %v5278 = vld [vmem:[%s5 + $0x20] sm:$0xff]
      %v5279 = vld [vmem:[%s5 + $0x28] sm:$0xff]
      %v5280 = vld [vmem:[%s5 + $0x30] sm:$0xff]
      %v5281 = vld [vmem:[%s5 + $0x38] sm:$0xff]
      %v5282 = vld [vmem:[%s5 + $0x40] sm:$0xff]
      %v5283 = vld [vmem:[%s5 + $0x48] sm:$0xff]
      %v5284 = vld [vmem:[%s5 + $0x50] sm:$0xff]
      %v5285 = vld [vmem:[%s5 + $0x58] sm:$0xff]
      %v5286 = vld [vmem:[%s5 + $0x60] sm:$0xff]
      %v5287 = vld [vmem:[%s5 + $0x68] sm:$0xff]
      %v5288 = vld [vmem:[%s5 + $0x70] sm:$0xff]
      %v5289 = vld [vmem:[%s5 + $0x78] sm:$0xff]
      %v5290 = vld [vmem:[%s5 + $0x80] sm:$0xff]
      %v5291 = vld [vmem:[%s5 + $0x88] sm:$0xff]
      %v5292 = vld [vmem:[%s5 + $0x90] sm:$0xff]
      %v5293 = vld [vmem:[%s5 + $0x98] sm:$0xff]
      %v5294 = vld [vmem:[%s5 + $0xa0] sm:$0xff]
      %v5295 = vld [vmem:[%s5 + $0xa8] sm:$0xff]
      %v5296 = vld [vmem:[%s5 + $0xb0] sm:$0xff]
      %v5297 = vld [vmem:[%s5 + $0xb8] sm:$0xff]
      %v5298 = vld [vmem:[%s5 + $0xc0] sm:$0xff]
      %v5299 = vld [vmem:[%s5 + $0xc8] sm:$0xff]
      %v5300 = vld [vmem:[%s5 + $0xd0] sm:$0xff]
      %v5301 = vld [vmem:[%s5 + $0xd8] sm:$0xff]
      %v5302 = vld [vmem:[%s5 + $0xe0] sm:$0xff]
      %v5303 = vld [vmem:[%s5 + $0xe8] sm:$0xff]
      %v5304 = vld [vmem:[%s5 + $0xf0] sm:$0xff]
      %v5305 = vld [vmem:[%s5 + $0xf8] sm:$0xff]
      %v5306 = vld [vmem:[%s5 + $0x100] sm:$0xff]
      %v5307 = vld [vmem:[%s5 + $0x108] sm:$0xff]
      %v5308 = vld [vmem:[%s5 + $0x110] sm:$0xff]
      %v5309 = vld [vmem:[%s5 + $0x118] sm:$0xff]
      %v5310 = vld [vmem:[%s5 + $0x120] sm:$0xff]
      %v5311 = vld [vmem:[%s5 + $0x128] sm:$0xff]
      %v5312 = vld [vmem:[%s5 + $0x130] sm:$0xff]
      %v5313 = vld [vmem:[%s5 + $0x138] sm:$0xff]
      %v5314 = vld [vmem:[%s5 + $0x140] sm:$0xff]
      %v5315 = vld [vmem:[%s5 + $0x148] sm:$0xff]
      %v5316 = vld [vmem:[%s5 + $0x150] sm:$0xff]
      %v5317 = vld [vmem:[%s5 + $0x158] sm:$0xff]
      %v5318 = vld [vmem:[%s5 + $0x160] sm:$0xff]
      %v5319 = vld [vmem:[%s5 + $0x168] sm:$0xff]
      %v5320 = vld [vmem:[%s5 + $0x170] sm:$0xff]
      %v5321 = vld [vmem:[%s5 + $0x178] sm:$0xff]
      %v5322 = vld [vmem:[%s5 + $0x180] sm:$0xff]
      %v5323 = vld [vmem:[%s5 + $0x188] sm:$0xff]
      %v5324 = vld [vmem:[%s5 + $0x190] sm:$0xff]
      %v5325 = vld [vmem:[%s5 + $0x198] sm:$0xff]
      %v5326 = vld [vmem:[%s5 + $0x1a0] sm:$0xff]
      %v5327 = vld [vmem:[%s5 + $0x1a8] sm:$0xff]
      %v5328 = vld [vmem:[%s5 + $0x1b0] sm:$0xff]
      %v5329 = vld [vmem:[%s5 + $0x1b8] sm:$0xff]
      %v5330 = vld [vmem:[%s5 + $0x1c0] sm:$0xff]
      %v5331 = vld [vmem:[%s5 + $0x1c8] sm:$0xff]
      %v5332 = vld [vmem:[%s5 + $0x1d0] sm:$0xff]
      %v5333 = vld [vmem:[%s5 + $0x1d8] sm:$0xff]
      %v5334 = vld [vmem:[%s5 + $0x1e0] sm:$0xff]
      %v5335 = vld [vmem:[%s5 + $0x1e8] sm:$0xff]
      %v5336 = vld [vmem:[%s5 + $0x1f0] sm:$0xff]
      %v5337 = vld [vmem:[%s5 + $0x1f8] sm:$0xff]
      %v5338 = vld [vmem:[%s5 + $0x200] sm:$0xff]
      %v5339 = vld [vmem:[%s5 + $0x208] sm:$0xff]
      %v5340 = vld [vmem:[%s5 + $0x210] sm:$0xff]
      %v5341 = vld [vmem:[%s5 + $0x218] sm:$0xff]
      %v5342 = vld [vmem:[%s5 + $0x220] sm:$0xff]
      %v5343 = vld [vmem:[%s5 + $0x228] sm:$0xff]
      %v5344 = vld [vmem:[%s5 + $0x230] sm:$0xff]
      %v5345 = vld [vmem:[%s5 + $0x238] sm:$0xff]
      %v5346 = vld [vmem:[%s5 + $0x240] sm:$0xff]
      %v5347 = vld [vmem:[%s5 + $0x248] sm:$0xff]
      %v5348 = vld [vmem:[%s5 + $0x250] sm:$0xff]
      %v5349 = vld [vmem:[%s5 + $0x258] sm:$0xff]
      %v5350 = vld [vmem:[%s5 + $0x260] sm:$0xff]
      %v5351 = vld [vmem:[%s5 + $0x268] sm:$0xff]
      %v5352 = vld [vmem:[%s5 + $0x270] sm:$0xff]
      %v5353 = vld [vmem:[%s5 + $0x278] sm:$0xff]
      %v5354 = vld [vmem:[%s5 + $0x280] sm:$0xff]
      %v5355 = vld [vmem:[%s5 + $0x288] sm:$0xff]
      %v5356 = vld [vmem:[%s5 + $0x290] sm:$0xff]
      %v5357 = vld [vmem:[%s5 + $0x298] sm:$0xff]
      %v5358 = vld [vmem:[%s5 + $0x2a0] sm:$0xff]
      %v5359 = vld [vmem:[%s5 + $0x2a8] sm:$0xff]
      %v5360 = vld [vmem:[%s5 + $0x2b0] sm:$0xff]
      %v5361 = vld [vmem:[%s5 + $0x2b8] sm:$0xff]
      %v5362 = vld [vmem:[%s5 + $0x2c0] sm:$0xff]
      %v5363 = vld [vmem:[%s5 + $0x2c8] sm:$0xff]
      %v5364 = vld [vmem:[%s5 + $0x2d0] sm:$0xff]
      %v5365 = vld [vmem:[%s5 + $0x2d8] sm:$0xff]
      %v5366 = vld [vmem:[%s5 + $0x2e0] sm:$0xff]
      %v5367 = vld [vmem:[%s5 + $0x2e8] sm:$0xff]
      %v5368 = vld [vmem:[%s5 + $0x2f0] sm:$0xff]
      %v5369 = vld [vmem:[%s5 + $0x2f8] sm:$0xff]
      %v5370 = vld [vmem:[%s5 + $0x300] sm:$0xff]
      %v5371 = vld [vmem:[%s5 + $0x308] sm:$0xff]
      %v5372 = vld [vmem:[%s5 + $0x310] sm:$0xff]
      %v5373 = vld [vmem:[%s5 + $0x318] sm:$0xff]
      %v5374 = vld [vmem:[%s5 + $0x320] sm:$0xff]
      %v5375 = vld [vmem:[%s5 + $0x328] sm:$0xff]
      %v5376 = vld [vmem:[%s5 + $0x330] sm:$0xff]
      %v5377 = vld [vmem:[%s5 + $0x338] sm:$0xff]
      %v5378 = vld [vmem:[%s5 + $0x340] sm:$0xff]
      %v5379 = vld [vmem:[%s5 + $0x348] sm:$0xff]
      %v5380 = vld [vmem:[%s5 + $0x350] sm:$0xff]
      %v5381 = vld [vmem:[%s5 + $0x358] sm:$0xff]
      %v5382 = vld [vmem:[%s5 + $0x360] sm:$0xff]
      %v5383 = vld [vmem:[%s5 + $0x368] sm:$0xff]
      %v5384 = vld [vmem:[%s5 + $0x370] sm:$0xff]
      %v5385 = vld [vmem:[%s5 + $0x378] sm:$0xff]
      %v5386 = vld [vmem:[%s5 + $0x380] sm:$0xff]
      %v5387 = vld [vmem:[%s5 + $0x388] sm:$0xff]
      %v5388 = vld [vmem:[%s5 + $0x390] sm:$0xff]
      %v5389 = vld [vmem:[%s5 + $0x398] sm:$0xff]
      %v5390 = vld [vmem:[%s5 + $0x3a0] sm:$0xff]
      %v5391 = vld [vmem:[%s5 + $0x3a8] sm:$0xff]
      %v5392 = vld [vmem:[%s5 + $0x3b0] sm:$0xff]
      %v5393 = vld [vmem:[%s5 + $0x3b8] sm:$0xff]
      %v5394 = vld [vmem:[%s5 + $0x3c0] sm:$0xff]
      %v5395 = vld [vmem:[%s5 + $0x3c8] sm:$0xff]
      %v5396 = vld [vmem:[%s5 + $0x3d0] sm:$0xff]
      %v5397 = vld [vmem:[%s5 + $0x3d8] sm:$0xff]
      %v5398 = vld [vmem:[%s5 + $0x3e0] sm:$0xff]
      %v5399 = vld [vmem:[%s5 + $0x3e8] sm:$0xff]
      %v5400 = vld [vmem:[%s5 + $0x3f0] sm:$0xff]
      %v5401 = vld [vmem:[%s5 + $0x3f8] sm:$0xff]
      %v5402 = vld [vmem:[%s5 + $0x400] sm:$0xff]
      %v5403 = vld [vmem:[%s5 + $0x408] sm:$0xff]
      %v5404 = vld [vmem:[%s5 + $0x410] sm:$0xff]
      %v5405 = vld [vmem:[%s5 + $0x418] sm:$0xff]
      %v5406 = vld [vmem:[%s5 + $0x420] sm:$0xff]
      %v5407 = vld [vmem:[%s5 + $0x428] sm:$0xff]
      %v5408 = vld [vmem:[%s5 + $0x430] sm:$0xff]
      %v5409 = vld [vmem:[%s5 + $0x438] sm:$0xff]
      %v5410 = vld [vmem:[%s5 + $0x440] sm:$0xff]
      %v5411 = vld [vmem:[%s5 + $0x448] sm:$0xff]
      %v5412 = vld [vmem:[%s5 + $0x450] sm:$0xff]
      %v5413 = vld [vmem:[%s5 + $0x458] sm:$0xff]
      %v5414 = vld [vmem:[%s5 + $0x460] sm:$0xff]
      %v5415 = vld [vmem:[%s5 + $0x468] sm:$0xff]
      %v5416 = vld [vmem:[%s5 + $0x470] sm:$0xff]
      %v5417 = vld [vmem:[%s5 + $0x478] sm:$0xff]
      %v5418 = vld [vmem:[%s5 + $0x480] sm:$0xff]
      %v5419 = vld [vmem:[%s5 + $0x488] sm:$0xff]
      %v5420 = vld [vmem:[%s5 + $0x490] sm:$0xff]
      %v5421 = vld [vmem:[%s5 + $0x498] sm:$0xff]
      %v5422 = vld [vmem:[%s5 + $0x4a0] sm:$0xff]
      %v5423 = vld [vmem:[%s5 + $0x4a8] sm:$0xff]
      %v5424 = vld [vmem:[%s5 + $0x4b0] sm:$0xff]
      %v5425 = vld [vmem:[%s5 + $0x4b8] sm:$0xff]
      %v5426 = vld [vmem:[%s5 + $0x4c0] sm:$0xff]
      %v5427 = vld [vmem:[%s5 + $0x4c8] sm:$0xff]
      %v5428 = vld [vmem:[%s5 + $0x4d0] sm:$0xff]
      %v5429 = vld [vmem:[%s5 + $0x4d8] sm:$0xff]
      %v5430 = vld [vmem:[%s5 + $0x4e0] sm:$0xff]
      %v5431 = vld [vmem:[%s5 + $0x4e8] sm:$0xff]
      %v5432 = vld [vmem:[%s5 + $0x4f0] sm:$0xff]
      %v5433 = vld [vmem:[%s5 + $0x4f8] sm:$0xff]
      %v5434 = vld [vmem:[%s5 + $0x500] sm:$0xff]
      %v5435 = vld [vmem:[%s5 + $0x508] sm:$0xff]
      %v5436 = vld [vmem:[%s5 + $0x510] sm:$0xff]
      %v5437 = vld [vmem:[%s5 + $0x518] sm:$0xff]
      %v5438 = vld [vmem:[%s5 + $0x520] sm:$0xff]
      %v5439 = vld [vmem:[%s5 + $0x528] sm:$0xff]
      %v5440 = vld [vmem:[%s5 + $0x530] sm:$0xff]
      %v5441 = vld [vmem:[%s5 + $0x538] sm:$0xff]
      %v5442 = vld [vmem:[%s5 + $0x540] sm:$0xff]
      %v5443 = vld [vmem:[%s5 + $0x548] sm:$0xff]
      %v5444 = vld [vmem:[%s5 + $0x550] sm:$0xff]
      %v5445 = vld [vmem:[%s5 + $0x558] sm:$0xff]
      %v5446 = vld [vmem:[%s5 + $0x560] sm:$0xff]
      %v5447 = vld [vmem:[%s5 + $0x568] sm:$0xff]
      %v5448 = vld [vmem:[%s5 + $0x570] sm:$0xff]
      %v5449 = vld [vmem:[%s5 + $0x578] sm:$0xff]
      %v5450 = vld [vmem:[%s5 + $0x580] sm:$0xff]
      %v5451 = vld [vmem:[%s5 + $0x588] sm:$0xff]
      %v5452 = vld [vmem:[%s5 + $0x590] sm:$0xff]
      %v5453 = vld [vmem:[%s5 + $0x598] sm:$0xff]
      %v5454 = vld [vmem:[%s5 + $0x5a0] sm:$0xff]
      %v5455 = vld [vmem:[%s5 + $0x5a8] sm:$0xff]
      %v5456 = vld [vmem:[%s5 + $0x5b0] sm:$0xff]
      %v5457 = vld [vmem:[%s5 + $0x5b8] sm:$0xff]
      %v5458 = vld [vmem:[%s5 + $0x5c0] sm:$0xff]
      %v5459 = vld [vmem:[%s5 + $0x5c8] sm:$0xff]
      %v5460 = vld [vmem:[%s5 + $0x5d0] sm:$0xff]
      %v5461 = vld [vmem:[%s5 + $0x5d8] sm:$0xff]
      %v5462 = vld [vmem:[%s5 + $0x5e0] sm:$0xff]
      %v5463 = vld [vmem:[%s5 + $0x5e8] sm:$0xff]
      %v5464 = vld [vmem:[%s5 + $0x5f0] sm:$0xff]
      %v5465 = vld [vmem:[%s5 + $0x5f8] sm:$0xff]
      %v5466 = vld [vmem:[%s5 + $0x600] sm:$0xff]
      %v5467 = vld [vmem:[%s5 + $0x608] sm:$0xff]
      %v5468 = vld [vmem:[%s5 + $0x610] sm:$0xff]
      %v5469 = vld [vmem:[%s5 + $0x618] sm:$0xff]
      %v5470 = vld [vmem:[%s5 + $0x620] sm:$0xff]
      %v5471 = vld [vmem:[%s5 + $0x628] sm:$0xff]
      %v5472 = vld [vmem:[%s5 + $0x630] sm:$0xff]
      %v5473 = vld [vmem:[%s5 + $0x638] sm:$0xff]
      %v5474 = vld [vmem:[%s5 + $0x640] sm:$0xff]
      %v5475 = vld [vmem:[%s5 + $0x648] sm:$0xff]
      %v5476 = vld [vmem:[%s5 + $0x650] sm:$0xff]
      %v5477 = vld [vmem:[%s5 + $0x658] sm:$0xff]
      %v5478 = vld [vmem:[%s5 + $0x660] sm:$0xff]
      %v5479 = vld [vmem:[%s5 + $0x668] sm:$0xff]
      %v5480 = vld [vmem:[%s5 + $0x670] sm:$0xff]
      %v5481 = vld [vmem:[%s5 + $0x678] sm:$0xff]
      %v5482 = vld [vmem:[%s5 + $0x680] sm:$0xff]
      %v5483 = vld [vmem:[%s5 + $0x688] sm:$0xff]
      %v5484 = vld [vmem:[%s5 + $0x690] sm:$0xff]
      %v5485 = vld [vmem:[%s5 + $0x698] sm:$0xff]
      %v5486 = vld [vmem:[%s5 + $0x6a0] sm:$0xff]
      %v5487 = vld [vmem:[%s5 + $0x6a8] sm:$0xff]
      %v5488 = vld [vmem:[%s5 + $0x6b0] sm:$0xff]
      %v5489 = vld [vmem:[%s5 + $0x6b8] sm:$0xff]
      %v5490 = vld [vmem:[%s5 + $0x6c0] sm:$0xff]
      %v5491 = vld [vmem:[%s5 + $0x6c8] sm:$0xff]
      %v5492 = vld [vmem:[%s5 + $0x6d0] sm:$0xff]
      %v5493 = vld [vmem:[%s5 + $0x6d8] sm:$0xff]
      %v5494 = vld [vmem:[%s5 + $0x6e0] sm:$0xff]
      %v5495 = vld [vmem:[%s5 + $0x6e8] sm:$0xff]
      %v5496 = vld [vmem:[%s5 + $0x6f0] sm:$0xff]
      %v5497 = vld [vmem:[%s5 + $0x6f8] sm:$0xff]
      %v5498 = vld [vmem:[%s5 + $0x700] sm:$0xff]
      %v5499 = vld [vmem:[%s5 + $0x708] sm:$0xff]
      %v5500 = vld [vmem:[%s5 + $0x710] sm:$0xff]
      %v5501 = vld [vmem:[%s5 + $0x718] sm:$0xff]
      %v5502 = vld [vmem:[%s5 + $0x720] sm:$0xff]
      %v5503 = vld [vmem:[%s5 + $0x728] sm:$0xff]
      %v5504 = vld [vmem:[%s5 + $0x730] sm:$0xff]
      %v5505 = vld [vmem:[%s5 + $0x738] sm:$0xff]
      %v5506 = vld [vmem:[%s5 + $0x740] sm:$0xff]
      %v5507 = vld [vmem:[%s5 + $0x748] sm:$0xff]
      %v5508 = vld [vmem:[%s5 + $0x750] sm:$0xff]
      %v5509 = vld [vmem:[%s5 + $0x758] sm:$0xff]
      %v5510 = vld [vmem:[%s5 + $0x760] sm:$0xff]
      %v5511 = vld [vmem:[%s5 + $0x768] sm:$0xff]
      %v5512 = vld [vmem:[%s5 + $0x770] sm:$0xff]
      %v5513 = vld [vmem:[%s5 + $0x778] sm:$0xff]
      %v5514 = vld [vmem:[%s6] sm:$0x3]
      %v5516 = vlaneseq
      %v5517 = vshrl.u32 %v5516, 7
      %v5518 = vsub.s32 0, %v5517
      %v5519 = vrot.slane %v5514, %v5518
      %v5520 = vlaneseq
      %v5521 = vshrl.u32 %v5520, 7
      %v5522 = vsub.s32 1, %v5521
      %v5523 = vrot.slane %v5514, %v5522
      %v5766 = vunpack.c.l.b16 %v5274
      %v5767 = vunpack.c.h.b16 %v5274
      %v5768 = vunpack.c.l.b16 %v5275
      %v5769 = vunpack.c.h.b16 %v5275
      %v5770 = vunpack.c.l.b16 %v5276
      %v5771 = vunpack.c.h.b16 %v5276
      %v5772 = vunpack.c.l.b16 %v5277
      %v5773 = vunpack.c.h.b16 %v5277
      %v5774 = vunpack.c.l.b16 %v5278
      %v5775 = vunpack.c.h.b16 %v5278
      %v5776 = vunpack.c.l.b16 %v5279
      %v5777 = vunpack.c.h.b16 %v5279
      %v5778 = vunpack.c.l.b16 %v5280
      %v5779 = vunpack.c.h.b16 %v5280
      %v5780 = vunpack.c.l.b16 %v5281
      %v5781 = vunpack.c.h.b16 %v5281
      %v5782 = vunpack.c.l.b16 %v5282
      %v5783 = vunpack.c.h.b16 %v5282
      %v5784 = vunpack.c.l.b16 %v5283
      %v5785 = vunpack.c.h.b16 %v5283
      %v5786 = vunpack.c.l.b16 %v5284
      %v5787 = vunpack.c.h.b16 %v5284
      %v5788 = vunpack.c.l.b16 %v5285
      %v5789 = vunpack.c.h.b16 %v5285
      %v5790 = vunpack.c.l.b16 %v5286
      %v5791 = vunpack.c.h.b16 %v5286
      %v5792 = vunpack.c.l.b16 %v5287
      %v5793 = vunpack.c.h.b16 %v5287
      %v5794 = vunpack.c.l.b16 %v5288
      %v5795 = vunpack.c.h.b16 %v5288
      %v5796 = vunpack.c.l.b16 %v5289
      %v5797 = vunpack.c.h.b16 %v5289
      %v5798 = vunpack.c.l.b16 %v5290
      %v5799 = vunpack.c.h.b16 %v5290
      %v5800 = vunpack.c.l.b16 %v5291
      %v5801 = vunpack.c.h.b16 %v5291
      %v5802 = vunpack.c.l.b16 %v5292
      %v5803 = vunpack.c.h.b16 %v5292
      %v5804 = vunpack.c.l.b16 %v5293
      %v5805 = vunpack.c.h.b16 %v5293
      %v5806 = vunpack.c.l.b16 %v5294
      %v5807 = vunpack.c.h.b16 %v5294
      %v5808 = vunpack.c.l.b16 %v5295
      %v5809 = vunpack.c.h.b16 %v5295
      %v5810 = vunpack.c.l.b16 %v5296
      %v5811 = vunpack.c.h.b16 %v5296
      %v5812 = vunpack.c.l.b16 %v5297
      %v5813 = vunpack.c.h.b16 %v5297
      %v5814 = vunpack.c.l.b16 %v5298
      %v5815 = vunpack.c.h.b16 %v5298
      %v5816 = vunpack.c.l.b16 %v5299
      %v5817 = vunpack.c.h.b16 %v5299
      %v5818 = vunpack.c.l.b16 %v5300
      %v5819 = vunpack.c.h.b16 %v5300
      %v5820 = vunpack.c.l.b16 %v5301
      %v5821 = vunpack.c.h.b16 %v5301
      %v5822 = vunpack.c.l.b16 %v5302
      %v5823 = vunpack.c.h.b16 %v5302
      %v5824 = vunpack.c.l.b16 %v5303
      %v5825 = vunpack.c.h.b16 %v5303
      %v5826 = vunpack.c.l.b16 %v5304
      %v5827 = vunpack.c.h.b16 %v5304
      %v5828 = vunpack.c.l.b16 %v5305
      %v5829 = vunpack.c.h.b16 %v5305
      %v5830 = vunpack.c.l.b16 %v5306
      %v5831 = vunpack.c.h.b16 %v5306
      %v5832 = vunpack.c.l.b16 %v5307
      %v5833 = vunpack.c.h.b16 %v5307
      %v5834 = vunpack.c.l.b16 %v5308
      %v5835 = vunpack.c.h.b16 %v5308
      %v5836 = vunpack.c.l.b16 %v5309
      %v5837 = vunpack.c.h.b16 %v5309
      %v5838 = vunpack.c.l.b16 %v5310
      %v5839 = vunpack.c.h.b16 %v5310
      %v5840 = vunpack.c.l.b16 %v5311
      %v5841 = vunpack.c.h.b16 %v5311
      %v5842 = vunpack.c.l.b16 %v5312
      %v5843 = vunpack.c.h.b16 %v5312
      %v5844 = vunpack.c.l.b16 %v5313
      %v5845 = vunpack.c.h.b16 %v5313
      %v5846 = vunpack.c.l.b16 %v5314
      %v5847 = vunpack.c.h.b16 %v5314
      %v5848 = vunpack.c.l.b16 %v5315
      %v5849 = vunpack.c.h.b16 %v5315
      %v5850 = vunpack.c.l.b16 %v5316
      %v5851 = vunpack.c.h.b16 %v5316
      %v5852 = vunpack.c.l.b16 %v5317
      %v5853 = vunpack.c.h.b16 %v5317
      %v5854 = vunpack.c.l.b16 %v5318
      %v5855 = vunpack.c.h.b16 %v5318
      %v5856 = vunpack.c.l.b16 %v5319
      %v5857 = vunpack.c.h.b16 %v5319
      %v5858 = vunpack.c.l.b16 %v5320
      %v5859 = vunpack.c.h.b16 %v5320
      %v5860 = vunpack.c.l.b16 %v5321
      %v5861 = vunpack.c.h.b16 %v5321
      %v5862 = vunpack.c.l.b16 %v5322
      %v5863 = vunpack.c.h.b16 %v5322
      %v5864 = vunpack.c.l.b16 %v5323
      %v5865 = vunpack.c.h.b16 %v5323
      %v5866 = vunpack.c.l.b16 %v5324
      %v5867 = vunpack.c.h.b16 %v5324
      %v5868 = vunpack.c.l.b16 %v5325
      %v5869 = vunpack.c.h.b16 %v5325
      %v5870 = vunpack.c.l.b16 %v5326
      %v5871 = vunpack.c.h.b16 %v5326
      %v5872 = vunpack.c.l.b16 %v5327
      %v5873 = vunpack.c.h.b16 %v5327
      %v5874 = vunpack.c.l.b16 %v5328
      %v5875 = vunpack.c.h.b16 %v5328
      %v5876 = vunpack.c.l.b16 %v5329
      %v5877 = vunpack.c.h.b16 %v5329
      %v5878 = vunpack.c.l.b16 %v5330
      %v5879 = vunpack.c.h.b16 %v5330
      %v5880 = vunpack.c.l.b16 %v5331
      %v5881 = vunpack.c.h.b16 %v5331
      %v5882 = vunpack.c.l.b16 %v5332
      %v5883 = vunpack.c.h.b16 %v5332
      %v5884 = vunpack.c.l.b16 %v5333
      %v5885 = vunpack.c.h.b16 %v5333
      %v5886 = vunpack.c.l.b16 %v5334
      %v5887 = vunpack.c.h.b16 %v5334
      %v5888 = vunpack.c.l.b16 %v5335
      %v5889 = vunpack.c.h.b16 %v5335
      %v5890 = vunpack.c.l.b16 %v5336
      %v5891 = vunpack.c.h.b16 %v5336
      %v5892 = vunpack.c.l.b16 %v5337
      %v5893 = vunpack.c.h.b16 %v5337
      %v5894 = vunpack.c.l.b16 %v5338
      %v5895 = vunpack.c.h.b16 %v5338
      %v5896 = vunpack.c.l.b16 %v5339
      %v5897 = vunpack.c.h.b16 %v5339
      %v5898 = vunpack.c.l.b16 %v5340
      %v5899 = vunpack.c.h.b16 %v5340
      %v5900 = vunpack.c.l.b16 %v5341
      %v5901 = vunpack.c.h.b16 %v5341
      %v5902 = vunpack.c.l.b16 %v5342
      %v5903 = vunpack.c.h.b16 %v5342
      %v5904 = vunpack.c.l.b16 %v5343
      %v5905 = vunpack.c.h.b16 %v5343
      %v5906 = vunpack.c.l.b16 %v5344
      %v5907 = vunpack.c.h.b16 %v5344
      %v5908 = vunpack.c.l.b16 %v5345
      %v5909 = vunpack.c.h.b16 %v5345
      %v5910 = vunpack.c.l.b16 %v5346
      %v5911 = vunpack.c.h.b16 %v5346
      %v5912 = vunpack.c.l.b16 %v5347
      %v5913 = vunpack.c.h.b16 %v5347
      %v5914 = vunpack.c.l.b16 %v5348
      %v5915 = vunpack.c.h.b16 %v5348
      %v5916 = vunpack.c.l.b16 %v5349
      %v5917 = vunpack.c.h.b16 %v5349
      %v5918 = vunpack.c.l.b16 %v5350
      %v5919 = vunpack.c.h.b16 %v5350
      %v5920 = vunpack.c.l.b16 %v5351
      %v5921 = vunpack.c.h.b16 %v5351
      %v5922 = vunpack.c.l.b16 %v5352
      %v5923 = vunpack.c.h.b16 %v5352
      %v5924 = vunpack.c.l.b16 %v5353
      %v5925 = vunpack.c.h.b16 %v5353
      %v5926 = vunpack.c.l.b16 %v5354
      %v5927 = vunpack.c.h.b16 %v5354
      %v5928 = vunpack.c.l.b16 %v5355
      %v5929 = vunpack.c.h.b16 %v5355
      %v5930 = vunpack.c.l.b16 %v5356
      %v5931 = vunpack.c.h.b16 %v5356
      %v5932 = vunpack.c.l.b16 %v5357
      %v5933 = vunpack.c.h.b16 %v5357
      %v5934 = vunpack.c.l.b16 %v5358
      %v5935 = vunpack.c.h.b16 %v5358
      %v5936 = vunpack.c.l.b16 %v5359
      %v5937 = vunpack.c.h.b16 %v5359
      %v5938 = vunpack.c.l.b16 %v5360
      %v5939 = vunpack.c.h.b16 %v5360
      %v5940 = vunpack.c.l.b16 %v5361
      %v5941 = vunpack.c.h.b16 %v5361
      %v5942 = vunpack.c.l.b16 %v5362
      %v5943 = vunpack.c.h.b16 %v5362
      %v5944 = vunpack.c.l.b16 %v5363
      %v5945 = vunpack.c.h.b16 %v5363
      %v5946 = vunpack.c.l.b16 %v5364
      %v5947 = vunpack.c.h.b16 %v5364
      %v5948 = vunpack.c.l.b16 %v5365
      %v5949 = vunpack.c.h.b16 %v5365
      %v5950 = vunpack.c.l.b16 %v5366
      %v5951 = vunpack.c.h.b16 %v5366
      %v5952 = vunpack.c.l.b16 %v5367
      %v5953 = vunpack.c.h.b16 %v5367
      %v5954 = vunpack.c.l.b16 %v5368
      %v5955 = vunpack.c.h.b16 %v5368
      %v5956 = vunpack.c.l.b16 %v5369
      %v5957 = vunpack.c.h.b16 %v5369
      %v5958 = vunpack.c.l.b16 %v5370
      %v5959 = vunpack.c.h.b16 %v5370
      %v5960 = vunpack.c.l.b16 %v5371
      %v5961 = vunpack.c.h.b16 %v5371
      %v5962 = vunpack.c.l.b16 %v5372
      %v5963 = vunpack.c.h.b16 %v5372
      %v5964 = vunpack.c.l.b16 %v5373
      %v5965 = vunpack.c.h.b16 %v5373
      %v5966 = vunpack.c.l.b16 %v5374
      %v5967 = vunpack.c.h.b16 %v5374
      %v5968 = vunpack.c.l.b16 %v5375
      %v5969 = vunpack.c.h.b16 %v5375
      %v5970 = vunpack.c.l.b16 %v5376
      %v5971 = vunpack.c.h.b16 %v5376
      %v5972 = vunpack.c.l.b16 %v5377
      %v5973 = vunpack.c.h.b16 %v5377
      %v5974 = vunpack.c.l.b16 %v5378
      %v5975 = vunpack.c.h.b16 %v5378
      %v5976 = vunpack.c.l.b16 %v5379
      %v5977 = vunpack.c.h.b16 %v5379
      %v5978 = vunpack.c.l.b16 %v5380
      %v5979 = vunpack.c.h.b16 %v5380
      %v5980 = vunpack.c.l.b16 %v5381
      %v5981 = vunpack.c.h.b16 %v5381
      %v5982 = vunpack.c.l.b16 %v5382
      %v5983 = vunpack.c.h.b16 %v5382
      %v5984 = vunpack.c.l.b16 %v5383
      %v5985 = vunpack.c.h.b16 %v5383
      %v5986 = vunpack.c.l.b16 %v5384
      %v5987 = vunpack.c.h.b16 %v5384
      %v5988 = vunpack.c.l.b16 %v5385
      %v5989 = vunpack.c.h.b16 %v5385
      %v5990 = vunpack.c.l.b16 %v5386
      %v5991 = vunpack.c.h.b16 %v5386
      %v5992 = vunpack.c.l.b16 %v5387
      %v5993 = vunpack.c.h.b16 %v5387
      %v5994 = vunpack.c.l.b16 %v5388
      %v5995 = vunpack.c.h.b16 %v5388
      %v5996 = vunpack.c.l.b16 %v5389
      %v5997 = vunpack.c.h.b16 %v5389
      %v5998 = vunpack.c.l.b16 %v5390
      %v5999 = vunpack.c.h.b16 %v5390
      %v6000 = vunpack.c.l.b16 %v5391
      %v6001 = vunpack.c.h.b16 %v5391
      %v6002 = vunpack.c.l.b16 %v5392
      %v6003 = vunpack.c.h.b16 %v5392
      %v6004 = vunpack.c.l.b16 %v5393
      %v6005 = vunpack.c.h.b16 %v5393
      %v6006 = vunpack.c.l.b16 %v5394
      %v6007 = vunpack.c.h.b16 %v5394
      %v6008 = vunpack.c.l.b16 %v5395
      %v6009 = vunpack.c.h.b16 %v5395
      %v6010 = vunpack.c.l.b16 %v5396
      %v6011 = vunpack.c.h.b16 %v5396
      %v6012 = vunpack.c.l.b16 %v5397
      %v6013 = vunpack.c.h.b16 %v5397
      %v6014 = vunpack.c.l.b16 %v5398
      %v6015 = vunpack.c.h.b16 %v5398
      %v6016 = vunpack.c.l.b16 %v5399
      %v6017 = vunpack.c.h.b16 %v5399
      %v6018 = vunpack.c.l.b16 %v5400
      %v6019 = vunpack.c.h.b16 %v5400
      %v6020 = vunpack.c.l.b16 %v5401
      %v6021 = vunpack.c.h.b16 %v5401
      %v6022 = vunpack.c.l.b16 %v5402
      %v6023 = vunpack.c.h.b16 %v5402
      %v6024 = vunpack.c.l.b16 %v5403
      %v6025 = vunpack.c.h.b16 %v5403
      %v6026 = vunpack.c.l.b16 %v5404
      %v6027 = vunpack.c.h.b16 %v5404
      %v6028 = vunpack.c.l.b16 %v5405
      %v6029 = vunpack.c.h.b16 %v5405
      %v6030 = vunpack.c.l.b16 %v5406
      %v6031 = vunpack.c.h.b16 %v5406
      %v6032 = vunpack.c.l.b16 %v5407
      %v6033 = vunpack.c.h.b16 %v5407
      %v6034 = vunpack.c.l.b16 %v5408
      %v6035 = vunpack.c.h.b16 %v5408
      %v6036 = vunpack.c.l.b16 %v5409
      %v6037 = vunpack.c.h.b16 %v5409
      %v6038 = vunpack.c.l.b16 %v5410
      %v6039 = vunpack.c.h.b16 %v5410
      %v6040 = vunpack.c.l.b16 %v5411
      %v6041 = vunpack.c.h.b16 %v5411
      %v6042 = vunpack.c.l.b16 %v5412
      %v6043 = vunpack.c.h.b16 %v5412
      %v6044 = vunpack.c.l.b16 %v5413
      %v6045 = vunpack.c.h.b16 %v5413
      %v6046 = vunpack.c.l.b16 %v5414
      %v6047 = vunpack.c.h.b16 %v5414
      %v6048 = vunpack.c.l.b16 %v5415
      %v6049 = vunpack.c.h.b16 %v5415
      %v6050 = vunpack.c.l.b16 %v5416
      %v6051 = vunpack.c.h.b16 %v5416
      %v6052 = vunpack.c.l.b16 %v5417
      %v6053 = vunpack.c.h.b16 %v5417
      %v6054 = vunpack.c.l.b16 %v5418
      %v6055 = vunpack.c.h.b16 %v5418
      %v6056 = vunpack.c.l.b16 %v5419
      %v6057 = vunpack.c.h.b16 %v5419
      %v6058 = vunpack.c.l.b16 %v5420
      %v6059 = vunpack.c.h.b16 %v5420
      %v6060 = vunpack.c.l.b16 %v5421
      %v6061 = vunpack.c.h.b16 %v5421
      %v6062 = vunpack.c.l.b16 %v5422
      %v6063 = vunpack.c.h.b16 %v5422
      %v6064 = vunpack.c.l.b16 %v5423
      %v6065 = vunpack.c.h.b16 %v5423
      %v6066 = vunpack.c.l.b16 %v5424
      %v6067 = vunpack.c.h.b16 %v5424
      %v6068 = vunpack.c.l.b16 %v5425
      %v6069 = vunpack.c.h.b16 %v5425
      %v6070 = vunpack.c.l.b16 %v5426
      %v6071 = vunpack.c.h.b16 %v5426
      %v6072 = vunpack.c.l.b16 %v5427
      %v6073 = vunpack.c.h.b16 %v5427
      %v6074 = vunpack.c.l.b16 %v5428
      %v6075 = vunpack.c.h.b16 %v5428
      %v6076 = vunpack.c.l.b16 %v5429
      %v6077 = vunpack.c.h.b16 %v5429
      %v6078 = vunpack.c.l.b16 %v5430
      %v6079 = vunpack.c.h.b16 %v5430
      %v6080 = vunpack.c.l.b16 %v5431
      %v6081 = vunpack.c.h.b16 %v5431
      %v6082 = vunpack.c.l.b16 %v5432
      %v6083 = vunpack.c.h.b16 %v5432
      %v6084 = vunpack.c.l.b16 %v5433
      %v6085 = vunpack.c.h.b16 %v5433
      %v6086 = vunpack.c.l.b16 %v5434
      %v6087 = vunpack.c.h.b16 %v5434
      %v6088 = vunpack.c.l.b16 %v5435
      %v6089 = vunpack.c.h.b16 %v5435
      %v6090 = vunpack.c.l.b16 %v5436
      %v6091 = vunpack.c.h.b16 %v5436
      %v6092 = vunpack.c.l.b16 %v5437
      %v6093 = vunpack.c.h.b16 %v5437
      %v6094 = vunpack.c.l.b16 %v5438
      %v6095 = vunpack.c.h.b16 %v5438
      %v6096 = vunpack.c.l.b16 %v5439
      %v6097 = vunpack.c.h.b16 %v5439
      %v6098 = vunpack.c.l.b16 %v5440
      %v6099 = vunpack.c.h.b16 %v5440
      %v6100 = vunpack.c.l.b16 %v5441
      %v6101 = vunpack.c.h.b16 %v5441
      %v6102 = vunpack.c.l.b16 %v5442
      %v6103 = vunpack.c.h.b16 %v5442
      %v6104 = vunpack.c.l.b16 %v5443
      %v6105 = vunpack.c.h.b16 %v5443
      %v6106 = vunpack.c.l.b16 %v5444
      %v6107 = vunpack.c.h.b16 %v5444
      %v6108 = vunpack.c.l.b16 %v5445
      %v6109 = vunpack.c.h.b16 %v5445
      %v6110 = vunpack.c.l.b16 %v5446
      %v6111 = vunpack.c.h.b16 %v5446
      %v6112 = vunpack.c.l.b16 %v5447
      %v6113 = vunpack.c.h.b16 %v5447
      %v6114 = vunpack.c.l.b16 %v5448
      %v6115 = vunpack.c.h.b16 %v5448
      %v6116 = vunpack.c.l.b16 %v5449
      %v6117 = vunpack.c.h.b16 %v5449
      %v6118 = vunpack.c.l.b16 %v5450
      %v6119 = vunpack.c.h.b16 %v5450
      %v6120 = vunpack.c.l.b16 %v5451
      %v6121 = vunpack.c.h.b16 %v5451
      %v6122 = vunpack.c.l.b16 %v5452
      %v6123 = vunpack.c.h.b16 %v5452
      %v6124 = vunpack.c.l.b16 %v5453
      %v6125 = vunpack.c.h.b16 %v5453
      %v6126 = vunpack.c.l.b16 %v5454
      %v6127 = vunpack.c.h.b16 %v5454
      %v6128 = vunpack.c.l.b16 %v5455
      %v6129 = vunpack.c.h.b16 %v5455
      %v6130 = vunpack.c.l.b16 %v5456
      %v6131 = vunpack.c.h.b16 %v5456
      %v6132 = vunpack.c.l.b16 %v5457
      %v6133 = vunpack.c.h.b16 %v5457
      %v6134 = vunpack.c.l.b16 %v5458
      %v6135 = vunpack.c.h.b16 %v5458
      %v6136 = vunpack.c.l.b16 %v5459
      %v6137 = vunpack.c.h.b16 %v5459
      %v6138 = vunpack.c.l.b16 %v5460
      %v6139 = vunpack.c.h.b16 %v5460
      %v6140 = vunpack.c.l.b16 %v5461
      %v6141 = vunpack.c.h.b16 %v5461
      %v6142 = vunpack.c.l.b16 %v5462
      %v6143 = vunpack.c.h.b16 %v5462
      %v6144 = vunpack.c.l.b16 %v5463
      %v6145 = vunpack.c.h.b16 %v5463
      %v6146 = vunpack.c.l.b16 %v5464
      %v6147 = vunpack.c.h.b16 %v5464
      %v6148 = vunpack.c.l.b16 %v5465
      %v6149 = vunpack.c.h.b16 %v5465
      %v6150 = vunpack.c.l.b16 %v5466
      %v6151 = vunpack.c.h.b16 %v5466
      %v6152 = vunpack.c.l.b16 %v5467
      %v6153 = vunpack.c.h.b16 %v5467
      %v6154 = vunpack.c.l.b16 %v5468
      %v6155 = vunpack.c.h.b16 %v5468
      %v6156 = vunpack.c.l.b16 %v5469
      %v6157 = vunpack.c.h.b16 %v5469
      %v6158 = vunpack.c.l.b16 %v5470
      %v6159 = vunpack.c.h.b16 %v5470
      %v6160 = vunpack.c.l.b16 %v5471
      %v6161 = vunpack.c.h.b16 %v5471
      %v6162 = vunpack.c.l.b16 %v5472
      %v6163 = vunpack.c.h.b16 %v5472
      %v6164 = vunpack.c.l.b16 %v5473
      %v6165 = vunpack.c.h.b16 %v5473
      %v6166 = vunpack.c.l.b16 %v5474
      %v6167 = vunpack.c.h.b16 %v5474
      %v6168 = vunpack.c.l.b16 %v5475
      %v6169 = vunpack.c.h.b16 %v5475
      %v6170 = vunpack.c.l.b16 %v5476
      %v6171 = vunpack.c.h.b16 %v5476
      %v6172 = vunpack.c.l.b16 %v5477
      %v6173 = vunpack.c.h.b16 %v5477
      %v6174 = vunpack.c.l.b16 %v5478
      %v6175 = vunpack.c.h.b16 %v5478
      %v6176 = vunpack.c.l.b16 %v5479
      %v6177 = vunpack.c.h.b16 %v5479
      %v6178 = vunpack.c.l.b16 %v5480
      %v6179 = vunpack.c.h.b16 %v5480
      %v6180 = vunpack.c.l.b16 %v5481
      %v6181 = vunpack.c.h.b16 %v5481
      %v6182 = vunpack.c.l.b16 %v5482
      %v6183 = vunpack.c.h.b16 %v5482
      %v6184 = vunpack.c.l.b16 %v5483
      %v6185 = vunpack.c.h.b16 %v5483
      %v6186 = vunpack.c.l.b16 %v5484
      %v6187 = vunpack.c.h.b16 %v5484
      %v6188 = vunpack.c.l.b16 %v5485
      %v6189 = vunpack.c.h.b16 %v5485
      %v6190 = vunpack.c.l.b16 %v5486
      %v6191 = vunpack.c.h.b16 %v5486
      %v6192 = vunpack.c.l.b16 %v5487
      %v6193 = vunpack.c.h.b16 %v5487
      %v6194 = vunpack.c.l.b16 %v5488
      %v6195 = vunpack.c.h.b16 %v5488
      %v6196 = vunpack.c.l.b16 %v5489
      %v6197 = vunpack.c.h.b16 %v5489
      %v6198 = vunpack.c.l.b16 %v5490
      %v6199 = vunpack.c.h.b16 %v5490
      %v6200 = vunpack.c.l.b16 %v5491
      %v6201 = vunpack.c.h.b16 %v5491
      %v6202 = vunpack.c.l.b16 %v5492
      %v6203 = vunpack.c.h.b16 %v5492
      %v6204 = vunpack.c.l.b16 %v5493
      %v6205 = vunpack.c.h.b16 %v5493
      %v6206 = vunpack.c.l.b16 %v5494
      %v6207 = vunpack.c.h.b16 %v5494
      %v6208 = vunpack.c.l.b16 %v5495
      %v6209 = vunpack.c.h.b16 %v5495
      %v6210 = vunpack.c.l.b16 %v5496
      %v6211 = vunpack.c.h.b16 %v5496
      %v6212 = vunpack.c.l.b16 %v5497
      %v6213 = vunpack.c.h.b16 %v5497
      %v6214 = vunpack.c.l.b16 %v5498
      %v6215 = vunpack.c.h.b16 %v5498
      %v6216 = vunpack.c.l.b16 %v5499
      %v6217 = vunpack.c.h.b16 %v5499
      %v6218 = vunpack.c.l.b16 %v5500
      %v6219 = vunpack.c.h.b16 %v5500
      %v6220 = vunpack.c.l.b16 %v5501
      %v6221 = vunpack.c.h.b16 %v5501
      %v6222 = vunpack.c.l.b16 %v5502
      %v6223 = vunpack.c.h.b16 %v5502
      %v6224 = vunpack.c.l.b16 %v5503
      %v6225 = vunpack.c.h.b16 %v5503
      %v6226 = vunpack.c.l.b16 %v5504
      %v6227 = vunpack.c.h.b16 %v5504
      %v6228 = vunpack.c.l.b16 %v5505
      %v6229 = vunpack.c.h.b16 %v5505
      %v6230 = vunpack.c.l.b16 %v5506
      %v6231 = vunpack.c.h.b16 %v5506
      %v6232 = vunpack.c.l.b16 %v5507
      %v6233 = vunpack.c.h.b16 %v5507
      %v6234 = vunpack.c.l.b16 %v5508
      %v6235 = vunpack.c.h.b16 %v5508
      %v6236 = vunpack.c.l.b16 %v5509
      %v6237 = vunpack.c.h.b16 %v5509
      %v6238 = vunpack.c.l.b16 %v5510
      %v6239 = vunpack.c.h.b16 %v5510
      %v6240 = vunpack.c.l.b16 %v5511
      %v6241 = vunpack.c.h.b16 %v5511
      %v6242 = vunpack.c.l.b16 %v5512
      %v6243 = vunpack.c.h.b16 %v5512
      %v6244 = vunpack.c.l.b16 %v5513
      %v6245 = vunpack.c.h.b16 %v5513
      %v6246 = vpack.c.b16 %v5768, %v5766
      %v6247 = vpack.c.b16 %v5769, %v5767
      %v6248 = vpack.c.b16 %v5772, %v5770
      %v6249 = vpack.c.b16 %v5773, %v5771
      %v6250 = vpack.c.b16 %v5776, %v5774
      %v6251 = vpack.c.b16 %v5777, %v5775
      %v6252 = vpack.c.b16 %v5780, %v5778
      %v6253 = vpack.c.b16 %v5781, %v5779
      %v6254 = vpack.c.b16 %v5784, %v5782
      %v6255 = vpack.c.b16 %v5785, %v5783
      %v6256 = vpack.c.b16 %v5788, %v5786
      %v6257 = vpack.c.b16 %v5789, %v5787
      %v6258 = vpack.c.b16 %v5792, %v5790
      %v6259 = vpack.c.b16 %v5793, %v5791
      %v6260 = vpack.c.b16 %v5796, %v5794
      %v6261 = vpack.c.b16 %v5797, %v5795
      %v6262 = vpack.c.b16 %v5800, %v5798
      %v6263 = vpack.c.b16 %v5801, %v5799
      %v6264 = vpack.c.b16 %v5804, %v5802
      %v6265 = vpack.c.b16 %v5805, %v5803
      %v6266 = vpack.c.b16 %v5808, %v5806
      %v6267 = vpack.c.b16 %v5809, %v5807
      %v6268 = vpack.c.b16 %v5812, %v5810
      %v6269 = vpack.c.b16 %v5813, %v5811
      %v6270 = vpack.c.b16 %v5816, %v5814
      %v6271 = vpack.c.b16 %v5817, %v5815
      %v6272 = vpack.c.b16 %v5820, %v5818
      %v6273 = vpack.c.b16 %v5821, %v5819
      %v6274 = vpack.c.b16 %v5824, %v5822
      %v6275 = vpack.c.b16 %v5825, %v5823
      %v6276 = vpack.c.b16 %v5828, %v5826
      %v6277 = vpack.c.b16 %v5829, %v5827
      %v6278 = vpack.c.b16 %v5832, %v5830
      %v6279 = vpack.c.b16 %v5833, %v5831
      %v6280 = vpack.c.b16 %v5836, %v5834
      %v6281 = vpack.c.b16 %v5837, %v5835
      %v6282 = vpack.c.b16 %v5840, %v5838
      %v6283 = vpack.c.b16 %v5841, %v5839
      %v6284 = vpack.c.b16 %v5844, %v5842
      %v6285 = vpack.c.b16 %v5845, %v5843
      %v6286 = vpack.c.b16 %v5848, %v5846
      %v6287 = vpack.c.b16 %v5849, %v5847
      %v6288 = vpack.c.b16 %v5852, %v5850
      %v6289 = vpack.c.b16 %v5853, %v5851
      %v6290 = vpack.c.b16 %v5856, %v5854
      %v6291 = vpack.c.b16 %v5857, %v5855
      %v6292 = vpack.c.b16 %v5860, %v5858
      %v6293 = vpack.c.b16 %v5861, %v5859
      %v6294 = vpack.c.b16 %v5864, %v5862
      %v6295 = vpack.c.b16 %v5865, %v5863
      %v6296 = vpack.c.b16 %v5868, %v5866
      %v6297 = vpack.c.b16 %v5869, %v5867
      %v6298 = vpack.c.b16 %v5872, %v5870
      %v6299 = vpack.c.b16 %v5873, %v5871
      %v6300 = vpack.c.b16 %v5876, %v5874
      %v6301 = vpack.c.b16 %v5877, %v5875
      %v6302 = vpack.c.b16 %v5880, %v5878
      %v6303 = vpack.c.b16 %v5881, %v5879
      %v6304 = vpack.c.b16 %v5884, %v5882
      %v6305 = vpack.c.b16 %v5885, %v5883
      %v6306 = vpack.c.b16 %v5888, %v5886
      %v6307 = vpack.c.b16 %v5889, %v5887
      %v6308 = vpack.c.b16 %v5892, %v5890
      %v6309 = vpack.c.b16 %v5893, %v5891
      %v6310 = vpack.c.b16 %v5896, %v5894
      %v6311 = vpack.c.b16 %v5897, %v5895
      %v6312 = vpack.c.b16 %v5900, %v5898
      %v6313 = vpack.c.b16 %v5901, %v5899
      %v6314 = vpack.c.b16 %v5904, %v5902
      %v6315 = vpack.c.b16 %v5905, %v5903
      %v6316 = vpack.c.b16 %v5908, %v5906
      %v6317 = vpack.c.b16 %v5909, %v5907
      %v6318 = vpack.c.b16 %v5912, %v5910
      %v6319 = vpack.c.b16 %v5913, %v5911
      %v6320 = vpack.c.b16 %v5916, %v5914
      %v6321 = vpack.c.b16 %v5917, %v5915
      %v6322 = vpack.c.b16 %v5920, %v5918
      %v6323 = vpack.c.b16 %v5921, %v5919
      %v6324 = vpack.c.b16 %v5924, %v5922
      %v6325 = vpack.c.b16 %v5925, %v5923
      %v6326 = vpack.c.b16 %v5928, %v5926
      %v6327 = vpack.c.b16 %v5929, %v5927
      %v6328 = vpack.c.b16 %v5932, %v5930
      %v6329 = vpack.c.b16 %v5933, %v5931
      %v6330 = vpack.c.b16 %v5936, %v5934
      %v6331 = vpack.c.b16 %v5937, %v5935
      %v6332 = vpack.c.b16 %v5940, %v5938
      %v6333 = vpack.c.b16 %v5941, %v5939
      %v6334 = vpack.c.b16 %v5944, %v5942
      %v6335 = vpack.c.b16 %v5945, %v5943
      %v6336 = vpack.c.b16 %v5948, %v5946
      %v6337 = vpack.c.b16 %v5949, %v5947
      %v6338 = vpack.c.b16 %v5952, %v5950
      %v6339 = vpack.c.b16 %v5953, %v5951
      %v6340 = vpack.c.b16 %v5956, %v5954
      %v6341 = vpack.c.b16 %v5957, %v5955
      %v6342 = vpack.c.b16 %v5960, %v5958
      %v6343 = vpack.c.b16 %v5961, %v5959
      %v6344 = vpack.c.b16 %v5964, %v5962
      %v6345 = vpack.c.b16 %v5965, %v5963
      %v6346 = vpack.c.b16 %v5968, %v5966
      %v6347 = vpack.c.b16 %v5969, %v5967
      %v6348 = vpack.c.b16 %v5972, %v5970
      %v6349 = vpack.c.b16 %v5973, %v5971
      %v6350 = vpack.c.b16 %v5976, %v5974
      %v6351 = vpack.c.b16 %v5977, %v5975
      %v6352 = vpack.c.b16 %v5980, %v5978
      %v6353 = vpack.c.b16 %v5981, %v5979
      %v6354 = vpack.c.b16 %v5984, %v5982
      %v6355 = vpack.c.b16 %v5985, %v5983
      %v6356 = vpack.c.b16 %v5988, %v5986
      %v6357 = vpack.c.b16 %v5989, %v5987
      %v6358 = vpack.c.b16 %v5992, %v5990
      %v6359 = vpack.c.b16 %v5993, %v5991
      %v6360 = vpack.c.b16 %v5996, %v5994
      %v6361 = vpack.c.b16 %v5997, %v5995
      %v6362 = vpack.c.b16 %v6000, %v5998
      %v6363 = vpack.c.b16 %v6001, %v5999
      %v6364 = vpack.c.b16 %v6004, %v6002
      %v6365 = vpack.c.b16 %v6005, %v6003
      %v6366 = vpack.c.b16 %v6008, %v6006
      %v6367 = vpack.c.b16 %v6009, %v6007
      %v6368 = vpack.c.b16 %v6012, %v6010
      %v6369 = vpack.c.b16 %v6013, %v6011
      %v6370 = vpack.c.b16 %v6016, %v6014
      %v6371 = vpack.c.b16 %v6017, %v6015
      %v6372 = vpack.c.b16 %v6020, %v6018
      %v6373 = vpack.c.b16 %v6021, %v6019
      %v6374 = vpack.c.b16 %v6024, %v6022
      %v6375 = vpack.c.b16 %v6025, %v6023
      %v6376 = vpack.c.b16 %v6028, %v6026
      %v6377 = vpack.c.b16 %v6029, %v6027
      %v6378 = vpack.c.b16 %v6032, %v6030
      %v6379 = vpack.c.b16 %v6033, %v6031
      %v6380 = vpack.c.b16 %v6036, %v6034
      %v6381 = vpack.c.b16 %v6037, %v6035
      %v6382 = vpack.c.b16 %v6040, %v6038
      %v6383 = vpack.c.b16 %v6041, %v6039
      %v6384 = vpack.c.b16 %v6044, %v6042
      %v6385 = vpack.c.b16 %v6045, %v6043
      %v6386 = vpack.c.b16 %v6048, %v6046
      %v6387 = vpack.c.b16 %v6049, %v6047
      %v6388 = vpack.c.b16 %v6052, %v6050
      %v6389 = vpack.c.b16 %v6053, %v6051
      %v6390 = vpack.c.b16 %v6056, %v6054
      %v6391 = vpack.c.b16 %v6057, %v6055
      %v6392 = vpack.c.b16 %v6060, %v6058
      %v6393 = vpack.c.b16 %v6061, %v6059
      %v6394 = vpack.c.b16 %v6064, %v6062
      %v6395 = vpack.c.b16 %v6065, %v6063
      %v6396 = vpack.c.b16 %v6068, %v6066
      %v6397 = vpack.c.b16 %v6069, %v6067
      %v6398 = vpack.c.b16 %v6072, %v6070
      %v6399 = vpack.c.b16 %v6073, %v6071
      %v6400 = vpack.c.b16 %v6076, %v6074
      %v6401 = vpack.c.b16 %v6077, %v6075
      %v6402 = vpack.c.b16 %v6080, %v6078
      %v6403 = vpack.c.b16 %v6081, %v6079
      %v6404 = vpack.c.b16 %v6084, %v6082
      %v6405 = vpack.c.b16 %v6085, %v6083
      %v6406 = vpack.c.b16 %v6088, %v6086
      %v6407 = vpack.c.b16 %v6089, %v6087
      %v6408 = vpack.c.b16 %v6092, %v6090
      %v6409 = vpack.c.b16 %v6093, %v6091
      %v6410 = vpack.c.b16 %v6096, %v6094
      %v6411 = vpack.c.b16 %v6097, %v6095
      %v6412 = vpack.c.b16 %v6100, %v6098
      %v6413 = vpack.c.b16 %v6101, %v6099
      %v6414 = vpack.c.b16 %v6104, %v6102
      %v6415 = vpack.c.b16 %v6105, %v6103
      %v6416 = vpack.c.b16 %v6108, %v6106
      %v6417 = vpack.c.b16 %v6109, %v6107
      %v6418 = vpack.c.b16 %v6112, %v6110
      %v6419 = vpack.c.b16 %v6113, %v6111
      %v6420 = vpack.c.b16 %v6116, %v6114
      %v6421 = vpack.c.b16 %v6117, %v6115
      %v6422 = vpack.c.b16 %v6120, %v6118
      %v6423 = vpack.c.b16 %v6121, %v6119
      %v6424 = vpack.c.b16 %v6124, %v6122
      %v6425 = vpack.c.b16 %v6125, %v6123
      %v6426 = vpack.c.b16 %v6128, %v6126
      %v6427 = vpack.c.b16 %v6129, %v6127
      %v6428 = vpack.c.b16 %v6132, %v6130
      %v6429 = vpack.c.b16 %v6133, %v6131
      %v6430 = vpack.c.b16 %v6136, %v6134
      %v6431 = vpack.c.b16 %v6137, %v6135
      %v6432 = vpack.c.b16 %v6140, %v6138
      %v6433 = vpack.c.b16 %v6141, %v6139
      %v6434 = vpack.c.b16 %v6144, %v6142
      %v6435 = vpack.c.b16 %v6145, %v6143
      %v6436 = vpack.c.b16 %v6148, %v6146
      %v6437 = vpack.c.b16 %v6149, %v6147
      %v6438 = vpack.c.b16 %v6152, %v6150
      %v6439 = vpack.c.b16 %v6153, %v6151
      %v6440 = vpack.c.b16 %v6156, %v6154
      %v6441 = vpack.c.b16 %v6157, %v6155
      %v6442 = vpack.c.b16 %v6160, %v6158
      %v6443 = vpack.c.b16 %v6161, %v6159
      %v6444 = vpack.c.b16 %v6164, %v6162
      %v6445 = vpack.c.b16 %v6165, %v6163
      %v6446 = vpack.c.b16 %v6168, %v6166
      %v6447 = vpack.c.b16 %v6169, %v6167
      %v6448 = vpack.c.b16 %v6172, %v6170
      %v6449 = vpack.c.b16 %v6173, %v6171
      %v6450 = vpack.c.b16 %v6176, %v6174
      %v6451 = vpack.c.b16 %v6177, %v6175
      %v6452 = vpack.c.b16 %v6180, %v6178
      %v6453 = vpack.c.b16 %v6181, %v6179
      %v6454 = vpack.c.b16 %v6184, %v6182
      %v6455 = vpack.c.b16 %v6185, %v6183
      %v6456 = vpack.c.b16 %v6188, %v6186
      %v6457 = vpack.c.b16 %v6189, %v6187
      %v6458 = vpack.c.b16 %v6192, %v6190
      %v6459 = vpack.c.b16 %v6193, %v6191
      %v6460 = vpack.c.b16 %v6196, %v6194
      %v6461 = vpack.c.b16 %v6197, %v6195
      %v6462 = vpack.c.b16 %v6200, %v6198
      %v6463 = vpack.c.b16 %v6201, %v6199
      %v6464 = vpack.c.b16 %v6204, %v6202
      %v6465 = vpack.c.b16 %v6205, %v6203
      %v6466 = vpack.c.b16 %v6208, %v6206
      %v6467 = vpack.c.b16 %v6209, %v6207
      %v6468 = vpack.c.b16 %v6212, %v6210
      %v6469 = vpack.c.b16 %v6213, %v6211
      %v6470 = vpack.c.b16 %v6216, %v6214
      %v6471 = vpack.c.b16 %v6217, %v6215
      %v6472 = vpack.c.b16 %v6220, %v6218
      %v6473 = vpack.c.b16 %v6221, %v6219
      %v6474 = vpack.c.b16 %v6224, %v6222
      %v6475 = vpack.c.b16 %v6225, %v6223
      %v6476 = vpack.c.b16 %v6228, %v6226
      %v6477 = vpack.c.b16 %v6229, %v6227
      %v6478 = vpack.c.b16 %v6232, %v6230
      %v6479 = vpack.c.b16 %v6233, %v6231
      %v6480 = vpack.c.b16 %v6236, %v6234
      %v6481 = vpack.c.b16 %v6237, %v6235
      %v6482 = vpack.c.b16 %v6240, %v6238
      %v6483 = vpack.c.b16 %v6241, %v6239
      %v6484 = vpack.c.b16 %v6244, %v6242
      %v6485 = vpack.c.b16 %v6245, %v6243
      %6726 = vmatprep.subr.bf16.mxu0 %v6247
      %6727 = vmatpush1.bf16.msra.mxu0 %v6246
      %6728 = vmatprep.subr.bf16.mxu0 %v6249
      %6729 = vmatpush1.bf16.msra.mxu0 %v6248
      %6730 = vmatprep.subr.bf16.mxu0 %v6251
      %6731 = vmatpush1.bf16.msra.mxu0 %v6250
      %6732 = vmatprep.subr.bf16.mxu0 %v6253
      %6733 = vmatpush1.bf16.msra.mxu0 %v6252
      %6734 = vmatprep.subr.bf16.mxu0 %v6255
      %6735 = vmatpush1.bf16.msra.mxu0 %v6254
      %6736 = vmatprep.subr.bf16.mxu0 %v6257
      %6737 = vmatpush1.bf16.msra.mxu0 %v6256
      %6738 = vmatprep.subr.bf16.mxu0 %v6259
      %6739 = vmatpush1.bf16.msra.mxu0 %v6258
      %6740 = vmatprep.subr.bf16.mxu0 %v6261
      %6741 = vmatpush1.bf16.msra.mxu0 %v6260
      %6742 = vmatprep.subr.bf16.mxu0 %v6263
      %6743 = vmatpush1.bf16.msra.mxu0 %v6262
      %6744 = vmatprep.subr.bf16.mxu0 %v6265
      %6745 = vmatpush1.bf16.msra.mxu0 %v6264
      %6746 = vmatprep.subr.bf16.mxu0 %v6267
      %6747 = vmatpush1.bf16.msra.mxu0 %v6266
      %6748 = vmatprep.subr.bf16.mxu0 %v6269
      %6749 = vmatpush1.bf16.msra.mxu0 %v6268
      %6750 = vmatprep.subr.bf16.mxu0 %v6271
      %6751 = vmatpush1.bf16.msra.mxu0 %v6270
      %6752 = vmatprep.subr.bf16.mxu0 %v6273
      %6753 = vmatpush1.bf16.msra.mxu0 %v6272
      %6754 = vmatprep.subr.bf16.mxu0 %v6275
      %6755 = vmatpush1.bf16.msra.mxu0 %v6274
      %6756 = vmatprep.subr.bf16.mxu0 %v6277
      %6757 = vmatpush1.bf16.msra.mxu0 %v6276
      %6758 = vmatprep.mubr.bf16.mxu0 %v4463
      %6759 = vmatmul.mubr.bf16.gmra.mrb[0].mxu0 %v4462
      %v6760 = vpop.f32.mrb[0].mxu0
      %v6761 = vadd.f32 %v5519, %v6760
      %v6762 = vpop.f32.mrb[0].mxu0
      %v6763 = vadd.f32 %v5523, %v6762
      %v6764 = vpop.f32.mrb[0].mxu0
      %v6765 = vadd.f32 %v5519, %v6764
      %v6766 = vpop.f32.mrb[0].mxu0
      %v6767 = vadd.f32 %v5523, %v6766
      %6768 = vmatprep.mubr.bf16.mxu0 %v4466
      %6769 = vmatmul.mubr.bf16.gmra.mrb[0].mxu0 %v4465
      %v6770 = vpop.f32.mrb[0].mxu0
      %v6771 = vadd.f32 %v5519, %v6770
      %v6772 = vpop.f32.mrb[0].mxu0
      %v6773 = vadd.f32 %v5523, %v6772
      %v6774 = vpop.f32.mrb[0].mxu0
      %v6775 = vadd.f32 %v5519, %v6774
      %v6776 = vpop.f32.mrb[0].mxu0
      %v6777 = vadd.f32 %v5523, %v6776
      %6778 = vmatprep.mubr.bf16.mxu0 %v4469
      %6779 = vmatmul.mubr.bf16.gmra.mrb[0].mxu0 %v4468
      %v6780 = vpop.f32.mrb[0].mxu0
      %v6781 = vadd.f32 %v5519, %v6780
      %v6782 = vpop.f32.mrb[0].mxu0
      %v6783 = vadd.f32 %v5523, %v6782
      %v6784 = vpop.f32.mrb[0].mxu0
      %v6785 = vadd.f32 %v5519, %v6784
      %v6786 = vpop.f32.mrb[0].mxu0
      %v6787 = vadd.f32 %v5523, %v6786
      %6788 = vmatprep.mubr.bf16.mxu0 %v4472
      %6789 = vmatmul.mubr.bf16.gmra.mrb[0].mxu0 %v4471
      %v6790 = vpop.f32.mrb[0].mxu0
      %v6791 = vadd.f32 %v5519, %v6790
      %v6792 = vpop.f32.mrb[0].mxu0
      %v6793 = vadd.f32 %v5523, %v6792
      %v6794 = vpop.f32.mrb[0].mxu0
      %v6795 = vpop.f32.mrb[0].mxu0
      %6796 = vdwg.mxu0
      %6797 = vmatprep.subr.bf16.mxu0 %v6279
      %6798 = vmatpush1.bf16.msra.mxu0 %v6278
      %6799 = vmatprep.subr.bf16.mxu0 %v6281
      %6800 = vmatpush1.bf16.msra.mxu0 %v6280
      %6801 = vmatprep.subr.bf16.mxu0 %v6283
      %6802 = vmatpush1.bf16.msra.mxu0 %v6282
      %6803 = vmatprep.subr.bf16.mxu0 %v6285
      %6804 = vmatpush1.bf16.msra.mxu0 %v6284
      %6805 = vmatprep.subr.bf16.mxu0 %v6287
      %6806 = vmatpush1.bf16.msra.mxu0 %v6286
      %6807 = vmatprep.subr.bf16.mxu0 %v6289
      %6808 = vmatpush1.bf16.msra.mxu0 %v6288
      %6809 = vmatprep.subr.bf16.mxu0 %v6291
      %6810 = vmatpush1.bf16.msra.mxu0 %v6290
      %6811 = vmatprep.subr.bf16.mxu0 %v6293
      %6812 = vmatpush1.bf16.msra.mxu0 %v6292
      %6813 = vmatprep.subr.bf16.mxu0 %v6295
      %6814 = vmatpush1.bf16.msra.mxu0 %v6294
      %6815 = vmatprep.subr.bf16.mxu0 %v6297
      %6816 = vmatpush1.bf16.msra.mxu0 %v6296
      %6817 = vmatprep.subr.bf16.mxu0 %v6299
      %6818 = vmatpush1.bf16.msra.mxu0 %v6298
      %6819 = vmatprep.subr.bf16.mxu0 %v6301
      %6820 = vmatpush1.bf16.msra.mxu0 %v6300
      %6821 = vmatprep.subr.bf16.mxu0 %v6303
      %6822 = vmatpush1.bf16.msra.mxu0 %v6302
      %6823 = vmatprep.subr.bf16.mxu0 %v6305
      %6824 = vmatpush1.bf16.msra.mxu0 %v6304
      %6825 = vmatprep.subr.bf16.mxu0 %v6307
      %6826 = vmatpush1.bf16.msra.mxu0 %v6306
      %6827 = vmatprep.subr.bf16.mxu0 %v6309
      %6828 = vmatpush1.bf16.msra.mxu0 %v6308
      %6829 = vmatprep.mubr.bf16.mxu0 %v4662
      %6830 = vmatmul.mubr.bf16.gmra.mrb[0].mxu0 %v4464
      %v6831 = vpop.f32.mrb[0].mxu0
      %v6832 = vadd.f32 %v6761, %v6831
      %v6833 = vpop.f32.mrb[0].mxu0
      %v6834 = vadd.f32 %v6763, %v6833
      %v6835 = vpop.f32.mrb[0].mxu0
      %v6836 = vadd.f32 %v6765, %v6835
      %v6837 = vpop.f32.mrb[0].mxu0
      %v6838 = vadd.f32 %v6767, %v6837
      %6839 = vmatprep.mubr.bf16.mxu0 %v4665
      %6840 = vmatmul.mubr.bf16.gmra.mrb[0].mxu0 %v4467
      %v6841 = vpop.f32.mrb[0].mxu0
      %v6842 = vadd.f32 %v6771, %v6841
      %v6843 = vpop.f32.mrb[0].mxu0
      %v6844 = vadd.f32 %v6773, %v6843
      %v6845 = vpop.f32.mrb[0].mxu0
      %v6846 = vadd.f32 %v6775, %v6845
      %v6847 = vpop.f32.mrb[0].mxu0
      %v6848 = vadd.f32 %v6777, %v6847
      %6849 = vmatprep.mubr.bf16.mxu0 %v4668
      %6850 = vmatmul.mubr.bf16.gmra.mrb[0].mxu0 %v4470
      %v6851 = vpop.f32.mrb[0].mxu0
      %v6852 = vadd.f32 %v6781, %v6851
      %v6853 = vpop.f32.mrb[0].mxu0
      %v6854 = vadd.f32 %v6783, %v6853
      %v6855 = vpop.f32.mrb[0].mxu0
      %v6856 = vadd.f32 %v6785, %v6855
      %v6857 = vpop.f32.mrb[0].mxu0
      %v6858 = vadd.f32 %v6787, %v6857
      %6859 = vmatprep.mubr.bf16.mxu0 %v4671
      %6860 = vmatmul.mubr.bf16.gmra.mrb[0].mxu0 %v4473
      %v6861 = vpop.f32.mrb[0].mxu0
      %v6862 = vadd.f32 %v6791, %v6861
      %v6863 = vpop.f32.mrb[0].mxu0
      %v6864 = vadd.f32 %v6793, %v6863
      %v6865 = vpop.f32.mrb[0].mxu0
      %v6866 = vpop.f32.mrb[0].mxu0
      %6867 = vdwg.mxu0
      %6868 = vmatprep.subr.bf16.mxu0 %v6311
      %6869 = vmatpush1.bf16.msra.mxu0 %v6310
      %6870 = vmatprep.subr.bf16.mxu0 %v6313
      %6871 = vmatpush1.bf16.msra.mxu0 %v6312
      %6872 = vmatprep.subr.bf16.mxu0 %v6315
      %6873 = vmatpush1.bf16.msra.mxu0 %v6314
      %6874 = vmatprep.subr.bf16.mxu0 %v6317
      %6875 = vmatpush1.bf16.msra.mxu0 %v6316
      %6876 = vmatprep.subr.bf16.mxu0 %v6319
      %6877 = vmatpush1.bf16.msra.mxu0 %v6318
      %6878 = vmatprep.subr.bf16.mxu0 %v6321
      %6879 = vmatpush1.bf16.msra.mxu0 %v6320
      %6880 = vmatprep.subr.bf16.mxu0 %v6323
      %6881 = vmatpush1.bf16.msra.mxu0 %v6322
      %6882 = vmatprep.subr.bf16.mxu0 %v6325
      %6883 = vmatpush1.bf16.msra.mxu0 %v6324
      %6884 = vmatprep.subr.bf16.mxu0 %v6327
      %6885 = vmatpush1.bf16.msra.mxu0 %v6326
      %6886 = vmatprep.subr.bf16.mxu0 %v6329
      %6887 = vmatpush1.bf16.msra.mxu0 %v6328
      %6888 = vmatprep.subr.bf16.mxu0 %v6331
      %6889 = vmatpush1.bf16.msra.mxu0 %v6330
      %6890 = vmatprep.subr.bf16.mxu0 %v6333
      %6891 = vmatpush1.bf16.msra.mxu0 %v6332
      %6892 = vmatprep.subr.bf16.mxu0 %v6335
      %6893 = vmatpush1.bf16.msra.mxu0 %v6334
      %6894 = vmatprep.subr.bf16.mxu0 %v6337
      %6895 = vmatpush1.bf16.msra.mxu0 %v6336
      %6896 = vmatprep.subr.bf16.mxu0 %v6339
      %6897 = vmatpush1.bf16.msra.mxu0 %v6338
      %6898 = vmatprep.subr.bf16.mxu0 %v6341
      %6899 = vmatpush1.bf16.msra.mxu0 %v6340
      %6900 = vmatprep.mubr.bf16.mxu0 %v4664
      %6901 = vmatmul.mubr.bf16.gmra.mrb[0].mxu0 %v4663
      %v6902 = vpop.f32.mrb[0].mxu0
      %v6903 = vadd.f32 %v6832, %v6902
      %v6904 = vpop.f32.mrb[0].mxu0
      %v6905 = vadd.f32 %v6834, %v6904
      %v6906 = vpop.f32.mrb[0].mxu0
      %v6907 = vadd.f32 %v6836, %v6906
      %v6908 = vpop.f32.mrb[0].mxu0
      %v6909 = vadd.f32 %v6838, %v6908
      %6910 = vmatprep.mubr.bf16.mxu0 %v4667
      %6911 = vmatmul.mubr.bf16.gmra.mrb[0].mxu0 %v4666
      %v6912 = vpop.f32.mrb[0].mxu0
      %v6913 = vadd.f32 %v6842, %v6912
      %v6914 = vpop.f32.mrb[0].mxu0
      %v6915 = vadd.f32 %v6844, %v6914
      %v6916 = vpop.f32.mrb[0].mxu0
      %v6917 = vadd.f32 %v6846, %v6916
      %v6918 = vpop.f32.mrb[0].mxu0
      %v6919 = vadd.f32 %v6848, %v6918
      %6920 = vmatprep.mubr.bf16.mxu0 %v4670
      %6921 = vmatmul.mubr.bf16.gmra.mrb[0].mxu0 %v4669
      %v6922 = vpop.f32.mrb[0].mxu0
      %v6923 = vadd.f32 %v6852, %v6922
      %v6924 = vpop.f32.mrb[0].mxu0
      %v6925 = vadd.f32 %v6854, %v6924
      %v6926 = vpop.f32.mrb[0].mxu0
      %v6927 = vadd.f32 %v6856, %v6926
      %v6928 = vpop.f32.mrb[0].mxu0
      %v6929 = vadd.f32 %v6858, %v6928
      %6930 = vmatprep.mubr.bf16.mxu0 %v4673
      %6931 = vmatmul.mubr.bf16.gmra.mrb[0].mxu0 %v4672
      %v6932 = vpop.f32.mrb[0].mxu0
      %v6933 = vadd.f32 %v6862, %v6932
      %v6934 = vpop.f32.mrb[0].mxu0
      %v6935 = vadd.f32 %v6864, %v6934
      %v6936 = vpop.f32.mrb[0].mxu0
      %v6937 = vpop.f32.mrb[0].mxu0
      %6938 = vdwg.mxu0
      %6939 = vmatprep.subr.bf16.mxu0 %v6343
      %6940 = vmatpush1.bf16.msra.mxu0 %v6342
      %6941 = vmatprep.subr.bf16.mxu0 %v6345
      %6942 = vmatpush1.bf16.msra.mxu0 %v6344
      %6943 = vmatprep.subr.bf16.mxu0 %v6347
      %6944 = vmatpush1.bf16.msra.mxu0 %v6346
      %6945 = vmatprep.subr.bf16.mxu0 %v6349
      %6946 = vmatpush1.bf16.msra.mxu0 %v6348
      %6947 = vmatprep.subr.bf16.mxu0 %v6351
      %6948 = vmatpush1.bf16.msra.mxu0 %v6350
      %6949 = vmatprep.subr.bf16.mxu0 %v6353
      %6950 = vmatpush1.bf16.msra.mxu0 %v6352
      %6951 = vmatprep.subr.bf16.mxu0 %v6355
      %6952 = vmatpush1.bf16.msra.mxu0 %v6354
      %6953 = vmatprep.subr.bf16.mxu0 %v6357
      %6954 = vmatpush1.bf16.msra.mxu0 %v6356
      %6955 = vmatprep.subr.bf16.mxu0 %v6359
      %6956 = vmatpush1.bf16.msra.mxu0 %v6358
      %6957 = vmatprep.subr.bf16.mxu0 %v6361
      %6958 = vmatpush1.bf16.msra.mxu0 %v6360
      %6959 = vmatprep.subr.bf16.mxu0 %v6363
      %6960 = vmatpush1.bf16.msra.mxu0 %v6362
      %6961 = vmatprep.subr.bf16.mxu0 %v6365
      %6962 = vmatpush1.bf16.msra.mxu0 %v6364
      %6963 = vmatprep.subr.bf16.mxu0 %v6367
      %6964 = vmatpush1.bf16.msra.mxu0 %v6366
      %6965 = vmatprep.subr.bf16.mxu0 %v6369
      %6966 = vmatpush1.bf16.msra.mxu0 %v6368
      %6967 = vmatprep.subr.bf16.mxu0 %v6371
      %6968 = vmatpush1.bf16.msra.mxu0 %v6370
      %6969 = vmatprep.subr.bf16.mxu0 %v6373
      %6970 = vmatpush1.bf16.msra.mxu0 %v6372
      %6971 = vmatprep.mubr.bf16.mxu0 %v4863
      %6972 = vmatmul.mubr.bf16.gmra.mrb[0].mxu0 %v4862
      %v6973 = vpop.f32.mrb[0].mxu0
      %v6974 = vadd.f32 %v6903, %v6973
      %v6975 = vpop.f32.mrb[0].mxu0
      %v6976 = vadd.f32 %v6905, %v6975
      %v6977 = vpop.f32.mrb[0].mxu0
      %v6978 = vadd.f32 %v6907, %v6977
      %v6979 = vpop.f32.mrb[0].mxu0
      %v6980 = vadd.f32 %v6909, %v6979
      %6981 = vmatprep.mubr.bf16.mxu0 %v4866
      %6982 = vmatmul.mubr.bf16.gmra.mrb[0].mxu0 %v4865
      %v6983 = vpop.f32.mrb[0].mxu0
      %v6984 = vadd.f32 %v6913, %v6983
      %v6985 = vpop.f32.mrb[0].mxu0
      %v6986 = vadd.f32 %v6915, %v6985
      %v6987 = vpop.f32.mrb[0].mxu0
      %v6988 = vadd.f32 %v6917, %v6987
      %v6989 = vpop.f32.mrb[0].mxu0
      %v6990 = vadd.f32 %v6919, %v6989
      %6991 = vmatprep.mubr.bf16.mxu0 %v4869
      %6992 = vmatmul.mubr.bf16.gmra.mrb[0].mxu0 %v4868
      %v6993 = vpop.f32.mrb[0].mxu0
      %v6994 = vadd.f32 %v6923, %v6993
      %v6995 = vpop.f32.mrb[0].mxu0
      %v6996 = vadd.f32 %v6925, %v6995
      %v6997 = vpop.f32.mrb[0].mxu0
      %v6998 = vadd.f32 %v6927, %v6997
      %v6999 = vpop.f32.mrb[0].mxu0
      %v7000 = vadd.f32 %v6929, %v6999
      %7001 = vmatprep.mubr.bf16.mxu0 %v4872
      %7002 = vmatmul.mubr.bf16.gmra.mrb[0].mxu0 %v4871
      %v7003 = vpop.f32.mrb[0].mxu0
      %v7004 = vadd.f32 %v6933, %v7003
      %v7005 = vpop.f32.mrb[0].mxu0
      %v7006 = vadd.f32 %v6935, %v7005
      %v7007 = vpop.f32.mrb[0].mxu0
      %v7008 = vpop.f32.mrb[0].mxu0
      %7009 = vdwg.mxu0
      %7010 = vmatprep.subr.bf16.mxu0 %v6375
      %7011 = vmatpush1.bf16.msra.mxu0 %v6374
      %7012 = vmatprep.subr.bf16.mxu0 %v6377
      %7013 = vmatpush1.bf16.msra.mxu0 %v6376
      %7014 = vmatprep.subr.bf16.mxu0 %v6379
      %7015 = vmatpush1.bf16.msra.mxu0 %v6378
      %7016 = vmatprep.subr.bf16.mxu0 %v6381
      %7017 = vmatpush1.bf16.msra.mxu0 %v6380
      %7018 = vmatprep.subr.bf16.mxu0 %v6383
      %7019 = vmatpush1.bf16.msra.mxu0 %v6382
      %7020 = vmatprep.subr.bf16.mxu0 %v6385
      %7021 = vmatpush1.bf16.msra.mxu0 %v6384
      %7022 = vmatprep.subr.bf16.mxu0 %v6387
      %7023 = vmatpush1.bf16.msra.mxu0 %v6386
      %7024 = vmatprep.subr.bf16.mxu0 %v6389
      %7025 = vmatpush1.bf16.msra.mxu0 %v6388
      %7026 = vmatprep.subr.bf16.mxu0 %v6391
      %7027 = vmatpush1.bf16.msra.mxu0 %v6390
      %7028 = vmatprep.subr.bf16.mxu0 %v6393
      %7029 = vmatpush1.bf16.msra.mxu0 %v6392
      %7030 = vmatprep.subr.bf16.mxu0 %v6395
      %7031 = vmatpush1.bf16.msra.mxu0 %v6394
      %7032 = vmatprep.subr.bf16.mxu0 %v6397
      %7033 = vmatpush1.bf16.msra.mxu0 %v6396
      %7034 = vmatprep.subr.bf16.mxu0 %v6399
      %7035 = vmatpush1.bf16.msra.mxu0 %v6398
      %7036 = vmatprep.subr.bf16.mxu0 %v6401
      %7037 = vmatpush1.bf16.msra.mxu0 %v6400
      %7038 = vmatprep.subr.bf16.mxu0 %v6403
      %7039 = vmatpush1.bf16.msra.mxu0 %v6402
      %7040 = vmatprep.subr.bf16.mxu0 %v6405
      %7041 = vmatpush1.bf16.msra.mxu0 %v6404
      %7042 = vmatprep.mubr.bf16.mxu0 %v5062
      %7043 = vmatmul.mubr.bf16.gmra.mrb[0].mxu0 %v4864
      %v7044 = vpop.f32.mrb[0].mxu0
      %v7045 = vadd.f32 %v6974, %v7044
      %v7046 = vpop.f32.mrb[0].mxu0
      %v7047 = vadd.f32 %v6976, %v7046
      %v7048 = vpop.f32.mrb[0].mxu0
      %v7049 = vadd.f32 %v6978, %v7048
      %v7050 = vpop.f32.mrb[0].mxu0
      %v7051 = vadd.f32 %v6980, %v7050
      %7052 = vmatprep.mubr.bf16.mxu0 %v5065
      %7053 = vmatmul.mubr.bf16.gmra.mrb[0].mxu0 %v4867
      %v7054 = vpop.f32.mrb[0].mxu0
      %v7055 = vadd.f32 %v6984, %v7054
      %v7056 = vpop.f32.mrb[0].mxu0
      %v7057 = vadd.f32 %v6986, %v7056
      %v7058 = vpop.f32.mrb[0].mxu0
      %v7059 = vadd.f32 %v6988, %v7058
      %v7060 = vpop.f32.mrb[0].mxu0
      %v7061 = vadd.f32 %v6990, %v7060
      %7062 = vmatprep.mubr.bf16.mxu0 %v5068
      %7063 = vmatmul.mubr.bf16.gmra.mrb[0].mxu0 %v4870
      %v7064 = vpop.f32.mrb[0].mxu0
      %v7065 = vadd.f32 %v6994, %v7064
      %v7066 = vpop.f32.mrb[0].mxu0
      %v7067 = vadd.f32 %v6996, %v7066
      %v7068 = vpop.f32.mrb[0].mxu0
      %v7069 = vadd.f32 %v6998, %v7068
      %v7070 = vpop.f32.mrb[0].mxu0
      %v7071 = vadd.f32 %v7000, %v7070
      %7072 = vmatprep.mubr.bf16.mxu0 %v5071
      %7073 = vmatmul.mubr.bf16.gmra.mrb[0].mxu0 %v4873
      %v7074 = vpop.f32.mrb[0].mxu0
      %v7075 = vadd.f32 %v7004, %v7074
      %v7076 = vpop.f32.mrb[0].mxu0
      %v7077 = vadd.f32 %v7006, %v7076
      %v7078 = vpop.f32.mrb[0].mxu0
      %v7079 = vpop.f32.mrb[0].mxu0
      %7080 = vdwg.mxu0
      %7081 = vmatprep.subr.bf16.mxu0 %v6407
      %7082 = vmatpush1.bf16.msra.mxu0 %v6406
      %7083 = vmatprep.subr.bf16.mxu0 %v6409
      %7084 = vmatpush1.bf16.msra.mxu0 %v6408
      %7085 = vmatprep.subr.bf16.mxu0 %v6411
      %7086 = vmatpush1.bf16.msra.mxu0 %v6410
      %7087 = vmatprep.subr.bf16.mxu0 %v6413
      %7088 = vmatpush1.bf16.msra.mxu0 %v6412
      %7089 = vmatprep.subr.bf16.mxu0 %v6415
      %7090 = vmatpush1.bf16.msra.mxu0 %v6414
      %7091 = vmatprep.subr.bf16.mxu0 %v6417
      %7092 = vmatpush1.bf16.msra.mxu0 %v6416
      %7093 = vmatprep.subr.bf16.mxu0 %v6419
      %7094 = vmatpush1.bf16.msra.mxu0 %v6418
      %7095 = vmatprep.subr.bf16.mxu0 %v6421
      %7096 = vmatpush1.bf16.msra.mxu0 %v6420
      %7097 = vmatprep.subr.bf16.mxu0 %v6423
      %7098 = vmatpush1.bf16.msra.mxu0 %v6422
      %7099 = vmatprep.subr.bf16.mxu0 %v6425
      %7100 = vmatpush1.bf16.msra.mxu0 %v6424
      %7101 = vmatprep.subr.bf16.mxu0 %v6427
      %7102 = vmatpush1.bf16.msra.mxu0 %v6426
      %7103 = vmatprep.subr.bf16.mxu0 %v6429
      %7104 = vmatpush1.bf16.msra.mxu0 %v6428
      %7105 = vmatprep.subr.bf16.mxu0 %v6431
      %7106 = vmatpush1.bf16.msra.mxu0 %v6430
      %7107 = vmatprep.subr.bf16.mxu0 %v6433
      %7108 = vmatpush1.bf16.msra.mxu0 %v6432
      %7109 = vmatprep.subr.bf16.mxu0 %v6435
      %7110 = vmatpush1.bf16.msra.mxu0 %v6434
      %7111 = vmatprep.subr.bf16.mxu0 %v6437
      %7112 = vmatpush1.bf16.msra.mxu0 %v6436
      %7113 = vmatprep.mubr.bf16.mxu0 %v5064
      %7114 = vmatmul.mubr.bf16.gmra.mrb[0].mxu0 %v5063
      %v7115 = vpop.f32.mrb[0].mxu0
      %v7116 = vadd.f32 %v7045, %v7115
      %v7117 = vpop.f32.mrb[0].mxu0
      %v7118 = vadd.f32 %v7047, %v7117
      %v7119 = vpop.f32.mrb[0].mxu0
      %v7120 = vadd.f32 %v7049, %v7119
      %v7121 = vpop.f32.mrb[0].mxu0
      %v7122 = vadd.f32 %v7051, %v7121
      %7123 = vmatprep.mubr.bf16.mxu0 %v5067
      %7124 = vmatmul.mubr.bf16.gmra.mrb[0].mxu0 %v5066
      %v7125 = vpop.f32.mrb[0].mxu0
      %v7126 = vadd.f32 %v7055, %v7125
      %v7127 = vpop.f32.mrb[0].mxu0
      %v7128 = vadd.f32 %v7057, %v7127
      %v7129 = vpop.f32.mrb[0].mxu0
      %v7130 = vadd.f32 %v7059, %v7129
      %v7131 = vpop.f32.mrb[0].mxu0
      %v7132 = vadd.f32 %v7061, %v7131
      %7133 = vmatprep.mubr.bf16.mxu0 %v5070
      %7134 = vmatmul.mubr.bf16.gmra.mrb[0].mxu0 %v5069
      %v7135 = vpop.f32.mrb[0].mxu0
      %v7136 = vadd.f32 %v7065, %v7135
      %v7137 = vpop.f32.mrb[0].mxu0
      %v7138 = vadd.f32 %v7067, %v7137
      %v7139 = vpop.f32.mrb[0].mxu0
      %v7140 = vadd.f32 %v7069, %v7139
      %v7141 = vpop.f32.mrb[0].mxu0
      %v7142 = vadd.f32 %v7071, %v7141
      %7143 = vmatprep.mubr.bf16.mxu0 %v5073
      %7144 = vmatmul.mubr.bf16.gmra.mrb[0].mxu0 %v5072
      %v7145 = vpop.f32.mrb[0].mxu0
      %v7146 = vadd.f32 %v7075, %v7145
      %v7147 = vpop.f32.mrb[0].mxu0
      %v7148 = vadd.f32 %v7077, %v7147
      %v7149 = vpop.f32.mrb[0].mxu0
      %v7150 = vpop.f32.mrb[0].mxu0
      %7151 = vdwg.mxu0
      %7152 = vmatprep.subr.bf16.mxu0 %v6439
      %7153 = vmatpush1.bf16.msra.mxu0 %v6438
      %7154 = vmatprep.subr.bf16.mxu0 %v6441
      %7155 = vmatpush1.bf16.msra.mxu0 %v6440
      %7156 = vmatprep.subr.bf16.mxu0 %v6443
      %7157 = vmatpush1.bf16.msra.mxu0 %v6442
      %7158 = vmatprep.subr.bf16.mxu0 %v6445
      %7159 = vmatpush1.bf16.msra.mxu0 %v6444
      %7160 = vmatprep.subr.bf16.mxu0 %v6447
      %7161 = vmatpush1.bf16.msra.mxu0 %v6446
      %7162 = vmatprep.subr.bf16.mxu0 %v6449
      %7163 = vmatpush1.bf16.msra.mxu0 %v6448
      %7164 = vmatprep.subr.bf16.mxu0 %v6451
      %7165 = vmatpush1.bf16.msra.mxu0 %v6450
      %7166 = vmatprep.subr.bf16.mxu0 %v6453
      %7167 = vmatpush1.bf16.msra.mxu0 %v6452
      %7168 = vmatprep.subr.bf16.mxu0 %v6455
      %7169 = vmatpush1.bf16.msra.mxu0 %v6454
      %7170 = vmatprep.subr.bf16.mxu0 %v6457
      %7171 = vmatpush1.bf16.msra.mxu0 %v6456
      %7172 = vmatprep.subr.bf16.mxu0 %v6459
      %7173 = vmatpush1.bf16.msra.mxu0 %v6458
      %7174 = vmatprep.subr.bf16.mxu0 %v6461
      %7175 = vmatpush1.bf16.msra.mxu0 %v6460
      %7176 = vmatprep.subr.bf16.mxu0 %v6463
      %7177 = vmatpush1.bf16.msra.mxu0 %v6462
      %7178 = vmatprep.subr.bf16.mxu0 %v6465
      %7179 = vmatpush1.bf16.msra.mxu0 %v6464
      %7180 = vmatprep.subr.bf16.mxu0 %v6467
      %7181 = vmatpush1.bf16.msra.mxu0 %v6466
      %7182 = vmatprep.subr.bf16.mxu0 %v6469
      %7183 = vmatpush1.bf16.msra.mxu0 %v6468
      %7184 = vmatprep.mubr.bf16.mxu0 %v5263
      %7185 = vmatmul.mubr.bf16.gmra.mrb[0].mxu0 %v5262
      %v7186 = vpop.f32.mrb[0].mxu0
      %v7187 = vadd.f32 %v7116, %v7186
      %v7188 = vpop.f32.mrb[0].mxu0
      %v7189 = vadd.f32 %v7118, %v7188
      %v7190 = vpop.f32.mrb[0].mxu0
      %v7191 = vadd.f32 %v7120, %v7190
      %v7192 = vpop.f32.mrb[0].mxu0
      %v7193 = vadd.f32 %v7122, %v7192
      %7194 = vmatprep.mubr.bf16.mxu0 %v5266
      %7195 = vmatmul.mubr.bf16.gmra.mrb[0].mxu0 %v5265
      %v7196 = vpop.f32.mrb[0].mxu0
      %v7197 = vadd.f32 %v7126, %v7196
      %v7198 = vpop.f32.mrb[0].mxu0
      %v7199 = vadd.f32 %v7128, %v7198
      %v7200 = vpop.f32.mrb[0].mxu0
      %v7201 = vadd.f32 %v7130, %v7200
      %v7202 = vpop.f32.mrb[0].mxu0
      %v7203 = vadd.f32 %v7132, %v7202
      %7204 = vmatprep.mubr.bf16.mxu0 %v5269
      %7205 = vmatmul.mubr.bf16.gmra.mrb[0].mxu0 %v5268
      %v7206 = vpop.f32.mrb[0].mxu0
      %v7207 = vadd.f32 %v7136, %v7206
      %v7208 = vpop.f32.mrb[0].mxu0
      %v7209 = vadd.f32 %v7138, %v7208
      %v7210 = vpop.f32.mrb[0].mxu0
      %v7211 = vadd.f32 %v7140, %v7210
      %v7212 = vpop.f32.mrb[0].mxu0
      %v7213 = vadd.f32 %v7142, %v7212
      %7214 = vmatprep.mubr.bf16.mxu0 %v5272
      %7215 = vmatmul.mubr.bf16.gmra.mrb[0].mxu0 %v5271
      %v7216 = vpop.f32.mrb[0].mxu0
      %v7217 = vadd.f32 %v7146, %v7216
      %v7218 = vpop.f32.mrb[0].mxu0
      %v7219 = vadd.f32 %v7148, %v7218
      %v7220 = vpop.f32.mrb[0].mxu0
      %v7221 = vpop.f32.mrb[0].mxu0
      %7222 = vdwg.mxu0
      %7223 = vmatprep.subr.bf16.mxu0 %v6471
      %7224 = vmatpush1.bf16.msra.mxu0 %v6470
      %7225 = vmatprep.subr.bf16.mxu0 %v6473
      %7226 = vmatpush1.bf16.msra.mxu0 %v6472
      %7227 = vmatprep.subr.bf16.mxu0 %v6475
      %7228 = vmatpush1.bf16.msra.mxu0 %v6474
      %7229 = vmatprep.subr.bf16.mxu0 %v6477
      %7230 = vmatpush1.bf16.msra.mxu0 %v6476
      %7231 = vmatprep.subr.bf16.mxu0 %v6479
      %7232 = vmatpush1.bf16.msra.mxu0 %v6478
      %7233 = vmatprep.subr.bf16.mxu0 %v6481
      %7234 = vmatpush1.bf16.msra.mxu0 %v6480
      %7235 = vmatprep.subr.bf16.mxu0 %v6483
      %7236 = vmatpush1.bf16.msra.mxu0 %v6482
      %7237 = vmatprep.subr.bf16.mxu0 %v6485
      %7238 = vmatpush1.bf16.msra.mxu0 %v6484
      %7239 = vmatprep.subr.bf16.mxu0 0
      %7240 = vmatpush1.bf16.msra.mxu0 0
      %7241 = vmatprep.subr.bf16.mxu0 0
      %7242 = vmatpush1.bf16.msra.mxu0 0
      %7243 = vmatprep.subr.bf16.mxu0 0
      %7244 = vmatpush1.bf16.msra.mxu0 0
      %7245 = vmatprep.subr.bf16.mxu0 0
      %7246 = vmatpush1.bf16.msra.mxu0 0
      %7247 = vmatprep.subr.bf16.mxu0 0
      %7248 = vmatpush1.bf16.msra.mxu0 0
      %7249 = vmatprep.subr.bf16.mxu0 0
      %7250 = vmatpush1.bf16.msra.mxu0 0
      %7251 = vmatprep.subr.bf16.mxu0 0
      %7252 = vmatpush1.bf16.msra.mxu0 0
      %7253 = vmatprep.subr.bf16.mxu0 0
      %7254 = vmatpush1.bf16.msra.mxu0 0
      %7255 = vmatprep.mubr.bf16.mxu0 0
      %7256 = vmatmul.mubr.bf16.gmra.mrb[0].mxu0 %v5264
      %v7257 = vpop.f32.mrb[0].mxu0
      %v7258 = vadd.f32 %v7187, %v7257
      %v7259 = vpop.f32.mrb[0].mxu0
      %v7260 = vadd.f32 %v7189, %v7259
      %v7261 = vpop.f32.mrb[0].mxu0
      %v7262 = vadd.f32 %v7191, %v7261
      %v7263 = vpop.f32.mrb[0].mxu0
      %v7264 = vadd.f32 %v7193, %v7263
      %7265 = vmatprep.mubr.bf16.mxu0 0
      %7266 = vmatmul.mubr.bf16.gmra.mrb[0].mxu0 %v5267
      %v7267 = vpop.f32.mrb[0].mxu0
      %v7268 = vadd.f32 %v7197, %v7267
      %v7269 = vpop.f32.mrb[0].mxu0
      %v7270 = vadd.f32 %v7199, %v7269
      %v7271 = vpop.f32.mrb[0].mxu0
      %v7272 = vadd.f32 %v7201, %v7271
      %v7273 = vpop.f32.mrb[0].mxu0
      %v7274 = vadd.f32 %v7203, %v7273
      %7275 = vmatprep.mubr.bf16.mxu0 0
      %7276 = vmatmul.mubr.bf16.gmra.mrb[0].mxu0 %v5270
      %v7277 = vpop.f32.mrb[0].mxu0
      %v7278 = vadd.f32 %v7207, %v7277
      %v7279 = vpop.f32.mrb[0].mxu0
      %v7280 = vadd.f32 %v7209, %v7279
      %v7281 = vpop.f32.mrb[0].mxu0
      %v7282 = vadd.f32 %v7211, %v7281
      %v7283 = vpop.f32.mrb[0].mxu0
      %v7284 = vadd.f32 %v7213, %v7283
      %7285 = vmatprep.mubr.bf16.mxu0 0
      %7286 = vmatmul.mubr.bf16.gmra.mrb[0].mxu0 %v5273
      %v7287 = vpop.f32.mrb[0].mxu0
      %v7288 = vadd.f32 %v7217, %v7287
      %v7289 = vpop.f32.mrb[0].mxu0
      %v7290 = vadd.f32 %v7219, %v7289
      %v7291 = vpop.f32.mrb[0].mxu0
      %v7292 = vpop.f32.mrb[0].mxu0
      %7293 = vdwg.mxu0
      %v7294 = vmax.f32 %v7258, 0.0
      %v7295 = vmax.f32 %v7260, 0.0
      %v7296 = vmax.f32 %v7262, 0.0
      %v7297 = vmax.f32 %v7264, 0.0
      %v7298 = vmax.f32 %v7268, 0.0
      %v7299 = vmax.f32 %v7270, 0.0
      %v7300 = vmax.f32 %v7272, 0.0
      %v7301 = vmax.f32 %v7274, 0.0
      %v7302 = vmax.f32 %v7278, 0.0
      %v7303 = vmax.f32 %v7280, 0.0
      %v7304 = vmax.f32 %v7282, 0.0
      %v7305 = vmax.f32 %v7284, 0.0
      %v7306 = vmax.f32 %v7288, 0.0
      %v7307 = vmax.f32 %v7290, 0.0
      %v7308 = vpack.c.bf16 %v7296, %v7294
      %v7309 = vpack.c.bf16 %v7297, %v7295
      %v7310 = vpack.c.bf16 %v7300, %v7298
      %v7311 = vpack.c.bf16 %v7301, %v7299
      %v7312 = vpack.c.bf16 %v7304, %v7302
      %v7313 = vpack.c.bf16 %v7305, %v7303
      %v7314 = vpack.c.bf16 %v7306, %v7306
      %v7315 = vpack.c.bf16 %v7307, %v7307
      %v7316 = vld [vmem:[%s7] sm:$0xf]
      %v7317 = vld [vmem:[%s7 + $0x4] sm:$0xf]
      %v7320 = vunpack.c.l.b16 %v7316
      %v7321 = vunpack.c.l.b16 %v7317
      %v7322 = vpack.c.b16 %v7321, %v7320
      %vm7323 = vcmask 457728
      %v7325 = vsel %vm7323, %v7322, 0
      %vm7327 = vcmask 1043456
      %v7329 = vsel %vm7327, %v7314, 0
      %v7332 = vsel %vm7327, %v7315, 0
      %7334 = vmatprep.subr.bf16.mxu0 %v7309
      %7335 = vmatpush1.bf16.msra.mxu0 %v7308
      %7336 = vmatprep.subr.bf16.mxu0 %v7311
      %7337 = vmatpush1.bf16.msra.mxu0 %v7310
      %7338 = vmatprep.subr.bf16.mxu0 %v7313
      %7339 = vmatpush1.bf16.msra.mxu0 %v7312
      %7340 = vmatprep.subr.bf16.mxu0 %v7332
      %7341 = vmatpush1.bf16.msra.mxu0 %v7329
      %7342 = vmatprep.subr.bf16.mxu0 0
      %7343 = vmatpush1.bf16.msra.mxu0 0
      %7344 = vmatprep.subr.bf16.mxu0 0
      %7345 = vmatpush1.bf16.msra.mxu0 0
      %7346 = vmatprep.subr.bf16.mxu0 0
      %7347 = vmatpush1.bf16.msra.mxu0 0
      %7348 = vmatprep.subr.bf16.mxu0 0
      %7349 = vmatpush1.bf16.msra.mxu0 0
      %7350 = vmatprep.subr.bf16.mxu0 0
      %7351 = vmatpush1.bf16.msra.mxu0 0
      %7352 = vmatprep.subr.bf16.mxu0 0
      %7353 = vmatpush1.bf16.msra.mxu0 0
      %7354 = vmatprep.subr.bf16.mxu0 0
      %7355 = vmatpush1.bf16.msra.mxu0 0
      %7356 = vmatprep.subr.bf16.mxu0 0
      %7357 = vmatpush1.bf16.msra.mxu0 0
      %7358 = vmatprep.subr.bf16.mxu0 0
      %7359 = vmatpush1.bf16.msra.mxu0 0
      %7360 = vmatprep.subr.bf16.mxu0 0
      %7361 = vmatpush1.bf16.msra.mxu0 0
      %7362 = vmatprep.subr.bf16.mxu0 0
      %7363 = vmatpush1.bf16.msra.mxu0 0
      %7364 = vmatprep.subr.bf16.mxu0 0
      %7365 = vmatpush1.bf16.msra.mxu0 0
      %7366 = vmatprep.mubr.bf16.mxu0 0
      %7367 = vmatmul.mubr.bf16.gmra.mrb[0].mxu0 %v7325
      %v7368 = vpop.f32.mrb[0].mxu0
      %v7369 = vadd.f32 0.0, %v7368
      %v7370 = vpop.f32.mrb[0].mxu0
      %v7371 = vadd.f32 0.0, %v7370
      %v7372 = vpop.f32.mrb[0].mxu0
      %v7373 = vadd.f32 0.0, %v7372
      %v7374 = vpop.f32.mrb[0].mxu0
      %v7375 = vadd.f32 0.0, %v7374
      %7376 = vdwg.mxu0
      %v7377 = vpack.c.bf16 %v7373, %v7369
      %v7378 = vpack.c.bf16 %v7375, %v7371
      %s7379 = scalar_lea.vmem %s7, 8
      %v7380 = vld [vmem:[%s7379] sm:$0xf]
      %v7381 = vld [vmem:[%s7379 + $0x4] sm:$0xf]
      %v7384 = vunpack.c.l.b16 %v7380
      %v7385 = vunpack.c.l.b16 %v7381
      %v7386 = vpack.c.b16 %v7385, %v7384
      %v7388 = vsel %vm7323, %v7386, 0
      %7390 = vmatprep.subr.bf16.mxu0 %v7309
      %7391 = vmatpush1.bf16.msra.mxu0 %v7308
      %7392 = vmatprep.subr.bf16.mxu0 %v7311
      %7393 = vmatpush1.bf16.msra.mxu0 %v7310
      %7394 = vmatprep.subr.bf16.mxu0 %v7313
      %7395 = vmatpush1.bf16.msra.mxu0 %v7312
      %7396 = vmatprep.subr.bf16.mxu0 %v7332
      %7397 = vmatpush1.bf16.msra.mxu0 %v7329
      %7398 = vmatprep.subr.bf16.mxu0 0
      %7399 = vmatpush1.bf16.msra.mxu0 0
      %7400 = vmatprep.subr.bf16.mxu0 0
      %7401 = vmatpush1.bf16.msra.mxu0 0
      %7402 = vmatprep.subr.bf16.mxu0 0
      %7403 = vmatpush1.bf16.msra.mxu0 0
      %7404 = vmatprep.subr.bf16.mxu0 0
      %7405 = vmatpush1.bf16.msra.mxu0 0
      %7406 = vmatprep.subr.bf16.mxu0 0
      %7407 = vmatpush1.bf16.msra.mxu0 0
      %7408 = vmatprep.subr.bf16.mxu0 0
      %7409 = vmatpush1.bf16.msra.mxu0 0
      %7410 = vmatprep.subr.bf16.mxu0 0
      %7411 = vmatpush1.bf16.msra.mxu0 0
      %7412 = vmatprep.subr.bf16.mxu0 0
      %7413 = vmatpush1.bf16.msra.mxu0 0
      %7414 = vmatprep.subr.bf16.mxu0 0
      %7415 = vmatpush1.bf16.msra.mxu0 0
      %7416 = vmatprep.subr.bf16.mxu0 0
      %7417 = vmatpush1.bf16.msra.mxu0 0
      %7418 = vmatprep.subr.bf16.mxu0 0
      %7419 = vmatpush1.bf16.msra.mxu0 0
      %7420 = vmatprep.subr.bf16.mxu0 0
      %7421 = vmatpush1.bf16.msra.mxu0 0
      %7422 = vmatprep.mubr.bf16.mxu0 0
      %7423 = vmatmul.mubr.bf16.gmra.mrb[0].mxu0 %v7388
      %v7424 = vpop.f32.mrb[0].mxu0
      %v7425 = vadd.f32 0.0, %v7424
      %v7426 = vpop.f32.mrb[0].mxu0
      %v7427 = vadd.f32 0.0, %v7426
      %v7428 = vpop.f32.mrb[0].mxu0
      %v7429 = vadd.f32 0.0, %v7428
      %v7430 = vpop.f32.mrb[0].mxu0
      %v7431 = vadd.f32 0.0, %v7430
      %7432 = vdwg.mxu0
      %v7433 = vpack.c.bf16 %v7429, %v7425
      %v7434 = vpack.c.bf16 %v7431, %v7427
      %s7435 = scalar_lea.vmem %s7, 16
      %v7436 = vld [vmem:[%s7435] sm:$0xf]
      %v7437 = vld [vmem:[%s7435 + $0x4] sm:$0xf]
      %v7440 = vunpack.c.l.b16 %v7436
      %v7441 = vunpack.c.l.b16 %v7437
      %v7442 = vpack.c.b16 %v7441, %v7440
      %v7444 = vsel %vm7323, %v7442, 0
      %7446 = vmatprep.subr.bf16.mxu0 %v7309
      %7447 = vmatpush1.bf16.msra.mxu0 %v7308
      %7448 = vmatprep.subr.bf16.mxu0 %v7311
      %7449 = vmatpush1.bf16.msra.mxu0 %v7310
      %7450 = vmatprep.subr.bf16.mxu0 %v7313
      %7451 = vmatpush1.bf16.msra.mxu0 %v7312
      %7452 = vmatprep.subr.bf16.mxu0 %v7332
      %7453 = vmatpush1.bf16.msra.mxu0 %v7329
      %7454 = vmatprep.subr.bf16.mxu0 0
      %7455 = vmatpush1.bf16.msra.mxu0 0
      %7456 = vmatprep.subr.bf16.mxu0 0
      %7457 = vmatpush1.bf16.msra.mxu0 0
      %7458 = vmatprep.subr.bf16.mxu0 0
      %7459 = vmatpush1.bf16.msra.mxu0 0
      %7460 = vmatprep.subr.bf16.mxu0 0
      %7461 = vmatpush1.bf16.msra.mxu0 0
      %7462 = vmatprep.subr.bf16.mxu0 0
      %7463 = vmatpush1.bf16.msra.mxu0 0
      %7464 = vmatprep.subr.bf16.mxu0 0
      %7465 = vmatpush1.bf16.msra.mxu0 0
      %7466 = vmatprep.subr.bf16.mxu0 0
      %7467 = vmatpush1.bf16.msra.mxu0 0
      %7468 = vmatprep.subr.bf16.mxu0 0
      %7469 = vmatpush1.bf16.msra.mxu0 0
      %7470 = vmatprep.subr.bf16.mxu0 0
      %7471 = vmatpush1.bf16.msra.mxu0 0
      %7472 = vmatprep.subr.bf16.mxu0 0
      %7473 = vmatpush1.bf16.msra.mxu0 0
      %7474 = vmatprep.subr.bf16.mxu0 0
      %7475 = vmatpush1.bf16.msra.mxu0 0
      %7476 = vmatprep.subr.bf16.mxu0 0
      %7477 = vmatpush1.bf16.msra.mxu0 0
      %7478 = vmatprep.mubr.bf16.mxu0 0
      %7479 = vmatmul.mubr.bf16.gmra.mrb[0].mxu0 %v7444
      %v7480 = vpop.f32.mrb[0].mxu0
      %v7481 = vadd.f32 0.0, %v7480
      %v7482 = vpop.f32.mrb[0].mxu0
      %v7483 = vadd.f32 0.0, %v7482
      %v7484 = vpop.f32.mrb[0].mxu0
      %v7485 = vadd.f32 0.0, %v7484
      %v7486 = vpop.f32.mrb[0].mxu0
      %v7487 = vadd.f32 0.0, %v7486
      %7488 = vdwg.mxu0
      %v7489 = vpack.c.bf16 %v7485, %v7481
      %v7490 = vpack.c.bf16 %v7487, %v7483
      %s7491 = scalar_lea.vmem %s7, 24
      %v7492 = vld [vmem:[%s7491] sm:$0xf]
      %v7493 = vld [vmem:[%s7491 + $0x4] sm:$0xf]
      %v7496 = vunpack.c.l.b16 %v7492
      %v7497 = vunpack.c.l.b16 %v7493
      %v7498 = vpack.c.b16 %v7497, %v7496
      %v7500 = vsel %vm7323, %v7498, 0
      %7502 = vmatprep.subr.bf16.mxu0 %v7309
      %7503 = vmatpush1.bf16.msra.mxu0 %v7308
      %7504 = vmatprep.subr.bf16.mxu0 %v7311
      %7505 = vmatpush1.bf16.msra.mxu0 %v7310
      %7506 = vmatprep.subr.bf16.mxu0 %v7313
      %7507 = vmatpush1.bf16.msra.mxu0 %v7312
      %7508 = vmatprep.subr.bf16.mxu0 %v7332
      %7509 = vmatpush1.bf16.msra.mxu0 %v7329
      %7510 = vmatprep.subr.bf16.mxu0 0
      %7511 = vmatpush1.bf16.msra.mxu0 0
      %7512 = vmatprep.subr.bf16.mxu0 0
      %7513 = vmatpush1.bf16.msra.mxu0 0
      %7514 = vmatprep.subr.bf16.mxu0 0
      %7515 = vmatpush1.bf16.msra.mxu0 0
      %7516 = vmatprep.subr.bf16.mxu0 0
      %7517 = vmatpush1.bf16.msra.mxu0 0
      %7518 = vmatprep.subr.bf16.mxu0 0
      %7519 = vmatpush1.bf16.msra.mxu0 0
      %7520 = vmatprep.subr.bf16.mxu0 0
      %7521 = vmatpush1.bf16.msra.mxu0 0
      %7522 = vmatprep.subr.bf16.mxu0 0
      %7523 = vmatpush1.bf16.msra.mxu0 0
      %7524 = vmatprep.subr.bf16.mxu0 0
      %7525 = vmatpush1.bf16.msra.mxu0 0
      %7526 = vmatprep.subr.bf16.mxu0 0
      %7527 = vmatpush1.bf16.msra.mxu0 0
      %7528 = vmatprep.subr.bf16.mxu0 0
      %7529 = vmatpush1.bf16.msra.mxu0 0
      %7530 = vmatprep.subr.bf16.mxu0 0
      %7531 = vmatpush1.bf16.msra.mxu0 0
      %7532 = vmatprep.subr.bf16.mxu0 0
      %7533 = vmatpush1.bf16.msra.mxu0 0
      %7534 = vmatprep.mubr.bf16.mxu0 0
      %7535 = vmatmul.mubr.bf16.gmra.mrb[0].mxu0 %v7500
      %v7536 = vpop.f32.mrb[0].mxu0
      %v7537 = vadd.f32 0.0, %v7536
      %v7538 = vpop.f32.mrb[0].mxu0
      %v7539 = vadd.f32 0.0, %v7538
      %v7540 = vpop.f32.mrb[0].mxu0
      %v7541 = vadd.f32 0.0, %v7540
      %v7542 = vpop.f32.mrb[0].mxu0
      %v7543 = vadd.f32 0.0, %v7542
      %7544 = vdwg.mxu0
      %v7545 = vpack.c.bf16 %v7541, %v7537
      %v7546 = vpack.c.bf16 %v7543, %v7539
      %s7547 = scalar_lea.vmem %s7, 32
      %v7548 = vld [vmem:[%s7547] sm:$0xf]
      %v7549 = vld [vmem:[%s7547 + $0x4] sm:$0xf]
      %v7552 = vunpack.c.l.b16 %v7548
      %v7553 = vunpack.c.l.b16 %v7549
      %v7554 = vpack.c.b16 %v7553, %v7552
      %v7556 = vsel %vm7323, %v7554, 0
      %7558 = vmatprep.subr.bf16.mxu0 %v7309
      %7559 = vmatpush1.bf16.msra.mxu0 %v7308
      %7560 = vmatprep.subr.bf16.mxu0 %v7311
      %7561 = vmatpush1.bf16.msra.mxu0 %v7310
      %7562 = vmatprep.subr.bf16.mxu0 %v7313
      %7563 = vmatpush1.bf16.msra.mxu0 %v7312
      %7564 = vmatprep.subr.bf16.mxu0 %v7332
      %7565 = vmatpush1.bf16.msra.mxu0 %v7329
      %7566 = vmatprep.subr.bf16.mxu0 0
      %7567 = vmatpush1.bf16.msra.mxu0 0
      %7568 = vmatprep.subr.bf16.mxu0 0
      %7569 = vmatpush1.bf16.msra.mxu0 0
      %7570 = vmatprep.subr.bf16.mxu0 0
      %7571 = vmatpush1.bf16.msra.mxu0 0
      %7572 = vmatprep.subr.bf16.mxu0 0
      %7573 = vmatpush1.bf16.msra.mxu0 0
      %7574 = vmatprep.subr.bf16.mxu0 0
      %7575 = vmatpush1.bf16.msra.mxu0 0
      %7576 = vmatprep.subr.bf16.mxu0 0
      %7577 = vmatpush1.bf16.msra.mxu0 0
      %7578 = vmatprep.subr.bf16.mxu0 0
      %7579 = vmatpush1.bf16.msra.mxu0 0
      %7580 = vmatprep.subr.bf16.mxu0 0
      %7581 = vmatpush1.bf16.msra.mxu0 0
      %7582 = vmatprep.subr.bf16.mxu0 0
      %7583 = vmatpush1.bf16.msra.mxu0 0
      %7584 = vmatprep.subr.bf16.mxu0 0
      %7585 = vmatpush1.bf16.msra.mxu0 0
      %7586 = vmatprep.subr.bf16.mxu0 0
      %7587 = vmatpush1.bf16.msra.mxu0 0
      %7588 = vmatprep.subr.bf16.mxu0 0
      %7589 = vmatpush1.bf16.msra.mxu0 0
      %7590 = vmatprep.mubr.bf16.mxu0 0
      %7591 = vmatmul.mubr.bf16.gmra.mrb[0].mxu0 %v7556
      %v7592 = vpop.f32.mrb[0].mxu0
      %v7593 = vadd.f32 0.0, %v7592
      %v7594 = vpop.f32.mrb[0].mxu0
      %v7595 = vadd.f32 0.0, %v7594
      %v7596 = vpop.f32.mrb[0].mxu0
      %v7597 = vadd.f32 0.0, %v7596
      %v7598 = vpop.f32.mrb[0].mxu0
      %v7599 = vadd.f32 0.0, %v7598
      %7600 = vdwg.mxu0
      %v7601 = vpack.c.bf16 %v7597, %v7593
      %v7602 = vpack.c.bf16 %v7599, %v7595
      %v7603 = vld [vmem:[%s8] sm:$0xf]
      %v7604 = vld [vmem:[%s8 + $0x4] sm:$0xf]
      %v7605 = vld [vmem:[%s8 + $0x8] sm:$0xf]
      %v7606 = vld [vmem:[%s8 + $0xc] sm:$0xf]
      %v7607 = vld [vmem:[%s8 + $0x10] sm:$0xf]
      %v7608 = vld [vmem:[%s8 + $0x14] sm:$0xf]
      %v7609 = vld [vmem:[%s8 + $0x18] sm:$0xf]
      %v7610 = vld [vmem:[%s8 + $0x1c] sm:$0xf]
      %v7611 = vld [vmem:[%s8 + $0x20] sm:$0xf]
      %v7612 = vld [vmem:[%s8 + $0x24] sm:$0xf]
      %v7613 = vld [vmem:[%s8 + $0x28] sm:$0xf]
      %v7614 = vld [vmem:[%s8 + $0x2c] sm:$0xf]
      %v7615 = vld [vmem:[%s8 + $0x30] sm:$0xf]
      %v7616 = vld [vmem:[%s8 + $0x34] sm:$0xf]
      %v7617 = vld [vmem:[%s8 + $0x38] sm:$0xf]
      %v7618 = vld [vmem:[%s8 + $0x3c] sm:$0xf]
      %v7619 = vld [vmem:[%s8 + $0x40] sm:$0xf]
      %v7620 = vld [vmem:[%s8 + $0x44] sm:$0xf]
      %v7621 = vld [vmem:[%s8 + $0x48] sm:$0xf]
      %v7622 = vld [vmem:[%s8 + $0x4c] sm:$0xf]
      %v7623 = vld [vmem:[%s8 + $0x50] sm:$0xf]
      %v7624 = vld [vmem:[%s8 + $0x54] sm:$0xf]
      %v7625 = vld [vmem:[%s8 + $0x58] sm:$0xf]
      %v7626 = vld [vmem:[%s8 + $0x5c] sm:$0xf]
      %v7627 = vld [vmem:[%s8 + $0x60] sm:$0xf]
      %v7628 = vld [vmem:[%s8 + $0x64] sm:$0xf]
      %v7629 = vld [vmem:[%s8 + $0x68] sm:$0xf]
      %v7630 = vld [vmem:[%s8 + $0x6c] sm:$0xf]
      %v7631 = vld [vmem:[%s8 + $0x70] sm:$0xf]
      %v7632 = vld [vmem:[%s8 + $0x74] sm:$0xf]
      %v7633 = vld [vmem:[%s8 + $0x78] sm:$0xf]
      %v7634 = vld [vmem:[%s8 + $0x7c] sm:$0xf]
      %v7635 = vld [vmem:[%s8 + $0x80] sm:$0xf]
      %v7636 = vld [vmem:[%s8 + $0x84] sm:$0xf]
      %v7637 = vld [vmem:[%s8 + $0x88] sm:$0xf]
      %v7638 = vld [vmem:[%s8 + $0x8c] sm:$0xf]
      %v7639 = vld [vmem:[%s8 + $0x90] sm:$0xf]
      %v7640 = vld [vmem:[%s8 + $0x94] sm:$0xf]
      %v7641 = vld [vmem:[%s8 + $0x98] sm:$0xf]
      %v7642 = vld [vmem:[%s8 + $0x9c] sm:$0xf]
      %v7643 = vld [vmem:[%s8 + $0xa0] sm:$0xf]
      %v7644 = vld [vmem:[%s8 + $0xa4] sm:$0xf]
      %v7645 = vld [vmem:[%s8 + $0xa8] sm:$0xf]
      %v7646 = vld [vmem:[%s8 + $0xac] sm:$0xf]
      %v7647 = vld [vmem:[%s8 + $0xb0] sm:$0xf]
      %v7648 = vld [vmem:[%s8 + $0xb4] sm:$0xf]
      %v7649 = vld [vmem:[%s8 + $0xb8] sm:$0xf]
      %v7650 = vld [vmem:[%s8 + $0xbc] sm:$0xf]
      %v7651 = vld [vmem:[%s8 + $0xc0] sm:$0xf]
      %v7652 = vld [vmem:[%s8 + $0xc4] sm:$0xf]
      %v7653 = vld [vmem:[%s8 + $0xc8] sm:$0xf]
      %v7654 = vld [vmem:[%s8 + $0xcc] sm:$0xf]
      %v7655 = vld [vmem:[%s8 + $0xd0] sm:$0xf]
      %v7656 = vld [vmem:[%s8 + $0xd4] sm:$0xf]
      %v7657 = vld [vmem:[%s8 + $0xd8] sm:$0xf]
      %v7658 = vld [vmem:[%s8 + $0xdc] sm:$0xf]
      %v7659 = vld [vmem:[%s8 + $0xe0] sm:$0xf]
      %v7660 = vld [vmem:[%s8 + $0xe4] sm:$0xf]
      %v7661 = vld [vmem:[%s8 + $0xe8] sm:$0xf]
      %v7662 = vld [vmem:[%s8 + $0xec] sm:$0xf]
      %v7663 = vld [vmem:[%s8 + $0xf0] sm:$0xf]
      %v7664 = vld [vmem:[%s8 + $0xf4] sm:$0xf]
      %v7665 = vld [vmem:[%s8 + $0xf8] sm:$0xf]
      %v7666 = vld [vmem:[%s8 + $0xfc] sm:$0xf]
      %v7667 = vld [vmem:[%s8 + $0x100] sm:$0xf]
      %v7668 = vld [vmem:[%s8 + $0x104] sm:$0xf]
      %v7669 = vld [vmem:[%s8 + $0x108] sm:$0xf]
      %v7670 = vld [vmem:[%s8 + $0x10c] sm:$0xf]
      %v7671 = vld [vmem:[%s8 + $0x110] sm:$0xf]
      %v7672 = vld [vmem:[%s8 + $0x114] sm:$0xf]
      %v7673 = vld [vmem:[%s8 + $0x118] sm:$0xf]
      %v7674 = vld [vmem:[%s8 + $0x11c] sm:$0xf]
      %v7675 = vld [vmem:[%s8 + $0x120] sm:$0xf]
      %v7676 = vld [vmem:[%s8 + $0x124] sm:$0xf]
      %v7677 = vld [vmem:[%s8 + $0x128] sm:$0xf]
      %v7678 = vld [vmem:[%s8 + $0x12c] sm:$0xf]
      %v7679 = vld [vmem:[%s8 + $0x130] sm:$0xf]
      %v7680 = vld [vmem:[%s8 + $0x134] sm:$0xf]
      %v7681 = vld [vmem:[%s8 + $0x138] sm:$0xf]
      %v7682 = vld [vmem:[%s8 + $0x13c] sm:$0xf]
      %v7683 = vld [vmem:[%s8 + $0x140] sm:$0xf]
      %v7684 = vld [vmem:[%s8 + $0x144] sm:$0xf]
      %v7685 = vld [vmem:[%s8 + $0x148] sm:$0xf]
      %v7686 = vld [vmem:[%s8 + $0x14c] sm:$0xf]
      %v7687 = vld [vmem:[%s8 + $0x150] sm:$0xf]
      %v7688 = vld [vmem:[%s8 + $0x154] sm:$0xf]
      %v7689 = vld [vmem:[%s8 + $0x158] sm:$0xf]
      %v7690 = vld [vmem:[%s8 + $0x15c] sm:$0xf]
      %v7691 = vld [vmem:[%s8 + $0x160] sm:$0xf]
      %v7692 = vld [vmem:[%s8 + $0x164] sm:$0xf]
      %v7693 = vld [vmem:[%s8 + $0x168] sm:$0xf]
      %v7694 = vld [vmem:[%s8 + $0x16c] sm:$0xf]
      %v7695 = vld [vmem:[%s8 + $0x170] sm:$0xf]
      %v7696 = vld [vmem:[%s8 + $0x174] sm:$0xf]
      %v7697 = vld [vmem:[%s8 + $0x178] sm:$0xf]
      %v7698 = vld [vmem:[%s8 + $0x17c] sm:$0xf]
      %v7699 = vld [vmem:[%s8 + $0x180] sm:$0xf]
      %v7700 = vld [vmem:[%s8 + $0x184] sm:$0xf]
      %v7701 = vld [vmem:[%s8 + $0x188] sm:$0xf]
      %v7702 = vld [vmem:[%s8 + $0x18c] sm:$0xf]
      %v7703 = vld [vmem:[%s8 + $0x190] sm:$0xf]
      %v7704 = vld [vmem:[%s8 + $0x194] sm:$0xf]
      %v7705 = vld [vmem:[%s8 + $0x198] sm:$0xf]
      %v7706 = vld [vmem:[%s8 + $0x19c] sm:$0xf]
      %v7707 = vld [vmem:[%s8 + $0x1a0] sm:$0xf]
      %v7708 = vld [vmem:[%s8 + $0x1a4] sm:$0xf]
      %v7709 = vld [vmem:[%s8 + $0x1a8] sm:$0xf]
      %v7710 = vld [vmem:[%s8 + $0x1ac] sm:$0xf]
      %v7711 = vld [vmem:[%s8 + $0x1b0] sm:$0xf]
      %v7712 = vld [vmem:[%s8 + $0x1b4] sm:$0xf]
      %v7713 = vld [vmem:[%s8 + $0x1b8] sm:$0xf]
      %v7714 = vld [vmem:[%s8 + $0x1bc] sm:$0xf]
      %v7715 = vld [vmem:[%s8 + $0x1c0] sm:$0xf]
      %v7716 = vld [vmem:[%s8 + $0x1c4] sm:$0xf]
      %v7717 = vld [vmem:[%s8 + $0x1c8] sm:$0xf]
      %v7718 = vld [vmem:[%s8 + $0x1cc] sm:$0xf]
      %v7719 = vld [vmem:[%s8 + $0x1d0] sm:$0xf]
      %v7720 = vld [vmem:[%s8 + $0x1d4] sm:$0xf]
      %v7721 = vld [vmem:[%s8 + $0x1d8] sm:$0xf]
      %v7722 = vld [vmem:[%s8 + $0x1dc] sm:$0xf]
      %v7723 = vld [vmem:[%s8 + $0x1e0] sm:$0xf]
      %v7724 = vld [vmem:[%s8 + $0x1e4] sm:$0xf]
      %v7725 = vld [vmem:[%s8 + $0x1e8] sm:$0xf]
      %v7726 = vld [vmem:[%s8 + $0x1ec] sm:$0xf]
      %v7727 = vld [vmem:[%s8 + $0x1f0] sm:$0xf]
      %v7728 = vld [vmem:[%s8 + $0x1f4] sm:$0xf]
      %v7729 = vld [vmem:[%s8 + $0x1f8] sm:$0xf]
      %v7730 = vld [vmem:[%s8 + $0x1fc] sm:$0xf]
      %v7731 = vld [vmem:[%s8 + $0x200] sm:$0xf]
      %v7732 = vld [vmem:[%s8 + $0x204] sm:$0xf]
      %v7733 = vld [vmem:[%s8 + $0x208] sm:$0xf]
      %v7734 = vld [vmem:[%s8 + $0x20c] sm:$0xf]
      %v7735 = vld [vmem:[%s8 + $0x210] sm:$0xf]
      %v7736 = vld [vmem:[%s8 + $0x214] sm:$0xf]
      %v7737 = vld [vmem:[%s8 + $0x218] sm:$0xf]
      %v7738 = vld [vmem:[%s8 + $0x21c] sm:$0xf]
      %v7739 = vld [vmem:[%s8 + $0x220] sm:$0xf]
      %v7740 = vld [vmem:[%s8 + $0x224] sm:$0xf]
      %v7741 = vld [vmem:[%s8 + $0x228] sm:$0xf]
      %v7742 = vld [vmem:[%s8 + $0x22c] sm:$0xf]
      %v7743 = vld [vmem:[%s8 + $0x230] sm:$0xf]
      %v7744 = vld [vmem:[%s8 + $0x234] sm:$0xf]
      %v7745 = vld [vmem:[%s8 + $0x238] sm:$0xf]
      %v7746 = vld [vmem:[%s8 + $0x23c] sm:$0xf]
      %v7747 = vld [vmem:[%s8 + $0x240] sm:$0xf]
      %v7748 = vld [vmem:[%s8 + $0x244] sm:$0xf]
      %v7749 = vld [vmem:[%s8 + $0x248] sm:$0xf]
      %v7750 = vld [vmem:[%s8 + $0x24c] sm:$0xf]
      %v7751 = vld [vmem:[%s8 + $0x250] sm:$0xf]
      %v7752 = vld [vmem:[%s8 + $0x254] sm:$0xf]
      %v7753 = vld [vmem:[%s8 + $0x258] sm:$0xf]
      %v7754 = vld [vmem:[%s8 + $0x25c] sm:$0xf]
      %v7755 = vld [vmem:[%s8 + $0x260] sm:$0xf]
      %v7756 = vld [vmem:[%s8 + $0x264] sm:$0xf]
      %v7757 = vld [vmem:[%s8 + $0x268] sm:$0xf]
      %v7758 = vld [vmem:[%s8 + $0x26c] sm:$0xf]
      %v7759 = vld [vmem:[%s8 + $0x270] sm:$0xf]
      %v7760 = vld [vmem:[%s8 + $0x274] sm:$0xf]
      %v7761 = vld [vmem:[%s8 + $0x278] sm:$0xf]
      %v7762 = vld [vmem:[%s8 + $0x27c] sm:$0xf]
      %v7763 = vld [vmem:[%s9] sm:$0x1]
      %v7765 = vlaneseq
      %v7766 = vshrl.u32 %v7765, 7
      %v7767 = vsub.s32 0, %v7766
      %v7768 = vrot.slane %v7763, %v7767
      %v7930 = vunpack.c.l.b16 %v7603
      %v7931 = vunpack.c.l.b16 %v7604
      %v7932 = vunpack.c.l.b16 %v7605
      %v7933 = vunpack.c.l.b16 %v7606
      %v7934 = vunpack.c.l.b16 %v7607
      %v7935 = vunpack.c.l.b16 %v7608
      %v7936 = vunpack.c.l.b16 %v7609
      %v7937 = vunpack.c.l.b16 %v7610
      %v7938 = vunpack.c.l.b16 %v7611
      %v7939 = vunpack.c.l.b16 %v7612
      %v7940 = vunpack.c.l.b16 %v7613
      %v7941 = vunpack.c.l.b16 %v7614
      %v7942 = vunpack.c.l.b16 %v7615
      %v7943 = vunpack.c.l.b16 %v7616
      %v7944 = vunpack.c.l.b16 %v7617
      %v7945 = vunpack.c.l.b16 %v7618
      %v7946 = vunpack.c.l.b16 %v7619
      %v7947 = vunpack.c.l.b16 %v7620
      %v7948 = vunpack.c.l.b16 %v7621
      %v7949 = vunpack.c.l.b16 %v7622
      %v7950 = vunpack.c.l.b16 %v7623
      %v7951 = vunpack.c.l.b16 %v7624
      %v7952 = vunpack.c.l.b16 %v7625
      %v7953 = vunpack.c.l.b16 %v7626
      %v7954 = vunpack.c.l.b16 %v7627
      %v7955 = vunpack.c.l.b16 %v7628
      %v7956 = vunpack.c.l.b16 %v7629
      %v7957 = vunpack.c.l.b16 %v7630
      %v7958 = vunpack.c.l.b16 %v7631
      %v7959 = vunpack.c.l.b16 %v7632
      %v7960 = vunpack.c.l.b16 %v7633
      %v7961 = vunpack.c.l.b16 %v7634
      %v7962 = vunpack.c.l.b16 %v7635
      %v7963 = vunpack.c.l.b16 %v7636
      %v7964 = vunpack.c.l.b16 %v7637
      %v7965 = vunpack.c.l.b16 %v7638
      %v7966 = vunpack.c.l.b16 %v7639
      %v7967 = vunpack.c.l.b16 %v7640
      %v7968 = vunpack.c.l.b16 %v7641
      %v7969 = vunpack.c.l.b16 %v7642
      %v7970 = vunpack.c.l.b16 %v7643
      %v7971 = vunpack.c.l.b16 %v7644
      %v7972 = vunpack.c.l.b16 %v7645
      %v7973 = vunpack.c.l.b16 %v7646
      %v7974 = vunpack.c.l.b16 %v7647
      %v7975 = vunpack.c.l.b16 %v7648
      %v7976 = vunpack.c.l.b16 %v7649
      %v7977 = vunpack.c.l.b16 %v7650
      %v7978 = vunpack.c.l.b16 %v7651
      %v7979 = vunpack.c.l.b16 %v7652
      %v7980 = vunpack.c.l.b16 %v7653
      %v7981 = vunpack.c.l.b16 %v7654
      %v7982 = vunpack.c.l.b16 %v7655
      %v7983 = vunpack.c.l.b16 %v7656
      %v7984 = vunpack.c.l.b16 %v7657
      %v7985 = vunpack.c.l.b16 %v7658
      %v7986 = vunpack.c.l.b16 %v7659
      %v7987 = vunpack.c.l.b16 %v7660
      %v7988 = vunpack.c.l.b16 %v7661
      %v7989 = vunpack.c.l.b16 %v7662
      %v7990 = vunpack.c.l.b16 %v7663
      %v7991 = vunpack.c.l.b16 %v7664
      %v7992 = vunpack.c.l.b16 %v7665
      %v7993 = vunpack.c.l.b16 %v7666
      %v7994 = vunpack.c.l.b16 %v7667
      %v7995 = vunpack.c.l.b16 %v7668
      %v7996 = vunpack.c.l.b16 %v7669
      %v7997 = vunpack.c.l.b16 %v7670
      %v7998 = vunpack.c.l.b16 %v7671
      %v7999 = vunpack.c.l.b16 %v7672
      %v8000 = vunpack.c.l.b16 %v7673
      %v8001 = vunpack.c.l.b16 %v7674
      %v8002 = vunpack.c.l.b16 %v7675
      %v8003 = vunpack.c.l.b16 %v7676
      %v8004 = vunpack.c.l.b16 %v7677
      %v8005 = vunpack.c.l.b16 %v7678
      %v8006 = vunpack.c.l.b16 %v7679
      %v8007 = vunpack.c.l.b16 %v7680
      %v8008 = vunpack.c.l.b16 %v7681
      %v8009 = vunpack.c.l.b16 %v7682
      %v8010 = vunpack.c.l.b16 %v7683
      %v8011 = vunpack.c.l.b16 %v7684
      %v8012 = vunpack.c.l.b16 %v7685
      %v8013 = vunpack.c.l.b16 %v7686
      %v8014 = vunpack.c.l.b16 %v7687
      %v8015 = vunpack.c.l.b16 %v7688
      %v8016 = vunpack.c.l.b16 %v7689
      %v8017 = vunpack.c.l.b16 %v7690
      %v8018 = vunpack.c.l.b16 %v7691
      %v8019 = vunpack.c.l.b16 %v7692
      %v8020 = vunpack.c.l.b16 %v7693
      %v8021 = vunpack.c.l.b16 %v7694
      %v8022 = vunpack.c.l.b16 %v7695
      %v8023 = vunpack.c.l.b16 %v7696
      %v8024 = vunpack.c.l.b16 %v7697
      %v8025 = vunpack.c.l.b16 %v7698
      %v8026 = vunpack.c.l.b16 %v7699
      %v8027 = vunpack.c.l.b16 %v7700
      %v8028 = vunpack.c.l.b16 %v7701
      %v8029 = vunpack.c.l.b16 %v7702
      %v8030 = vunpack.c.l.b16 %v7703
      %v8031 = vunpack.c.l.b16 %v7704
      %v8032 = vunpack.c.l.b16 %v7705
      %v8033 = vunpack.c.l.b16 %v7706
      %v8034 = vunpack.c.l.b16 %v7707
      %v8035 = vunpack.c.l.b16 %v7708
      %v8036 = vunpack.c.l.b16 %v7709
      %v8037 = vunpack.c.l.b16 %v7710
      %v8038 = vunpack.c.l.b16 %v7711
      %v8039 = vunpack.c.l.b16 %v7712
      %v8040 = vunpack.c.l.b16 %v7713
      %v8041 = vunpack.c.l.b16 %v7714
      %v8042 = vunpack.c.l.b16 %v7715
      %v8043 = vunpack.c.l.b16 %v7716
      %v8044 = vunpack.c.l.b16 %v7717
      %v8045 = vunpack.c.l.b16 %v7718
      %v8046 = vunpack.c.l.b16 %v7719
      %v8047 = vunpack.c.l.b16 %v7720
      %v8048 = vunpack.c.l.b16 %v7721
      %v8049 = vunpack.c.l.b16 %v7722
      %v8050 = vunpack.c.l.b16 %v7723
      %v8051 = vunpack.c.l.b16 %v7724
      %v8052 = vunpack.c.l.b16 %v7725
      %v8053 = vunpack.c.l.b16 %v7726
      %v8054 = vunpack.c.l.b16 %v7727
      %v8055 = vunpack.c.l.b16 %v7728
      %v8056 = vunpack.c.l.b16 %v7729
      %v8057 = vunpack.c.l.b16 %v7730
      %v8058 = vunpack.c.l.b16 %v7731
      %v8059 = vunpack.c.l.b16 %v7732
      %v8060 = vunpack.c.l.b16 %v7733
      %v8061 = vunpack.c.l.b16 %v7734
      %v8062 = vunpack.c.l.b16 %v7735
      %v8063 = vunpack.c.l.b16 %v7736
      %v8064 = vunpack.c.l.b16 %v7737
      %v8065 = vunpack.c.l.b16 %v7738
      %v8066 = vunpack.c.l.b16 %v7739
      %v8067 = vunpack.c.l.b16 %v7740
      %v8068 = vunpack.c.l.b16 %v7741
      %v8069 = vunpack.c.l.b16 %v7742
      %v8070 = vunpack.c.l.b16 %v7743
      %v8071 = vunpack.c.l.b16 %v7744
      %v8072 = vunpack.c.l.b16 %v7745
      %v8073 = vunpack.c.l.b16 %v7746
      %v8074 = vunpack.c.l.b16 %v7747
      %v8075 = vunpack.c.l.b16 %v7748
      %v8076 = vunpack.c.l.b16 %v7749
      %v8077 = vunpack.c.l.b16 %v7750
      %v8078 = vunpack.c.l.b16 %v7751
      %v8079 = vunpack.c.l.b16 %v7752
      %v8080 = vunpack.c.l.b16 %v7753
      %v8081 = vunpack.c.l.b16 %v7754
      %v8082 = vunpack.c.l.b16 %v7755
      %v8083 = vunpack.c.l.b16 %v7756
      %v8084 = vunpack.c.l.b16 %v7757
      %v8085 = vunpack.c.l.b16 %v7758
      %v8086 = vunpack.c.l.b16 %v7759
      %v8087 = vunpack.c.l.b16 %v7760
      %v8088 = vunpack.c.l.b16 %v7761
      %v8089 = vunpack.c.l.b16 %v7762
      %v8090 = vpack.c.b16 %v7931, %v7930
      %v8091 = vpack.c.b16 %v7933, %v7932
      %v8092 = vpack.c.b16 %v7935, %v7934
      %v8093 = vpack.c.b16 %v7937, %v7936
      %v8094 = vpack.c.b16 %v7939, %v7938
      %v8095 = vpack.c.b16 %v7941, %v7940
      %v8096 = vpack.c.b16 %v7943, %v7942
      %v8097 = vpack.c.b16 %v7945, %v7944
      %v8098 = vpack.c.b16 %v7947, %v7946
      %v8099 = vpack.c.b16 %v7949, %v7948
      %v8100 = vpack.c.b16 %v7951, %v7950
      %v8101 = vpack.c.b16 %v7953, %v7952
      %v8102 = vpack.c.b16 %v7955, %v7954
      %v8103 = vpack.c.b16 %v7957, %v7956
      %v8104 = vpack.c.b16 %v7959, %v7958
      %v8105 = vpack.c.b16 %v7961, %v7960
      %v8106 = vpack.c.b16 %v7963, %v7962
      %v8107 = vpack.c.b16 %v7965, %v7964
      %v8108 = vpack.c.b16 %v7967, %v7966
      %v8109 = vpack.c.b16 %v7969, %v7968
      %v8110 = vpack.c.b16 %v7971, %v7970
      %v8111 = vpack.c.b16 %v7973, %v7972
      %v8112 = vpack.c.b16 %v7975, %v7974
      %v8113 = vpack.c.b16 %v7977, %v7976
      %v8114 = vpack.c.b16 %v7979, %v7978
      %v8115 = vpack.c.b16 %v7981, %v7980
      %v8116 = vpack.c.b16 %v7983, %v7982
      %v8117 = vpack.c.b16 %v7985, %v7984
      %v8118 = vpack.c.b16 %v7987, %v7986
      %v8119 = vpack.c.b16 %v7989, %v7988
      %v8120 = vpack.c.b16 %v7991, %v7990
      %v8121 = vpack.c.b16 %v7993, %v7992
      %v8122 = vpack.c.b16 %v7995, %v7994
      %v8123 = vpack.c.b16 %v7997, %v7996
      %v8124 = vpack.c.b16 %v7999, %v7998
      %v8125 = vpack.c.b16 %v8001, %v8000
      %v8126 = vpack.c.b16 %v8003, %v8002
      %v8127 = vpack.c.b16 %v8005, %v8004
      %v8128 = vpack.c.b16 %v8007, %v8006
      %v8129 = vpack.c.b16 %v8009, %v8008
      %v8130 = vpack.c.b16 %v8011, %v8010
      %v8131 = vpack.c.b16 %v8013, %v8012
      %v8132 = vpack.c.b16 %v8015, %v8014
      %v8133 = vpack.c.b16 %v8017, %v8016
      %v8134 = vpack.c.b16 %v8019, %v8018
      %v8135 = vpack.c.b16 %v8021, %v8020
      %v8136 = vpack.c.b16 %v8023, %v8022
      %v8137 = vpack.c.b16 %v8025, %v8024
      %v8138 = vpack.c.b16 %v8027, %v8026
      %v8139 = vpack.c.b16 %v8029, %v8028
      %v8140 = vpack.c.b16 %v8031, %v8030
      %v8141 = vpack.c.b16 %v8033, %v8032
      %v8142 = vpack.c.b16 %v8035, %v8034
      %v8143 = vpack.c.b16 %v8037, %v8036
      %v8144 = vpack.c.b16 %v8039, %v8038
      %v8145 = vpack.c.b16 %v8041, %v8040
      %v8146 = vpack.c.b16 %v8043, %v8042
      %v8147 = vpack.c.b16 %v8045, %v8044
      %v8148 = vpack.c.b16 %v8047, %v8046
      %v8149 = vpack.c.b16 %v8049, %v8048
      %v8150 = vpack.c.b16 %v8051, %v8050
      %v8151 = vpack.c.b16 %v8053, %v8052
      %v8152 = vpack.c.b16 %v8055, %v8054
      %v8153 = vpack.c.b16 %v8057, %v8056
      %v8154 = vpack.c.b16 %v8059, %v8058
      %v8155 = vpack.c.b16 %v8061, %v8060
      %v8156 = vpack.c.b16 %v8063, %v8062
      %v8157 = vpack.c.b16 %v8065, %v8064
      %v8158 = vpack.c.b16 %v8067, %v8066
      %v8159 = vpack.c.b16 %v8069, %v8068
      %v8160 = vpack.c.b16 %v8071, %v8070
      %v8161 = vpack.c.b16 %v8073, %v8072
      %v8162 = vpack.c.b16 %v8075, %v8074
      %v8163 = vpack.c.b16 %v8077, %v8076
      %v8164 = vpack.c.b16 %v8079, %v8078
      %v8165 = vpack.c.b16 %v8081, %v8080
      %v8166 = vpack.c.b16 %v8083, %v8082
      %v8167 = vpack.c.b16 %v8085, %v8084
      %v8168 = vpack.c.b16 %v8087, %v8086
      %v8169 = vpack.c.b16 %v8089, %v8088
      %8250 = vmatprep.subr.bf16.mxu0 0
      %8251 = vmatpush1.bf16.msra.mxu0 %v8090
      %8252 = vmatprep.subr.bf16.mxu0 0
      %8253 = vmatpush1.bf16.msra.mxu0 %v8091
      %8254 = vmatprep.subr.bf16.mxu0 0
      %8255 = vmatpush1.bf16.msra.mxu0 %v8092
      %8256 = vmatprep.subr.bf16.mxu0 0
      %8257 = vmatpush1.bf16.msra.mxu0 %v8093
      %8258 = vmatprep.subr.bf16.mxu0 0
      %8259 = vmatpush1.bf16.msra.mxu0 %v8094
      %8260 = vmatprep.subr.bf16.mxu0 0
      %8261 = vmatpush1.bf16.msra.mxu0 %v8095
      %8262 = vmatprep.subr.bf16.mxu0 0
      %8263 = vmatpush1.bf16.msra.mxu0 %v8096
      %8264 = vmatprep.subr.bf16.mxu0 0
      %8265 = vmatpush1.bf16.msra.mxu0 %v8097
      %8266 = vmatprep.subr.bf16.mxu0 0
      %8267 = vmatpush1.bf16.msra.mxu0 %v8098
      %8268 = vmatprep.subr.bf16.mxu0 0
      %8269 = vmatpush1.bf16.msra.mxu0 %v8099
      %8270 = vmatprep.subr.bf16.mxu0 0
      %8271 = vmatpush1.bf16.msra.mxu0 %v8100
      %8272 = vmatprep.subr.bf16.mxu0 0
      %8273 = vmatpush1.bf16.msra.mxu0 %v8101
      %8274 = vmatprep.subr.bf16.mxu0 0
      %8275 = vmatpush1.bf16.msra.mxu0 %v8102
      %8276 = vmatprep.subr.bf16.mxu0 0
      %8277 = vmatpush1.bf16.msra.mxu0 %v8103
      %8278 = vmatprep.subr.bf16.mxu0 0
      %8279 = vmatpush1.bf16.msra.mxu0 %v8104
      %8280 = vmatprep.subr.bf16.mxu0 0
      %8281 = vmatpush1.bf16.msra.mxu0 %v8105
      %8282 = vmatprep.mubr.bf16.mxu0 %v7378
      %8283 = vmatmul.mubr.bf16.gmra.mrb[0].mxu0 %v7377
      %v8284 = vpop.f32.mrb[0].mxu0
      %v8285 = vadd.f32 %v7768, %v8284
      %v8286 = vpop.f32.mrb[0].mxu0
      %v8287 = vpop.f32.mrb[0].mxu0
      %v8288 = vadd.f32 %v7768, %v8287
      %v8289 = vpop.f32.mrb[0].mxu0
      %8290 = vdwg.mxu0
      %8291 = vmatprep.subr.bf16.mxu0 0
      %8292 = vmatpush1.bf16.msra.mxu0 %v8106
      %8293 = vmatprep.subr.bf16.mxu0 0
      %8294 = vmatpush1.bf16.msra.mxu0 %v8107
      %8295 = vmatprep.subr.bf16.mxu0 0
      %8296 = vmatpush1.bf16.msra.mxu0 %v8108
      %8297 = vmatprep.subr.bf16.mxu0 0
      %8298 = vmatpush1.bf16.msra.mxu0 %v8109
      %8299 = vmatprep.subr.bf16.mxu0 0
      %8300 = vmatpush1.bf16.msra.mxu0 %v8110
      %8301 = vmatprep.subr.bf16.mxu0 0
      %8302 = vmatpush1.bf16.msra.mxu0 %v8111
      %8303 = vmatprep.subr.bf16.mxu0 0
      %8304 = vmatpush1.bf16.msra.mxu0 %v8112
      %8305 = vmatprep.subr.bf16.mxu0 0
      %8306 = vmatpush1.bf16.msra.mxu0 %v8113
      %8307 = vmatprep.subr.bf16.mxu0 0
      %8308 = vmatpush1.bf16.msra.mxu0 %v8114
      %8309 = vmatprep.subr.bf16.mxu0 0
      %8310 = vmatpush1.bf16.msra.mxu0 %v8115
      %8311 = vmatprep.subr.bf16.mxu0 0
      %8312 = vmatpush1.bf16.msra.mxu0 %v8116
      %8313 = vmatprep.subr.bf16.mxu0 0
      %8314 = vmatpush1.bf16.msra.mxu0 %v8117
      %8315 = vmatprep.subr.bf16.mxu0 0
      %8316 = vmatpush1.bf16.msra.mxu0 %v8118
      %8317 = vmatprep.subr.bf16.mxu0 0
      %8318 = vmatpush1.bf16.msra.mxu0 %v8119
      %8319 = vmatprep.subr.bf16.mxu0 0
      %8320 = vmatpush1.bf16.msra.mxu0 %v8120
      %8321 = vmatprep.subr.bf16.mxu0 0
      %8322 = vmatpush1.bf16.msra.mxu0 %v8121
      %8323 = vmatprep.mubr.bf16.mxu0 %v7434
      %8324 = vmatmul.mubr.bf16.gmra.mrb[0].mxu0 %v7433
      %v8325 = vpop.f32.mrb[0].mxu0
      %v8326 = vadd.f32 %v8285, %v8325
      %v8327 = vpop.f32.mrb[0].mxu0
      %v8328 = vpop.f32.mrb[0].mxu0
      %v8329 = vadd.f32 %v8288, %v8328
      %v8330 = vpop.f32.mrb[0].mxu0
      %8331 = vdwg.mxu0
      %8332 = vmatprep.subr.bf16.mxu0 0
      %8333 = vmatpush1.bf16.msra.mxu0 %v8122
      %8334 = vmatprep.subr.bf16.mxu0 0
      %8335 = vmatpush1.bf16.msra.mxu0 %v8123
      %8336 = vmatprep.subr.bf16.mxu0 0
      %8337 = vmatpush1.bf16.msra.mxu0 %v8124
      %8338 = vmatprep.subr.bf16.mxu0 0
      %8339 = vmatpush1.bf16.msra.mxu0 %v8125
      %8340 = vmatprep.subr.bf16.mxu0 0
      %8341 = vmatpush1.bf16.msra.mxu0 %v8126
      %8342 = vmatprep.subr.bf16.mxu0 0
      %8343 = vmatpush1.bf16.msra.mxu0 %v8127
      %8344 = vmatprep.subr.bf16.mxu0 0
      %8345 = vmatpush1.bf16.msra.mxu0 %v8128
      %8346 = vmatprep.subr.bf16.mxu0 0
      %8347 = vmatpush1.bf16.msra.mxu0 %v8129
      %8348 = vmatprep.subr.bf16.mxu0 0
      %8349 = vmatpush1.bf16.msra.mxu0 %v8130
      %8350 = vmatprep.subr.bf16.mxu0 0
      %8351 = vmatpush1.bf16.msra.mxu0 %v8131
      %8352 = vmatprep.subr.bf16.mxu0 0
      %8353 = vmatpush1.bf16.msra.mxu0 %v8132
      %8354 = vmatprep.subr.bf16.mxu0 0
      %8355 = vmatpush1.bf16.msra.mxu0 %v8133
      %8356 = vmatprep.subr.bf16.mxu0 0
      %8357 = vmatpush1.bf16.msra.mxu0 %v8134
      %8358 = vmatprep.subr.bf16.mxu0 0
      %8359 = vmatpush1.bf16.msra.mxu0 %v8135
      %8360 = vmatprep.subr.bf16.mxu0 0
      %8361 = vmatpush1.bf16.msra.mxu0 %v8136
      %8362 = vmatprep.subr.bf16.mxu0 0
      %8363 = vmatpush1.bf16.msra.mxu0 %v8137
      %8364 = vmatprep.mubr.bf16.mxu0 %v7490
      %8365 = vmatmul.mubr.bf16.gmra.mrb[0].mxu0 %v7489
      %v8366 = vpop.f32.mrb[0].mxu0
      %v8367 = vadd.f32 %v8326, %v8366
      %v8368 = vpop.f32.mrb[0].mxu0
      %v8369 = vpop.f32.mrb[0].mxu0
      %v8370 = vadd.f32 %v8329, %v8369
      %v8371 = vpop.f32.mrb[0].mxu0
      %8372 = vdwg.mxu0
      %8373 = vmatprep.subr.bf16.mxu0 0
      %8374 = vmatpush1.bf16.msra.mxu0 %v8138
      %8375 = vmatprep.subr.bf16.mxu0 0
      %8376 = vmatpush1.bf16.msra.mxu0 %v8139
      %8377 = vmatprep.subr.bf16.mxu0 0
      %8378 = vmatpush1.bf16.msra.mxu0 %v8140
      %8379 = vmatprep.subr.bf16.mxu0 0
      %8380 = vmatpush1.bf16.msra.mxu0 %v8141
      %8381 = vmatprep.subr.bf16.mxu0 0
      %8382 = vmatpush1.bf16.msra.mxu0 %v8142
      %8383 = vmatprep.subr.bf16.mxu0 0
      %8384 = vmatpush1.bf16.msra.mxu0 %v8143
      %8385 = vmatprep.subr.bf16.mxu0 0
      %8386 = vmatpush1.bf16.msra.mxu0 %v8144
      %8387 = vmatprep.subr.bf16.mxu0 0
      %8388 = vmatpush1.bf16.msra.mxu0 %v8145
      %8389 = vmatprep.subr.bf16.mxu0 0
      %8390 = vmatpush1.bf16.msra.mxu0 %v8146
      %8391 = vmatprep.subr.bf16.mxu0 0
      %8392 = vmatpush1.bf16.msra.mxu0 %v8147
      %8393 = vmatprep.subr.bf16.mxu0 0
      %8394 = vmatpush1.bf16.msra.mxu0 %v8148
      %8395 = vmatprep.subr.bf16.mxu0 0
      %8396 = vmatpush1.bf16.msra.mxu0 %v8149
      %8397 = vmatprep.subr.bf16.mxu0 0
      %8398 = vmatpush1.bf16.msra.mxu0 %v8150
      %8399 = vmatprep.subr.bf16.mxu0 0
      %8400 = vmatpush1.bf16.msra.mxu0 %v8151
      %8401 = vmatprep.subr.bf16.mxu0 0
      %8402 = vmatpush1.bf16.msra.mxu0 %v8152
      %8403 = vmatprep.subr.bf16.mxu0 0
      %8404 = vmatpush1.bf16.msra.mxu0 %v8153
      %8405 = vmatprep.mubr.bf16.mxu0 %v7546
      %8406 = vmatmul.mubr.bf16.gmra.mrb[0].mxu0 %v7545
      %v8407 = vpop.f32.mrb[0].mxu0
      %v8408 = vadd.f32 %v8367, %v8407
      %v8409 = vpop.f32.mrb[0].mxu0
      %v8410 = vpop.f32.mrb[0].mxu0
      %v8411 = vadd.f32 %v8370, %v8410
      %v8412 = vpop.f32.mrb[0].mxu0
      %8413 = vdwg.mxu0
      %8414 = vmatprep.subr.bf16.mxu0 0
      %8415 = vmatpush1.bf16.msra.mxu0 %v8154
      %8416 = vmatprep.subr.bf16.mxu0 0
      %8417 = vmatpush1.bf16.msra.mxu0 %v8155
      %8418 = vmatprep.subr.bf16.mxu0 0
      %8419 = vmatpush1.bf16.msra.mxu0 %v8156
      %8420 = vmatprep.subr.bf16.mxu0 0
      %8421 = vmatpush1.bf16.msra.mxu0 %v8157
      %8422 = vmatprep.subr.bf16.mxu0 0
      %8423 = vmatpush1.bf16.msra.mxu0 %v8158
      %8424 = vmatprep.subr.bf16.mxu0 0
      %8425 = vmatpush1.bf16.msra.mxu0 %v8159
      %8426 = vmatprep.subr.bf16.mxu0 0
      %8427 = vmatpush1.bf16.msra.mxu0 %v8160
      %8428 = vmatprep.subr.bf16.mxu0 0
      %8429 = vmatpush1.bf16.msra.mxu0 %v8161
      %8430 = vmatprep.subr.bf16.mxu0 0
      %8431 = vmatpush1.bf16.msra.mxu0 %v8162
      %8432 = vmatprep.subr.bf16.mxu0 0
      %8433 = vmatpush1.bf16.msra.mxu0 %v8163
      %8434 = vmatprep.subr.bf16.mxu0 0
      %8435 = vmatpush1.bf16.msra.mxu0 %v8164
      %8436 = vmatprep.subr.bf16.mxu0 0
      %8437 = vmatpush1.bf16.msra.mxu0 %v8165
      %8438 = vmatprep.subr.bf16.mxu0 0
      %8439 = vmatpush1.bf16.msra.mxu0 %v8166
      %8440 = vmatprep.subr.bf16.mxu0 0
      %8441 = vmatpush1.bf16.msra.mxu0 %v8167
      %8442 = vmatprep.subr.bf16.mxu0 0
      %8443 = vmatpush1.bf16.msra.mxu0 %v8168
      %8444 = vmatprep.subr.bf16.mxu0 0
      %8445 = vmatpush1.bf16.msra.mxu0 %v8169
      %8446 = vmatprep.mubr.bf16.mxu0 %v7602
      %8447 = vmatmul.mubr.bf16.gmra.mrb[0].mxu0 %v7601
      %v8448 = vpop.f32.mrb[0].mxu0
      %v8449 = vadd.f32 %v8408, %v8448
      %v8450 = vpop.f32.mrb[0].mxu0
      %v8451 = vpop.f32.mrb[0].mxu0
      %v8452 = vadd.f32 %v8411, %v8451
      %v8453 = vpop.f32.mrb[0].mxu0
      %8454 = vdwg.mxu0
      %v8455 = vmax.f32 %v8449, 0.0
      %v8456 = vmax.f32 %v8452, 0.0
      %v8457 = vpack.c.bf16 %v8456, %v8455
      %v8458 = vld [vmem:[%s10] sm:$0xf]
      %v8460 = vsel %vm4314, %v8458, 0
      %8462 = vmatprep.subr.bf16.mxu0 0
      %8463 = vmatpush1.bf16.msra.mxu0 %v8457
      %8464 = vmatprep.subr.bf16.mxu0 0
      %8465 = vmatpush1.bf16.msra.mxu0 0
      %8466 = vmatprep.subr.bf16.mxu0 0
      %8467 = vmatpush1.bf16.msra.mxu0 0
      %8468 = vmatprep.subr.bf16.mxu0 0
      %8469 = vmatpush1.bf16.msra.mxu0 0
      %8470 = vmatprep.subr.bf16.mxu0 0
      %8471 = vmatpush1.bf16.msra.mxu0 0
      %8472 = vmatprep.subr.bf16.mxu0 0
      %8473 = vmatpush1.bf16.msra.mxu0 0
      %8474 = vmatprep.subr.bf16.mxu0 0
      %8475 = vmatpush1.bf16.msra.mxu0 0
      %8476 = vmatprep.subr.bf16.mxu0 0
      %8477 = vmatpush1.bf16.msra.mxu0 0
      %8478 = vmatprep.subr.bf16.mxu0 0
      %8479 = vmatpush1.bf16.msra.mxu0 0
      %8480 = vmatprep.subr.bf16.mxu0 0
      %8481 = vmatpush1.bf16.msra.mxu0 0
      %8482 = vmatprep.subr.bf16.mxu0 0
      %8483 = vmatpush1.bf16.msra.mxu0 0
      %8484 = vmatprep.subr.bf16.mxu0 0
      %8485 = vmatpush1.bf16.msra.mxu0 0
      %8486 = vmatprep.subr.bf16.mxu0 0
      %8487 = vmatpush1.bf16.msra.mxu0 0
      %8488 = vmatprep.subr.bf16.mxu0 0
      %8489 = vmatpush1.bf16.msra.mxu0 0
      %8490 = vmatprep.subr.bf16.mxu0 0
      %8491 = vmatpush1.bf16.msra.mxu0 0
      %8492 = vmatprep.subr.bf16.mxu0 0
      %8493 = vmatpush1.bf16.msra.mxu0 0
      %8494 = vmatprep.mubr.bf16.mxu0 0
      %8495 = vmatmul.mubr.bf16.gmra.mrb[0].mxu0 %v8460
      %v8496 = vpop.f32.mrb[0].mxu0
      %v8497 = vadd.f32 0.0, %v8496
      %v8498 = vpop.f32.mrb[0].mxu0
      %v8499 = vpop.f32.mrb[0].mxu0
      %v8500 = vpop.f32.mrb[0].mxu0
      %8501 = vdwg.mxu0
      %v8502 = vpack.c.bf16 %v8497, %v8497
      %s8503 = scalar_lea.vmem %s10, 4
      %v8504 = vld [vmem:[%s8503] sm:$0xf]
      %v8506 = vsel %vm4314, %v8504, 0
      %8508 = vmatprep.subr.bf16.mxu0 0
      %8509 = vmatpush1.bf16.msra.mxu0 %v8457
      %8510 = vmatprep.subr.bf16.mxu0 0
      %8511 = vmatpush1.bf16.msra.mxu0 0
      %8512 = vmatprep.subr.bf16.mxu0 0
      %8513 = vmatpush1.bf16.msra.mxu0 0
      %8514 = vmatprep.subr.bf16.mxu0 0
      %8515 = vmatpush1.bf16.msra.mxu0 0
      %8516 = vmatprep.subr.bf16.mxu0 0
      %8517 = vmatpush1.bf16.msra.mxu0 0
      %8518 = vmatprep.subr.bf16.mxu0 0
      %8519 = vmatpush1.bf16.msra.mxu0 0
      %8520 = vmatprep.subr.bf16.mxu0 0
      %8521 = vmatpush1.bf16.msra.mxu0 0
      %8522 = vmatprep.subr.bf16.mxu0 0
      %8523 = vmatpush1.bf16.msra.mxu0 0
      %8524 = vmatprep.subr.bf16.mxu0 0
      %8525 = vmatpush1.bf16.msra.mxu0 0
      %8526 = vmatprep.subr.bf16.mxu0 0
      %8527 = vmatpush1.bf16.msra.mxu0 0
      %8528 = vmatprep.subr.bf16.mxu0 0
      %8529 = vmatpush1.bf16.msra.mxu0 0
      %8530 = vmatprep.subr.bf16.mxu0 0
      %8531 = vmatpush1.bf16.msra.mxu0 0
      %8532 = vmatprep.subr.bf16.mxu0 0
      %8533 = vmatpush1.bf16.msra.mxu0 0
      %8534 = vmatprep.subr.bf16.mxu0 0
      %8535 = vmatpush1.bf16.msra.mxu0 0
      %8536 = vmatprep.subr.bf16.mxu0 0
      %8537 = vmatpush1.bf16.msra.mxu0 0
      %8538 = vmatprep.subr.bf16.mxu0 0
      %8539 = vmatpush1.bf16.msra.mxu0 0
      %8540 = vmatprep.mubr.bf16.mxu0 0
      %8541 = vmatmul.mubr.bf16.gmra.mrb[0].mxu0 %v8506
      %v8542 = vpop.f32.mrb[0].mxu0
      %v8543 = vadd.f32 0.0, %v8542
      %v8544 = vpop.f32.mrb[0].mxu0
      %v8545 = vpop.f32.mrb[0].mxu0
      %v8546 = vpop.f32.mrb[0].mxu0
      %8547 = vdwg.mxu0
      %v8548 = vpack.c.bf16 %v8543, %v8543
      %v8549 = vld [vmem:[%s11] sm:$0xf]
      %v8550 = vld [vmem:[%s11 + $0x4] sm:$0xf]
      %v8551 = vld [vmem:[%s11 + $0x8] sm:$0xf]
      %v8552 = vld [vmem:[%s11 + $0xc] sm:$0xf]
      %v8553 = vld [vmem:[%s11 + $0x10] sm:$0xf]
      %v8554 = vld [vmem:[%s11 + $0x14] sm:$0xf]
      %v8555 = vld [vmem:[%s11 + $0x18] sm:$0xf]
      %v8556 = vld [vmem:[%s11 + $0x1c] sm:$0xf]
      %v8557 = vld [vmem:[%s11 + $0x20] sm:$0xf]
      %v8558 = vld [vmem:[%s11 + $0x24] sm:$0xf]
      %v8559 = vld [vmem:[%s11 + $0x28] sm:$0xf]
      %v8560 = vld [vmem:[%s11 + $0x2c] sm:$0xf]
      %v8561 = vld [vmem:[%s11 + $0x30] sm:$0xf]
      %v8562 = vld [vmem:[%s11 + $0x34] sm:$0xf]
      %v8563 = vld [vmem:[%s11 + $0x38] sm:$0xf]
      %v8564 = vld [vmem:[%s11 + $0x3c] sm:$0xf]
      %v8565 = vld [vmem:[%s11 + $0x40] sm:$0xf]
      %v8566 = vld [vmem:[%s11 + $0x44] sm:$0xf]
      %v8567 = vld [vmem:[%s11 + $0x48] sm:$0xf]
      %v8568 = vld [vmem:[%s11 + $0x4c] sm:$0xf]
      %v8569 = vld [vmem:[%s11 + $0x50] sm:$0xf]
      %v8570 = vld [vmem:[%s11 + $0x54] sm:$0xf]
      %v8571 = vld [vmem:[%s11 + $0x58] sm:$0xf]
      %v8572 = vld [vmem:[%s11 + $0x5c] sm:$0xf]
      %v8573 = vld [vmem:[%s11 + $0x60] sm:$0xf]
      %v8574 = vld [vmem:[%s11 + $0x64] sm:$0xf]
      %v8575 = vld [vmem:[%s11 + $0x68] sm:$0xf]
      %v8576 = vld [vmem:[%s11 + $0x6c] sm:$0xf]
      %v8577 = vld [vmem:[%s11 + $0x70] sm:$0xf]
      %v8578 = vld [vmem:[%s11 + $0x74] sm:$0xf]
      %v8579 = vld [vmem:[%s11 + $0x78] sm:$0xf]
      %v8580 = vld [vmem:[%s11 + $0x7c] sm:$0xf]
      %v8581 = vld [vmem:[%s12] sm:$0x1]
      %v8583 = vlaneseq
      %v8584 = vshrl.u32 %v8583, 7
      %v8585 = vsub.s32 0, %v8584
      %v8586 = vrot.slane %v8581, %v8585
      %v8620 = vunpack.c.l.b16 %v8549
      %v8621 = vunpack.c.l.b16 %v8550
      %v8622 = vunpack.c.l.b16 %v8551
      %v8623 = vunpack.c.l.b16 %v8552
      %v8624 = vunpack.c.l.b16 %v8553
      %v8625 = vunpack.c.l.b16 %v8554
      %v8626 = vunpack.c.l.b16 %v8555
      %v8627 = vunpack.c.l.b16 %v8556
      %v8628 = vunpack.c.l.b16 %v8557
      %v8629 = vunpack.c.l.b16 %v8558
      %v8630 = vunpack.c.l.b16 %v8559
      %v8631 = vunpack.c.l.b16 %v8560
      %v8632 = vunpack.c.l.b16 %v8561
      %v8633 = vunpack.c.l.b16 %v8562
      %v8634 = vunpack.c.l.b16 %v8563
      %v8635 = vunpack.c.l.b16 %v8564
      %v8636 = vunpack.c.l.b16 %v8565
      %v8637 = vunpack.c.l.b16 %v8566
      %v8638 = vunpack.c.l.b16 %v8567
      %v8639 = vunpack.c.l.b16 %v8568
      %v8640 = vunpack.c.l.b16 %v8569
      %v8641 = vunpack.c.l.b16 %v8570
      %v8642 = vunpack.c.l.b16 %v8571
      %v8643 = vunpack.c.l.b16 %v8572
      %v8644 = vunpack.c.l.b16 %v8573
      %v8645 = vunpack.c.l.b16 %v8574
      %v8646 = vunpack.c.l.b16 %v8575
      %v8647 = vunpack.c.l.b16 %v8576
      %v8648 = vunpack.c.l.b16 %v8577
      %v8649 = vunpack.c.l.b16 %v8578
      %v8650 = vunpack.c.l.b16 %v8579
      %v8651 = vunpack.c.l.b16 %v8580
      %v8652 = vpack.c.b16 %v8621, %v8620
      %v8653 = vpack.c.b16 %v8623, %v8622
      %v8654 = vpack.c.b16 %v8625, %v8624
      %v8655 = vpack.c.b16 %v8627, %v8626
      %v8656 = vpack.c.b16 %v8629, %v8628
      %v8657 = vpack.c.b16 %v8631, %v8630
      %v8658 = vpack.c.b16 %v8633, %v8632
      %v8659 = vpack.c.b16 %v8635, %v8634
      %v8660 = vpack.c.b16 %v8637, %v8636
      %v8661 = vpack.c.b16 %v8639, %v8638
      %v8662 = vpack.c.b16 %v8641, %v8640
      %v8663 = vpack.c.b16 %v8643, %v8642
      %v8664 = vpack.c.b16 %v8645, %v8644
      %v8665 = vpack.c.b16 %v8647, %v8646
      %v8666 = vpack.c.b16 %v8649, %v8648
      %v8667 = vpack.c.b16 %v8651, %v8650
      %8684 = vmatprep.subr.bf16.mxu0 0
      %8685 = vmatpush1.bf16.msra.mxu0 %v8652
      %8686 = vmatprep.subr.bf16.mxu0 0
      %8687 = vmatpush1.bf16.msra.mxu0 %v8653
      %8688 = vmatprep.subr.bf16.mxu0 0
      %8689 = vmatpush1.bf16.msra.mxu0 %v8654
      %8690 = vmatprep.subr.bf16.mxu0 0
      %8691 = vmatpush1.bf16.msra.mxu0 %v8655
      %8692 = vmatprep.subr.bf16.mxu0 0
      %8693 = vmatpush1.bf16.msra.mxu0 %v8656
      %8694 = vmatprep.subr.bf16.mxu0 0
      %8695 = vmatpush1.bf16.msra.mxu0 %v8657
      %8696 = vmatprep.subr.bf16.mxu0 0
      %8697 = vmatpush1.bf16.msra.mxu0 %v8658
      %8698 = vmatprep.subr.bf16.mxu0 0
      %8699 = vmatpush1.bf16.msra.mxu0 %v8659
      %8700 = vmatprep.subr.bf16.mxu0 0
      %8701 = vmatpush1.bf16.msra.mxu0 %v8660
      %8702 = vmatprep.subr.bf16.mxu0 0
      %8703 = vmatpush1.bf16.msra.mxu0 %v8661
      %8704 = vmatprep.subr.bf16.mxu0 0
      %8705 = vmatpush1.bf16.msra.mxu0 %v8662
      %8706 = vmatprep.subr.bf16.mxu0 0
      %8707 = vmatpush1.bf16.msra.mxu0 %v8663
      %8708 = vmatprep.subr.bf16.mxu0 0
      %8709 = vmatpush1.bf16.msra.mxu0 %v8664
      %8710 = vmatprep.subr.bf16.mxu0 0
      %8711 = vmatpush1.bf16.msra.mxu0 %v8665
      %8712 = vmatprep.subr.bf16.mxu0 0
      %8713 = vmatpush1.bf16.msra.mxu0 %v8666
      %8714 = vmatprep.subr.bf16.mxu0 0
      %8715 = vmatpush1.bf16.msra.mxu0 %v8667
      %8716 = vmatprep.mubr.bf16.mxu0 %v8548
      %8717 = vmatmul.mubr.bf16.gmra.mrb[0].mxu0 %v8502
      %v8718 = vpop.f32.mrb[0].mxu0
      %v8719 = vadd.f32 %v8586, %v8718
      %v8720 = vpop.f32.mrb[0].mxu0
      %v8721 = vpop.f32.mrb[0].mxu0
      %v8722 = vpop.f32.mrb[0].mxu0
      %8723 = vdwg.mxu0
      %8724 = vst [vmem:[%s440] sm:$0xff] %v8719
      %p8725 = scmp.lt.s32.totalorder %s24, 1
      %s8726 = scalar_select %p8725, %s24, 1
      %s8727 = smul.addr %s8726, 8
      %s8728 = scalar_lea.vmem %s13, %s8727
      // Predicated region
      $region73: #{dqn_forward.1} parent=71 // pred_check
        %p8729 = pneg %p320
      $region74: #{dqn_forward.1} parent=71 // pred_check_branch
        %8731 = sbr.rel (%p8729) target = $region76
      $region75: #{dqn_forward.1} parent=71 // pred_region
        _
      $region76: #{dqn_forward.1} parent=71 // pred_fallthru
        _
    $region72: #{dqn_forward.1} parent=5 // pred_fallthru
      _
    %p8732 = scmp.le.s32.totalorder 2, %s19
    // Predicated region
    $region77: #{dqn_forward.1} parent=5 // pred_check
      %p8733 = pneg %p8732
    $region78: #{dqn_forward.1} parent=5 // pred_check_branch
      %8735 = sbr.rel (%p8733) target = $region80
    $region79: #{dqn_forward.1} parent=5 // pred_region
      %s8736 = ssub.s32 %s19, 2
      // Predicated region
      $region81: #{dqn_forward.1} parent=79 // pred_check
        %p8737 = pneg %p326
      $region82: #{dqn_forward.1} parent=79 // pred_check_branch
        %8739 = sbr.rel (%p8737) target = $region84
      $region83: #{dqn_forward.1} parent=79 // pred_region
        %p8740 = scmp.lt.s32.totalorder %s25, 1
        %s8741 = scalar_select %p8740, %s25, 1
        %s8742 = smul.addr %s8741, 8
        %s8743 = scalar_lea.vmem %s13, %s8742
      $region84: #{dqn_forward.1} parent=79 // pred_fallthru
        _
    $region80: #{dqn_forward.1} parent=5 // pred_fallthru
      _
  $region6: #{dqn_forward.1} parent=0 // loop_footer
    %s23 = sadd.s32 1, %s19
  $region7: #{dqn_forward.1} parent=0 // loop_footer_branch
    %18 = sbr.rel target = $region3
  $region8: #{dqn_forward.1} parent=0 // loop_exit
    _

</llo_original>
